<compile_context>
chip_gen: v5e
topology: v5e:2x2
jax: 0.10.0
libtpu: 0.0.40
codegen_flags: <defaults>
</compile_context>

<pallas_src>
import functools

import jax
import jax.numpy as jnp
from jax.experimental import pallas as pl
from jax.experimental.pallas import tpu as pltpu

NUM_CLASSES = 11
NUM_CLASSES_PADDED = 128     # lane-dense FC output; sliced back to NUM_CLASSES in the wrapper
EPS = 1e-5


# ---------------------------- fused Pallas kernel ----------------------------

def _mobilenet_fused_kernel(*refs, strides, stem_hw):
    """One grid step == `batch_tile` images.

    refs layout:
      [patches, stem_w, stem_shift, (dw_w, pw_w, shift) * n_blocks, fc_w, fc_b,  (inputs)
       out,                                                                       (output)
       pad_0 .. pad_{n_blocks-1}]                                                 (VMEM scratch)

    Activations live in VMEM scratch laid out as (H+2, W+2, batch_tile, C):
      * every 3x3 tap (stride 1 and stride 2) is a contiguous static slice,
      * (h, w, b) collapse into the matmul M dimension with a sublane-aligned
        reshape (batch_tile is a multiple of 8, so the last-two-dims layout is
        preserved exactly).
    """
    n_blocks = len(strides)
    it = iter(refs)
    patches_ref = next(it)                               # (Hs*Ws, B, 9*Cin)  f32
    stem_w_ref = next(it)                                # (9*Cin, 32)        bf16 (BN folded)
    stem_sh_ref = next(it)                               # (1, 32)            f32
    blk_refs = [(next(it), next(it), next(it)) for _ in range(n_blocks)]
    fc_w_ref = next(it)                                  # (256, 128)         bf16 (zero-pad cols)
    fc_b_ref = next(it)                                  # (1, 128)           f32
    o_ref = next(it)                                     # (B, 128)           f32
    pad_refs = [next(it) for _ in range(n_blocks)]       # zero-halo activation scratch

    batch = o_ref.shape[0]

    # ---- zero only the halo of each padded activation buffer (interiors are
    #      fully overwritten every step; done per step so it is megacore-safe). ----
    for p in pad_refs:
        hp, wp, _, c = p.shape
        zrow = jnp.zeros((1, wp, batch, c), jnp.float32)
        zcol = jnp.zeros((hp, 1, batch, c), jnp.float32)
        p[0:1, :, :, :] = zrow
        p[hp - 1:hp, :, :, :] = zrow
        p[:, 0:1, :, :] = zcol
        p[:, wp - 1:wp, :, :] = zcol

    # ---- stem: Conv2d(9, 32, k=3, s=2, p=1) + folded BN + ReLU as ONE im2col matmul ----
    hs = stem_hw
    c_stem = stem_w_ref.shape[-1]
    m0 = hs * hs * batch
    x0 = patches_ref[...].reshape(m0, patches_ref.shape[-1]).astype(jnp.bfloat16)
    y = jnp.dot(x0, stem_w_ref[...], preferred_element_type=jnp.float32)
    y = jnp.maximum(y + stem_sh_ref[...], 0.0)
    pad_refs[0][1:hs + 1, 1:hs + 1, :, :] = y.reshape(hs, hs, batch, c_stem)

    # ---- depthwise-separable blocks, each fully vectorized over (h, w, batch) ----
    h_in = hs
    pooled = None
    for bi, ((dw_ref, pw_ref, sh_ref), stride) in enumerate(zip(blk_refs, strides)):
        pin = pad_refs[bi]
        h_out = h_in // stride
        c_in = dw_ref.shape[-1]
        dw = dw_ref[...]          # (3, 3, c_in)  loaded once (hoisted out of tap loop)
        pw = pw_ref[...]          # (c_in, c_out) bf16, BN scale folded
        sh = sh_ref[...]          # (1, c_out)    f32

        acc = None
        for kh in range(3):
            for kw in range(3):
                if stride == 1:
                    tap = pin[kh:kh + h_out, kw:kw + h_out, :, :]
                else:
                    # stride-2: contiguous slab load, parity select on leading
                    # (un-tiled) spatial dims -- no strided ref reads.
                    slab = pin[kh:kh + 2 * h_out, kw:kw + 2 * h_out, :, :]
                    slab = slab.reshape(h_out, 2, h_out, 2, batch, c_in)
                    tap = slab[:, 0, :, 0, :, :]
                term = tap * dw[kh, kw]                 # f32 depthwise MAC on the VPU
                acc = term if acc is None else acc + term

        m = h_out * h_out * batch
        y = jnp.dot(acc.reshape(m, c_in).astype(jnp.bfloat16), pw,
                    preferred_element_type=jnp.float32)
        y = jnp.maximum(y + sh, 0.0)
        c_out = y.shape[-1]
        if bi + 1 < n_blocks:
            pad_refs[bi + 1][1:h_out + 1, 1:h_out + 1, :, :] = (
                y.reshape(h_out, h_out, batch, c_out))
        else:
            # Fused AdaptiveAvgPool2d(1): mean over the (tiny) spatial extent.
            pooled = jnp.sum(y.reshape(h_out, h_out, batch, c_out), axis=(0, 1))
            pooled = pooled * (1.0 / float(h_out * h_out))
        h_in = h_out

    # ---- Linear(256, NUM_CLASSES), output lane-padded to 128 ----
    logits = jnp.dot(pooled.astype(jnp.bfloat16), fc_w_ref[...],
                     preferred_element_type=jnp.float32) + fc_b_ref[...]
    o_ref[...] = logits


# ------------------------------ wrapper ------------------------------

def mobilenet_forward(x_nchw, params, batch_tile=8):
    assert batch_tile % 8 == 0, "batch_tile must be a multiple of 8 (sublane alignment)"
    x = jnp.transpose(x_nchw, (0, 2, 3, 1)).astype(jnp.float32)      # NCHW -> NHWC
    n, h, w, c_in = x.shape
    assert h == w and h % 2 == 0, "spatial size must be square and even"
    assert c_in == params["stem_w"].shape[2]

    strides = tuple(int(b["stride"]) for b in params["blocks"])
    n_blocks = len(strides)

    # Spatial schedule: sizes[i] = input spatial size of block i (sizes[0] = stem out).
    hs = h // 2
    sizes = [hs]
    cur = hs
    for s in strides:
        assert cur % s == 0, "spatial size not divisible by the stride schedule"
        cur //= s
        sizes.append(cur)

    # Pad the batch to a multiple of batch_tile (extra images are zeros, sliced off).
    n_pad = pl.cdiv(n, batch_tile) * batch_tile
    if n_pad != n:
        x = jnp.pad(x, ((0, n_pad - n), (0, 0), (0, 0), (0, 0)))

    # Wrapper-side im2col for the stride-2 stem (pure layout plumbing): lets the
    # kernel do one (M, 9*Cin) @ (9*Cin, 32) matmul instead of 9 K=9 tap matmuls.
    xp = jnp.pad(x, ((0, 0), (1, 1), (1, 1), (0, 0)))
    taps = [xp[:, kh:kh + h:2, kw:kw + w:2, :] for kh in range(3) for kw in range(3)]
    patches = jnp.concatenate(taps, axis=-1)                          # (n_pad, hs, hs, 9*Cin)
    patches = jnp.transpose(patches, (1, 2, 0, 3)).reshape(hs * hs, n_pad, 9 * c_in)

    # Fold BatchNorm scale into the conv / pointwise weights; bf16 MXU feeds.
    stem_w = params["stem_w"] * params["stem_scale"][None, None, None, :]
    stem_w = stem_w.reshape(9 * c_in, -1).astype(jnp.bfloat16)
    stem_sh = params["stem_shift"].reshape(1, -1).astype(jnp.float32)
    weight_args = [stem_w, stem_sh]
    for blk in params["blocks"]:
        weight_args += [
            blk["dw_w"].astype(jnp.float32),                              # depthwise stays f32
            (blk["pw_w"] * blk["scale"][None, :]).astype(jnp.bfloat16),   # BN scale folded
            blk["shift"].reshape(1, -1).astype(jnp.float32),
        ]
    fc_w = jnp.zeros((params["fc_w"].shape[0], NUM_CLASSES_PADDED), jnp.float32)
    fc_w = fc_w.at[:, :NUM_CLASSES].set(params["fc_w"])
    fc_b = jnp.zeros((1, NUM_CLASSES_PADDED), jnp.float32)
    fc_b = fc_b.at[0, :NUM_CLASSES].set(params["fc_b"])
    weight_args += [fc_w.astype(jnp.bfloat16), fc_b]

    # One zero-halo activation buffer per conv output consumed by a later 3x3 conv.
    out_chans = [params["stem_w"].shape[-1]] + [b["pw_w"].shape[-1]
                                                for b in params["blocks"][:-1]]
    out_sizes = sizes[:n_blocks]
    scratch_shapes = [pltpu.VMEM((sz + 2, sz + 2, batch_tile, ch), jnp.float32)
                      for sz, ch in zip(out_sizes, out_chans)]

    def _full_spec(arr):
        nd = arr.ndim
        return pl.BlockSpec(arr.shape, lambda i, _nd=nd: (0,) * _nd)

    in_specs = [pl.BlockSpec((hs * hs, batch_tile, 9 * c_in), lambda i: (0, i, 0))]
    in_specs += [_full_spec(a) for a in weight_args]
    out_spec = pl.BlockSpec((batch_tile, NUM_CLASSES_PADDED), lambda i: (i, 0))

    out = pl.pallas_call(
        functools.partial(_mobilenet_fused_kernel, strides=strides, stem_hw=hs),
        out_shape=jax.ShapeDtypeStruct((n_pad, NUM_CLASSES_PADDED), jnp.float32),
        grid=(n_pad // batch_tile,),
        in_specs=in_specs,
        out_specs=out_spec,
        scratch_shapes=scratch_shapes,
        compiler_params=pltpu.CompilerParams(dimension_semantics=("parallel",)),
    )(patches, *weight_args)
    return out[:n, :NUM_CLASSES]


# ------------------------------ params & reference ------------------------------

def init_params(key):
    def conv_w(k, shape, fan_in):
        return jax.random.normal(k, shape, jnp.float32) * jnp.sqrt(2.0 / fan_in)

    def bn(k, c):
        k1, k2, k3, k4 = jax.random.split(k, 4)
        gamma = jax.random.uniform(k1, (c,), jnp.float32, 0.5, 1.5)
        beta = jax.random.normal(k2, (c,), jnp.float32) * 0.1
        mean = jax.random.normal(k3, (c,), jnp.float32) * 0.1
        var = jax.random.uniform(k4, (c,), jnp.float32, 0.5, 1.5)
        scale = gamma / jnp.sqrt(var + EPS)
        shift = beta - mean * scale
        return scale, shift

    keys = iter(jax.random.split(key, 32))
    params = {}
    # Stem conv: Conv2d(9, 32, k=3, s=2, p=1, bias=False)  (weights stored HWIO)
    params["stem_w"] = conv_w(next(keys), (3, 3, 9, 32), 3 * 3 * 9)
    params["stem_scale"], params["stem_shift"] = bn(next(keys), 32)
    cfg = [(32, 64, 1), (64, 128, 2), (128, 128, 1), (128, 256, 2), (256, 256, 1)]
    blocks = []
    for cin, cout, stride in cfg:
        blocks.append(dict(
            dw_w=conv_w(next(keys), (3, 3, cin), 9),       # depthwise (kh, kw, C)
            pw_w=conv_w(next(keys), (cin, cout), cin),     # pointwise (Cin, Cout)
            stride=stride,
        ))
        blocks[-1]["scale"], blocks[-1]["shift"] = bn(next(keys), cout)
    params["blocks"] = blocks
    params["fc_w"] = jax.random.normal(next(keys), (256, NUM_CLASSES), jnp.float32) / jnp.sqrt(256.0)
    params["fc_b"] = jax.random.normal(next(keys), (NUM_CLASSES,), jnp.float32) * 0.01
    return params


def reference_forward(x_nchw, params):
    """Pure-JAX f32 reference (eval-mode BN) for correctness checking."""
    x = jnp.transpose(x_nchw, (0, 2, 3, 1)).astype(jnp.float32)
    dn = ("NHWC", "HWIO", "NHWC")
    y = jax.lax.conv_general_dilated(x, params["stem_w"], (2, 2), ((1, 1), (1, 1)),
                                     dimension_numbers=dn)
    x = jnp.maximum(y * params["stem_scale"] + params["stem_shift"], 0.0)
    for blk in params["blocks"]:
        c = x.shape[-1]
        s = blk["stride"]
        y = jax.lax.conv_general_dilated(x, blk["dw_w"][:, :, None, :], (s, s),
                                         ((1, 1), (1, 1)), dimension_numbers=dn,
                                         feature_group_count=c)
        y = jnp.einsum("nhwc,cd->nhwd", y, blk["pw_w"])
        x = jnp.maximum(y * blk["scale"] + blk["shift"], 0.0)
    pooled = jnp.mean(x, axis=(1, 2))
    return pooled @ params["fc_w"] + params["fc_b"]


if __name__ == "__main__":
    key = jax.random.PRNGKey(0)
    kx, kp = jax.random.split(key)
    # PyTorch-style NCHW input: batch=2, channels=9 (fixed by the stem conv), 16x16 spectrogram.
    x = jax.random.normal(kx, (2, 9, 16, 16), jnp.float32)
    params = init_params(kp)

    logits = jax.block_until_ready(mobilenet_forward(x, params))
    assert logits.shape == (2, NUM_CLASSES), logits.shape

    ref = jax.block_until_ready(reference_forward(x, params))
    # bf16 MXU feeds with f32 accumulation vs f32 reference (depthwise stays f32).
    if not bool(jnp.allclose(logits, ref, rtol=5e-2, atol=5e-2)):
        raise AssertionError(f"mismatch vs reference, max abs err={jnp.max(jnp.abs(logits - ref))}")

    print("KERNEL_OK")
</pallas_src>

<mosaic_0001>
module attributes {stable_mosaic.version = 11 : i64} {
  func.func @_mobilenet_fused_kernel(%arg0: i32, %arg1: memref<64x8x81xf32, #tpu.memory_space<vmem>>, %arg2: memref<81x32xbf16, #tpu.memory_space<vmem>>, %arg3: memref<1x32xf32, #tpu.memory_space<vmem>>, %arg4: memref<3x3x32xf32, #tpu.memory_space<vmem>>, %arg5: memref<32x64xbf16, #tpu.memory_space<vmem>>, %arg6: memref<1x64xf32, #tpu.memory_space<vmem>>, %arg7: memref<3x3x64xf32, #tpu.memory_space<vmem>>, %arg8: memref<64x128xbf16, #tpu.memory_space<vmem>>, %arg9: memref<1x128xf32, #tpu.memory_space<vmem>>, %arg10: memref<3x3x128xf32, #tpu.memory_space<vmem>>, %arg11: memref<128x128xbf16, #tpu.memory_space<vmem>>, %arg12: memref<1x128xf32, #tpu.memory_space<vmem>>, %arg13: memref<3x3x128xf32, #tpu.memory_space<vmem>>, %arg14: memref<128x256xbf16, #tpu.memory_space<vmem>>, %arg15: memref<1x256xf32, #tpu.memory_space<vmem>>, %arg16: memref<3x3x256xf32, #tpu.memory_space<vmem>>, %arg17: memref<256x256xbf16, #tpu.memory_space<vmem>>, %arg18: memref<1x256xf32, #tpu.memory_space<vmem>>, %arg19: memref<256x128xbf16, #tpu.memory_space<vmem>>, %arg20: memref<1x128xf32, #tpu.memory_space<vmem>>, %arg21: memref<8x128xf32, #tpu.memory_space<vmem>>, %arg22: memref<10x10x8x32xf32, #tpu.memory_space<vmem>>, %arg23: memref<10x10x8x64xf32, #tpu.memory_space<vmem>>, %arg24: memref<6x6x8x128xf32, #tpu.memory_space<vmem>>, %arg25: memref<6x6x8x128xf32, #tpu.memory_space<vmem>>, %arg26: memref<4x4x8x256xf32, #tpu.memory_space<vmem>>) attributes {dimension_semantics = [#tpu.dimension_semantics<parallel>], iteration_bounds = array<i64: 1>, scalar_prefetch = 0 : i64, scratch_operands = 5 : i64, tpu.core_type = #tpu.core_type<tc>, window_params = [{transform_indices = @transform_0, window_bounds = array<i64: 64, 8, 81>}, {pipeline_mode = #tpu.pipeline_mode<synchronous>, transform_indices = @transform_1, window_bounds = array<i64: 81, 32>}, {pipeline_mode = #tpu.pipeline_mode<synchronous>, transform_indices = @transform_2, window_bounds = array<i64: 1, 32>}, {pipeline_mode = #tpu.pipeline_mode<synchronous>, transform_indices = @transform_3, window_bounds = array<i64: 3, 3, 32>}, {pipeline_mode = #tpu.pipeline_mode<synchronous>, transform_indices = @transform_4, window_bounds = array<i64: 32, 64>}, {pipeline_mode = #tpu.pipeline_mode<synchronous>, transform_indices = @transform_5, window_bounds = array<i64: 1, 64>}, {pipeline_mode = #tpu.pipeline_mode<synchronous>, transform_indices = @transform_6, window_bounds = array<i64: 3, 3, 64>}, {pipeline_mode = #tpu.pipeline_mode<synchronous>, transform_indices = @transform_7, window_bounds = array<i64: 64, 128>}, {pipeline_mode = #tpu.pipeline_mode<synchronous>, transform_indices = @transform_8, window_bounds = array<i64: 1, 128>}, {pipeline_mode = #tpu.pipeline_mode<synchronous>, transform_indices = @transform_9, window_bounds = array<i64: 3, 3, 128>}, {pipeline_mode = #tpu.pipeline_mode<synchronous>, transform_indices = @transform_10, window_bounds = array<i64: 128, 128>}, {pipeline_mode = #tpu.pipeline_mode<synchronous>, transform_indices = @transform_11, window_bounds = array<i64: 1, 128>}, {pipeline_mode = #tpu.pipeline_mode<synchronous>, transform_indices = @transform_12, window_bounds = array<i64: 3, 3, 128>}, {pipeline_mode = #tpu.pipeline_mode<synchronous>, transform_indices = @transform_13, window_bounds = array<i64: 128, 256>}, {pipeline_mode = #tpu.pipeline_mode<synchronous>, transform_indices = @transform_14, window_bounds = array<i64: 1, 256>}, {pipeline_mode = #tpu.pipeline_mode<synchronous>, transform_indices = @transform_15, window_bounds = array<i64: 3, 3, 256>}, {pipeline_mode = #tpu.pipeline_mode<synchronous>, transform_indices = @transform_16, window_bounds = array<i64: 256, 256>}, {pipeline_mode = #tpu.pipeline_mode<synchronous>, transform_indices = @transform_17, window_bounds = array<i64: 1, 256>}, {pipeline_mode = #tpu.pipeline_mode<synchronous>, transform_indices = @transform_18, window_bounds = array<i64: 256, 128>}, {pipeline_mode = #tpu.pipeline_mode<synchronous>, transform_indices = @transform_19, window_bounds = array<i64: 1, 128>}, {transform_indices = @transform_20, window_bounds = array<i64: 8, 128>}]} {
    %cst = arith.constant 0.000000e+00 : f32
    %0 = vector.broadcast %cst : f32 to vector<1x10x8x32xf32>
    %cst_0 = arith.constant 0.000000e+00 : f32
    %1 = vector.broadcast %cst_0 : f32 to vector<10x1x8x32xf32>
    %c0 = arith.constant 0 : index
    %c0_1 = arith.constant 0 : index
    %c0_2 = arith.constant 0 : index
    %c0_3 = arith.constant 0 : index
    %2 = vector.load %arg22[%c0, %c0_1, %c0_2, %c0_3] : memref<10x10x8x32xf32, #tpu.memory_space<vmem>>, vector<1x10x8x32xf32>
    tpu.vector_store %arg22[%c0, %c0_1, %c0_2, %c0_3], %0 {strides = array<i32>} : memref<10x10x8x32xf32, #tpu.memory_space<vmem>>, vector<1x10x8x32xf32>,
    %c9 = arith.constant 9 : index
    %c0_4 = arith.constant 0 : index
    %c0_5 = arith.constant 0 : index
    %c0_6 = arith.constant 0 : index
    %3 = vector.load %arg22[%c9, %c0_4, %c0_5, %c0_6] : memref<10x10x8x32xf32, #tpu.memory_space<vmem>>, vector<1x10x8x32xf32>
    tpu.vector_store %arg22[%c9, %c0_4, %c0_5, %c0_6], %0 {strides = array<i32>} : memref<10x10x8x32xf32, #tpu.memory_space<vmem>>, vector<1x10x8x32xf32>,
    %c0_7 = arith.constant 0 : index
    %c0_8 = arith.constant 0 : index
    %c0_9 = arith.constant 0 : index
    %c0_10 = arith.constant 0 : index
    %4 = vector.load %arg22[%c0_7, %c0_8, %c0_9, %c0_10] : memref<10x10x8x32xf32, #tpu.memory_space<vmem>>, vector<10x1x8x32xf32>
    tpu.vector_store %arg22[%c0_7, %c0_8, %c0_9, %c0_10], %1 {strides = array<i32>} : memref<10x10x8x32xf32, #tpu.memory_space<vmem>>, vector<10x1x8x32xf32>,
    %c0_11 = arith.constant 0 : index
    %c9_12 = arith.constant 9 : index
    %c0_13 = arith.constant 0 : index
    %c0_14 = arith.constant 0 : index
    %5 = vector.load %arg22[%c0_11, %c9_12, %c0_13, %c0_14] : memref<10x10x8x32xf32, #tpu.memory_space<vmem>>, vector<10x1x8x32xf32>
    tpu.vector_store %arg22[%c0_11, %c9_12, %c0_13, %c0_14], %1 {strides = array<i32>} : memref<10x10x8x32xf32, #tpu.memory_space<vmem>>, vector<10x1x8x32xf32>,
    %cst_15 = arith.constant 0.000000e+00 : f32
    %6 = vector.broadcast %cst_15 : f32 to vector<1x10x8x64xf32>
    %cst_16 = arith.constant 0.000000e+00 : f32
    %7 = vector.broadcast %cst_16 : f32 to vector<10x1x8x64xf32>
    %c0_17 = arith.constant 0 : index
    %c0_18 = arith.constant 0 : index
    %c0_19 = arith.constant 0 : index
    %c0_20 = arith.constant 0 : index
    %8 = vector.load %arg23[%c0_17, %c0_18, %c0_19, %c0_20] : memref<10x10x8x64xf32, #tpu.memory_space<vmem>>, vector<1x10x8x64xf32>
    tpu.vector_store %arg23[%c0_17, %c0_18, %c0_19, %c0_20], %6 {strides = array<i32>} : memref<10x10x8x64xf32, #tpu.memory_space<vmem>>, vector<1x10x8x64xf32>,
    %c9_21 = arith.constant 9 : index
    %c0_22 = arith.constant 0 : index
    %c0_23 = arith.constant 0 : index
    %c0_24 = arith.constant 0 : index
    %9 = vector.load %arg23[%c9_21, %c0_22, %c0_23, %c0_24] : memref<10x10x8x64xf32, #tpu.memory_space<vmem>>, vector<1x10x8x64xf32>
    tpu.vector_store %arg23[%c9_21, %c0_22, %c0_23, %c0_24], %6 {strides = array<i32>} : memref<10x10x8x64xf32, #tpu.memory_space<vmem>>, vector<1x10x8x64xf32>,
    %c0_25 = arith.constant 0 : index
    %c0_26 = arith.constant 0 : index
    %c0_27 = arith.constant 0 : index
    %c0_28 = arith.constant 0 : index
    %10 = vector.load %arg23[%c0_25, %c0_26, %c0_27, %c0_28] : memref<10x10x8x64xf32, #tpu.memory_space<vmem>>, vector<10x1x8x64xf32>
    tpu.vector_store %arg23[%c0_25, %c0_26, %c0_27, %c0_28], %7 {strides = array<i32>} : memref<10x10x8x64xf32, #tpu.memory_space<vmem>>, vector<10x1x8x64xf32>,
    %c0_29 = arith.constant 0 : index
    %c9_30 = arith.constant 9 : index
    %c0_31 = arith.constant 0 : index
    %c0_32 = arith.constant 0 : index
    %11 = vector.load %arg23[%c0_29, %c9_30, %c0_31, %c0_32] : memref<10x10x8x64xf32, #tpu.memory_space<vmem>>, vector<10x1x8x64xf32>
    tpu.vector_store %arg23[%c0_29, %c9_30, %c0_31, %c0_32], %7 {strides = array<i32>} : memref<10x10x8x64xf32, #tpu.memory_space<vmem>>, vector<10x1x8x64xf32>,
    %cst_33 = arith.constant 0.000000e+00 : f32
    %12 = vector.broadcast %cst_33 : f32 to vector<1x6x8x128xf32>
    %cst_34 = arith.constant 0.000000e+00 : f32
    %13 = vector.broadcast %cst_34 : f32 to vector<6x1x8x128xf32>
    %c0_35 = arith.constant 0 : index
    %c0_36 = arith.constant 0 : index
    %c0_37 = arith.constant 0 : index
    %c0_38 = arith.constant 0 : index
    %14 = vector.load %arg24[%c0_35, %c0_36, %c0_37, %c0_38] : memref<6x6x8x128xf32, #tpu.memory_space<vmem>>, vector<1x6x8x128xf32>
    tpu.vector_store %arg24[%c0_35, %c0_36, %c0_37, %c0_38], %12 {strides = array<i32>} : memref<6x6x8x128xf32, #tpu.memory_space<vmem>>, vector<1x6x8x128xf32>,
    %c5 = arith.constant 5 : index
    %c0_39 = arith.constant 0 : index
    %c0_40 = arith.constant 0 : index
    %c0_41 = arith.constant 0 : index
    %15 = vector.load %arg24[%c5, %c0_39, %c0_40, %c0_41] : memref<6x6x8x128xf32, #tpu.memory_space<vmem>>, vector<1x6x8x128xf32>
    tpu.vector_store %arg24[%c5, %c0_39, %c0_40, %c0_41], %12 {strides = array<i32>} : memref<6x6x8x128xf32, #tpu.memory_space<vmem>>, vector<1x6x8x128xf32>,
    %c0_42 = arith.constant 0 : index
    %c0_43 = arith.constant 0 : index
    %c0_44 = arith.constant 0 : index
    %c0_45 = arith.constant 0 : index
    %16 = vector.load %arg24[%c0_42, %c0_43, %c0_44, %c0_45] : memref<6x6x8x128xf32, #tpu.memory_space<vmem>>, vector<6x1x8x128xf32>
    tpu.vector_store %arg24[%c0_42, %c0_43, %c0_44, %c0_45], %13 {strides = array<i32>} : memref<6x6x8x128xf32, #tpu.memory_space<vmem>>, vector<6x1x8x128xf32>,
    %c0_46 = arith.constant 0 : index
    %c5_47 = arith.constant 5 : index
    %c0_48 = arith.constant 0 : index
    %c0_49 = arith.constant 0 : index
    %17 = vector.load %arg24[%c0_46, %c5_47, %c0_48, %c0_49] : memref<6x6x8x128xf32, #tpu.memory_space<vmem>>, vector<6x1x8x128xf32>
    tpu.vector_store %arg24[%c0_46, %c5_47, %c0_48, %c0_49], %13 {strides = array<i32>} : memref<6x6x8x128xf32, #tpu.memory_space<vmem>>, vector<6x1x8x128xf32>,
    %cst_50 = arith.constant 0.000000e+00 : f32
    %18 = vector.broadcast %cst_50 : f32 to vector<1x6x8x128xf32>
    %cst_51 = arith.constant 0.000000e+00 : f32
    %19 = vector.broadcast %cst_51 : f32 to vector<6x1x8x128xf32>
    %c0_52 = arith.constant 0 : index
    %c0_53 = arith.constant 0 : index
    %c0_54 = arith.constant 0 : index
    %c0_55 = arith.constant 0 : index
    %20 = vector.load %arg25[%c0_52, %c0_53, %c0_54, %c0_55] : memref<6x6x8x128xf32, #tpu.memory_space<vmem>>, vector<1x6x8x128xf32>
    tpu.vector_store %arg25[%c0_52, %c0_53, %c0_54, %c0_55], %18 {strides = array<i32>} : memref<6x6x8x128xf32, #tpu.memory_space<vmem>>, vector<1x6x8x128xf32>,
    %c5_56 = arith.constant 5 : index
    %c0_57 = arith.constant 0 : index
    %c0_58 = arith.constant 0 : index
    %c0_59 = arith.constant 0 : index
    %21 = vector.load %arg25[%c5_56, %c0_57, %c0_58, %c0_59] : memref<6x6x8x128xf32, #tpu.memory_space<vmem>>, vector<1x6x8x128xf32>
    tpu.vector_store %arg25[%c5_56, %c0_57, %c0_58, %c0_59], %18 {strides = array<i32>} : memref<6x6x8x128xf32, #tpu.memory_space<vmem>>, vector<1x6x8x128xf32>,
    %c0_60 = arith.constant 0 : index
    %c0_61 = arith.constant 0 : index
    %c0_62 = arith.constant 0 : index
    %c0_63 = arith.constant 0 : index
    %22 = vector.load %arg25[%c0_60, %c0_61, %c0_62, %c0_63] : memref<6x6x8x128xf32, #tpu.memory_space<vmem>>, vector<6x1x8x128xf32>
    tpu.vector_store %arg25[%c0_60, %c0_61, %c0_62, %c0_63], %19 {strides = array<i32>} : memref<6x6x8x128xf32, #tpu.memory_space<vmem>>, vector<6x1x8x128xf32>,
    %c0_64 = arith.constant 0 : index
    %c5_65 = arith.constant 5 : index
    %c0_66 = arith.constant 0 : index
    %c0_67 = arith.constant 0 : index
    %23 = vector.load %arg25[%c0_64, %c5_65, %c0_66, %c0_67] : memref<6x6x8x128xf32, #tpu.memory_space<vmem>>, vector<6x1x8x128xf32>
    tpu.vector_store %arg25[%c0_64, %c5_65, %c0_66, %c0_67], %19 {strides = array<i32>} : memref<6x6x8x128xf32, #tpu.memory_space<vmem>>, vector<6x1x8x128xf32>,
    %cst_68 = arith.constant 0.000000e+00 : f32
    %24 = vector.broadcast %cst_68 : f32 to vector<1x4x8x256xf32>
    %cst_69 = arith.constant 0.000000e+00 : f32
    %25 = vector.broadcast %cst_69 : f32 to vector<4x1x8x256xf32>
    %c0_70 = arith.constant 0 : index
    %c0_71 = arith.constant 0 : index
    %c0_72 = arith.constant 0 : index
    %c0_73 = arith.constant 0 : index
    %26 = vector.load %arg26[%c0_70, %c0_71, %c0_72, %c0_73] : memref<4x4x8x256xf32, #tpu.memory_space<vmem>>, vector<1x4x8x256xf32>
    tpu.vector_store %arg26[%c0_70, %c0_71, %c0_72, %c0_73], %24 {strides = array<i32>} : memref<4x4x8x256xf32, #tpu.memory_space<vmem>>, vector<1x4x8x256xf32>,
    %c3 = arith.constant 3 : index
    %c0_74 = arith.constant 0 : index
    %c0_75 = arith.constant 0 : index
    %c0_76 = arith.constant 0 : index
    %27 = vector.load %arg26[%c3, %c0_74, %c0_75, %c0_76] : memref<4x4x8x256xf32, #tpu.memory_space<vmem>>, vector<1x4x8x256xf32>
    tpu.vector_store %arg26[%c3, %c0_74, %c0_75, %c0_76], %24 {strides = array<i32>} : memref<4x4x8x256xf32, #tpu.memory_space<vmem>>, vector<1x4x8x256xf32>,
    %c0_77 = arith.constant 0 : index
    %c0_78 = arith.constant 0 : index
    %c0_79 = arith.constant 0 : index
    %c0_80 = arith.constant 0 : index
    %28 = vector.load %arg26[%c0_77, %c0_78, %c0_79, %c0_80] : memref<4x4x8x256xf32, #tpu.memory_space<vmem>>, vector<4x1x8x256xf32>
    tpu.vector_store %arg26[%c0_77, %c0_78, %c0_79, %c0_80], %25 {strides = array<i32>} : memref<4x4x8x256xf32, #tpu.memory_space<vmem>>, vector<4x1x8x256xf32>,
    %c0_81 = arith.constant 0 : index
    %c3_82 = arith.constant 3 : index
    %c0_83 = arith.constant 0 : index
    %c0_84 = arith.constant 0 : index
    %29 = vector.load %arg26[%c0_81, %c3_82, %c0_83, %c0_84] : memref<4x4x8x256xf32, #tpu.memory_space<vmem>>, vector<4x1x8x256xf32>
    tpu.vector_store %arg26[%c0_81, %c3_82, %c0_83, %c0_84], %25 {strides = array<i32>} : memref<4x4x8x256xf32, #tpu.memory_space<vmem>>, vector<4x1x8x256xf32>,
    %c0_85 = arith.constant 0 : index
    %c0_86 = arith.constant 0 : index
    %c0_87 = arith.constant 0 : index
    %30 = vector.load %arg1[%c0_85, %c0_86, %c0_87] : memref<64x8x81xf32, #tpu.memory_space<vmem>>, vector<64x8x81xf32>
    %31 = vector.shape_cast %30 : vector<64x8x81xf32> to vector<512x81xf32>
    %32 = arith.truncf %31 : vector<512x81xf32> to vector<512x81xbf16>
    %c0_88 = arith.constant 0 : index
    %c0_89 = arith.constant 0 : index
    %33 = vector.load %arg2[%c0_88, %c0_89] : memref<81x32xbf16, #tpu.memory_space<vmem>>, vector<81x32xbf16>
    %cst_90 = arith.constant dense<0.000000e+00> : vector<512x32xf32>
    %34 = tpu.matmul %32, %33, %cst_90 {dimension_numbers = #tpu.dot_dimension_numbers<[1], [0], [0], [1], [0, 0, 1, 1], [], []>} : vector<512x81xbf16>, vector<81x32xbf16>, vector<512x32xf32> -> vector<512x32xf32>
    %c0_91 = arith.constant 0 : index
    %c0_92 = arith.constant 0 : index
    %35 = vector.load %arg3[%c0_91, %c0_92] : memref<1x32xf32, #tpu.memory_space<vmem>>, vector<1x32xf32>
    %36 = vector.broadcast %35 : vector<1x32xf32> to vector<512x32xf32>
    %37 = arith.addf %34, %36 : vector<512x32xf32>
    %cst_93 = arith.constant 0.000000e+00 : f32
    %38 = vector.broadcast %cst_93 : f32 to vector<512x32xf32>
    %39 = arith.maximumf %37, %38 : vector<512x32xf32>
    %40 = vector.shape_cast %39 : vector<512x32xf32> to vector<8x8x8x32xf32>
    %c1 = arith.constant 1 : index
    %c1_94 = arith.constant 1 : index
    %c0_95 = arith.constant 0 : index
    %c0_96 = arith.constant 0 : index
    %41 = vector.load %arg22[%c1, %c1_94, %c0_95, %c0_96] : memref<10x10x8x32xf32, #tpu.memory_space<vmem>>, vector<8x8x8x32xf32>
    tpu.vector_store %arg22[%c1, %c1_94, %c0_95, %c0_96], %40 {strides = array<i32>} : memref<10x10x8x32xf32, #tpu.memory_space<vmem>>, vector<8x8x8x32xf32>,
    %c0_97 = arith.constant 0 : index
    %c0_98 = arith.constant 0 : index
    %c0_99 = arith.constant 0 : index
    %42 = vector.load %arg4[%c0_97, %c0_98, %c0_99] : memref<3x3x32xf32, #tpu.memory_space<vmem>>, vector<3x3x32xf32>
    %c0_100 = arith.constant 0 : index
    %c0_101 = arith.constant 0 : index
    %43 = vector.load %arg5[%c0_100, %c0_101] : memref<32x64xbf16, #tpu.memory_space<vmem>>, vector<32x64xbf16>
    %c0_102 = arith.constant 0 : index
    %c0_103 = arith.constant 0 : index
    %44 = vector.load %arg6[%c0_102, %c0_103] : memref<1x64xf32, #tpu.memory_space<vmem>>, vector<1x64xf32>
    %c0_104 = arith.constant 0 : index
    %c0_105 = arith.constant 0 : index
    %c0_106 = arith.constant 0 : index
    %c0_107 = arith.constant 0 : index
    %45 = vector.load %arg22[%c0_104, %c0_105, %c0_106, %c0_107] : memref<10x10x8x32xf32, #tpu.memory_space<vmem>>, vector<8x8x8x32xf32>
    %46 = vector.extract_strided_slice %42 {offsets = [0, 0, 0], sizes = [1, 1, 32], strides = [1, 1, 1]} : vector<3x3x32xf32> to vector<1x1x32xf32>
    %47 = vector.shape_cast %46 : vector<1x1x32xf32> to vector<32xf32>
    %48 = vector.shape_cast %47 : vector<32xf32> to vector<1x1x1x32xf32>
    %49 = vector.broadcast %48 : vector<1x1x1x32xf32> to vector<8x8x8x32xf32>
    %50 = arith.mulf %45, %49 : vector<8x8x8x32xf32>
    %c0_108 = arith.constant 0 : index
    %c1_109 = arith.constant 1 : index
    %c0_110 = arith.constant 0 : index
    %c0_111 = arith.constant 0 : index
    %51 = vector.load %arg22[%c0_108, %c1_109, %c0_110, %c0_111] : memref<10x10x8x32xf32, #tpu.memory_space<vmem>>, vector<8x8x8x32xf32>
    %52 = vector.extract_strided_slice %42 {offsets = [0, 1, 0], sizes = [1, 1, 32], strides = [1, 1, 1]} : vector<3x3x32xf32> to vector<1x1x32xf32>
    %53 = vector.shape_cast %52 : vector<1x1x32xf32> to vector<32xf32>
    %54 = vector.shape_cast %53 : vector<32xf32> to vector<1x1x1x32xf32>
    %55 = vector.broadcast %54 : vector<1x1x1x32xf32> to vector<8x8x8x32xf32>
    %56 = arith.mulf %51, %55 : vector<8x8x8x32xf32>
    %57 = arith.addf %50, %56 : vector<8x8x8x32xf32>
    %c0_112 = arith.constant 0 : index
    %c2 = arith.constant 2 : index
    %c0_113 = arith.constant 0 : index
    %c0_114 = arith.constant 0 : index
    %58 = vector.load %arg22[%c0_112, %c2, %c0_113, %c0_114] : memref<10x10x8x32xf32, #tpu.memory_space<vmem>>, vector<8x8x8x32xf32>
    %59 = vector.extract_strided_slice %42 {offsets = [0, 2, 0], sizes = [1, 1, 32], strides = [1, 1, 1]} : vector<3x3x32xf32> to vector<1x1x32xf32>
    %60 = vector.shape_cast %59 : vector<1x1x32xf32> to vector<32xf32>
    %61 = vector.shape_cast %60 : vector<32xf32> to vector<1x1x1x32xf32>
    %62 = vector.broadcast %61 : vector<1x1x1x32xf32> to vector<8x8x8x32xf32>
    %63 = arith.mulf %58, %62 : vector<8x8x8x32xf32>
    %64 = arith.addf %57, %63 : vector<8x8x8x32xf32>
    %c1_115 = arith.constant 1 : index
    %c0_116 = arith.constant 0 : index
    %c0_117 = arith.constant 0 : index
    %c0_118 = arith.constant 0 : index
    %65 = vector.load %arg22[%c1_115, %c0_116, %c0_117, %c0_118] : memref<10x10x8x32xf32, #tpu.memory_space<vmem>>, vector<8x8x8x32xf32>
    %66 = vector.extract_strided_slice %42 {offsets = [1, 0, 0], sizes = [1, 1, 32], strides = [1, 1, 1]} : vector<3x3x32xf32> to vector<1x1x32xf32>
    %67 = vector.shape_cast %66 : vector<1x1x32xf32> to vector<32xf32>
    %68 = vector.shape_cast %67 : vector<32xf32> to vector<1x1x1x32xf32>
    %69 = vector.broadcast %68 : vector<1x1x1x32xf32> to vector<8x8x8x32xf32>
    %70 = arith.mulf %65, %69 : vector<8x8x8x32xf32>
    %71 = arith.addf %64, %70 : vector<8x8x8x32xf32>
    %c1_119 = arith.constant 1 : index
    %c1_120 = arith.constant 1 : index
    %c0_121 = arith.constant 0 : index
    %c0_122 = arith.constant 0 : index
    %72 = vector.load %arg22[%c1_119, %c1_120, %c0_121, %c0_122] : memref<10x10x8x32xf32, #tpu.memory_space<vmem>>, vector<8x8x8x32xf32>
    %73 = vector.extract_strided_slice %42 {offsets = [1, 1, 0], sizes = [1, 1, 32], strides = [1, 1, 1]} : vector<3x3x32xf32> to vector<1x1x32xf32>
    %74 = vector.shape_cast %73 : vector<1x1x32xf32> to vector<32xf32>
    %75 = vector.shape_cast %74 : vector<32xf32> to vector<1x1x1x32xf32>
    %76 = vector.broadcast %75 : vector<1x1x1x32xf32> to vector<8x8x8x32xf32>
    %77 = arith.mulf %72, %76 : vector<8x8x8x32xf32>
    %78 = arith.addf %71, %77 : vector<8x8x8x32xf32>
    %c1_123 = arith.constant 1 : index
    %c2_124 = arith.constant 2 : index
    %c0_125 = arith.constant 0 : index
    %c0_126 = arith.constant 0 : index
    %79 = vector.load %arg22[%c1_123, %c2_124, %c0_125, %c0_126] : memref<10x10x8x32xf32, #tpu.memory_space<vmem>>, vector<8x8x8x32xf32>
    %80 = vector.extract_strided_slice %42 {offsets = [1, 2, 0], sizes = [1, 1, 32], strides = [1, 1, 1]} : vector<3x3x32xf32> to vector<1x1x32xf32>
    %81 = vector.shape_cast %80 : vector<1x1x32xf32> to vector<32xf32>
    %82 = vector.shape_cast %81 : vector<32xf32> to vector<1x1x1x32xf32>
    %83 = vector.broadcast %82 : vector<1x1x1x32xf32> to vector<8x8x8x32xf32>
    %84 = arith.mulf %79, %83 : vector<8x8x8x32xf32>
    %85 = arith.addf %78, %84 : vector<8x8x8x32xf32>
    %c2_127 = arith.constant 2 : index
    %c0_128 = arith.constant 0 : index
    %c0_129 = arith.constant 0 : index
    %c0_130 = arith.constant 0 : index
    %86 = vector.load %arg22[%c2_127, %c0_128, %c0_129, %c0_130] : memref<10x10x8x32xf32, #tpu.memory_space<vmem>>, vector<8x8x8x32xf32>
    %87 = vector.extract_strided_slice %42 {offsets = [2, 0, 0], sizes = [1, 1, 32], strides = [1, 1, 1]} : vector<3x3x32xf32> to vector<1x1x32xf32>
    %88 = vector.shape_cast %87 : vector<1x1x32xf32> to vector<32xf32>
    %89 = vector.shape_cast %88 : vector<32xf32> to vector<1x1x1x32xf32>
    %90 = vector.broadcast %89 : vector<1x1x1x32xf32> to vector<8x8x8x32xf32>
    %91 = arith.mulf %86, %90 : vector<8x8x8x32xf32>
    %92 = arith.addf %85, %91 : vector<8x8x8x32xf32>
    %c2_131 = arith.constant 2 : index
    %c1_132 = arith.constant 1 : index
    %c0_133 = arith.constant 0 : index
    %c0_134 = arith.constant 0 : index
    %93 = vector.load %arg22[%c2_131, %c1_132, %c0_133, %c0_134] : memref<10x10x8x32xf32, #tpu.memory_space<vmem>>, vector<8x8x8x32xf32>
    %94 = vector.extract_strided_slice %42 {offsets = [2, 1, 0], sizes = [1, 1, 32], strides = [1, 1, 1]} : vector<3x3x32xf32> to vector<1x1x32xf32>
    %95 = vector.shape_cast %94 : vector<1x1x32xf32> to vector<32xf32>
    %96 = vector.shape_cast %95 : vector<32xf32> to vector<1x1x1x32xf32>
    %97 = vector.broadcast %96 : vector<1x1x1x32xf32> to vector<8x8x8x32xf32>
    %98 = arith.mulf %93, %97 : vector<8x8x8x32xf32>
    %99 = arith.addf %92, %98 : vector<8x8x8x32xf32>
    %c2_135 = arith.constant 2 : index
    %c2_136 = arith.constant 2 : index
    %c0_137 = arith.constant 0 : index
    %c0_138 = arith.constant 0 : index
    %100 = vector.load %arg22[%c2_135, %c2_136, %c0_137, %c0_138] : memref<10x10x8x32xf32, #tpu.memory_space<vmem>>, vector<8x8x8x32xf32>
    %101 = vector.extract_strided_slice %42 {offsets = [2, 2, 0], sizes = [1, 1, 32], strides = [1, 1, 1]} : vector<3x3x32xf32> to vector<1x1x32xf32>
    %102 = vector.shape_cast %101 : vector<1x1x32xf32> to vector<32xf32>
    %103 = vector.shape_cast %102 : vector<32xf32> to vector<1x1x1x32xf32>
    %104 = vector.broadcast %103 : vector<1x1x1x32xf32> to vector<8x8x8x32xf32>
    %105 = arith.mulf %100, %104 : vector<8x8x8x32xf32>
    %106 = arith.addf %99, %105 : vector<8x8x8x32xf32>
    %107 = vector.shape_cast %106 : vector<8x8x8x32xf32> to vector<512x32xf32>
    %108 = arith.truncf %107 : vector<512x32xf32> to vector<512x32xbf16>
    %cst_139 = arith.constant dense<0.000000e+00> : vector<512x64xf32>
    %109 = tpu.matmul %108, %43, %cst_139 {dimension_numbers = #tpu.dot_dimension_numbers<[1], [0], [0], [1], [0, 0, 1, 1], [], []>} : vector<512x32xbf16>, vector<32x64xbf16>, vector<512x64xf32> -> vector<512x64xf32>
    %110 = vector.broadcast %44 : vector<1x64xf32> to vector<512x64xf32>
    %111 = arith.addf %109, %110 : vector<512x64xf32>
    %cst_140 = arith.constant 0.000000e+00 : f32
    %112 = vector.broadcast %cst_140 : f32 to vector<512x64xf32>
    %113 = arith.maximumf %111, %112 : vector<512x64xf32>
    %114 = vector.shape_cast %113 : vector<512x64xf32> to vector<8x8x8x64xf32>
    %c1_141 = arith.constant 1 : index
    %c1_142 = arith.constant 1 : index
    %c0_143 = arith.constant 0 : index
    %c0_144 = arith.constant 0 : index
    %115 = vector.load %arg23[%c1_141, %c1_142, %c0_143, %c0_144] : memref<10x10x8x64xf32, #tpu.memory_space<vmem>>, vector<8x8x8x64xf32>
    tpu.vector_store %arg23[%c1_141, %c1_142, %c0_143, %c0_144], %114 {strides = array<i32>} : memref<10x10x8x64xf32, #tpu.memory_space<vmem>>, vector<8x8x8x64xf32>,
    %c0_145 = arith.constant 0 : index
    %c0_146 = arith.constant 0 : index
    %c0_147 = arith.constant 0 : index
    %116 = vector.load %arg7[%c0_145, %c0_146, %c0_147] : memref<3x3x64xf32, #tpu.memory_space<vmem>>, vector<3x3x64xf32>
    %c0_148 = arith.constant 0 : index
    %c0_149 = arith.constant 0 : index
    %117 = vector.load %arg8[%c0_148, %c0_149] : memref<64x128xbf16, #tpu.memory_space<vmem>>, vector<64x128xbf16>
    %c0_150 = arith.constant 0 : index
    %c0_151 = arith.constant 0 : index
    %118 = vector.load %arg9[%c0_150, %c0_151] : memref<1x128xf32, #tpu.memory_space<vmem>>, vector<1x128xf32>
    %c0_152 = arith.constant 0 : index
    %c0_153 = arith.constant 0 : index
    %c0_154 = arith.constant 0 : index
    %c0_155 = arith.constant 0 : index
    %119 = vector.load %arg23[%c0_152, %c0_153, %c0_154, %c0_155] : memref<10x10x8x64xf32, #tpu.memory_space<vmem>>, vector<8x8x8x64xf32>
    %120 = vector.shape_cast %119 : vector<8x8x8x64xf32> to vector<4x2x4x2x8x64xf32>
    %121 = vector.extract_strided_slice %120 {offsets = [0, 0, 0, 0, 0, 0], sizes = [4, 1, 4, 1, 8, 64], strides = [1, 1, 1, 1, 1, 1]} : vector<4x2x4x2x8x64xf32> to vector<4x1x4x1x8x64xf32>
    %122 = vector.shape_cast %121 : vector<4x1x4x1x8x64xf32> to vector<4x4x8x64xf32>
    %123 = vector.extract_strided_slice %116 {offsets = [0, 0, 0], sizes = [1, 1, 64], strides = [1, 1, 1]} : vector<3x3x64xf32> to vector<1x1x64xf32>
    %124 = vector.shape_cast %123 : vector<1x1x64xf32> to vector<64xf32>
    %125 = vector.shape_cast %124 : vector<64xf32> to vector<1x1x1x64xf32>
    %126 = vector.broadcast %125 : vector<1x1x1x64xf32> to vector<4x4x8x64xf32>
    %127 = arith.mulf %122, %126 : vector<4x4x8x64xf32>
    %c0_156 = arith.constant 0 : index
    %c1_157 = arith.constant 1 : index
    %c0_158 = arith.constant 0 : index
    %c0_159 = arith.constant 0 : index
    %128 = vector.load %arg23[%c0_156, %c1_157, %c0_158, %c0_159] : memref<10x10x8x64xf32, #tpu.memory_space<vmem>>, vector<8x8x8x64xf32>
    %129 = vector.shape_cast %128 : vector<8x8x8x64xf32> to vector<4x2x4x2x8x64xf32>
    %130 = vector.extract_strided_slice %129 {offsets = [0, 0, 0, 0, 0, 0], sizes = [4, 1, 4, 1, 8, 64], strides = [1, 1, 1, 1, 1, 1]} : vector<4x2x4x2x8x64xf32> to vector<4x1x4x1x8x64xf32>
    %131 = vector.shape_cast %130 : vector<4x1x4x1x8x64xf32> to vector<4x4x8x64xf32>
    %132 = vector.extract_strided_slice %116 {offsets = [0, 1, 0], sizes = [1, 1, 64], strides = [1, 1, 1]} : vector<3x3x64xf32> to vector<1x1x64xf32>
    %133 = vector.shape_cast %132 : vector<1x1x64xf32> to vector<64xf32>
    %134 = vector.shape_cast %133 : vector<64xf32> to vector<1x1x1x64xf32>
    %135 = vector.broadcast %134 : vector<1x1x1x64xf32> to vector<4x4x8x64xf32>
    %136 = arith.mulf %131, %135 : vector<4x4x8x64xf32>
    %137 = arith.addf %127, %136 : vector<4x4x8x64xf32>
    %c0_160 = arith.constant 0 : index
    %c2_161 = arith.constant 2 : index
    %c0_162 = arith.constant 0 : index
    %c0_163 = arith.constant 0 : index
    %138 = vector.load %arg23[%c0_160, %c2_161, %c0_162, %c0_163] : memref<10x10x8x64xf32, #tpu.memory_space<vmem>>, vector<8x8x8x64xf32>
    %139 = vector.shape_cast %138 : vector<8x8x8x64xf32> to vector<4x2x4x2x8x64xf32>
    %140 = vector.extract_strided_slice %139 {offsets = [0, 0, 0, 0, 0, 0], sizes = [4, 1, 4, 1, 8, 64], strides = [1, 1, 1, 1, 1, 1]} : vector<4x2x4x2x8x64xf32> to vector<4x1x4x1x8x64xf32>
    %141 = vector.shape_cast %140 : vector<4x1x4x1x8x64xf32> to vector<4x4x8x64xf32>
    %142 = vector.extract_strided_slice %116 {offsets = [0, 2, 0], sizes = [1, 1, 64], strides = [1, 1, 1]} : vector<3x3x64xf32> to vector<1x1x64xf32>
    %143 = vector.shape_cast %142 : vector<1x1x64xf32> to vector<64xf32>
    %144 = vector.shape_cast %143 : vector<64xf32> to vector<1x1x1x64xf32>
    %145 = vector.broadcast %144 : vector<1x1x1x64xf32> to vector<4x4x8x64xf32>
    %146 = arith.mulf %141, %145 : vector<4x4x8x64xf32>
    %147 = arith.addf %137, %146 : vector<4x4x8x64xf32>
    %c1_164 = arith.constant 1 : index
    %c0_165 = arith.constant 0 : index
    %c0_166 = arith.constant 0 : index
    %c0_167 = arith.constant 0 : index
    %148 = vector.load %arg23[%c1_164, %c0_165, %c0_166, %c0_167] : memref<10x10x8x64xf32, #tpu.memory_space<vmem>>, vector<8x8x8x64xf32>
    %149 = vector.shape_cast %148 : vector<8x8x8x64xf32> to vector<4x2x4x2x8x64xf32>
    %150 = vector.extract_strided_slice %149 {offsets = [0, 0, 0, 0, 0, 0], sizes = [4, 1, 4, 1, 8, 64], strides = [1, 1, 1, 1, 1, 1]} : vector<4x2x4x2x8x64xf32> to vector<4x1x4x1x8x64xf32>
    %151 = vector.shape_cast %150 : vector<4x1x4x1x8x64xf32> to vector<4x4x8x64xf32>
    %152 = vector.extract_strided_slice %116 {offsets = [1, 0, 0], sizes = [1, 1, 64], strides = [1, 1, 1]} : vector<3x3x64xf32> to vector<1x1x64xf32>
    %153 = vector.shape_cast %152 : vector<1x1x64xf32> to vector<64xf32>
    %154 = vector.shape_cast %153 : vector<64xf32> to vector<1x1x1x64xf32>
    %155 = vector.broadcast %154 : vector<1x1x1x64xf32> to vector<4x4x8x64xf32>
    %156 = arith.mulf %151, %155 : vector<4x4x8x64xf32>
    %157 = arith.addf %147, %156 : vector<4x4x8x64xf32>
    %c1_168 = arith.constant 1 : index
    %c1_169 = arith.constant 1 : index
    %c0_170 = arith.constant 0 : index
    %c0_171 = arith.constant 0 : index
    %158 = vector.load %arg23[%c1_168, %c1_169, %c0_170, %c0_171] : memref<10x10x8x64xf32, #tpu.memory_space<vmem>>, vector<8x8x8x64xf32>
    %159 = vector.shape_cast %158 : vector<8x8x8x64xf32> to vector<4x2x4x2x8x64xf32>
    %160 = vector.extract_strided_slice %159 {offsets = [0, 0, 0, 0, 0, 0], sizes = [4, 1, 4, 1, 8, 64], strides = [1, 1, 1, 1, 1, 1]} : vector<4x2x4x2x8x64xf32> to vector<4x1x4x1x8x64xf32>
    %161 = vector.shape_cast %160 : vector<4x1x4x1x8x64xf32> to vector<4x4x8x64xf32>
    %162 = vector.extract_strided_slice %116 {offsets = [1, 1, 0], sizes = [1, 1, 64], strides = [1, 1, 1]} : vector<3x3x64xf32> to vector<1x1x64xf32>
    %163 = vector.shape_cast %162 : vector<1x1x64xf32> to vector<64xf32>
    %164 = vector.shape_cast %163 : vector<64xf32> to vector<1x1x1x64xf32>
    %165 = vector.broadcast %164 : vector<1x1x1x64xf32> to vector<4x4x8x64xf32>
    %166 = arith.mulf %161, %165 : vector<4x4x8x64xf32>
    %167 = arith.addf %157, %166 : vector<4x4x8x64xf32>
    %c1_172 = arith.constant 1 : index
    %c2_173 = arith.constant 2 : index
    %c0_174 = arith.constant 0 : index
    %c0_175 = arith.constant 0 : index
    %168 = vector.load %arg23[%c1_172, %c2_173, %c0_174, %c0_175] : memref<10x10x8x64xf32, #tpu.memory_space<vmem>>, vector<8x8x8x64xf32>
    %169 = vector.shape_cast %168 : vector<8x8x8x64xf32> to vector<4x2x4x2x8x64xf32>
    %170 = vector.extract_strided_slice %169 {offsets = [0, 0, 0, 0, 0, 0], sizes = [4, 1, 4, 1, 8, 64], strides = [1, 1, 1, 1, 1, 1]} : vector<4x2x4x2x8x64xf32> to vector<4x1x4x1x8x64xf32>
    %171 = vector.shape_cast %170 : vector<4x1x4x1x8x64xf32> to vector<4x4x8x64xf32>
    %172 = vector.extract_strided_slice %116 {offsets = [1, 2, 0], sizes = [1, 1, 64], strides = [1, 1, 1]} : vector<3x3x64xf32> to vector<1x1x64xf32>
    %173 = vector.shape_cast %172 : vector<1x1x64xf32> to vector<64xf32>
    %174 = vector.shape_cast %173 : vector<64xf32> to vector<1x1x1x64xf32>
    %175 = vector.broadcast %174 : vector<1x1x1x64xf32> to vector<4x4x8x64xf32>
    %176 = arith.mulf %171, %175 : vector<4x4x8x64xf32>
    %177 = arith.addf %167, %176 : vector<4x4x8x64xf32>
    %c2_176 = arith.constant 2 : index
    %c0_177 = arith.constant 0 : index
    %c0_178 = arith.constant 0 : index
    %c0_179 = arith.constant 0 : index
    %178 = vector.load %arg23[%c2_176, %c0_177, %c0_178, %c0_179] : memref<10x10x8x64xf32, #tpu.memory_space<vmem>>, vector<8x8x8x64xf32>
    %179 = vector.shape_cast %178 : vector<8x8x8x64xf32> to vector<4x2x4x2x8x64xf32>
    %180 = vector.extract_strided_slice %179 {offsets = [0, 0, 0, 0, 0, 0], sizes = [4, 1, 4, 1, 8, 64], strides = [1, 1, 1, 1, 1, 1]} : vector<4x2x4x2x8x64xf32> to vector<4x1x4x1x8x64xf32>
    %181 = vector.shape_cast %180 : vector<4x1x4x1x8x64xf32> to vector<4x4x8x64xf32>
    %182 = vector.extract_strided_slice %116 {offsets = [2, 0, 0], sizes = [1, 1, 64], strides = [1, 1, 1]} : vector<3x3x64xf32> to vector<1x1x64xf32>
    %183 = vector.shape_cast %182 : vector<1x1x64xf32> to vector<64xf32>
    %184 = vector.shape_cast %183 : vector<64xf32> to vector<1x1x1x64xf32>
    %185 = vector.broadcast %184 : vector<1x1x1x64xf32> to vector<4x4x8x64xf32>
    %186 = arith.mulf %181, %185 : vector<4x4x8x64xf32>
    %187 = arith.addf %177, %186 : vector<4x4x8x64xf32>
    %c2_180 = arith.constant 2 : index
    %c1_181 = arith.constant 1 : index
    %c0_182 = arith.constant 0 : index
    %c0_183 = arith.constant 0 : index
    %188 = vector.load %arg23[%c2_180, %c1_181, %c0_182, %c0_183] : memref<10x10x8x64xf32, #tpu.memory_space<vmem>>, vector<8x8x8x64xf32>
    %189 = vector.shape_cast %188 : vector<8x8x8x64xf32> to vector<4x2x4x2x8x64xf32>
    %190 = vector.extract_strided_slice %189 {offsets = [0, 0, 0, 0, 0, 0], sizes = [4, 1, 4, 1, 8, 64], strides = [1, 1, 1, 1, 1, 1]} : vector<4x2x4x2x8x64xf32> to vector<4x1x4x1x8x64xf32>
    %191 = vector.shape_cast %190 : vector<4x1x4x1x8x64xf32> to vector<4x4x8x64xf32>
    %192 = vector.extract_strided_slice %116 {offsets = [2, 1, 0], sizes = [1, 1, 64], strides = [1, 1, 1]} : vector<3x3x64xf32> to vector<1x1x64xf32>
    %193 = vector.shape_cast %192 : vector<1x1x64xf32> to vector<64xf32>
    %194 = vector.shape_cast %193 : vector<64xf32> to vector<1x1x1x64xf32>
    %195 = vector.broadcast %194 : vector<1x1x1x64xf32> to vector<4x4x8x64xf32>
    %196 = arith.mulf %191, %195 : vector<4x4x8x64xf32>
    %197 = arith.addf %187, %196 : vector<4x4x8x64xf32>
    %c2_184 = arith.constant 2 : index
    %c2_185 = arith.constant 2 : index
    %c0_186 = arith.constant 0 : index
    %c0_187 = arith.constant 0 : index
    %198 = vector.load %arg23[%c2_184, %c2_185, %c0_186, %c0_187] : memref<10x10x8x64xf32, #tpu.memory_space<vmem>>, vector<8x8x8x64xf32>
    %199 = vector.shape_cast %198 : vector<8x8x8x64xf32> to vector<4x2x4x2x8x64xf32>
    %200 = vector.extract_strided_slice %199 {offsets = [0, 0, 0, 0, 0, 0], sizes = [4, 1, 4, 1, 8, 64], strides = [1, 1, 1, 1, 1, 1]} : vector<4x2x4x2x8x64xf32> to vector<4x1x4x1x8x64xf32>
    %201 = vector.shape_cast %200 : vector<4x1x4x1x8x64xf32> to vector<4x4x8x64xf32>
    %202 = vector.extract_strided_slice %116 {offsets = [2, 2, 0], sizes = [1, 1, 64], strides = [1, 1, 1]} : vector<3x3x64xf32> to vector<1x1x64xf32>
    %203 = vector.shape_cast %202 : vector<1x1x64xf32> to vector<64xf32>
    %204 = vector.shape_cast %203 : vector<64xf32> to vector<1x1x1x64xf32>
    %205 = vector.broadcast %204 : vector<1x1x1x64xf32> to vector<4x4x8x64xf32>
    %206 = arith.mulf %201, %205 : vector<4x4x8x64xf32>
    %207 = arith.addf %197, %206 : vector<4x4x8x64xf32>
    %208 = vector.shape_cast %207 : vector<4x4x8x64xf32> to vector<128x64xf32>
    %209 = arith.truncf %208 : vector<128x64xf32> to vector<128x64xbf16>
    %cst_188 = arith.constant dense<0.000000e+00> : vector<128x128xf32>
    %210 = tpu.matmul %209, %117, %cst_188 {dimension_numbers = #tpu.dot_dimension_numbers<[1], [0], [0], [1], [0, 0, 1, 1], [], []>} : vector<128x64xbf16>, vector<64x128xbf16>, vector<128x128xf32> -> vector<128x128xf32>
    %211 = vector.broadcast %118 : vector<1x128xf32> to vector<128x128xf32>
    %212 = arith.addf %210, %211 : vector<128x128xf32>
    %cst_189 = arith.constant 0.000000e+00 : f32
    %213 = vector.broadcast %cst_189 : f32 to vector<128x128xf32>
    %214 = arith.maximumf %212, %213 : vector<128x128xf32>
    %215 = vector.shape_cast %214 : vector<128x128xf32> to vector<4x4x8x128xf32>
    %c1_190 = arith.constant 1 : index
    %c1_191 = arith.constant 1 : index
    %c0_192 = arith.constant 0 : index
    %c0_193 = arith.constant 0 : index
    %216 = vector.load %arg24[%c1_190, %c1_191, %c0_192, %c0_193] : memref<6x6x8x128xf32, #tpu.memory_space<vmem>>, vector<4x4x8x128xf32>
    tpu.vector_store %arg24[%c1_190, %c1_191, %c0_192, %c0_193], %215 {strides = array<i32>} : memref<6x6x8x128xf32, #tpu.memory_space<vmem>>, vector<4x4x8x128xf32>,
    %c0_194 = arith.constant 0 : index
    %c0_195 = arith.constant 0 : index
    %c0_196 = arith.constant 0 : index
    %217 = vector.load %arg10[%c0_194, %c0_195, %c0_196] : memref<3x3x128xf32, #tpu.memory_space<vmem>>, vector<3x3x128xf32>
    %c0_197 = arith.constant 0 : index
    %c0_198 = arith.constant 0 : index
    %218 = vector.load %arg11[%c0_197, %c0_198] : memref<128x128xbf16, #tpu.memory_space<vmem>>, vector<128x128xbf16>
    %c0_199 = arith.constant 0 : index
    %c0_200 = arith.constant 0 : index
    %219 = vector.load %arg12[%c0_199, %c0_200] : memref<1x128xf32, #tpu.memory_space<vmem>>, vector<1x128xf32>
    %c0_201 = arith.constant 0 : index
    %c0_202 = arith.constant 0 : index
    %c0_203 = arith.constant 0 : index
    %c0_204 = arith.constant 0 : index
    %220 = vector.load %arg24[%c0_201, %c0_202, %c0_203, %c0_204] : memref<6x6x8x128xf32, #tpu.memory_space<vmem>>, vector<4x4x8x128xf32>
    %221 = vector.extract_strided_slice %217 {offsets = [0, 0, 0], sizes = [1, 1, 128], strides = [1, 1, 1]} : vector<3x3x128xf32> to vector<1x1x128xf32>
    %222 = vector.shape_cast %221 : vector<1x1x128xf32> to vector<128xf32>
    %223 = vector.shape_cast %222 : vector<128xf32> to vector<1x1x1x128xf32>
    %224 = vector.broadcast %223 : vector<1x1x1x128xf32> to vector<4x4x8x128xf32>
    %225 = arith.mulf %220, %224 : vector<4x4x8x128xf32>
    %c0_205 = arith.constant 0 : index
    %c1_206 = arith.constant 1 : index
    %c0_207 = arith.constant 0 : index
    %c0_208 = arith.constant 0 : index
    %226 = vector.load %arg24[%c0_205, %c1_206, %c0_207, %c0_208] : memref<6x6x8x128xf32, #tpu.memory_space<vmem>>, vector<4x4x8x128xf32>
    %227 = vector.extract_strided_slice %217 {offsets = [0, 1, 0], sizes = [1, 1, 128], strides = [1, 1, 1]} : vector<3x3x128xf32> to vector<1x1x128xf32>
    %228 = vector.shape_cast %227 : vector<1x1x128xf32> to vector<128xf32>
    %229 = vector.shape_cast %228 : vector<128xf32> to vector<1x1x1x128xf32>
    %230 = vector.broadcast %229 : vector<1x1x1x128xf32> to vector<4x4x8x128xf32>
    %231 = arith.mulf %226, %230 : vector<4x4x8x128xf32>
    %232 = arith.addf %225, %231 : vector<4x4x8x128xf32>
    %c0_209 = arith.constant 0 : index
    %c2_210 = arith.constant 2 : index
    %c0_211 = arith.constant 0 : index
    %c0_212 = arith.constant 0 : index
    %233 = vector.load %arg24[%c0_209, %c2_210, %c0_211, %c0_212] : memref<6x6x8x128xf32, #tpu.memory_space<vmem>>, vector<4x4x8x128xf32>
    %234 = vector.extract_strided_slice %217 {offsets = [0, 2, 0], sizes = [1, 1, 128], strides = [1, 1, 1]} : vector<3x3x128xf32> to vector<1x1x128xf32>
    %235 = vector.shape_cast %234 : vector<1x1x128xf32> to vector<128xf32>
    %236 = vector.shape_cast %235 : vector<128xf32> to vector<1x1x1x128xf32>
    %237 = vector.broadcast %236 : vector<1x1x1x128xf32> to vector<4x4x8x128xf32>
    %238 = arith.mulf %233, %237 : vector<4x4x8x128xf32>
    %239 = arith.addf %232, %238 : vector<4x4x8x128xf32>
    %c1_213 = arith.constant 1 : index
    %c0_214 = arith.constant 0 : index
    %c0_215 = arith.constant 0 : index
    %c0_216 = arith.constant 0 : index
    %240 = vector.load %arg24[%c1_213, %c0_214, %c0_215, %c0_216] : memref<6x6x8x128xf32, #tpu.memory_space<vmem>>, vector<4x4x8x128xf32>
    %241 = vector.extract_strided_slice %217 {offsets = [1, 0, 0], sizes = [1, 1, 128], strides = [1, 1, 1]} : vector<3x3x128xf32> to vector<1x1x128xf32>
    %242 = vector.shape_cast %241 : vector<1x1x128xf32> to vector<128xf32>
    %243 = vector.shape_cast %242 : vector<128xf32> to vector<1x1x1x128xf32>
    %244 = vector.broadcast %243 : vector<1x1x1x128xf32> to vector<4x4x8x128xf32>
    %245 = arith.mulf %240, %244 : vector<4x4x8x128xf32>
    %246 = arith.addf %239, %245 : vector<4x4x8x128xf32>
    %c1_217 = arith.constant 1 : index
    %c1_218 = arith.constant 1 : index
    %c0_219 = arith.constant 0 : index
    %c0_220 = arith.constant 0 : index
    %247 = vector.load %arg24[%c1_217, %c1_218, %c0_219, %c0_220] : memref<6x6x8x128xf32, #tpu.memory_space<vmem>>, vector<4x4x8x128xf32>
    %248 = vector.extract_strided_slice %217 {offsets = [1, 1, 0], sizes = [1, 1, 128], strides = [1, 1, 1]} : vector<3x3x128xf32> to vector<1x1x128xf32>
    %249 = vector.shape_cast %248 : vector<1x1x128xf32> to vector<128xf32>
    %250 = vector.shape_cast %249 : vector<128xf32> to vector<1x1x1x128xf32>
    %251 = vector.broadcast %250 : vector<1x1x1x128xf32> to vector<4x4x8x128xf32>
    %252 = arith.mulf %247, %251 : vector<4x4x8x128xf32>
    %253 = arith.addf %246, %252 : vector<4x4x8x128xf32>
    %c1_221 = arith.constant 1 : index
    %c2_222 = arith.constant 2 : index
    %c0_223 = arith.constant 0 : index
    %c0_224 = arith.constant 0 : index
    %254 = vector.load %arg24[%c1_221, %c2_222, %c0_223, %c0_224] : memref<6x6x8x128xf32, #tpu.memory_space<vmem>>, vector<4x4x8x128xf32>
    %255 = vector.extract_strided_slice %217 {offsets = [1, 2, 0], sizes = [1, 1, 128], strides = [1, 1, 1]} : vector<3x3x128xf32> to vector<1x1x128xf32>
    %256 = vector.shape_cast %255 : vector<1x1x128xf32> to vector<128xf32>
    %257 = vector.shape_cast %256 : vector<128xf32> to vector<1x1x1x128xf32>
    %258 = vector.broadcast %257 : vector<1x1x1x128xf32> to vector<4x4x8x128xf32>
    %259 = arith.mulf %254, %258 : vector<4x4x8x128xf32>
    %260 = arith.addf %253, %259 : vector<4x4x8x128xf32>
    %c2_225 = arith.constant 2 : index
    %c0_226 = arith.constant 0 : index
    %c0_227 = arith.constant 0 : index
    %c0_228 = arith.constant 0 : index
    %261 = vector.load %arg24[%c2_225, %c0_226, %c0_227, %c0_228] : memref<6x6x8x128xf32, #tpu.memory_space<vmem>>, vector<4x4x8x128xf32>
    %262 = vector.extract_strided_slice %217 {offsets = [2, 0, 0], sizes = [1, 1, 128], strides = [1, 1, 1]} : vector<3x3x128xf32> to vector<1x1x128xf32>
    %263 = vector.shape_cast %262 : vector<1x1x128xf32> to vector<128xf32>
    %264 = vector.shape_cast %263 : vector<128xf32> to vector<1x1x1x128xf32>
    %265 = vector.broadcast %264 : vector<1x1x1x128xf32> to vector<4x4x8x128xf32>
    %266 = arith.mulf %261, %265 : vector<4x4x8x128xf32>
    %267 = arith.addf %260, %266 : vector<4x4x8x128xf32>
    %c2_229 = arith.constant 2 : index
    %c1_230 = arith.constant 1 : index
    %c0_231 = arith.constant 0 : index
    %c0_232 = arith.constant 0 : index
    %268 = vector.load %arg24[%c2_229, %c1_230, %c0_231, %c0_232] : memref<6x6x8x128xf32, #tpu.memory_space<vmem>>, vector<4x4x8x128xf32>
    %269 = vector.extract_strided_slice %217 {offsets = [2, 1, 0], sizes = [1, 1, 128], strides = [1, 1, 1]} : vector<3x3x128xf32> to vector<1x1x128xf32>
    %270 = vector.shape_cast %269 : vector<1x1x128xf32> to vector<128xf32>
    %271 = vector.shape_cast %270 : vector<128xf32> to vector<1x1x1x128xf32>
    %272 = vector.broadcast %271 : vector<1x1x1x128xf32> to vector<4x4x8x128xf32>
    %273 = arith.mulf %268, %272 : vector<4x4x8x128xf32>
    %274 = arith.addf %267, %273 : vector<4x4x8x128xf32>
    %c2_233 = arith.constant 2 : index
    %c2_234 = arith.constant 2 : index
    %c0_235 = arith.constant 0 : index
    %c0_236 = arith.constant 0 : index
    %275 = vector.load %arg24[%c2_233, %c2_234, %c0_235, %c0_236] : memref<6x6x8x128xf32, #tpu.memory_space<vmem>>, vector<4x4x8x128xf32>
    %276 = vector.extract_strided_slice %217 {offsets = [2, 2, 0], sizes = [1, 1, 128], strides = [1, 1, 1]} : vector<3x3x128xf32> to vector<1x1x128xf32>
    %277 = vector.shape_cast %276 : vector<1x1x128xf32> to vector<128xf32>
    %278 = vector.shape_cast %277 : vector<128xf32> to vector<1x1x1x128xf32>
    %279 = vector.broadcast %278 : vector<1x1x1x128xf32> to vector<4x4x8x128xf32>
    %280 = arith.mulf %275, %279 : vector<4x4x8x128xf32>
    %281 = arith.addf %274, %280 : vector<4x4x8x128xf32>
    %282 = vector.shape_cast %281 : vector<4x4x8x128xf32> to vector<128x128xf32>
    %283 = arith.truncf %282 : vector<128x128xf32> to vector<128x128xbf16>
    %cst_237 = arith.constant dense<0.000000e+00> : vector<128x128xf32>
    %284 = tpu.matmul %283, %218, %cst_237 {dimension_numbers = #tpu.dot_dimension_numbers<[1], [0], [0], [1], [0, 0, 1, 1], [], []>} : vector<128x128xbf16>, vector<128x128xbf16>, vector<128x128xf32> -> vector<128x128xf32>
    %285 = vector.broadcast %219 : vector<1x128xf32> to vector<128x128xf32>
    %286 = arith.addf %284, %285 : vector<128x128xf32>
    %cst_238 = arith.constant 0.000000e+00 : f32
    %287 = vector.broadcast %cst_238 : f32 to vector<128x128xf32>
    %288 = arith.maximumf %286, %287 : vector<128x128xf32>
    %289 = vector.shape_cast %288 : vector<128x128xf32> to vector<4x4x8x128xf32>
    %c1_239 = arith.constant 1 : index
    %c1_240 = arith.constant 1 : index
    %c0_241 = arith.constant 0 : index
    %c0_242 = arith.constant 0 : index
    %290 = vector.load %arg25[%c1_239, %c1_240, %c0_241, %c0_242] : memref<6x6x8x128xf32, #tpu.memory_space<vmem>>, vector<4x4x8x128xf32>
    tpu.vector_store %arg25[%c1_239, %c1_240, %c0_241, %c0_242], %289 {strides = array<i32>} : memref<6x6x8x128xf32, #tpu.memory_space<vmem>>, vector<4x4x8x128xf32>,
    %c0_243 = arith.constant 0 : index
    %c0_244 = arith.constant 0 : index
    %c0_245 = arith.constant 0 : index
    %291 = vector.load %arg13[%c0_243, %c0_244, %c0_245] : memref<3x3x128xf32, #tpu.memory_space<vmem>>, vector<3x3x128xf32>
    %c0_246 = arith.constant 0 : index
    %c0_247 = arith.constant 0 : index
    %292 = vector.load %arg14[%c0_246, %c0_247] : memref<128x256xbf16, #tpu.memory_space<vmem>>, vector<128x256xbf16>
    %c0_248 = arith.constant 0 : index
    %c0_249 = arith.constant 0 : index
    %293 = vector.load %arg15[%c0_248, %c0_249] : memref<1x256xf32, #tpu.memory_space<vmem>>, vector<1x256xf32>
    %c0_250 = arith.constant 0 : index
    %c0_251 = arith.constant 0 : index
    %c0_252 = arith.constant 0 : index
    %c0_253 = arith.constant 0 : index
    %294 = vector.load %arg25[%c0_250, %c0_251, %c0_252, %c0_253] : memref<6x6x8x128xf32, #tpu.memory_space<vmem>>, vector<4x4x8x128xf32>
    %295 = vector.shape_cast %294 : vector<4x4x8x128xf32> to vector<2x2x2x2x8x128xf32>
    %296 = vector.extract_strided_slice %295 {offsets = [0, 0, 0, 0, 0, 0], sizes = [2, 1, 2, 1, 8, 128], strides = [1, 1, 1, 1, 1, 1]} : vector<2x2x2x2x8x128xf32> to vector<2x1x2x1x8x128xf32>
    %297 = vector.shape_cast %296 : vector<2x1x2x1x8x128xf32> to vector<2x2x8x128xf32>
    %298 = vector.extract_strided_slice %291 {offsets = [0, 0, 0], sizes = [1, 1, 128], strides = [1, 1, 1]} : vector<3x3x128xf32> to vector<1x1x128xf32>
    %299 = vector.shape_cast %298 : vector<1x1x128xf32> to vector<128xf32>
    %300 = vector.shape_cast %299 : vector<128xf32> to vector<1x1x1x128xf32>
    %301 = vector.broadcast %300 : vector<1x1x1x128xf32> to vector<2x2x8x128xf32>
    %302 = arith.mulf %297, %301 : vector<2x2x8x128xf32>
    %c0_254 = arith.constant 0 : index
    %c1_255 = arith.constant 1 : index
    %c0_256 = arith.constant 0 : index
    %c0_257 = arith.constant 0 : index
    %303 = vector.load %arg25[%c0_254, %c1_255, %c0_256, %c0_257] : memref<6x6x8x128xf32, #tpu.memory_space<vmem>>, vector<4x4x8x128xf32>
    %304 = vector.shape_cast %303 : vector<4x4x8x128xf32> to vector<2x2x2x2x8x128xf32>
    %305 = vector.extract_strided_slice %304 {offsets = [0, 0, 0, 0, 0, 0], sizes = [2, 1, 2, 1, 8, 128], strides = [1, 1, 1, 1, 1, 1]} : vector<2x2x2x2x8x128xf32> to vector<2x1x2x1x8x128xf32>
    %306 = vector.shape_cast %305 : vector<2x1x2x1x8x128xf32> to vector<2x2x8x128xf32>
    %307 = vector.extract_strided_slice %291 {offsets = [0, 1, 0], sizes = [1, 1, 128], strides = [1, 1, 1]} : vector<3x3x128xf32> to vector<1x1x128xf32>
    %308 = vector.shape_cast %307 : vector<1x1x128xf32> to vector<128xf32>
    %309 = vector.shape_cast %308 : vector<128xf32> to vector<1x1x1x128xf32>
    %310 = vector.broadcast %309 : vector<1x1x1x128xf32> to vector<2x2x8x128xf32>
    %311 = arith.mulf %306, %310 : vector<2x2x8x128xf32>
    %312 = arith.addf %302, %311 : vector<2x2x8x128xf32>
    %c0_258 = arith.constant 0 : index
    %c2_259 = arith.constant 2 : index
    %c0_260 = arith.constant 0 : index
    %c0_261 = arith.constant 0 : index
    %313 = vector.load %arg25[%c0_258, %c2_259, %c0_260, %c0_261] : memref<6x6x8x128xf32, #tpu.memory_space<vmem>>, vector<4x4x8x128xf32>
    %314 = vector.shape_cast %313 : vector<4x4x8x128xf32> to vector<2x2x2x2x8x128xf32>
    %315 = vector.extract_strided_slice %314 {offsets = [0, 0, 0, 0, 0, 0], sizes = [2, 1, 2, 1, 8, 128], strides = [1, 1, 1, 1, 1, 1]} : vector<2x2x2x2x8x128xf32> to vector<2x1x2x1x8x128xf32>
    %316 = vector.shape_cast %315 : vector<2x1x2x1x8x128xf32> to vector<2x2x8x128xf32>
    %317 = vector.extract_strided_slice %291 {offsets = [0, 2, 0], sizes = [1, 1, 128], strides = [1, 1, 1]} : vector<3x3x128xf32> to vector<1x1x128xf32>
    %318 = vector.shape_cast %317 : vector<1x1x128xf32> to vector<128xf32>
    %319 = vector.shape_cast %318 : vector<128xf32> to vector<1x1x1x128xf32>
    %320 = vector.broadcast %319 : vector<1x1x1x128xf32> to vector<2x2x8x128xf32>
    %321 = arith.mulf %316, %320 : vector<2x2x8x128xf32>
    %322 = arith.addf %312, %321 : vector<2x2x8x128xf32>
    %c1_262 = arith.constant 1 : index
    %c0_263 = arith.constant 0 : index
    %c0_264 = arith.constant 0 : index
    %c0_265 = arith.constant 0 : index
    %323 = vector.load %arg25[%c1_262, %c0_263, %c0_264, %c0_265] : memref<6x6x8x128xf32, #tpu.memory_space<vmem>>, vector<4x4x8x128xf32>
    %324 = vector.shape_cast %323 : vector<4x4x8x128xf32> to vector<2x2x2x2x8x128xf32>
    %325 = vector.extract_strided_slice %324 {offsets = [0, 0, 0, 0, 0, 0], sizes = [2, 1, 2, 1, 8, 128], strides = [1, 1, 1, 1, 1, 1]} : vector<2x2x2x2x8x128xf32> to vector<2x1x2x1x8x128xf32>
    %326 = vector.shape_cast %325 : vector<2x1x2x1x8x128xf32> to vector<2x2x8x128xf32>
    %327 = vector.extract_strided_slice %291 {offsets = [1, 0, 0], sizes = [1, 1, 128], strides = [1, 1, 1]} : vector<3x3x128xf32> to vector<1x1x128xf32>
    %328 = vector.shape_cast %327 : vector<1x1x128xf32> to vector<128xf32>
    %329 = vector.shape_cast %328 : vector<128xf32> to vector<1x1x1x128xf32>
    %330 = vector.broadcast %329 : vector<1x1x1x128xf32> to vector<2x2x8x128xf32>
    %331 = arith.mulf %326, %330 : vector<2x2x8x128xf32>
    %332 = arith.addf %322, %331 : vector<2x2x8x128xf32>
    %c1_266 = arith.constant 1 : index
    %c1_267 = arith.constant 1 : index
    %c0_268 = arith.constant 0 : index
    %c0_269 = arith.constant 0 : index
    %333 = vector.load %arg25[%c1_266, %c1_267, %c0_268, %c0_269] : memref<6x6x8x128xf32, #tpu.memory_space<vmem>>, vector<4x4x8x128xf32>
    %334 = vector.shape_cast %333 : vector<4x4x8x128xf32> to vector<2x2x2x2x8x128xf32>
    %335 = vector.extract_strided_slice %334 {offsets = [0, 0, 0, 0, 0, 0], sizes = [2, 1, 2, 1, 8, 128], strides = [1, 1, 1, 1, 1, 1]} : vector<2x2x2x2x8x128xf32> to vector<2x1x2x1x8x128xf32>
    %336 = vector.shape_cast %335 : vector<2x1x2x1x8x128xf32> to vector<2x2x8x128xf32>
    %337 = vector.extract_strided_slice %291 {offsets = [1, 1, 0], sizes = [1, 1, 128], strides = [1, 1, 1]} : vector<3x3x128xf32> to vector<1x1x128xf32>
    %338 = vector.shape_cast %337 : vector<1x1x128xf32> to vector<128xf32>
    %339 = vector.shape_cast %338 : vector<128xf32> to vector<1x1x1x128xf32>
    %340 = vector.broadcast %339 : vector<1x1x1x128xf32> to vector<2x2x8x128xf32>
    %341 = arith.mulf %336, %340 : vector<2x2x8x128xf32>
    %342 = arith.addf %332, %341 : vector<2x2x8x128xf32>
    %c1_270 = arith.constant 1 : index
    %c2_271 = arith.constant 2 : index
    %c0_272 = arith.constant 0 : index
    %c0_273 = arith.constant 0 : index
    %343 = vector.load %arg25[%c1_270, %c2_271, %c0_272, %c0_273] : memref<6x6x8x128xf32, #tpu.memory_space<vmem>>, vector<4x4x8x128xf32>
    %344 = vector.shape_cast %343 : vector<4x4x8x128xf32> to vector<2x2x2x2x8x128xf32>
    %345 = vector.extract_strided_slice %344 {offsets = [0, 0, 0, 0, 0, 0], sizes = [2, 1, 2, 1, 8, 128], strides = [1, 1, 1, 1, 1, 1]} : vector<2x2x2x2x8x128xf32> to vector<2x1x2x1x8x128xf32>
    %346 = vector.shape_cast %345 : vector<2x1x2x1x8x128xf32> to vector<2x2x8x128xf32>
    %347 = vector.extract_strided_slice %291 {offsets = [1, 2, 0], sizes = [1, 1, 128], strides = [1, 1, 1]} : vector<3x3x128xf32> to vector<1x1x128xf32>
    %348 = vector.shape_cast %347 : vector<1x1x128xf32> to vector<128xf32>
    %349 = vector.shape_cast %348 : vector<128xf32> to vector<1x1x1x128xf32>
    %350 = vector.broadcast %349 : vector<1x1x1x128xf32> to vector<2x2x8x128xf32>
    %351 = arith.mulf %346, %350 : vector<2x2x8x128xf32>
    %352 = arith.addf %342, %351 : vector<2x2x8x128xf32>
    %c2_274 = arith.constant 2 : index
    %c0_275 = arith.constant 0 : index
    %c0_276 = arith.constant 0 : index
    %c0_277 = arith.constant 0 : index
    %353 = vector.load %arg25[%c2_274, %c0_275, %c0_276, %c0_277] : memref<6x6x8x128xf32, #tpu.memory_space<vmem>>, vector<4x4x8x128xf32>
    %354 = vector.shape_cast %353 : vector<4x4x8x128xf32> to vector<2x2x2x2x8x128xf32>
    %355 = vector.extract_strided_slice %354 {offsets = [0, 0, 0, 0, 0, 0], sizes = [2, 1, 2, 1, 8, 128], strides = [1, 1, 1, 1, 1, 1]} : vector<2x2x2x2x8x128xf32> to vector<2x1x2x1x8x128xf32>
    %356 = vector.shape_cast %355 : vector<2x1x2x1x8x128xf32> to vector<2x2x8x128xf32>
    %357 = vector.extract_strided_slice %291 {offsets = [2, 0, 0], sizes = [1, 1, 128], strides = [1, 1, 1]} : vector<3x3x128xf32> to vector<1x1x128xf32>
    %358 = vector.shape_cast %357 : vector<1x1x128xf32> to vector<128xf32>
    %359 = vector.shape_cast %358 : vector<128xf32> to vector<1x1x1x128xf32>
    %360 = vector.broadcast %359 : vector<1x1x1x128xf32> to vector<2x2x8x128xf32>
    %361 = arith.mulf %356, %360 : vector<2x2x8x128xf32>
    %362 = arith.addf %352, %361 : vector<2x2x8x128xf32>
    %c2_278 = arith.constant 2 : index
    %c1_279 = arith.constant 1 : index
    %c0_280 = arith.constant 0 : index
    %c0_281 = arith.constant 0 : index
    %363 = vector.load %arg25[%c2_278, %c1_279, %c0_280, %c0_281] : memref<6x6x8x128xf32, #tpu.memory_space<vmem>>, vector<4x4x8x128xf32>
    %364 = vector.shape_cast %363 : vector<4x4x8x128xf32> to vector<2x2x2x2x8x128xf32>
    %365 = vector.extract_strided_slice %364 {offsets = [0, 0, 0, 0, 0, 0], sizes = [2, 1, 2, 1, 8, 128], strides = [1, 1, 1, 1, 1, 1]} : vector<2x2x2x2x8x128xf32> to vector<2x1x2x1x8x128xf32>
    %366 = vector.shape_cast %365 : vector<2x1x2x1x8x128xf32> to vector<2x2x8x128xf32>
    %367 = vector.extract_strided_slice %291 {offsets = [2, 1, 0], sizes = [1, 1, 128], strides = [1, 1, 1]} : vector<3x3x128xf32> to vector<1x1x128xf32>
    %368 = vector.shape_cast %367 : vector<1x1x128xf32> to vector<128xf32>
    %369 = vector.shape_cast %368 : vector<128xf32> to vector<1x1x1x128xf32>
    %370 = vector.broadcast %369 : vector<1x1x1x128xf32> to vector<2x2x8x128xf32>
    %371 = arith.mulf %366, %370 : vector<2x2x8x128xf32>
    %372 = arith.addf %362, %371 : vector<2x2x8x128xf32>
    %c2_282 = arith.constant 2 : index
    %c2_283 = arith.constant 2 : index
    %c0_284 = arith.constant 0 : index
    %c0_285 = arith.constant 0 : index
    %373 = vector.load %arg25[%c2_282, %c2_283, %c0_284, %c0_285] : memref<6x6x8x128xf32, #tpu.memory_space<vmem>>, vector<4x4x8x128xf32>
    %374 = vector.shape_cast %373 : vector<4x4x8x128xf32> to vector<2x2x2x2x8x128xf32>
    %375 = vector.extract_strided_slice %374 {offsets = [0, 0, 0, 0, 0, 0], sizes = [2, 1, 2, 1, 8, 128], strides = [1, 1, 1, 1, 1, 1]} : vector<2x2x2x2x8x128xf32> to vector<2x1x2x1x8x128xf32>
    %376 = vector.shape_cast %375 : vector<2x1x2x1x8x128xf32> to vector<2x2x8x128xf32>
    %377 = vector.extract_strided_slice %291 {offsets = [2, 2, 0], sizes = [1, 1, 128], strides = [1, 1, 1]} : vector<3x3x128xf32> to vector<1x1x128xf32>
    %378 = vector.shape_cast %377 : vector<1x1x128xf32> to vector<128xf32>
    %379 = vector.shape_cast %378 : vector<128xf32> to vector<1x1x1x128xf32>
    %380 = vector.broadcast %379 : vector<1x1x1x128xf32> to vector<2x2x8x128xf32>
    %381 = arith.mulf %376, %380 : vector<2x2x8x128xf32>
    %382 = arith.addf %372, %381 : vector<2x2x8x128xf32>
    %383 = vector.shape_cast %382 : vector<2x2x8x128xf32> to vector<32x128xf32>
    %384 = arith.truncf %383 : vector<32x128xf32> to vector<32x128xbf16>
    %cst_286 = arith.constant dense<0.000000e+00> : vector<32x256xf32>
    %385 = tpu.matmul %384, %292, %cst_286 {dimension_numbers = #tpu.dot_dimension_numbers<[1], [0], [0], [1], [0, 0, 1, 1], [], []>} : vector<32x128xbf16>, vector<128x256xbf16>, vector<32x256xf32> -> vector<32x256xf32>
    %386 = vector.broadcast %293 : vector<1x256xf32> to vector<32x256xf32>
    %387 = arith.addf %385, %386 : vector<32x256xf32>
    %cst_287 = arith.constant 0.000000e+00 : f32
    %388 = vector.broadcast %cst_287 : f32 to vector<32x256xf32>
    %389 = arith.maximumf %387, %388 : vector<32x256xf32>
    %390 = vector.shape_cast %389 : vector<32x256xf32> to vector<2x2x8x256xf32>
    %c1_288 = arith.constant 1 : index
    %c1_289 = arith.constant 1 : index
    %c0_290 = arith.constant 0 : index
    %c0_291 = arith.constant 0 : index
    %391 = vector.load %arg26[%c1_288, %c1_289, %c0_290, %c0_291] : memref<4x4x8x256xf32, #tpu.memory_space<vmem>>, vector<2x2x8x256xf32>
    tpu.vector_store %arg26[%c1_288, %c1_289, %c0_290, %c0_291], %390 {strides = array<i32>} : memref<4x4x8x256xf32, #tpu.memory_space<vmem>>, vector<2x2x8x256xf32>,
    %c0_292 = arith.constant 0 : index
    %c0_293 = arith.constant 0 : index
    %c0_294 = arith.constant 0 : index
    %392 = vector.load %arg16[%c0_292, %c0_293, %c0_294] : memref<3x3x256xf32, #tpu.memory_space<vmem>>, vector<3x3x256xf32>
    %c0_295 = arith.constant 0 : index
    %c0_296 = arith.constant 0 : index
    %393 = vector.load %arg17[%c0_295, %c0_296] : memref<256x256xbf16, #tpu.memory_space<vmem>>, vector<256x256xbf16>
    %c0_297 = arith.constant 0 : index
    %c0_298 = arith.constant 0 : index
    %394 = vector.load %arg18[%c0_297, %c0_298] : memref<1x256xf32, #tpu.memory_space<vmem>>, vector<1x256xf32>
    %c0_299 = arith.constant 0 : index
    %c0_300 = arith.constant 0 : index
    %c0_301 = arith.constant 0 : index
    %c0_302 = arith.constant 0 : index
    %395 = vector.load %arg26[%c0_299, %c0_300, %c0_301, %c0_302] : memref<4x4x8x256xf32, #tpu.memory_space<vmem>>, vector<2x2x8x256xf32>
    %396 = vector.extract_strided_slice %392 {offsets = [0, 0, 0], sizes = [1, 1, 256], strides = [1, 1, 1]} : vector<3x3x256xf32> to vector<1x1x256xf32>
    %397 = vector.shape_cast %396 : vector<1x1x256xf32> to vector<256xf32>
    %398 = vector.shape_cast %397 : vector<256xf32> to vector<1x1x1x256xf32>
    %399 = vector.broadcast %398 : vector<1x1x1x256xf32> to vector<2x2x8x256xf32>
    %400 = arith.mulf %395, %399 : vector<2x2x8x256xf32>
    %c0_303 = arith.constant 0 : index
    %c1_304 = arith.constant 1 : index
    %c0_305 = arith.constant 0 : index
    %c0_306 = arith.constant 0 : index
    %401 = vector.load %arg26[%c0_303, %c1_304, %c0_305, %c0_306] : memref<4x4x8x256xf32, #tpu.memory_space<vmem>>, vector<2x2x8x256xf32>
    %402 = vector.extract_strided_slice %392 {offsets = [0, 1, 0], sizes = [1, 1, 256], strides = [1, 1, 1]} : vector<3x3x256xf32> to vector<1x1x256xf32>
    %403 = vector.shape_cast %402 : vector<1x1x256xf32> to vector<256xf32>
    %404 = vector.shape_cast %403 : vector<256xf32> to vector<1x1x1x256xf32>
    %405 = vector.broadcast %404 : vector<1x1x1x256xf32> to vector<2x2x8x256xf32>
    %406 = arith.mulf %401, %405 : vector<2x2x8x256xf32>
    %407 = arith.addf %400, %406 : vector<2x2x8x256xf32>
    %c0_307 = arith.constant 0 : index
    %c2_308 = arith.constant 2 : index
    %c0_309 = arith.constant 0 : index
    %c0_310 = arith.constant 0 : index
    %408 = vector.load %arg26[%c0_307, %c2_308, %c0_309, %c0_310] : memref<4x4x8x256xf32, #tpu.memory_space<vmem>>, vector<2x2x8x256xf32>
    %409 = vector.extract_strided_slice %392 {offsets = [0, 2, 0], sizes = [1, 1, 256], strides = [1, 1, 1]} : vector<3x3x256xf32> to vector<1x1x256xf32>
    %410 = vector.shape_cast %409 : vector<1x1x256xf32> to vector<256xf32>
    %411 = vector.shape_cast %410 : vector<256xf32> to vector<1x1x1x256xf32>
    %412 = vector.broadcast %411 : vector<1x1x1x256xf32> to vector<2x2x8x256xf32>
    %413 = arith.mulf %408, %412 : vector<2x2x8x256xf32>
    %414 = arith.addf %407, %413 : vector<2x2x8x256xf32>
    %c1_311 = arith.constant 1 : index
    %c0_312 = arith.constant 0 : index
    %c0_313 = arith.constant 0 : index
    %c0_314 = arith.constant 0 : index
    %415 = vector.load %arg26[%c1_311, %c0_312, %c0_313, %c0_314] : memref<4x4x8x256xf32, #tpu.memory_space<vmem>>, vector<2x2x8x256xf32>
    %416 = vector.extract_strided_slice %392 {offsets = [1, 0, 0], sizes = [1, 1, 256], strides = [1, 1, 1]} : vector<3x3x256xf32> to vector<1x1x256xf32>
    %417 = vector.shape_cast %416 : vector<1x1x256xf32> to vector<256xf32>
    %418 = vector.shape_cast %417 : vector<256xf32> to vector<1x1x1x256xf32>
    %419 = vector.broadcast %418 : vector<1x1x1x256xf32> to vector<2x2x8x256xf32>
    %420 = arith.mulf %415, %419 : vector<2x2x8x256xf32>
    %421 = arith.addf %414, %420 : vector<2x2x8x256xf32>
    %c1_315 = arith.constant 1 : index
    %c1_316 = arith.constant 1 : index
    %c0_317 = arith.constant 0 : index
    %c0_318 = arith.constant 0 : index
    %422 = vector.load %arg26[%c1_315, %c1_316, %c0_317, %c0_318] : memref<4x4x8x256xf32, #tpu.memory_space<vmem>>, vector<2x2x8x256xf32>
    %423 = vector.extract_strided_slice %392 {offsets = [1, 1, 0], sizes = [1, 1, 256], strides = [1, 1, 1]} : vector<3x3x256xf32> to vector<1x1x256xf32>
    %424 = vector.shape_cast %423 : vector<1x1x256xf32> to vector<256xf32>
    %425 = vector.shape_cast %424 : vector<256xf32> to vector<1x1x1x256xf32>
    %426 = vector.broadcast %425 : vector<1x1x1x256xf32> to vector<2x2x8x256xf32>
    %427 = arith.mulf %422, %426 : vector<2x2x8x256xf32>
    %428 = arith.addf %421, %427 : vector<2x2x8x256xf32>
    %c1_319 = arith.constant 1 : index
    %c2_320 = arith.constant 2 : index
    %c0_321 = arith.constant 0 : index
    %c0_322 = arith.constant 0 : index
    %429 = vector.load %arg26[%c1_319, %c2_320, %c0_321, %c0_322] : memref<4x4x8x256xf32, #tpu.memory_space<vmem>>, vector<2x2x8x256xf32>
    %430 = vector.extract_strided_slice %392 {offsets = [1, 2, 0], sizes = [1, 1, 256], strides = [1, 1, 1]} : vector<3x3x256xf32> to vector<1x1x256xf32>
    %431 = vector.shape_cast %430 : vector<1x1x256xf32> to vector<256xf32>
    %432 = vector.shape_cast %431 : vector<256xf32> to vector<1x1x1x256xf32>
    %433 = vector.broadcast %432 : vector<1x1x1x256xf32> to vector<2x2x8x256xf32>
    %434 = arith.mulf %429, %433 : vector<2x2x8x256xf32>
    %435 = arith.addf %428, %434 : vector<2x2x8x256xf32>
    %c2_323 = arith.constant 2 : index
    %c0_324 = arith.constant 0 : index
    %c0_325 = arith.constant 0 : index
    %c0_326 = arith.constant 0 : index
    %436 = vector.load %arg26[%c2_323, %c0_324, %c0_325, %c0_326] : memref<4x4x8x256xf32, #tpu.memory_space<vmem>>, vector<2x2x8x256xf32>
    %437 = vector.extract_strided_slice %392 {offsets = [2, 0, 0], sizes = [1, 1, 256], strides = [1, 1, 1]} : vector<3x3x256xf32> to vector<1x1x256xf32>
    %438 = vector.shape_cast %437 : vector<1x1x256xf32> to vector<256xf32>
    %439 = vector.shape_cast %438 : vector<256xf32> to vector<1x1x1x256xf32>
    %440 = vector.broadcast %439 : vector<1x1x1x256xf32> to vector<2x2x8x256xf32>
    %441 = arith.mulf %436, %440 : vector<2x2x8x256xf32>
    %442 = arith.addf %435, %441 : vector<2x2x8x256xf32>
    %c2_327 = arith.constant 2 : index
    %c1_328 = arith.constant 1 : index
    %c0_329 = arith.constant 0 : index
    %c0_330 = arith.constant 0 : index
    %443 = vector.load %arg26[%c2_327, %c1_328, %c0_329, %c0_330] : memref<4x4x8x256xf32, #tpu.memory_space<vmem>>, vector<2x2x8x256xf32>
    %444 = vector.extract_strided_slice %392 {offsets = [2, 1, 0], sizes = [1, 1, 256], strides = [1, 1, 1]} : vector<3x3x256xf32> to vector<1x1x256xf32>
    %445 = vector.shape_cast %444 : vector<1x1x256xf32> to vector<256xf32>
    %446 = vector.shape_cast %445 : vector<256xf32> to vector<1x1x1x256xf32>
    %447 = vector.broadcast %446 : vector<1x1x1x256xf32> to vector<2x2x8x256xf32>
    %448 = arith.mulf %443, %447 : vector<2x2x8x256xf32>
    %449 = arith.addf %442, %448 : vector<2x2x8x256xf32>
    %c2_331 = arith.constant 2 : index
    %c2_332 = arith.constant 2 : index
    %c0_333 = arith.constant 0 : index
    %c0_334 = arith.constant 0 : index
    %450 = vector.load %arg26[%c2_331, %c2_332, %c0_333, %c0_334] : memref<4x4x8x256xf32, #tpu.memory_space<vmem>>, vector<2x2x8x256xf32>
    %451 = vector.extract_strided_slice %392 {offsets = [2, 2, 0], sizes = [1, 1, 256], strides = [1, 1, 1]} : vector<3x3x256xf32> to vector<1x1x256xf32>
    %452 = vector.shape_cast %451 : vector<1x1x256xf32> to vector<256xf32>
    %453 = vector.shape_cast %452 : vector<256xf32> to vector<1x1x1x256xf32>
    %454 = vector.broadcast %453 : vector<1x1x1x256xf32> to vector<2x2x8x256xf32>
    %455 = arith.mulf %450, %454 : vector<2x2x8x256xf32>
    %456 = arith.addf %449, %455 : vector<2x2x8x256xf32>
    %457 = vector.shape_cast %456 : vector<2x2x8x256xf32> to vector<32x256xf32>
    %458 = arith.truncf %457 : vector<32x256xf32> to vector<32x256xbf16>
    %cst_335 = arith.constant dense<0.000000e+00> : vector<32x256xf32>
    %459 = tpu.matmul %458, %393, %cst_335 {dimension_numbers = #tpu.dot_dimension_numbers<[1], [0], [0], [1], [0, 0, 1, 1], [], []>} : vector<32x256xbf16>, vector<256x256xbf16>, vector<32x256xf32> -> vector<32x256xf32>
    %460 = vector.broadcast %394 : vector<1x256xf32> to vector<32x256xf32>
    %461 = arith.addf %459, %460 : vector<32x256xf32>
    %cst_336 = arith.constant 0.000000e+00 : f32
    %462 = vector.broadcast %cst_336 : f32 to vector<32x256xf32>
    %463 = arith.maximumf %461, %462 : vector<32x256xf32>
    %464 = vector.shape_cast %463 : vector<32x256xf32> to vector<2x2x8x256xf32>
    %cst_337 = arith.constant dense<0.000000e+00> : vector<8x256xf32>
    %465 = vector.multi_reduction <add>, %464, %cst_337 [0, 1] : vector<2x2x8x256xf32> to vector<8x256xf32>
    %cst_338 = arith.constant 2.500000e-01 : f32
    %466 = vector.broadcast %cst_338 : f32 to vector<8x256xf32>
    %467 = arith.mulf %465, %466 : vector<8x256xf32>
    %468 = arith.truncf %467 : vector<8x256xf32> to vector<8x256xbf16>
    %c0_339 = arith.constant 0 : index
    %c0_340 = arith.constant 0 : index
    %469 = vector.load %arg19[%c0_339, %c0_340] : memref<256x128xbf16, #tpu.memory_space<vmem>>, vector<256x128xbf16>
    %cst_341 = arith.constant dense<0.000000e+00> : vector<8x128xf32>
    %470 = tpu.matmul %468, %469, %cst_341 {dimension_numbers = #tpu.dot_dimension_numbers<[1], [0], [0], [1], [0, 0, 1, 1], [], []>} : vector<8x256xbf16>, vector<256x128xbf16>, vector<8x128xf32> -> vector<8x128xf32>
    %c0_342 = arith.constant 0 : index
    %c0_343 = arith.constant 0 : index
    %471 = vector.load %arg20[%c0_342, %c0_343] : memref<1x128xf32, #tpu.memory_space<vmem>>, vector<1x128xf32>
    %472 = vector.broadcast %471 : vector<1x128xf32> to vector<8x128xf32>
    %473 = arith.addf %470, %472 : vector<8x128xf32>
    %c0_344 = arith.constant 0 : index
    %c0_345 = arith.constant 0 : index
    %474 = vector.load %arg21[%c0_344, %c0_345] : memref<8x128xf32, #tpu.memory_space<vmem>>, vector<8x128xf32>
    tpu.vector_store %arg21[%c0_344, %c0_345], %473 {strides = array<i32>} : memref<8x128xf32, #tpu.memory_space<vmem>>, vector<8x128xf32>,
    return
  }
  func.func @transform_0(%arg0: i32) -> (i32, i32, i32) {
    %c0_i32 = arith.constant 0 : i32
    %c0_i32_0 = arith.constant 0 : i32
    %c0_i32_1 = arith.constant 0 : i32
    return %c0_i32, %arg0, %c0_i32_0 : i32, i32, i32
  }
  func.func @transform_1(%arg0: i32) -> (i32, i32) {
    %c0_i32 = arith.constant 0 : i32
    %c0_i32_0 = arith.constant 0 : i32
    %c0_i32_1 = arith.constant 0 : i32
    return %c0_i32, %c0_i32_0 : i32, i32
  }
  func.func @transform_2(%arg0: i32) -> (i32, i32) {
    %c0_i32 = arith.constant 0 : i32
    %c0_i32_0 = arith.constant 0 : i32
    %c0_i32_1 = arith.constant 0 : i32
    return %c0_i32, %c0_i32_0 : i32, i32
  }
  func.func @transform_3(%arg0: i32) -> (i32, i32, i32) {
    %c0_i32 = arith.constant 0 : i32
    %c0_i32_0 = arith.constant 0 : i32
    %c0_i32_1 = arith.constant 0 : i32
    %c0_i32_2 = arith.constant 0 : i32
    return %c0_i32, %c0_i32_0, %c0_i32_1 : i32, i32, i32
  }
  func.func @transform_4(%arg0: i32) -> (i32, i32) {
    %c0_i32 = arith.constant 0 : i32
    %c0_i32_0 = arith.constant 0 : i32
    %c0_i32_1 = arith.constant 0 : i32
    return %c0_i32, %c0_i32_0 : i32, i32
  }
  func.func @transform_5(%arg0: i32) -> (i32, i32) {
    %c0_i32 = arith.constant 0 : i32
    %c0_i32_0 = arith.constant 0 : i32
    %c0_i32_1 = arith.constant 0 : i32
    return %c0_i32, %c0_i32_0 : i32, i32
  }
  func.func @transform_6(%arg0: i32) -> (i32, i32, i32) {
    %c0_i32 = arith.constant 0 : i32
    %c0_i32_0 = arith.constant 0 : i32
    %c0_i32_1 = arith.constant 0 : i32
    %c0_i32_2 = arith.constant 0 : i32
    return %c0_i32, %c0_i32_0, %c0_i32_1 : i32, i32, i32
  }
  func.func @transform_7(%arg0: i32) -> (i32, i32) {
    %c0_i32 = arith.constant 0 : i32
    %c0_i32_0 = arith.constant 0 : i32
    %c0_i32_1 = arith.constant 0 : i32
    return %c0_i32, %c0_i32_0 : i32, i32
  }
  func.func @transform_8(%arg0: i32) -> (i32, i32) {
    %c0_i32 = arith.constant 0 : i32
    %c0_i32_0 = arith.constant 0 : i32
    %c0_i32_1 = arith.constant 0 : i32
    return %c0_i32, %c0_i32_0 : i32, i32
  }
  func.func @transform_9(%arg0: i32) -> (i32, i32, i32) {
    %c0_i32 = arith.constant 0 : i32
    %c0_i32_0 = arith.constant 0 : i32
    %c0_i32_1 = arith.constant 0 : i32
    %c0_i32_2 = arith.constant 0 : i32
    return %c0_i32, %c0_i32_0, %c0_i32_1 : i32, i32, i32
  }
  func.func @transform_10(%arg0: i32) -> (i32, i32) {
    %c0_i32 = arith.constant 0 : i32
    %c0_i32_0 = arith.constant 0 : i32
    %c0_i32_1 = arith.constant 0 : i32
    return %c0_i32, %c0_i32_0 : i32, i32
  }
  func.func @transform_11(%arg0: i32) -> (i32, i32) {
    %c0_i32 = arith.constant 0 : i32
    %c0_i32_0 = arith.constant 0 : i32
    %c0_i32_1 = arith.constant 0 : i32
    return %c0_i32, %c0_i32_0 : i32, i32
  }
  func.func @transform_12(%arg0: i32) -> (i32, i32, i32) {
    %c0_i32 = arith.constant 0 : i32
    %c0_i32_0 = arith.constant 0 : i32
    %c0_i32_1 = arith.constant 0 : i32
    %c0_i32_2 = arith.constant 0 : i32
    return %c0_i32, %c0_i32_0, %c0_i32_1 : i32, i32, i32
  }
  func.func @transform_13(%arg0: i32) -> (i32, i32) {
    %c0_i32 = arith.constant 0 : i32
    %c0_i32_0 = arith.constant 0 : i32
    %c0_i32_1 = arith.constant 0 : i32
    return %c0_i32, %c0_i32_0 : i32, i32
  }
  func.func @transform_14(%arg0: i32) -> (i32, i32) {
    %c0_i32 = arith.constant 0 : i32
    %c0_i32_0 = arith.constant 0 : i32
    %c0_i32_1 = arith.constant 0 : i32
    return %c0_i32, %c0_i32_0 : i32, i32
  }
  func.func @transform_15(%arg0: i32) -> (i32, i32, i32) {
    %c0_i32 = arith.constant 0 : i32
    %c0_i32_0 = arith.constant 0 : i32
    %c0_i32_1 = arith.constant 0 : i32
    %c0_i32_2 = arith.constant 0 : i32
    return %c0_i32, %c0_i32_0, %c0_i32_1 : i32, i32, i32
  }
  func.func @transform_16(%arg0: i32) -> (i32, i32) {
    %c0_i32 = arith.constant 0 : i32
    %c0_i32_0 = arith.constant 0 : i32
    %c0_i32_1 = arith.constant 0 : i32
    return %c0_i32, %c0_i32_0 : i32, i32
  }
  func.func @transform_17(%arg0: i32) -> (i32, i32) {
    %c0_i32 = arith.constant 0 : i32
    %c0_i32_0 = arith.constant 0 : i32
    %c0_i32_1 = arith.constant 0 : i32
    return %c0_i32, %c0_i32_0 : i32, i32
  }
  func.func @transform_18(%arg0: i32) -> (i32, i32) {
    %c0_i32 = arith.constant 0 : i32
    %c0_i32_0 = arith.constant 0 : i32
    %c0_i32_1 = arith.constant 0 : i32
    return %c0_i32, %c0_i32_0 : i32, i32
  }
  func.func @transform_19(%arg0: i32) -> (i32, i32) {
    %c0_i32 = arith.constant 0 : i32
    %c0_i32_0 = arith.constant 0 : i32
    %c0_i32_1 = arith.constant 0 : i32
    return %c0_i32, %c0_i32_0 : i32, i32
  }
  func.func @transform_20(%arg0: i32) -> (i32, i32) {
    %c0_i32 = arith.constant 0 : i32
    %c0_i32_0 = arith.constant 0 : i32
    return %arg0, %c0_i32 : i32, i32
  }
}

</mosaic_0001>

<llo_original>
// kernel: tpu_custom_call.1
$region0: #{tpu_custom_call.1}
  #allocation0 [shape = 'u32[]', space=smem, size = 0x4, offset = 0x4, fixed_abs, tag = 'smem constant byte address 0x4 - core index']
  #allocation1 [shape = 'u32[72,128]{1,0:T(1,128)}', space=vmem, size = 0x9000, scoped, tag = 'internal scratch']
  #allocation2 [shape = 'f32[10,10,8,32]{3,2,1,0:T(8,128)}', space=vmem, size = 0x64000, scoped, tag = 'scratch operand']
  #allocation3 [shape = 'f32[10,10,8,64]{3,2,1,0:T(8,128)}', space=vmem, size = 0x64000, scoped, tag = 'scratch operand']
  #allocation4 [shape = 'f32[6,6,8,128]{3,2,1,0:T(8,128)}', space=vmem, size = 0x24000, scoped, tag = 'scratch operand']
  #allocation5 [shape = 'f32[6,6,8,128]{3,2,1,0:T(8,128)}', space=vmem, size = 0x24000, scoped, tag = 'scratch operand']
  #allocation6 [shape = 'f32[4,4,8,256]{3,2,1,0:T(8,128)}', space=vmem, size = 0x20000, scoped, tag = 'scratch operand']
  %s0 = inlined_call_operand.hbm [shape: f32[64,8,81], index: 0, kind: input, shape index: {}]
  %s1 = inlined_call_operand.vmem [shape: bf16[81,32], index: 1, kind: input, shape index: {}]
  %s2 = inlined_call_operand.vmem [shape: f32[1,32], index: 2, kind: input, shape index: {}]
  %s3 = inlined_call_operand.hbm [shape: f32[3,3,32], index: 3, kind: input, shape index: {}]
  %s4 = inlined_call_operand.hbm [shape: bf16[32,64], index: 4, kind: input, shape index: {}]
  %s5 = inlined_call_operand.hbm [shape: f32[1,64], index: 5, kind: input, shape index: {}]
  %s6 = inlined_call_operand.hbm [shape: f32[3,3,64], index: 6, kind: input, shape index: {}]
  %s7 = inlined_call_operand.hbm [shape: bf16[64,128], index: 7, kind: input, shape index: {}]
  %s8 = inlined_call_operand.hbm [shape: f32[1,128], index: 8, kind: input, shape index: {}]
  %s9 = inlined_call_operand.hbm [shape: f32[3,3,128], index: 9, kind: input, shape index: {}]
  %s10 = inlined_call_operand.vmem [shape: bf16[128,128], index: 10, kind: input, shape index: {}]
  %s11 = inlined_call_operand.vmem [shape: f32[1,128], index: 11, kind: input, shape index: {}]
  %s12 = inlined_call_operand.hbm [shape: f32[3,3,128], index: 12, kind: input, shape index: {}]
  %s13 = inlined_call_operand.hbm [shape: bf16[128,256], index: 13, kind: input, shape index: {}]
  %s14 = inlined_call_operand.vmem [shape: f32[1,256], index: 14, kind: input, shape index: {}]
  %s15 = inlined_call_operand.hbm [shape: f32[3,3,256], index: 15, kind: input, shape index: {}]
  %s16 = inlined_call_operand.hbm [shape: bf16[256,256], index: 16, kind: input, shape index: {}]
  %s17 = inlined_call_operand.vmem [shape: f32[1,256], index: 17, kind: input, shape index: {}]
  %s18 = inlined_call_operand.hbm [shape: bf16[256,128], index: 18, kind: input, shape index: {}]
  %s19 = inlined_call_operand.vmem [shape: f32[1,128], index: 19, kind: input, shape index: {}]
  %s20 = inlined_call_operand.hbm [shape: f32[8,128], index: 20, kind: output, shape index: {}]
  %s21 = sld [smem:[#allocation0]]
  $region142: #{tpu_custom_call.1} parent=0
    _
  %s23 = ssub.s32 1, %s21
  %s24 = scalar_select 0, %s23, %s21
  $region1: #{tpu_custom_call.1} parent=0
    #allocation7 [shape = 'u8[262144]{0}', space=vmem, size = 0x40000, scoped, tag = 'input window, operand 0, single buffered']
    #allocation8 [shape = 's32[1]{0}', space=sflag, size = 0x4, scoped, tag = 'scoped memory for tpu_custom_call.1']
    #allocation9 [shape = 's32[1]{0}', space=sflag, size = 0x4, scoped, tag = 'scoped memory for tpu_custom_call.1']
    #allocation10 [shape = 'u8[6144]{0}', space=vmem, size = 0x1800, scoped, tag = 'input window, operand 3, single buffered']
    #allocation11 [shape = 's32[1]{0}', space=sflag, size = 0x4, scoped, tag = 'scoped memory for tpu_custom_call.1']
    #allocation12 [shape = 'u8[8192]{0}', space=vmem, size = 0x2000, scoped, tag = 'input window, operand 4, single buffered']
    #allocation13 [shape = 'u8[512]{0}', space=vmem, size = 0x400, scoped, tag = 'input window, operand 5, single buffered']
    #allocation14 [shape = 's32[1]{0}', space=sflag, size = 0x4, scoped, tag = 'scoped memory for tpu_custom_call.1']
    #allocation15 [shape = 'u8[6144]{0}', space=vmem, size = 0x1800, scoped, tag = 'input window, operand 6, single buffered']
    #allocation16 [shape = 'u8[16384]{0}', space=vmem, size = 0x4000, scoped, tag = 'input window, operand 7, single buffered']
    #allocation17 [shape = 's32[1]{0}', space=sflag, size = 0x4, scoped, tag = 'scoped memory for tpu_custom_call.1']
    #allocation18 [shape = 'u8[512]{0}', space=vmem, size = 0x400, scoped, tag = 'input window, operand 8, single buffered']
    #allocation19 [shape = 'u8[6144]{0}', space=vmem, size = 0x1800, scoped, tag = 'input window, operand 9, single buffered']
    #allocation20 [shape = 's32[1]{0}', space=sflag, size = 0x4, scoped, tag = 'scoped memory for tpu_custom_call.1']
    #allocation21 [shape = 'u8[6144]{0}', space=vmem, size = 0x1800, scoped, tag = 'input window, operand 12, single buffered']
    #allocation22 [shape = 'u8[65536]{0}', space=vmem, size = 0x10000, scoped, tag = 'input window, operand 13, single buffered']
    #allocation23 [shape = 's32[1]{0}', space=sflag, size = 0x4, scoped, tag = 'scoped memory for tpu_custom_call.1']
    #allocation24 [shape = 'u8[12288]{0}', space=vmem, size = 0x3000, scoped, tag = 'input window, operand 15, single buffered']
    #allocation25 [shape = 'u8[131072]{0}', space=vmem, size = 0x20000, scoped, tag = 'input window, operand 16, single buffered']
    #allocation26 [shape = 's32[1]{0}', space=sflag, size = 0x4, scoped, tag = 'scoped memory for tpu_custom_call.1']
    #allocation27 [shape = 'u8[65536]{0}', space=vmem, size = 0x10000, scoped, tag = 'input window, operand 18, single buffered']
    #allocation28 [shape = 'u8[4096]{0}', space=vmem, size = 0x1000, scoped, tag = 'output window, operand 0, single buffered']
    %25 = vsyncpa [#allocation8], 0
    %26 = vsyncpa [#allocation11], 0
    %27 = vsyncpa [#allocation14], 0
    %28 = vsyncpa [#allocation17], 0
    %29 = vsyncpa [#allocation20], 0
    %30 = vsyncpa [#allocation23], 0
    %31 = vsyncpa [#allocation26], 0
    %32 = vsyncpa [#allocation9], 0
    // Predicated region
    $region2: #{tpu_custom_call.1} parent=1 // pred_check
      _
    $region3: #{tpu_custom_call.1} parent=1 // pred_check_branch
      %34 = sbr.rel (0) target = $region5
    $region4: #{tpu_custom_call.1} parent=1 // pred_region
      %36 = vsyncadd [#allocation8], 0
      %s37 = sshll.u32 %s0, 4
      %s38 = int_to_ptr.hbm [resolvable:$true] %s37
      %s39 = sshll.u32 [#allocation7], 4
      %s40 = int_to_ptr.vmem [resolvable:$true] %s39
      %45 = dma.hbm_to_vmem [thread:$0]  %s38, 8192, %s40, [#allocation8], 128, 128, 8
    $region5: #{tpu_custom_call.1} parent=1 // pred_fallthru
      _
    // Predicated region
    $region6: #{tpu_custom_call.1} parent=1 // pred_check
      _
    $region7: #{tpu_custom_call.1} parent=1 // pred_check_branch
      %47 = sbr.rel (0) target = $region9
    $region8: #{tpu_custom_call.1} parent=1 // pred_region
      _
    $region9: #{tpu_custom_call.1} parent=1 // pred_fallthru
      _
    // Predicated region
    $region10: #{tpu_custom_call.1} parent=1 // pred_check
      _
    $region11: #{tpu_custom_call.1} parent=1 // pred_check_branch
      %49 = sbr.rel (0) target = $region13
    $region12: #{tpu_custom_call.1} parent=1 // pred_region
      _
    $region13: #{tpu_custom_call.1} parent=1 // pred_fallthru
      _
    // Predicated region
    $region14: #{tpu_custom_call.1} parent=1 // pred_check
      _
    $region15: #{tpu_custom_call.1} parent=1 // pred_check_branch
      %51 = sbr.rel (0) target = $region17
    $region16: #{tpu_custom_call.1} parent=1 // pred_region
      %53 = vsyncadd [#allocation11], 0
      %s54 = sshll.u32 %s3, 4
      %s55 = int_to_ptr.hbm [resolvable:$true] %s54
      %s56 = sshll.u32 [#allocation10], 4
      %s57 = int_to_ptr.vmem [resolvable:$true] %s56
      %62 = dma.hbm_to_vmem [thread:$0]  %s55, 192, %s57, [#allocation11], 64, 64, 4
    $region17: #{tpu_custom_call.1} parent=1 // pred_fallthru
      _
    // Predicated region
    $region18: #{tpu_custom_call.1} parent=1 // pred_check
      _
    $region19: #{tpu_custom_call.1} parent=1 // pred_check_branch
      %64 = sbr.rel (0) target = $region21
    $region20: #{tpu_custom_call.1} parent=1 // pred_region
      %66 = vsyncadd [#allocation11], 0
      %s67 = sshll.u32 %s4, 4
      %s68 = int_to_ptr.hbm [resolvable:$true] %s67
      %s69 = sshll.u32 [#allocation12], 4
      %s70 = int_to_ptr.vmem [resolvable:$true] %s69
      %75 = dma.hbm_to_vmem [thread:$0]  %s68, 256, %s70, [#allocation11], 64, 64, 4
    $region21: #{tpu_custom_call.1} parent=1 // pred_fallthru
      _
    // Predicated region
    $region22: #{tpu_custom_call.1} parent=1 // pred_check
      _
    $region23: #{tpu_custom_call.1} parent=1 // pred_check_branch
      %77 = sbr.rel (0) target = $region25
    $region24: #{tpu_custom_call.1} parent=1 // pred_region
      %79 = vsyncadd [#allocation14], 0
      %s81 = sshll.u32 %s5, 4
      %s82 = int_to_ptr.hbm [resolvable:$true] %s81
      %s83 = sshll.u32 [#allocation13], 4
      %s84 = int_to_ptr.vmem [resolvable:$true] %s83
      %86 = dma.hbm_to_vmem [thread:$0]  %s82, 16, %s84, [#allocation14]
    $region25: #{tpu_custom_call.1} parent=1 // pred_fallthru
      _
    // Predicated region
    $region26: #{tpu_custom_call.1} parent=1 // pred_check
      _
    $region27: #{tpu_custom_call.1} parent=1 // pred_check_branch
      %88 = sbr.rel (0) target = $region29
    $region28: #{tpu_custom_call.1} parent=1 // pred_region
      %90 = vsyncadd [#allocation14], 0
      %s91 = sshll.u32 %s6, 4
      %s92 = int_to_ptr.hbm [resolvable:$true] %s91
      %s93 = sshll.u32 [#allocation15], 4
      %s94 = int_to_ptr.vmem [resolvable:$true] %s93
      %99 = dma.hbm_to_vmem [thread:$0]  %s92, 192, %s94, [#allocation14], 64, 64, 4
    $region29: #{tpu_custom_call.1} parent=1 // pred_fallthru
      _
    // Predicated region
    $region30: #{tpu_custom_call.1} parent=1 // pred_check
      _
    $region31: #{tpu_custom_call.1} parent=1 // pred_check_branch
      %101 = sbr.rel (0) target = $region33
    $region32: #{tpu_custom_call.1} parent=1 // pred_region
      %103 = vsyncadd [#allocation17], 0
      %s104 = sshll.u32 %s7, 4
      %s105 = int_to_ptr.hbm [resolvable:$true] %s104
      %s106 = sshll.u32 [#allocation16], 4
      %s107 = int_to_ptr.vmem [resolvable:$true] %s106
      %112 = dma.hbm_to_vmem [thread:$0]  %s105, 512, %s107, [#allocation17], 64, 64, 4
    $region33: #{tpu_custom_call.1} parent=1 // pred_fallthru
      _
    // Predicated region
    $region34: #{tpu_custom_call.1} parent=1 // pred_check
      _
    $region35: #{tpu_custom_call.1} parent=1 // pred_check_branch
      %114 = sbr.rel (0) target = $region37
    $region36: #{tpu_custom_call.1} parent=1 // pred_region
      %116 = vsyncadd [#allocation17], 0
      %s118 = sshll.u32 %s8, 4
      %s119 = int_to_ptr.hbm [resolvable:$true] %s118
      %s120 = sshll.u32 [#allocation18], 4
      %s121 = int_to_ptr.vmem [resolvable:$true] %s120
      %123 = dma.hbm_to_vmem [thread:$0]  %s119, 16, %s121, [#allocation17]
    $region37: #{tpu_custom_call.1} parent=1 // pred_fallthru
      _
    // Predicated region
    $region38: #{tpu_custom_call.1} parent=1 // pred_check
      _
    $region39: #{tpu_custom_call.1} parent=1 // pred_check_branch
      %125 = sbr.rel (0) target = $region41
    $region40: #{tpu_custom_call.1} parent=1 // pred_region
      %127 = vsyncadd [#allocation20], 0
      %s128 = sshll.u32 %s9, 4
      %s129 = int_to_ptr.hbm [resolvable:$true] %s128
      %s130 = sshll.u32 [#allocation19], 4
      %s131 = int_to_ptr.vmem [resolvable:$true] %s130
      %136 = dma.hbm_to_vmem [thread:$0]  %s129, 192, %s131, [#allocation20], 64, 64, 4
    $region41: #{tpu_custom_call.1} parent=1 // pred_fallthru
      _
    // Predicated region
    $region42: #{tpu_custom_call.1} parent=1 // pred_check
      _
    $region43: #{tpu_custom_call.1} parent=1 // pred_check_branch
      %138 = sbr.rel (0) target = $region45
    $region44: #{tpu_custom_call.1} parent=1 // pred_region
      _
    $region45: #{tpu_custom_call.1} parent=1 // pred_fallthru
      _
    // Predicated region
    $region46: #{tpu_custom_call.1} parent=1 // pred_check
      _
    $region47: #{tpu_custom_call.1} parent=1 // pred_check_branch
      %140 = sbr.rel (0) target = $region49
    $region48: #{tpu_custom_call.1} parent=1 // pred_region
      _
    $region49: #{tpu_custom_call.1} parent=1 // pred_fallthru
      _
    // Predicated region
    $region50: #{tpu_custom_call.1} parent=1 // pred_check
      _
    $region51: #{tpu_custom_call.1} parent=1 // pred_check_branch
      %142 = sbr.rel (0) target = $region53
    $region52: #{tpu_custom_call.1} parent=1 // pred_region
      %144 = vsyncadd [#allocation20], 0
      %s145 = sshll.u32 %s12, 4
      %s146 = int_to_ptr.hbm [resolvable:$true] %s145
      %s147 = sshll.u32 [#allocation21], 4
      %s148 = int_to_ptr.vmem [resolvable:$true] %s147
      %153 = dma.hbm_to_vmem [thread:$0]  %s146, 192, %s148, [#allocation20], 64, 64, 4
    $region53: #{tpu_custom_call.1} parent=1 // pred_fallthru
      _
    // Predicated region
    $region54: #{tpu_custom_call.1} parent=1 // pred_check
      _
    $region55: #{tpu_custom_call.1} parent=1 // pred_check_branch
      %155 = sbr.rel (0) target = $region57
    $region56: #{tpu_custom_call.1} parent=1 // pred_region
      %157 = vsyncadd [#allocation23], 0
      %s158 = sshll.u32 %s13, 4
      %s159 = int_to_ptr.hbm [resolvable:$true] %s158
      %s160 = sshll.u32 [#allocation22], 4
      %s161 = int_to_ptr.vmem [resolvable:$true] %s160
      %166 = dma.hbm_to_vmem [thread:$0]  %s159, 2048, %s161, [#allocation23], 128, 128, 8
    $region57: #{tpu_custom_call.1} parent=1 // pred_fallthru
      _
    // Predicated region
    $region58: #{tpu_custom_call.1} parent=1 // pred_check
      _
    $region59: #{tpu_custom_call.1} parent=1 // pred_check_branch
      %168 = sbr.rel (0) target = $region61
    $region60: #{tpu_custom_call.1} parent=1 // pred_region
      _
    $region61: #{tpu_custom_call.1} parent=1 // pred_fallthru
      _
    // Predicated region
    $region62: #{tpu_custom_call.1} parent=1 // pred_check
      _
    $region63: #{tpu_custom_call.1} parent=1 // pred_check_branch
      %170 = sbr.rel (0) target = $region65
    $region64: #{tpu_custom_call.1} parent=1 // pred_region
      %172 = vsyncadd [#allocation23], 0
      %s173 = sshll.u32 %s15, 4
      %s174 = int_to_ptr.hbm [resolvable:$true] %s173
      %s175 = sshll.u32 [#allocation24], 4
      %s176 = int_to_ptr.vmem [resolvable:$true] %s175
      %181 = dma.hbm_to_vmem [thread:$0]  %s174, 384, %s176, [#allocation23], 128, 128, 8
    $region65: #{tpu_custom_call.1} parent=1 // pred_fallthru
      _
    // Predicated region
    $region66: #{tpu_custom_call.1} parent=1 // pred_check
      _
    $region67: #{tpu_custom_call.1} parent=1 // pred_check_branch
      %183 = sbr.rel (0) target = $region69
    $region68: #{tpu_custom_call.1} parent=1 // pred_region
      %185 = vsyncadd [#allocation26], 0
      %s186 = sshll.u32 %s16, 4
      %s187 = int_to_ptr.hbm [resolvable:$true] %s186
      %s188 = sshll.u32 [#allocation25], 4
      %s189 = int_to_ptr.vmem [resolvable:$true] %s188
      %194 = dma.hbm_to_vmem [thread:$0]  %s187, 4096, %s189, [#allocation26], 128, 128, 8
    $region69: #{tpu_custom_call.1} parent=1 // pred_fallthru
      _
    // Predicated region
    $region70: #{tpu_custom_call.1} parent=1 // pred_check
      _
    $region71: #{tpu_custom_call.1} parent=1 // pred_check_branch
      %196 = sbr.rel (0) target = $region73
    $region72: #{tpu_custom_call.1} parent=1 // pred_region
      _
    $region73: #{tpu_custom_call.1} parent=1 // pred_fallthru
      _
    // Predicated region
    $region74: #{tpu_custom_call.1} parent=1 // pred_check
      _
    $region75: #{tpu_custom_call.1} parent=1 // pred_check_branch
      %198 = sbr.rel (0) target = $region77
    $region76: #{tpu_custom_call.1} parent=1 // pred_region
      %200 = vsyncadd [#allocation26], 0
      %s201 = sshll.u32 %s18, 4
      %s202 = int_to_ptr.hbm [resolvable:$true] %s201
      %s203 = sshll.u32 [#allocation27], 4
      %s204 = int_to_ptr.vmem [resolvable:$true] %s203
      %209 = dma.hbm_to_vmem [thread:$0]  %s202, 2048, %s204, [#allocation26], 64, 64, 4
    $region77: #{tpu_custom_call.1} parent=1 // pred_fallthru
      _
    // Predicated region
    $region78: #{tpu_custom_call.1} parent=1 // pred_check
      _
    $region79: #{tpu_custom_call.1} parent=1 // pred_check_branch
      %211 = sbr.rel (0) target = $region81
    $region80: #{tpu_custom_call.1} parent=1 // pred_region
      _
    $region81: #{tpu_custom_call.1} parent=1 // pred_fallthru
      _
    // Predicated region
    $region82: #{tpu_custom_call.1} parent=1 // pred_check
      _
    $region83: #{tpu_custom_call.1} parent=1 // pred_check_branch
      %213 = sbr.rel (0) target = $region85
    $region84: #{tpu_custom_call.1} parent=1 // pred_region
      %215 = dma.done [#allocation8], 8192
    $region85: #{tpu_custom_call.1} parent=1 // pred_fallthru
      _
    // Predicated region
    $region86: #{tpu_custom_call.1} parent=1 // pred_check
      _
    $region87: #{tpu_custom_call.1} parent=1 // pred_check_branch
      %217 = sbr.rel (0) target = $region89
    $region88: #{tpu_custom_call.1} parent=1 // pred_region
      %219 = dma.done [#allocation11], 192
    $region89: #{tpu_custom_call.1} parent=1 // pred_fallthru
      _
    // Predicated region
    $region90: #{tpu_custom_call.1} parent=1 // pred_check
      _
    $region91: #{tpu_custom_call.1} parent=1 // pred_check_branch
      %221 = sbr.rel (0) target = $region93
    $region92: #{tpu_custom_call.1} parent=1 // pred_region
      %223 = dma.done [#allocation11], 256
    $region93: #{tpu_custom_call.1} parent=1 // pred_fallthru
      _
    // Predicated region
    $region94: #{tpu_custom_call.1} parent=1 // pred_check
      _
    $region95: #{tpu_custom_call.1} parent=1 // pred_check_branch
      %225 = sbr.rel (0) target = $region97
    $region96: #{tpu_custom_call.1} parent=1 // pred_region
      %227 = dma.done [#allocation14], 16
    $region97: #{tpu_custom_call.1} parent=1 // pred_fallthru
      _
    // Predicated region
    $region98: #{tpu_custom_call.1} parent=1 // pred_check
      _
    $region99: #{tpu_custom_call.1} parent=1 // pred_check_branch
      %229 = sbr.rel (0) target = $region101
    $region100: #{tpu_custom_call.1} parent=1 // pred_region
      %231 = dma.done [#allocation14], 192
    $region101: #{tpu_custom_call.1} parent=1 // pred_fallthru
      _
    // Predicated region
    $region102: #{tpu_custom_call.1} parent=1 // pred_check
      _
    $region103: #{tpu_custom_call.1} parent=1 // pred_check_branch
      %233 = sbr.rel (0) target = $region105
    $region104: #{tpu_custom_call.1} parent=1 // pred_region
      %235 = dma.done [#allocation17], 512
    $region105: #{tpu_custom_call.1} parent=1 // pred_fallthru
      _
    // Predicated region
    $region106: #{tpu_custom_call.1} parent=1 // pred_check
      _
    $region107: #{tpu_custom_call.1} parent=1 // pred_check_branch
      %237 = sbr.rel (0) target = $region109
    $region108: #{tpu_custom_call.1} parent=1 // pred_region
      %239 = dma.done [#allocation17], 16
    $region109: #{tpu_custom_call.1} parent=1 // pred_fallthru
      _
    // Predicated region
    $region110: #{tpu_custom_call.1} parent=1 // pred_check
      _
    $region111: #{tpu_custom_call.1} parent=1 // pred_check_branch
      %241 = sbr.rel (0) target = $region113
    $region112: #{tpu_custom_call.1} parent=1 // pred_region
      %243 = dma.done [#allocation20], 192
    $region113: #{tpu_custom_call.1} parent=1 // pred_fallthru
      _
    // Predicated region
    $region114: #{tpu_custom_call.1} parent=1 // pred_check
      _
    $region115: #{tpu_custom_call.1} parent=1 // pred_check_branch
      %245 = sbr.rel (0) target = $region117
    $region116: #{tpu_custom_call.1} parent=1 // pred_region
      %247 = dma.done [#allocation20], 192
    $region117: #{tpu_custom_call.1} parent=1 // pred_fallthru
      _
    // Predicated region
    $region118: #{tpu_custom_call.1} parent=1 // pred_check
      _
    $region119: #{tpu_custom_call.1} parent=1 // pred_check_branch
      %249 = sbr.rel (0) target = $region121
    $region120: #{tpu_custom_call.1} parent=1 // pred_region
      %251 = dma.done [#allocation23], 2048
    $region121: #{tpu_custom_call.1} parent=1 // pred_fallthru
      _
    // Predicated region
    $region122: #{tpu_custom_call.1} parent=1 // pred_check
      _
    $region123: #{tpu_custom_call.1} parent=1 // pred_check_branch
      %253 = sbr.rel (0) target = $region125
    $region124: #{tpu_custom_call.1} parent=1 // pred_region
      %255 = dma.done [#allocation23], 384
    $region125: #{tpu_custom_call.1} parent=1 // pred_fallthru
      _
    // Predicated region
    $region126: #{tpu_custom_call.1} parent=1 // pred_check
      _
    $region127: #{tpu_custom_call.1} parent=1 // pred_check_branch
      %257 = sbr.rel (0) target = $region129
    $region128: #{tpu_custom_call.1} parent=1 // pred_region
      %259 = dma.done [#allocation26], 4096
    $region129: #{tpu_custom_call.1} parent=1 // pred_fallthru
      _
    // Predicated region
    $region130: #{tpu_custom_call.1} parent=1 // pred_check
      _
    $region131: #{tpu_custom_call.1} parent=1 // pred_check_branch
      %261 = sbr.rel (0) target = $region133
    $region132: #{tpu_custom_call.1} parent=1 // pred_region
      %263 = dma.done [#allocation26], 2048
    $region133: #{tpu_custom_call.1} parent=1 // pred_fallthru
      _
    %vm265 = vcmask 261120
    %266 = vst.msk [vmem:[#allocation2] sm:$0xff] %vm265, 0.0
    %267 = vst.msk [vmem:[#allocation2 + $0x8] sm:$0xff] %vm265, 0.0
    %268 = vst.msk [vmem:[#allocation2 + $0x10] sm:$0xff] %vm265, 0.0
    %269 = vst.msk [vmem:[#allocation2 + $0x18] sm:$0xff] %vm265, 0.0
    %270 = vst.msk [vmem:[#allocation2 + $0x20] sm:$0xff] %vm265, 0.0
    %271 = vst.msk [vmem:[#allocation2 + $0x28] sm:$0xff] %vm265, 0.0
    %272 = vst.msk [vmem:[#allocation2 + $0x30] sm:$0xff] %vm265, 0.0
    %273 = vst.msk [vmem:[#allocation2 + $0x38] sm:$0xff] %vm265, 0.0
    %274 = vst.msk [vmem:[#allocation2 + $0x40] sm:$0xff] %vm265, 0.0
    %275 = vst.msk [vmem:[#allocation2 + $0x48] sm:$0xff] %vm265, 0.0
    %s276 = scalar_lea.vmem [#allocation2], 720
    %277 = vst.msk [vmem:[%s276] sm:$0xff] %vm265, 0.0
    %278 = vst.msk [vmem:[%s276 + $0x8] sm:$0xff] %vm265, 0.0
    %279 = vst.msk [vmem:[%s276 + $0x10] sm:$0xff] %vm265, 0.0
    %280 = vst.msk [vmem:[%s276 + $0x18] sm:$0xff] %vm265, 0.0
    %281 = vst.msk [vmem:[%s276 + $0x20] sm:$0xff] %vm265, 0.0
    %282 = vst.msk [vmem:[%s276 + $0x28] sm:$0xff] %vm265, 0.0
    %283 = vst.msk [vmem:[%s276 + $0x30] sm:$0xff] %vm265, 0.0
    %284 = vst.msk [vmem:[%s276 + $0x38] sm:$0xff] %vm265, 0.0
    %285 = vst.msk [vmem:[%s276 + $0x40] sm:$0xff] %vm265, 0.0
    %286 = vst.msk [vmem:[%s276 + $0x48] sm:$0xff] %vm265, 0.0
    %287 = vst.msk [vmem:[#allocation2] sm:$0xff] %vm265, 0.0
    %288 = vst.msk [vmem:[#allocation2 + $0x50] sm:$0xff] %vm265, 0.0
    %289 = vst.msk [vmem:[#allocation2 + $0xa0] sm:$0xff] %vm265, 0.0
    %290 = vst.msk [vmem:[#allocation2 + $0xf0] sm:$0xff] %vm265, 0.0
    %291 = vst.msk [vmem:[#allocation2 + $0x140] sm:$0xff] %vm265, 0.0
    %292 = vst.msk [vmem:[#allocation2 + $0x190] sm:$0xff] %vm265, 0.0
    %293 = vst.msk [vmem:[#allocation2 + $0x1e0] sm:$0xff] %vm265, 0.0
    %294 = vst.msk [vmem:[#allocation2 + $0x230] sm:$0xff] %vm265, 0.0
    %295 = vst.msk [vmem:[#allocation2 + $0x280] sm:$0xff] %vm265, 0.0
    %296 = vst.msk [vmem:[#allocation2 + $0x2d0] sm:$0xff] %vm265, 0.0
    %s297 = scalar_lea.vmem [#allocation2], 72
    %298 = vst.msk [vmem:[%s297] sm:$0xff] %vm265, 0.0
    %299 = vst.msk [vmem:[%s297 + $0x50] sm:$0xff] %vm265, 0.0
    %300 = vst.msk [vmem:[%s297 + $0xa0] sm:$0xff] %vm265, 0.0
    %301 = vst.msk [vmem:[%s297 + $0xf0] sm:$0xff] %vm265, 0.0
    %302 = vst.msk [vmem:[%s297 + $0x140] sm:$0xff] %vm265, 0.0
    %303 = vst.msk [vmem:[%s297 + $0x190] sm:$0xff] %vm265, 0.0
    %304 = vst.msk [vmem:[%s297 + $0x1e0] sm:$0xff] %vm265, 0.0
    %305 = vst.msk [vmem:[%s297 + $0x230] sm:$0xff] %vm265, 0.0
    %306 = vst.msk [vmem:[%s297 + $0x280] sm:$0xff] %vm265, 0.0
    %307 = vst.msk [vmem:[%s297 + $0x2d0] sm:$0xff] %vm265, 0.0
    %vm308 = vcmask 523264
    %309 = vst.msk [vmem:[#allocation3] sm:$0xff] %vm308, 0.0
    %310 = vst.msk [vmem:[#allocation3 + $0x8] sm:$0xff] %vm308, 0.0
    %311 = vst.msk [vmem:[#allocation3 + $0x10] sm:$0xff] %vm308, 0.0
    %312 = vst.msk [vmem:[#allocation3 + $0x18] sm:$0xff] %vm308, 0.0
    %313 = vst.msk [vmem:[#allocation3 + $0x20] sm:$0xff] %vm308, 0.0
    %314 = vst.msk [vmem:[#allocation3 + $0x28] sm:$0xff] %vm308, 0.0
    %315 = vst.msk [vmem:[#allocation3 + $0x30] sm:$0xff] %vm308, 0.0
    %316 = vst.msk [vmem:[#allocation3 + $0x38] sm:$0xff] %vm308, 0.0
    %317 = vst.msk [vmem:[#allocation3 + $0x40] sm:$0xff] %vm308, 0.0
    %318 = vst.msk [vmem:[#allocation3 + $0x48] sm:$0xff] %vm308, 0.0
    %s319 = scalar_lea.vmem [#allocation3], 720
    %320 = vst.msk [vmem:[%s319] sm:$0xff] %vm308, 0.0
    %321 = vst.msk [vmem:[%s319 + $0x8] sm:$0xff] %vm308, 0.0
    %322 = vst.msk [vmem:[%s319 + $0x10] sm:$0xff] %vm308, 0.0
    %323 = vst.msk [vmem:[%s319 + $0x18] sm:$0xff] %vm308, 0.0
    %324 = vst.msk [vmem:[%s319 + $0x20] sm:$0xff] %vm308, 0.0
    %325 = vst.msk [vmem:[%s319 + $0x28] sm:$0xff] %vm308, 0.0
    %326 = vst.msk [vmem:[%s319 + $0x30] sm:$0xff] %vm308, 0.0
    %327 = vst.msk [vmem:[%s319 + $0x38] sm:$0xff] %vm308, 0.0
    %328 = vst.msk [vmem:[%s319 + $0x40] sm:$0xff] %vm308, 0.0
    %329 = vst.msk [vmem:[%s319 + $0x48] sm:$0xff] %vm308, 0.0
    %330 = vst.msk [vmem:[#allocation3] sm:$0xff] %vm308, 0.0
    %331 = vst.msk [vmem:[#allocation3 + $0x50] sm:$0xff] %vm308, 0.0
    %332 = vst.msk [vmem:[#allocation3 + $0xa0] sm:$0xff] %vm308, 0.0
    %333 = vst.msk [vmem:[#allocation3 + $0xf0] sm:$0xff] %vm308, 0.0
    %334 = vst.msk [vmem:[#allocation3 + $0x140] sm:$0xff] %vm308, 0.0
    %335 = vst.msk [vmem:[#allocation3 + $0x190] sm:$0xff] %vm308, 0.0
    %336 = vst.msk [vmem:[#allocation3 + $0x1e0] sm:$0xff] %vm308, 0.0
    %337 = vst.msk [vmem:[#allocation3 + $0x230] sm:$0xff] %vm308, 0.0
    %338 = vst.msk [vmem:[#allocation3 + $0x280] sm:$0xff] %vm308, 0.0
    %339 = vst.msk [vmem:[#allocation3 + $0x2d0] sm:$0xff] %vm308, 0.0
    %s340 = scalar_lea.vmem [#allocation3], 72
    %341 = vst.msk [vmem:[%s340] sm:$0xff] %vm308, 0.0
    %342 = vst.msk [vmem:[%s340 + $0x50] sm:$0xff] %vm308, 0.0
    %343 = vst.msk [vmem:[%s340 + $0xa0] sm:$0xff] %vm308, 0.0
    %344 = vst.msk [vmem:[%s340 + $0xf0] sm:$0xff] %vm308, 0.0
    %345 = vst.msk [vmem:[%s340 + $0x140] sm:$0xff] %vm308, 0.0
    %346 = vst.msk [vmem:[%s340 + $0x190] sm:$0xff] %vm308, 0.0
    %347 = vst.msk [vmem:[%s340 + $0x1e0] sm:$0xff] %vm308, 0.0
    %348 = vst.msk [vmem:[%s340 + $0x230] sm:$0xff] %vm308, 0.0
    %349 = vst.msk [vmem:[%s340 + $0x280] sm:$0xff] %vm308, 0.0
    %350 = vst.msk [vmem:[%s340 + $0x2d0] sm:$0xff] %vm308, 0.0
    %351 = vst [vmem:[#allocation4] sm:$0xff] 0.0
    %352 = vst [vmem:[#allocation4 + $0x8] sm:$0xff] 0.0
    %353 = vst [vmem:[#allocation4 + $0x10] sm:$0xff] 0.0
    %354 = vst [vmem:[#allocation4 + $0x18] sm:$0xff] 0.0
    %355 = vst [vmem:[#allocation4 + $0x20] sm:$0xff] 0.0
    %356 = vst [vmem:[#allocation4 + $0x28] sm:$0xff] 0.0
    %s357 = scalar_lea.vmem [#allocation4], 240
    %358 = vst [vmem:[%s357] sm:$0xff] 0.0
    %359 = vst [vmem:[%s357 + $0x8] sm:$0xff] 0.0
    %360 = vst [vmem:[%s357 + $0x10] sm:$0xff] 0.0
    %361 = vst [vmem:[%s357 + $0x18] sm:$0xff] 0.0
    %362 = vst [vmem:[%s357 + $0x20] sm:$0xff] 0.0
    %363 = vst [vmem:[%s357 + $0x28] sm:$0xff] 0.0
    %364 = vst [vmem:[#allocation4] sm:$0xff] 0.0
    %365 = vst [vmem:[#allocation4 + $0x30] sm:$0xff] 0.0
    %366 = vst [vmem:[#allocation4 + $0x60] sm:$0xff] 0.0
    %367 = vst [vmem:[#allocation4 + $0x90] sm:$0xff] 0.0
    %368 = vst [vmem:[#allocation4 + $0xc0] sm:$0xff] 0.0
    %369 = vst [vmem:[#allocation4 + $0xf0] sm:$0xff] 0.0
    %s370 = scalar_lea.vmem [#allocation4], 40
    %371 = vst [vmem:[%s370] sm:$0xff] 0.0
    %372 = vst [vmem:[%s370 + $0x30] sm:$0xff] 0.0
    %373 = vst [vmem:[%s370 + $0x60] sm:$0xff] 0.0
    %374 = vst [vmem:[%s370 + $0x90] sm:$0xff] 0.0
    %375 = vst [vmem:[%s370 + $0xc0] sm:$0xff] 0.0
    %376 = vst [vmem:[%s370 + $0xf0] sm:$0xff] 0.0
    %377 = vst [vmem:[#allocation5] sm:$0xff] 0.0
    %378 = vst [vmem:[#allocation5 + $0x8] sm:$0xff] 0.0
    %379 = vst [vmem:[#allocation5 + $0x10] sm:$0xff] 0.0
    %380 = vst [vmem:[#allocation5 + $0x18] sm:$0xff] 0.0
    %381 = vst [vmem:[#allocation5 + $0x20] sm:$0xff] 0.0
    %382 = vst [vmem:[#allocation5 + $0x28] sm:$0xff] 0.0
    %s383 = scalar_lea.vmem [#allocation5], 240
    %384 = vst [vmem:[%s383] sm:$0xff] 0.0
    %385 = vst [vmem:[%s383 + $0x8] sm:$0xff] 0.0
    %386 = vst [vmem:[%s383 + $0x10] sm:$0xff] 0.0
    %387 = vst [vmem:[%s383 + $0x18] sm:$0xff] 0.0
    %388 = vst [vmem:[%s383 + $0x20] sm:$0xff] 0.0
    %389 = vst [vmem:[%s383 + $0x28] sm:$0xff] 0.0
    %390 = vst [vmem:[#allocation5] sm:$0xff] 0.0
    %391 = vst [vmem:[#allocation5 + $0x30] sm:$0xff] 0.0
    %392 = vst [vmem:[#allocation5 + $0x60] sm:$0xff] 0.0
    %393 = vst [vmem:[#allocation5 + $0x90] sm:$0xff] 0.0
    %394 = vst [vmem:[#allocation5 + $0xc0] sm:$0xff] 0.0
    %395 = vst [vmem:[#allocation5 + $0xf0] sm:$0xff] 0.0
    %s396 = scalar_lea.vmem [#allocation5], 40
    %397 = vst [vmem:[%s396] sm:$0xff] 0.0
    %398 = vst [vmem:[%s396 + $0x30] sm:$0xff] 0.0
    %399 = vst [vmem:[%s396 + $0x60] sm:$0xff] 0.0
    %400 = vst [vmem:[%s396 + $0x90] sm:$0xff] 0.0
    %401 = vst [vmem:[%s396 + $0xc0] sm:$0xff] 0.0
    %402 = vst [vmem:[%s396 + $0xf0] sm:$0xff] 0.0
    %403 = vst [vmem:[#allocation6] sm:$0xff] 0.0
    %404 = vst [vmem:[#allocation6 + $0x8] sm:$0xff] 0.0
    %405 = vst [vmem:[#allocation6 + $0x10] sm:$0xff] 0.0
    %406 = vst [vmem:[#allocation6 + $0x18] sm:$0xff] 0.0
    %407 = vst [vmem:[#allocation6 + $0x20] sm:$0xff] 0.0
    %408 = vst [vmem:[#allocation6 + $0x28] sm:$0xff] 0.0
    %409 = vst [vmem:[#allocation6 + $0x30] sm:$0xff] 0.0
    %410 = vst [vmem:[#allocation6 + $0x38] sm:$0xff] 0.0
    %s411 = scalar_lea.vmem [#allocation6], 192
    %412 = vst [vmem:[%s411] sm:$0xff] 0.0
    %413 = vst [vmem:[%s411 + $0x8] sm:$0xff] 0.0
    %414 = vst [vmem:[%s411 + $0x10] sm:$0xff] 0.0
    %415 = vst [vmem:[%s411 + $0x18] sm:$0xff] 0.0
    %416 = vst [vmem:[%s411 + $0x20] sm:$0xff] 0.0
    %417 = vst [vmem:[%s411 + $0x28] sm:$0xff] 0.0
    %418 = vst [vmem:[%s411 + $0x30] sm:$0xff] 0.0
    %419 = vst [vmem:[%s411 + $0x38] sm:$0xff] 0.0
    %420 = vst [vmem:[#allocation6] sm:$0xff] 0.0
    %421 = vst [vmem:[#allocation6 + $0x8] sm:$0xff] 0.0
    %422 = vst [vmem:[#allocation6 + $0x40] sm:$0xff] 0.0
    %423 = vst [vmem:[#allocation6 + $0x48] sm:$0xff] 0.0
    %424 = vst [vmem:[#allocation6 + $0x80] sm:$0xff] 0.0
    %425 = vst [vmem:[#allocation6 + $0x88] sm:$0xff] 0.0
    %426 = vst [vmem:[#allocation6 + $0xc0] sm:$0xff] 0.0
    %427 = vst [vmem:[#allocation6 + $0xc8] sm:$0xff] 0.0
    %s428 = scalar_lea.vmem [#allocation6], 48
    %429 = vst [vmem:[%s428] sm:$0xff] 0.0
    %430 = vst [vmem:[%s428 + $0x8] sm:$0xff] 0.0
    %431 = vst [vmem:[%s428 + $0x40] sm:$0xff] 0.0
    %432 = vst [vmem:[%s428 + $0x48] sm:$0xff] 0.0
    %433 = vst [vmem:[%s428 + $0x80] sm:$0xff] 0.0
    %434 = vst [vmem:[%s428 + $0x88] sm:$0xff] 0.0
    %435 = vst [vmem:[%s428 + $0xc0] sm:$0xff] 0.0
    %436 = vst [vmem:[%s428 + $0xc8] sm:$0xff] 0.0
    %v437 = vld [vmem:[#allocation7] sm:$0xff]
    %v438 = vld [vmem:[#allocation7 + $0x8] sm:$0xff]
    %v439 = vld [vmem:[#allocation7 + $0x10] sm:$0xff]
    %v440 = vld [vmem:[#allocation7 + $0x18] sm:$0xff]
    %v441 = vld [vmem:[#allocation7 + $0x20] sm:$0xff]
    %v442 = vld [vmem:[#allocation7 + $0x28] sm:$0xff]
    %v443 = vld [vmem:[#allocation7 + $0x30] sm:$0xff]
    %v444 = vld [vmem:[#allocation7 + $0x38] sm:$0xff]
    %v445 = vld [vmem:[#allocation7 + $0x40] sm:$0xff]
    %v446 = vld [vmem:[#allocation7 + $0x48] sm:$0xff]
    %v447 = vld [vmem:[#allocation7 + $0x50] sm:$0xff]
    %v448 = vld [vmem:[#allocation7 + $0x58] sm:$0xff]
    %v449 = vld [vmem:[#allocation7 + $0x60] sm:$0xff]
    %v450 = vld [vmem:[#allocation7 + $0x68] sm:$0xff]
    %v451 = vld [vmem:[#allocation7 + $0x70] sm:$0xff]
    %v452 = vld [vmem:[#allocation7 + $0x78] sm:$0xff]
    %v453 = vld [vmem:[#allocation7 + $0x80] sm:$0xff]
    %v454 = vld [vmem:[#allocation7 + $0x88] sm:$0xff]
    %v455 = vld [vmem:[#allocation7 + $0x90] sm:$0xff]
    %v456 = vld [vmem:[#allocation7 + $0x98] sm:$0xff]
    %v457 = vld [vmem:[#allocation7 + $0xa0] sm:$0xff]
    %v458 = vld [vmem:[#allocation7 + $0xa8] sm:$0xff]
    %v459 = vld [vmem:[#allocation7 + $0xb0] sm:$0xff]
    %v460 = vld [vmem:[#allocation7 + $0xb8] sm:$0xff]
    %v461 = vld [vmem:[#allocation7 + $0xc0] sm:$0xff]
    %v462 = vld [vmem:[#allocation7 + $0xc8] sm:$0xff]
    %v463 = vld [vmem:[#allocation7 + $0xd0] sm:$0xff]
    %v464 = vld [vmem:[#allocation7 + $0xd8] sm:$0xff]
    %v465 = vld [vmem:[#allocation7 + $0xe0] sm:$0xff]
    %v466 = vld [vmem:[#allocation7 + $0xe8] sm:$0xff]
    %v467 = vld [vmem:[#allocation7 + $0xf0] sm:$0xff]
    %v468 = vld [vmem:[#allocation7 + $0xf8] sm:$0xff]
    %v469 = vld [vmem:[#allocation7 + $0x100] sm:$0xff]
    %v470 = vld [vmem:[#allocation7 + $0x108] sm:$0xff]
    %v471 = vld [vmem:[#allocation7 + $0x110] sm:$0xff]
    %v472 = vld [vmem:[#allocation7 + $0x118] sm:$0xff]
    %v473 = vld [vmem:[#allocation7 + $0x120] sm:$0xff]
    %v474 = vld [vmem:[#allocation7 + $0x128] sm:$0xff]
    %v475 = vld [vmem:[#allocation7 + $0x130] sm:$0xff]
    %v476 = vld [vmem:[#allocation7 + $0x138] sm:$0xff]
    %v477 = vld [vmem:[#allocation7 + $0x140] sm:$0xff]
    %v478 = vld [vmem:[#allocation7 + $0x148] sm:$0xff]
    %v479 = vld [vmem:[#allocation7 + $0x150] sm:$0xff]
    %v480 = vld [vmem:[#allocation7 + $0x158] sm:$0xff]
    %v481 = vld [vmem:[#allocation7 + $0x160] sm:$0xff]
    %v482 = vld [vmem:[#allocation7 + $0x168] sm:$0xff]
    %v483 = vld [vmem:[#allocation7 + $0x170] sm:$0xff]
    %v484 = vld [vmem:[#allocation7 + $0x178] sm:$0xff]
    %v485 = vld [vmem:[#allocation7 + $0x180] sm:$0xff]
    %v486 = vld [vmem:[#allocation7 + $0x188] sm:$0xff]
    %v487 = vld [vmem:[#allocation7 + $0x190] sm:$0xff]
    %v488 = vld [vmem:[#allocation7 + $0x198] sm:$0xff]
    %v489 = vld [vmem:[#allocation7 + $0x1a0] sm:$0xff]
    %v490 = vld [vmem:[#allocation7 + $0x1a8] sm:$0xff]
    %v491 = vld [vmem:[#allocation7 + $0x1b0] sm:$0xff]
    %v492 = vld [vmem:[#allocation7 + $0x1b8] sm:$0xff]
    %v493 = vld [vmem:[#allocation7 + $0x1c0] sm:$0xff]
    %v494 = vld [vmem:[#allocation7 + $0x1c8] sm:$0xff]
    %v495 = vld [vmem:[#allocation7 + $0x1d0] sm:$0xff]
    %v496 = vld [vmem:[#allocation7 + $0x1d8] sm:$0xff]
    %v497 = vld [vmem:[#allocation7 + $0x1e0] sm:$0xff]
    %v498 = vld [vmem:[#allocation7 + $0x1e8] sm:$0xff]
    %v499 = vld [vmem:[#allocation7 + $0x1f0] sm:$0xff]
    %v500 = vld [vmem:[#allocation7 + $0x1f8] sm:$0xff]
    %v501 = vpack.c.bf16 %v438, %v437
    %v502 = vpack.c.bf16 %v440, %v439
    %v503 = vpack.c.bf16 %v442, %v441
    %v504 = vpack.c.bf16 %v444, %v443
    %v505 = vpack.c.bf16 %v446, %v445
    %v506 = vpack.c.bf16 %v448, %v447
    %v507 = vpack.c.bf16 %v450, %v449
    %v508 = vpack.c.bf16 %v452, %v451
    %v509 = vpack.c.bf16 %v454, %v453
    %v510 = vpack.c.bf16 %v456, %v455
    %v511 = vpack.c.bf16 %v458, %v457
    %v512 = vpack.c.bf16 %v460, %v459
    %v513 = vpack.c.bf16 %v462, %v461
    %v514 = vpack.c.bf16 %v464, %v463
    %v515 = vpack.c.bf16 %v466, %v465
    %v516 = vpack.c.bf16 %v468, %v467
    %v517 = vpack.c.bf16 %v470, %v469
    %v518 = vpack.c.bf16 %v472, %v471
    %v519 = vpack.c.bf16 %v474, %v473
    %v520 = vpack.c.bf16 %v476, %v475
    %v521 = vpack.c.bf16 %v478, %v477
    %v522 = vpack.c.bf16 %v480, %v479
    %v523 = vpack.c.bf16 %v482, %v481
    %v524 = vpack.c.bf16 %v484, %v483
    %v525 = vpack.c.bf16 %v486, %v485
    %v526 = vpack.c.bf16 %v488, %v487
    %v527 = vpack.c.bf16 %v490, %v489
    %v528 = vpack.c.bf16 %v492, %v491
    %v529 = vpack.c.bf16 %v494, %v493
    %v530 = vpack.c.bf16 %v496, %v495
    %v531 = vpack.c.bf16 %v498, %v497
    %v532 = vpack.c.bf16 %v500, %v499
    %v533 = vld [vmem:[%s1] sm:$0xf]
    %v534 = vld [vmem:[%s1 + $0x4] sm:$0xf]
    %v535 = vld [vmem:[%s1 + $0x8] sm:$0xf]
    %v536 = vld [vmem:[%s1 + $0xc] sm:$0xf]
    %v537 = vld [vmem:[%s1 + $0x10] sm:$0xf]
    %v538 = vld [vmem:[%s1 + $0x14] sm:$0xf]
    %v539 = vld [vmem:[%s1 + $0x18] sm:$0xf]
    %v540 = vld [vmem:[%s1 + $0x1c] sm:$0xf]
    %v541 = vld [vmem:[%s1 + $0x20] sm:$0xf]
    %v542 = vld [vmem:[%s1 + $0x24] sm:$0xf]
    %v543 = vld [vmem:[%s1 + $0x28] sm:$0x1]
    %v544 = vld [vmem:[%s2] sm:$0x1]
    %v546 = vperm.slane %v544, 0
    %v559 = vunpack.c.l.b16 %v533
    %v560 = vunpack.c.l.b16 %v534
    %v561 = vunpack.c.l.b16 %v535
    %v562 = vunpack.c.l.b16 %v536
    %v563 = vunpack.c.l.b16 %v537
    %v564 = vunpack.c.l.b16 %v538
    %v565 = vunpack.c.l.b16 %v539
    %v566 = vunpack.c.l.b16 %v540
    %v567 = vunpack.c.l.b16 %v541
    %v568 = vunpack.c.l.b16 %v542
    %v569 = vunpack.c.l.b16 %v543
    %v570 = vpack.c.b16 %v560, %v559
    %v571 = vpack.c.b16 %v562, %v561
    %v572 = vpack.c.b16 %v564, %v563
    %v573 = vpack.c.b16 %v566, %v565
    %v574 = vpack.c.b16 %v568, %v567
    %v575 = vpack.c.b16 %v569, %v569
    %vm581 = vcmask 662528
    %v583 = vsel %vm581, %v501, 0
    %v586 = vsel %vm581, %v502, 0
    %v589 = vsel %vm581, %v503, 0
    %v592 = vsel %vm581, %v504, 0
    %v595 = vsel %vm581, %v505, 0
    %v598 = vsel %vm581, %v506, 0
    %v601 = vsel %vm581, %v507, 0
    %v604 = vsel %vm581, %v508, 0
    %v607 = vsel %vm581, %v509, 0
    %v610 = vsel %vm581, %v510, 0
    %v613 = vsel %vm581, %v511, 0
    %v616 = vsel %vm581, %v512, 0
    %v619 = vsel %vm581, %v513, 0
    %v622 = vsel %vm581, %v514, 0
    %v625 = vsel %vm581, %v515, 0
    %v628 = vsel %vm581, %v516, 0
    %v631 = vsel %vm581, %v517, 0
    %v634 = vsel %vm581, %v518, 0
    %v637 = vsel %vm581, %v519, 0
    %v640 = vsel %vm581, %v520, 0
    %v643 = vsel %vm581, %v521, 0
    %v646 = vsel %vm581, %v522, 0
    %v649 = vsel %vm581, %v523, 0
    %v652 = vsel %vm581, %v524, 0
    %v655 = vsel %vm581, %v525, 0
    %v658 = vsel %vm581, %v526, 0
    %v661 = vsel %vm581, %v527, 0
    %v664 = vsel %vm581, %v528, 0
    %v667 = vsel %vm581, %v529, 0
    %v670 = vsel %vm581, %v530, 0
    %v673 = vsel %vm581, %v531, 0
    %v676 = vsel %vm581, %v532, 0
    %vm678 = vcmask 1040384
    %v679 = vsel 0, 4294967295, 65535
    %v680 = vsel %vm678, %v679, 0
    %v682 = vand.u32 %v575, %v680
    %684 = vmatpush.bf16.msra.mxu0 0
    %685 = vmatpush.bf16.msra.mxu0 0
    %686 = vmatpush.bf16.msra.mxu0 %v682
    %687 = vmatpush.bf16.msra.mxu0 %v574
    %688 = vmatpush.bf16.msra.mxu0 %v573
    %689 = vmatpush.bf16.msra.mxu0 %v572
    %690 = vmatpush.bf16.msra.mxu0 %v571
    %691 = vmatpush.bf16.msra.mxu0 %v570
    %692 = vmatmul.bf16.gmra.mxu0 %v583
    %v693 = vpop.f32.mrf.mxu0
    %v694 = vadd.f32 %v546, %v693
    %v695 = vpop.f32.mrf.mxu0
    %v696 = vadd.f32 %v546, %v695
    %697 = vmatmul.bf16.gmra.mxu0 %v586
    %v698 = vpop.f32.mrf.mxu0
    %v699 = vadd.f32 %v546, %v698
    %v700 = vpop.f32.mrf.mxu0
    %v701 = vadd.f32 %v546, %v700
    %702 = vmatmul.bf16.gmra.mxu0 %v589
    %v703 = vpop.f32.mrf.mxu0
    %v704 = vadd.f32 %v546, %v703
    %v705 = vpop.f32.mrf.mxu0
    %v706 = vadd.f32 %v546, %v705
    %707 = vmatmul.bf16.gmra.mxu0 %v592
    %v708 = vpop.f32.mrf.mxu0
    %v709 = vadd.f32 %v546, %v708
    %v710 = vpop.f32.mrf.mxu0
    %v711 = vadd.f32 %v546, %v710
    %712 = vmatmul.bf16.gmra.mxu0 %v595
    %v713 = vpop.f32.mrf.mxu0
    %v714 = vadd.f32 %v546, %v713
    %v715 = vpop.f32.mrf.mxu0
    %v716 = vadd.f32 %v546, %v715
    %717 = vmatmul.bf16.gmra.mxu0 %v598
    %v718 = vpop.f32.mrf.mxu0
    %v719 = vadd.f32 %v546, %v718
    %v720 = vpop.f32.mrf.mxu0
    %v721 = vadd.f32 %v546, %v720
    %722 = vmatmul.bf16.gmra.mxu0 %v601
    %v723 = vpop.f32.mrf.mxu0
    %v724 = vadd.f32 %v546, %v723
    %v725 = vpop.f32.mrf.mxu0
    %v726 = vadd.f32 %v546, %v725
    %727 = vmatmul.bf16.gmra.mxu0 %v604
    %v728 = vpop.f32.mrf.mxu0
    %v729 = vadd.f32 %v546, %v728
    %v730 = vpop.f32.mrf.mxu0
    %v731 = vadd.f32 %v546, %v730
    %732 = vmatmul.bf16.gmra.mxu0 %v607
    %v733 = vpop.f32.mrf.mxu0
    %v734 = vadd.f32 %v546, %v733
    %v735 = vpop.f32.mrf.mxu0
    %v736 = vadd.f32 %v546, %v735
    %737 = vmatmul.bf16.gmra.mxu0 %v610
    %v738 = vpop.f32.mrf.mxu0
    %v739 = vadd.f32 %v546, %v738
    %v740 = vpop.f32.mrf.mxu0
    %v741 = vadd.f32 %v546, %v740
    %742 = vmatmul.bf16.gmra.mxu0 %v613
    %v743 = vpop.f32.mrf.mxu0
    %v744 = vadd.f32 %v546, %v743
    %v745 = vpop.f32.mrf.mxu0
    %v746 = vadd.f32 %v546, %v745
    %747 = vmatmul.bf16.gmra.mxu0 %v616
    %v748 = vpop.f32.mrf.mxu0
    %v749 = vadd.f32 %v546, %v748
    %v750 = vpop.f32.mrf.mxu0
    %v751 = vadd.f32 %v546, %v750
    %752 = vmatmul.bf16.gmra.mxu0 %v619
    %v753 = vpop.f32.mrf.mxu0
    %v754 = vadd.f32 %v546, %v753
    %v755 = vpop.f32.mrf.mxu0
    %v756 = vadd.f32 %v546, %v755
    %757 = vmatmul.bf16.gmra.mxu0 %v622
    %v758 = vpop.f32.mrf.mxu0
    %v759 = vadd.f32 %v546, %v758
    %v760 = vpop.f32.mrf.mxu0
    %v761 = vadd.f32 %v546, %v760
    %762 = vmatmul.bf16.gmra.mxu0 %v625
    %v763 = vpop.f32.mrf.mxu0
    %v764 = vadd.f32 %v546, %v763
    %v765 = vpop.f32.mrf.mxu0
    %v766 = vadd.f32 %v546, %v765
    %767 = vmatmul.bf16.gmra.mxu0 %v628
    %v768 = vpop.f32.mrf.mxu0
    %v769 = vadd.f32 %v546, %v768
    %v770 = vpop.f32.mrf.mxu0
    %v771 = vadd.f32 %v546, %v770
    %772 = vmatmul.bf16.gmra.mxu0 %v631
    %v773 = vpop.f32.mrf.mxu0
    %v774 = vadd.f32 %v546, %v773
    %v775 = vpop.f32.mrf.mxu0
    %v776 = vadd.f32 %v546, %v775
    %777 = vmatmul.bf16.gmra.mxu0 %v634
    %v778 = vpop.f32.mrf.mxu0
    %v779 = vadd.f32 %v546, %v778
    %v780 = vpop.f32.mrf.mxu0
    %v781 = vadd.f32 %v546, %v780
    %782 = vmatmul.bf16.gmra.mxu0 %v637
    %v783 = vpop.f32.mrf.mxu0
    %v784 = vadd.f32 %v546, %v783
    %v785 = vpop.f32.mrf.mxu0
    %v786 = vadd.f32 %v546, %v785
    %787 = vmatmul.bf16.gmra.mxu0 %v640
    %v788 = vpop.f32.mrf.mxu0
    %v789 = vadd.f32 %v546, %v788
    %v790 = vpop.f32.mrf.mxu0
    %v791 = vadd.f32 %v546, %v790
    %792 = vmatmul.bf16.gmra.mxu0 %v643
    %v793 = vpop.f32.mrf.mxu0
    %v794 = vadd.f32 %v546, %v793
    %v795 = vpop.f32.mrf.mxu0
    %v796 = vadd.f32 %v546, %v795
    %797 = vmatmul.bf16.gmra.mxu0 %v646
    %v798 = vpop.f32.mrf.mxu0
    %v799 = vadd.f32 %v546, %v798
    %v800 = vpop.f32.mrf.mxu0
    %v801 = vadd.f32 %v546, %v800
    %802 = vmatmul.bf16.gmra.mxu0 %v649
    %v803 = vpop.f32.mrf.mxu0
    %v804 = vadd.f32 %v546, %v803
    %v805 = vpop.f32.mrf.mxu0
    %v806 = vadd.f32 %v546, %v805
    %807 = vmatmul.bf16.gmra.mxu0 %v652
    %v808 = vpop.f32.mrf.mxu0
    %v809 = vadd.f32 %v546, %v808
    %v810 = vpop.f32.mrf.mxu0
    %v811 = vadd.f32 %v546, %v810
    %812 = vmatmul.bf16.gmra.mxu0 %v655
    %v813 = vpop.f32.mrf.mxu0
    %v814 = vadd.f32 %v546, %v813
    %v815 = vpop.f32.mrf.mxu0
    %v816 = vadd.f32 %v546, %v815
    %817 = vmatmul.bf16.gmra.mxu0 %v658
    %v818 = vpop.f32.mrf.mxu0
    %v819 = vadd.f32 %v546, %v818
    %v820 = vpop.f32.mrf.mxu0
    %v821 = vadd.f32 %v546, %v820
    %822 = vmatmul.bf16.gmra.mxu0 %v661
    %v823 = vpop.f32.mrf.mxu0
    %v824 = vadd.f32 %v546, %v823
    %v825 = vpop.f32.mrf.mxu0
    %v826 = vadd.f32 %v546, %v825
    %827 = vmatmul.bf16.gmra.mxu0 %v664
    %v828 = vpop.f32.mrf.mxu0
    %v829 = vadd.f32 %v546, %v828
    %v830 = vpop.f32.mrf.mxu0
    %v831 = vadd.f32 %v546, %v830
    %832 = vmatmul.bf16.gmra.mxu0 %v667
    %v833 = vpop.f32.mrf.mxu0
    %v834 = vadd.f32 %v546, %v833
    %v835 = vpop.f32.mrf.mxu0
    %v836 = vadd.f32 %v546, %v835
    %837 = vmatmul.bf16.gmra.mxu0 %v670
    %v838 = vpop.f32.mrf.mxu0
    %v839 = vadd.f32 %v546, %v838
    %v840 = vpop.f32.mrf.mxu0
    %v841 = vadd.f32 %v546, %v840
    %842 = vmatmul.bf16.gmra.mxu0 %v673
    %v843 = vpop.f32.mrf.mxu0
    %v844 = vadd.f32 %v546, %v843
    %v845 = vpop.f32.mrf.mxu0
    %v846 = vadd.f32 %v546, %v845
    %847 = vmatmul.bf16.gmra.mxu0 %v676
    %v848 = vpop.f32.mrf.mxu0
    %v849 = vadd.f32 %v546, %v848
    %v850 = vpop.f32.mrf.mxu0
    %v851 = vadd.f32 %v546, %v850
    %852 = vdwg.mxu0
    %v853 = vmax.f32 %v694, 0.0
    %v854 = vmax.f32 %v696, 0.0
    %v855 = vmax.f32 %v699, 0.0
    %v856 = vmax.f32 %v701, 0.0
    %v857 = vmax.f32 %v704, 0.0
    %v858 = vmax.f32 %v706, 0.0
    %v859 = vmax.f32 %v709, 0.0
    %v860 = vmax.f32 %v711, 0.0
    %v861 = vmax.f32 %v714, 0.0
    %v862 = vmax.f32 %v716, 0.0
    %v863 = vmax.f32 %v719, 0.0
    %v864 = vmax.f32 %v721, 0.0
    %v865 = vmax.f32 %v724, 0.0
    %v866 = vmax.f32 %v726, 0.0
    %v867 = vmax.f32 %v729, 0.0
    %v868 = vmax.f32 %v731, 0.0
    %v869 = vmax.f32 %v734, 0.0
    %v870 = vmax.f32 %v736, 0.0
    %v871 = vmax.f32 %v739, 0.0
    %v872 = vmax.f32 %v741, 0.0
    %v873 = vmax.f32 %v744, 0.0
    %v874 = vmax.f32 %v746, 0.0
    %v875 = vmax.f32 %v749, 0.0
    %v876 = vmax.f32 %v751, 0.0
    %v877 = vmax.f32 %v754, 0.0
    %v878 = vmax.f32 %v756, 0.0
    %v879 = vmax.f32 %v759, 0.0
    %v880 = vmax.f32 %v761, 0.0
    %v881 = vmax.f32 %v764, 0.0
    %v882 = vmax.f32 %v766, 0.0
    %v883 = vmax.f32 %v769, 0.0
    %v884 = vmax.f32 %v771, 0.0
    %v885 = vmax.f32 %v774, 0.0
    %v886 = vmax.f32 %v776, 0.0
    %v887 = vmax.f32 %v779, 0.0
    %v888 = vmax.f32 %v781, 0.0
    %v889 = vmax.f32 %v784, 0.0
    %v890 = vmax.f32 %v786, 0.0
    %v891 = vmax.f32 %v789, 0.0
    %v892 = vmax.f32 %v791, 0.0
    %v893 = vmax.f32 %v794, 0.0
    %v894 = vmax.f32 %v796, 0.0
    %v895 = vmax.f32 %v799, 0.0
    %v896 = vmax.f32 %v801, 0.0
    %v897 = vmax.f32 %v804, 0.0
    %v898 = vmax.f32 %v806, 0.0
    %v899 = vmax.f32 %v809, 0.0
    %v900 = vmax.f32 %v811, 0.0
    %v901 = vmax.f32 %v814, 0.0
    %v902 = vmax.f32 %v816, 0.0
    %v903 = vmax.f32 %v819, 0.0
    %v904 = vmax.f32 %v821, 0.0
    %v905 = vmax.f32 %v824, 0.0
    %v906 = vmax.f32 %v826, 0.0
    %v907 = vmax.f32 %v829, 0.0
    %v908 = vmax.f32 %v831, 0.0
    %v909 = vmax.f32 %v834, 0.0
    %v910 = vmax.f32 %v836, 0.0
    %v911 = vmax.f32 %v839, 0.0
    %v912 = vmax.f32 %v841, 0.0
    %v913 = vmax.f32 %v844, 0.0
    %v914 = vmax.f32 %v846, 0.0
    %v915 = vmax.f32 %v849, 0.0
    %v916 = vmax.f32 %v851, 0.0
    %s917 = scalar_lea.vmem [#allocation2], 88
    %918 = vst.msk [vmem:[%s917] sm:$0xff] %vm265, %v853
    %919 = vst.msk [vmem:[%s917 + $0x8] sm:$0xff] %vm265, %v854
    %920 = vst.msk [vmem:[%s917 + $0x10] sm:$0xff] %vm265, %v855
    %921 = vst.msk [vmem:[%s917 + $0x18] sm:$0xff] %vm265, %v856
    %922 = vst.msk [vmem:[%s917 + $0x20] sm:$0xff] %vm265, %v857
    %923 = vst.msk [vmem:[%s917 + $0x28] sm:$0xff] %vm265, %v858
    %924 = vst.msk [vmem:[%s917 + $0x30] sm:$0xff] %vm265, %v859
    %925 = vst.msk [vmem:[%s917 + $0x38] sm:$0xff] %vm265, %v860
    %926 = vst.msk [vmem:[%s917 + $0x50] sm:$0xff] %vm265, %v861
    %927 = vst.msk [vmem:[%s917 + $0x58] sm:$0xff] %vm265, %v862
    %928 = vst.msk [vmem:[%s917 + $0x60] sm:$0xff] %vm265, %v863
    %929 = vst.msk [vmem:[%s917 + $0x68] sm:$0xff] %vm265, %v864
    %930 = vst.msk [vmem:[%s917 + $0x70] sm:$0xff] %vm265, %v865
    %931 = vst.msk [vmem:[%s917 + $0x78] sm:$0xff] %vm265, %v866
    %932 = vst.msk [vmem:[%s917 + $0x80] sm:$0xff] %vm265, %v867
    %933 = vst.msk [vmem:[%s917 + $0x88] sm:$0xff] %vm265, %v868
    %934 = vst.msk [vmem:[%s917 + $0xa0] sm:$0xff] %vm265, %v869
    %935 = vst.msk [vmem:[%s917 + $0xa8] sm:$0xff] %vm265, %v870
    %936 = vst.msk [vmem:[%s917 + $0xb0] sm:$0xff] %vm265, %v871
    %937 = vst.msk [vmem:[%s917 + $0xb8] sm:$0xff] %vm265, %v872
    %938 = vst.msk [vmem:[%s917 + $0xc0] sm:$0xff] %vm265, %v873
    %939 = vst.msk [vmem:[%s917 + $0xc8] sm:$0xff] %vm265, %v874
    %940 = vst.msk [vmem:[%s917 + $0xd0] sm:$0xff] %vm265, %v875
    %941 = vst.msk [vmem:[%s917 + $0xd8] sm:$0xff] %vm265, %v876
    %942 = vst.msk [vmem:[%s917 + $0xf0] sm:$0xff] %vm265, %v877
    %943 = vst.msk [vmem:[%s917 + $0xf8] sm:$0xff] %vm265, %v878
    %944 = vst.msk [vmem:[%s917 + $0x100] sm:$0xff] %vm265, %v879
    %945 = vst.msk [vmem:[%s917 + $0x108] sm:$0xff] %vm265, %v880
    %946 = vst.msk [vmem:[%s917 + $0x110] sm:$0xff] %vm265, %v881
    %947 = vst.msk [vmem:[%s917 + $0x118] sm:$0xff] %vm265, %v882
    %948 = vst.msk [vmem:[%s917 + $0x120] sm:$0xff] %vm265, %v883
    %949 = vst.msk [vmem:[%s917 + $0x128] sm:$0xff] %vm265, %v884
    %950 = vst.msk [vmem:[%s917 + $0x140] sm:$0xff] %vm265, %v885
    %951 = vst.msk [vmem:[%s917 + $0x148] sm:$0xff] %vm265, %v886
    %952 = vst.msk [vmem:[%s917 + $0x150] sm:$0xff] %vm265, %v887
    %953 = vst.msk [vmem:[%s917 + $0x158] sm:$0xff] %vm265, %v888
    %954 = vst.msk [vmem:[%s917 + $0x160] sm:$0xff] %vm265, %v889
    %955 = vst.msk [vmem:[%s917 + $0x168] sm:$0xff] %vm265, %v890
    %956 = vst.msk [vmem:[%s917 + $0x170] sm:$0xff] %vm265, %v891
    %957 = vst.msk [vmem:[%s917 + $0x178] sm:$0xff] %vm265, %v892
    %958 = vst.msk [vmem:[%s917 + $0x190] sm:$0xff] %vm265, %v893
    %959 = vst.msk [vmem:[%s917 + $0x198] sm:$0xff] %vm265, %v894
    %960 = vst.msk [vmem:[%s917 + $0x1a0] sm:$0xff] %vm265, %v895
    %961 = vst.msk [vmem:[%s917 + $0x1a8] sm:$0xff] %vm265, %v896
    %962 = vst.msk [vmem:[%s917 + $0x1b0] sm:$0xff] %vm265, %v897
    %963 = vst.msk [vmem:[%s917 + $0x1b8] sm:$0xff] %vm265, %v898
    %964 = vst.msk [vmem:[%s917 + $0x1c0] sm:$0xff] %vm265, %v899
    %965 = vst.msk [vmem:[%s917 + $0x1c8] sm:$0xff] %vm265, %v900
    %966 = vst.msk [vmem:[%s917 + $0x1e0] sm:$0xff] %vm265, %v901
    %967 = vst.msk [vmem:[%s917 + $0x1e8] sm:$0xff] %vm265, %v902
    %968 = vst.msk [vmem:[%s917 + $0x1f0] sm:$0xff] %vm265, %v903
    %969 = vst.msk [vmem:[%s917 + $0x1f8] sm:$0xff] %vm265, %v904
    %970 = vst.msk [vmem:[%s917 + $0x200] sm:$0xff] %vm265, %v905
    %971 = vst.msk [vmem:[%s917 + $0x208] sm:$0xff] %vm265, %v906
    %972 = vst.msk [vmem:[%s917 + $0x210] sm:$0xff] %vm265, %v907
    %973 = vst.msk [vmem:[%s917 + $0x218] sm:$0xff] %vm265, %v908
    %974 = vst.msk [vmem:[%s917 + $0x230] sm:$0xff] %vm265, %v909
    %975 = vst.msk [vmem:[%s917 + $0x238] sm:$0xff] %vm265, %v910
    %976 = vst.msk [vmem:[%s917 + $0x240] sm:$0xff] %vm265, %v911
    %977 = vst.msk [vmem:[%s917 + $0x248] sm:$0xff] %vm265, %v912
    %978 = vst.msk [vmem:[%s917 + $0x250] sm:$0xff] %vm265, %v913
    %979 = vst.msk [vmem:[%s917 + $0x258] sm:$0xff] %vm265, %v914
    %980 = vst.msk [vmem:[%s917 + $0x260] sm:$0xff] %vm265, %v915
    %981 = vst.msk [vmem:[%s917 + $0x268] sm:$0xff] %vm265, %v916
    %v982 = vld [vmem:[#allocation10] sm:$0x7]
    %v983 = vld [vmem:[#allocation10 + $0x4] sm:$0x7]
    %v984 = vld [vmem:[#allocation10 + $0x8] sm:$0x7]
    %v985 = vld [vmem:[#allocation12] sm:$0xf]
    %v986 = vld [vmem:[#allocation12 + $0x4] sm:$0xf]
    %v987 = vld [vmem:[#allocation12 + $0x8] sm:$0xf]
    %v988 = vld [vmem:[#allocation12 + $0xc] sm:$0xf]
    %v989 = vld [vmem:[#allocation13] sm:$0x1]
    %v990 = vld [vmem:[#allocation2] sm:$0xff]
    %v991 = vld [vmem:[#allocation2 + $0x8] sm:$0xff]
    %v992 = vld [vmem:[#allocation2 + $0x10] sm:$0xff]
    %v993 = vld [vmem:[#allocation2 + $0x18] sm:$0xff]
    %v994 = vld [vmem:[#allocation2 + $0x20] sm:$0xff]
    %v995 = vld [vmem:[#allocation2 + $0x28] sm:$0xff]
    %v996 = vld [vmem:[#allocation2 + $0x30] sm:$0xff]
    %v997 = vld [vmem:[#allocation2 + $0x38] sm:$0xff]
    %v998 = vld [vmem:[#allocation2 + $0x50] sm:$0xff]
    %v999 = vld [vmem:[#allocation2 + $0x58] sm:$0xff]
    %v1000 = vld [vmem:[#allocation2 + $0x60] sm:$0xff]
    %v1001 = vld [vmem:[#allocation2 + $0x68] sm:$0xff]
    %v1002 = vld [vmem:[#allocation2 + $0x70] sm:$0xff]
    %v1003 = vld [vmem:[#allocation2 + $0x78] sm:$0xff]
    %v1004 = vld [vmem:[#allocation2 + $0x80] sm:$0xff]
    %v1005 = vld [vmem:[#allocation2 + $0x88] sm:$0xff]
    %v1006 = vld [vmem:[#allocation2 + $0xa0] sm:$0xff]
    %v1007 = vld [vmem:[#allocation2 + $0xa8] sm:$0xff]
    %v1008 = vld [vmem:[#allocation2 + $0xb0] sm:$0xff]
    %v1009 = vld [vmem:[#allocation2 + $0xb8] sm:$0xff]
    %v1010 = vld [vmem:[#allocation2 + $0xc0] sm:$0xff]
    %v1011 = vld [vmem:[#allocation2 + $0xc8] sm:$0xff]
    %v1012 = vld [vmem:[#allocation2 + $0xd0] sm:$0xff]
    %v1013 = vld [vmem:[#allocation2 + $0xd8] sm:$0xff]
    %v1014 = vld [vmem:[#allocation2 + $0xf0] sm:$0xff]
    %v1015 = vld [vmem:[#allocation2 + $0xf8] sm:$0xff]
    %v1016 = vld [vmem:[#allocation2 + $0x100] sm:$0xff]
    %v1017 = vld [vmem:[#allocation2 + $0x108] sm:$0xff]
    %v1018 = vld [vmem:[#allocation2 + $0x110] sm:$0xff]
    %v1019 = vld [vmem:[#allocation2 + $0x118] sm:$0xff]
    %v1020 = vld [vmem:[#allocation2 + $0x120] sm:$0xff]
    %v1021 = vld [vmem:[#allocation2 + $0x128] sm:$0xff]
    %v1022 = vld [vmem:[#allocation2 + $0x140] sm:$0xff]
    %v1023 = vld [vmem:[#allocation2 + $0x148] sm:$0xff]
    %v1024 = vld [vmem:[#allocation2 + $0x150] sm:$0xff]
    %v1025 = vld [vmem:[#allocation2 + $0x158] sm:$0xff]
    %v1026 = vld [vmem:[#allocation2 + $0x160] sm:$0xff]
    %v1027 = vld [vmem:[#allocation2 + $0x168] sm:$0xff]
    %v1028 = vld [vmem:[#allocation2 + $0x170] sm:$0xff]
    %v1029 = vld [vmem:[#allocation2 + $0x178] sm:$0xff]
    %v1030 = vld [vmem:[#allocation2 + $0x190] sm:$0xff]
    %v1031 = vld [vmem:[#allocation2 + $0x198] sm:$0xff]
    %v1032 = vld [vmem:[#allocation2 + $0x1a0] sm:$0xff]
    %v1033 = vld [vmem:[#allocation2 + $0x1a8] sm:$0xff]
    %v1034 = vld [vmem:[#allocation2 + $0x1b0] sm:$0xff]
    %v1035 = vld [vmem:[#allocation2 + $0x1b8] sm:$0xff]
    %v1036 = vld [vmem:[#allocation2 + $0x1c0] sm:$0xff]
    %v1037 = vld [vmem:[#allocation2 + $0x1c8] sm:$0xff]
    %v1038 = vld [vmem:[#allocation2 + $0x1e0] sm:$0xff]
    %v1039 = vld [vmem:[#allocation2 + $0x1e8] sm:$0xff]
    %v1040 = vld [vmem:[#allocation2 + $0x1f0] sm:$0xff]
    %v1041 = vld [vmem:[#allocation2 + $0x1f8] sm:$0xff]
    %v1042 = vld [vmem:[#allocation2 + $0x200] sm:$0xff]
    %v1043 = vld [vmem:[#allocation2 + $0x208] sm:$0xff]
    %v1044 = vld [vmem:[#allocation2 + $0x210] sm:$0xff]
    %v1045 = vld [vmem:[#allocation2 + $0x218] sm:$0xff]
    %v1046 = vld [vmem:[#allocation2 + $0x230] sm:$0xff]
    %v1047 = vld [vmem:[#allocation2 + $0x238] sm:$0xff]
    %v1048 = vld [vmem:[#allocation2 + $0x240] sm:$0xff]
    %v1049 = vld [vmem:[#allocation2 + $0x248] sm:$0xff]
    %v1050 = vld [vmem:[#allocation2 + $0x250] sm:$0xff]
    %v1051 = vld [vmem:[#allocation2 + $0x258] sm:$0xff]
    %v1052 = vld [vmem:[#allocation2 + $0x260] sm:$0xff]
    %v1053 = vld [vmem:[#allocation2 + $0x268] sm:$0xff]
    %v1054 = vperm.slane %v982, 0
    %v1055 = vmul.f32 %v990, %v1054
    %v1056 = vmul.f32 %v991, %v1054
    %v1057 = vmul.f32 %v992, %v1054
    %v1058 = vmul.f32 %v993, %v1054
    %v1059 = vmul.f32 %v994, %v1054
    %v1060 = vmul.f32 %v995, %v1054
    %v1061 = vmul.f32 %v996, %v1054
    %v1062 = vmul.f32 %v997, %v1054
    %v1063 = vmul.f32 %v998, %v1054
    %v1064 = vmul.f32 %v999, %v1054
    %v1065 = vmul.f32 %v1000, %v1054
    %v1066 = vmul.f32 %v1001, %v1054
    %v1067 = vmul.f32 %v1002, %v1054
    %v1068 = vmul.f32 %v1003, %v1054
    %v1069 = vmul.f32 %v1004, %v1054
    %v1070 = vmul.f32 %v1005, %v1054
    %v1071 = vmul.f32 %v1006, %v1054
    %v1072 = vmul.f32 %v1007, %v1054
    %v1073 = vmul.f32 %v1008, %v1054
    %v1074 = vmul.f32 %v1009, %v1054
    %v1075 = vmul.f32 %v1010, %v1054
    %v1076 = vmul.f32 %v1011, %v1054
    %v1077 = vmul.f32 %v1012, %v1054
    %v1078 = vmul.f32 %v1013, %v1054
    %v1079 = vmul.f32 %v1014, %v1054
    %v1080 = vmul.f32 %v1015, %v1054
    %v1081 = vmul.f32 %v1016, %v1054
    %v1082 = vmul.f32 %v1017, %v1054
    %v1083 = vmul.f32 %v1018, %v1054
    %v1084 = vmul.f32 %v1019, %v1054
    %v1085 = vmul.f32 %v1020, %v1054
    %v1086 = vmul.f32 %v1021, %v1054
    %v1087 = vmul.f32 %v1022, %v1054
    %v1088 = vmul.f32 %v1023, %v1054
    %v1089 = vmul.f32 %v1024, %v1054
    %v1090 = vmul.f32 %v1025, %v1054
    %v1091 = vmul.f32 %v1026, %v1054
    %v1092 = vmul.f32 %v1027, %v1054
    %v1093 = vmul.f32 %v1028, %v1054
    %v1094 = vmul.f32 %v1029, %v1054
    %v1095 = vmul.f32 %v1030, %v1054
    %v1096 = vmul.f32 %v1031, %v1054
    %v1097 = vmul.f32 %v1032, %v1054
    %v1098 = vmul.f32 %v1033, %v1054
    %v1099 = vmul.f32 %v1034, %v1054
    %v1100 = vmul.f32 %v1035, %v1054
    %v1101 = vmul.f32 %v1036, %v1054
    %v1102 = vmul.f32 %v1037, %v1054
    %v1103 = vmul.f32 %v1038, %v1054
    %v1104 = vmul.f32 %v1039, %v1054
    %v1105 = vmul.f32 %v1040, %v1054
    %v1106 = vmul.f32 %v1041, %v1054
    %v1107 = vmul.f32 %v1042, %v1054
    %v1108 = vmul.f32 %v1043, %v1054
    %v1109 = vmul.f32 %v1044, %v1054
    %v1110 = vmul.f32 %v1045, %v1054
    %v1111 = vmul.f32 %v1046, %v1054
    %v1112 = vmul.f32 %v1047, %v1054
    %v1113 = vmul.f32 %v1048, %v1054
    %v1114 = vmul.f32 %v1049, %v1054
    %v1115 = vmul.f32 %v1050, %v1054
    %v1116 = vmul.f32 %v1051, %v1054
    %v1117 = vmul.f32 %v1052, %v1054
    %v1118 = vmul.f32 %v1053, %v1054
    %s1119 = scalar_lea.vmem [#allocation2], 8
    %v1120 = vld [vmem:[%s1119] sm:$0xff]
    %v1121 = vld [vmem:[%s1119 + $0x8] sm:$0xff]
    %v1122 = vld [vmem:[%s1119 + $0x10] sm:$0xff]
    %v1123 = vld [vmem:[%s1119 + $0x18] sm:$0xff]
    %v1124 = vld [vmem:[%s1119 + $0x20] sm:$0xff]
    %v1125 = vld [vmem:[%s1119 + $0x28] sm:$0xff]
    %v1126 = vld [vmem:[%s1119 + $0x30] sm:$0xff]
    %v1127 = vld [vmem:[%s1119 + $0x38] sm:$0xff]
    %v1128 = vld [vmem:[%s1119 + $0x50] sm:$0xff]
    %v1129 = vld [vmem:[%s1119 + $0x58] sm:$0xff]
    %v1130 = vld [vmem:[%s1119 + $0x60] sm:$0xff]
    %v1131 = vld [vmem:[%s1119 + $0x68] sm:$0xff]
    %v1132 = vld [vmem:[%s1119 + $0x70] sm:$0xff]
    %v1133 = vld [vmem:[%s1119 + $0x78] sm:$0xff]
    %v1134 = vld [vmem:[%s1119 + $0x80] sm:$0xff]
    %v1135 = vld [vmem:[%s1119 + $0x88] sm:$0xff]
    %v1136 = vld [vmem:[%s1119 + $0xa0] sm:$0xff]
    %v1137 = vld [vmem:[%s1119 + $0xa8] sm:$0xff]
    %v1138 = vld [vmem:[%s1119 + $0xb0] sm:$0xff]
    %v1139 = vld [vmem:[%s1119 + $0xb8] sm:$0xff]
    %v1140 = vld [vmem:[%s1119 + $0xc0] sm:$0xff]
    %v1141 = vld [vmem:[%s1119 + $0xc8] sm:$0xff]
    %v1142 = vld [vmem:[%s1119 + $0xd0] sm:$0xff]
    %v1143 = vld [vmem:[%s1119 + $0xd8] sm:$0xff]
    %v1144 = vld [vmem:[%s1119 + $0xf0] sm:$0xff]
    %v1145 = vld [vmem:[%s1119 + $0xf8] sm:$0xff]
    %v1146 = vld [vmem:[%s1119 + $0x100] sm:$0xff]
    %v1147 = vld [vmem:[%s1119 + $0x108] sm:$0xff]
    %v1148 = vld [vmem:[%s1119 + $0x110] sm:$0xff]
    %v1149 = vld [vmem:[%s1119 + $0x118] sm:$0xff]
    %v1150 = vld [vmem:[%s1119 + $0x120] sm:$0xff]
    %v1151 = vld [vmem:[%s1119 + $0x128] sm:$0xff]
    %v1152 = vld [vmem:[%s1119 + $0x140] sm:$0xff]
    %v1153 = vld [vmem:[%s1119 + $0x148] sm:$0xff]
    %v1154 = vld [vmem:[%s1119 + $0x150] sm:$0xff]
    %v1155 = vld [vmem:[%s1119 + $0x158] sm:$0xff]
    %v1156 = vld [vmem:[%s1119 + $0x160] sm:$0xff]
    %v1157 = vld [vmem:[%s1119 + $0x168] sm:$0xff]
    %v1158 = vld [vmem:[%s1119 + $0x170] sm:$0xff]
    %v1159 = vld [vmem:[%s1119 + $0x178] sm:$0xff]
    %v1160 = vld [vmem:[%s1119 + $0x190] sm:$0xff]
    %v1161 = vld [vmem:[%s1119 + $0x198] sm:$0xff]
    %v1162 = vld [vmem:[%s1119 + $0x1a0] sm:$0xff]
    %v1163 = vld [vmem:[%s1119 + $0x1a8] sm:$0xff]
    %v1164 = vld [vmem:[%s1119 + $0x1b0] sm:$0xff]
    %v1165 = vld [vmem:[%s1119 + $0x1b8] sm:$0xff]
    %v1166 = vld [vmem:[%s1119 + $0x1c0] sm:$0xff]
    %v1167 = vld [vmem:[%s1119 + $0x1c8] sm:$0xff]
    %v1168 = vld [vmem:[%s1119 + $0x1e0] sm:$0xff]
    %v1169 = vld [vmem:[%s1119 + $0x1e8] sm:$0xff]
    %v1170 = vld [vmem:[%s1119 + $0x1f0] sm:$0xff]
    %v1171 = vld [vmem:[%s1119 + $0x1f8] sm:$0xff]
    %v1172 = vld [vmem:[%s1119 + $0x200] sm:$0xff]
    %v1173 = vld [vmem:[%s1119 + $0x208] sm:$0xff]
    %v1174 = vld [vmem:[%s1119 + $0x210] sm:$0xff]
    %v1175 = vld [vmem:[%s1119 + $0x218] sm:$0xff]
    %v1176 = vld [vmem:[%s1119 + $0x230] sm:$0xff]
    %v1177 = vld [vmem:[%s1119 + $0x238] sm:$0xff]
    %v1178 = vld [vmem:[%s1119 + $0x240] sm:$0xff]
    %v1179 = vld [vmem:[%s1119 + $0x248] sm:$0xff]
    %v1180 = vld [vmem:[%s1119 + $0x250] sm:$0xff]
    %v1181 = vld [vmem:[%s1119 + $0x258] sm:$0xff]
    %v1182 = vld [vmem:[%s1119 + $0x260] sm:$0xff]
    %v1183 = vld [vmem:[%s1119 + $0x268] sm:$0xff]
    %v1184 = vperm.slane %v982, 1
    %v1185 = vmul.f32 %v1120, %v1184
    %v1186 = vmul.f32 %v1121, %v1184
    %v1187 = vmul.f32 %v1122, %v1184
    %v1188 = vmul.f32 %v1123, %v1184
    %v1189 = vmul.f32 %v1124, %v1184
    %v1190 = vmul.f32 %v1125, %v1184
    %v1191 = vmul.f32 %v1126, %v1184
    %v1192 = vmul.f32 %v1127, %v1184
    %v1193 = vmul.f32 %v1128, %v1184
    %v1194 = vmul.f32 %v1129, %v1184
    %v1195 = vmul.f32 %v1130, %v1184
    %v1196 = vmul.f32 %v1131, %v1184
    %v1197 = vmul.f32 %v1132, %v1184
    %v1198 = vmul.f32 %v1133, %v1184
    %v1199 = vmul.f32 %v1134, %v1184
    %v1200 = vmul.f32 %v1135, %v1184
    %v1201 = vmul.f32 %v1136, %v1184
    %v1202 = vmul.f32 %v1137, %v1184
    %v1203 = vmul.f32 %v1138, %v1184
    %v1204 = vmul.f32 %v1139, %v1184
    %v1205 = vmul.f32 %v1140, %v1184
    %v1206 = vmul.f32 %v1141, %v1184
    %v1207 = vmul.f32 %v1142, %v1184
    %v1208 = vmul.f32 %v1143, %v1184
    %v1209 = vmul.f32 %v1144, %v1184
    %v1210 = vmul.f32 %v1145, %v1184
    %v1211 = vmul.f32 %v1146, %v1184
    %v1212 = vmul.f32 %v1147, %v1184
    %v1213 = vmul.f32 %v1148, %v1184
    %v1214 = vmul.f32 %v1149, %v1184
    %v1215 = vmul.f32 %v1150, %v1184
    %v1216 = vmul.f32 %v1151, %v1184
    %v1217 = vmul.f32 %v1152, %v1184
    %v1218 = vmul.f32 %v1153, %v1184
    %v1219 = vmul.f32 %v1154, %v1184
    %v1220 = vmul.f32 %v1155, %v1184
    %v1221 = vmul.f32 %v1156, %v1184
    %v1222 = vmul.f32 %v1157, %v1184
    %v1223 = vmul.f32 %v1158, %v1184
    %v1224 = vmul.f32 %v1159, %v1184
    %v1225 = vmul.f32 %v1160, %v1184
    %v1226 = vmul.f32 %v1161, %v1184
    %v1227 = vmul.f32 %v1162, %v1184
    %v1228 = vmul.f32 %v1163, %v1184
    %v1229 = vmul.f32 %v1164, %v1184
    %v1230 = vmul.f32 %v1165, %v1184
    %v1231 = vmul.f32 %v1166, %v1184
    %v1232 = vmul.f32 %v1167, %v1184
    %v1233 = vmul.f32 %v1168, %v1184
    %v1234 = vmul.f32 %v1169, %v1184
    %v1235 = vmul.f32 %v1170, %v1184
    %v1236 = vmul.f32 %v1171, %v1184
    %v1237 = vmul.f32 %v1172, %v1184
    %v1238 = vmul.f32 %v1173, %v1184
    %v1239 = vmul.f32 %v1174, %v1184
    %v1240 = vmul.f32 %v1175, %v1184
    %v1241 = vmul.f32 %v1176, %v1184
    %v1242 = vmul.f32 %v1177, %v1184
    %v1243 = vmul.f32 %v1178, %v1184
    %v1244 = vmul.f32 %v1179, %v1184
    %v1245 = vmul.f32 %v1180, %v1184
    %v1246 = vmul.f32 %v1181, %v1184
    %v1247 = vmul.f32 %v1182, %v1184
    %v1248 = vmul.f32 %v1183, %v1184
    %v1249 = vadd.f32 %v1055, %v1185
    %v1250 = vadd.f32 %v1056, %v1186
    %v1251 = vadd.f32 %v1057, %v1187
    %v1252 = vadd.f32 %v1058, %v1188
    %v1253 = vadd.f32 %v1059, %v1189
    %v1254 = vadd.f32 %v1060, %v1190
    %v1255 = vadd.f32 %v1061, %v1191
    %v1256 = vadd.f32 %v1062, %v1192
    %v1257 = vadd.f32 %v1063, %v1193
    %v1258 = vadd.f32 %v1064, %v1194
    %v1259 = vadd.f32 %v1065, %v1195
    %v1260 = vadd.f32 %v1066, %v1196
    %v1261 = vadd.f32 %v1067, %v1197
    %v1262 = vadd.f32 %v1068, %v1198
    %v1263 = vadd.f32 %v1069, %v1199
    %v1264 = vadd.f32 %v1070, %v1200
    %v1265 = vadd.f32 %v1071, %v1201
    %v1266 = vadd.f32 %v1072, %v1202
    %v1267 = vadd.f32 %v1073, %v1203
    %v1268 = vadd.f32 %v1074, %v1204
    %v1269 = vadd.f32 %v1075, %v1205
    %v1270 = vadd.f32 %v1076, %v1206
    %v1271 = vadd.f32 %v1077, %v1207
    %v1272 = vadd.f32 %v1078, %v1208
    %v1273 = vadd.f32 %v1079, %v1209
    %v1274 = vadd.f32 %v1080, %v1210
    %v1275 = vadd.f32 %v1081, %v1211
    %v1276 = vadd.f32 %v1082, %v1212
    %v1277 = vadd.f32 %v1083, %v1213
    %v1278 = vadd.f32 %v1084, %v1214
    %v1279 = vadd.f32 %v1085, %v1215
    %v1280 = vadd.f32 %v1086, %v1216
    %v1281 = vadd.f32 %v1087, %v1217
    %v1282 = vadd.f32 %v1088, %v1218
    %v1283 = vadd.f32 %v1089, %v1219
    %v1284 = vadd.f32 %v1090, %v1220
    %v1285 = vadd.f32 %v1091, %v1221
    %v1286 = vadd.f32 %v1092, %v1222
    %v1287 = vadd.f32 %v1093, %v1223
    %v1288 = vadd.f32 %v1094, %v1224
    %v1289 = vadd.f32 %v1095, %v1225
    %v1290 = vadd.f32 %v1096, %v1226
    %v1291 = vadd.f32 %v1097, %v1227
    %v1292 = vadd.f32 %v1098, %v1228
    %v1293 = vadd.f32 %v1099, %v1229
    %v1294 = vadd.f32 %v1100, %v1230
    %v1295 = vadd.f32 %v1101, %v1231
    %v1296 = vadd.f32 %v1102, %v1232
    %v1297 = vadd.f32 %v1103, %v1233
    %v1298 = vadd.f32 %v1104, %v1234
    %v1299 = vadd.f32 %v1105, %v1235
    %v1300 = vadd.f32 %v1106, %v1236
    %v1301 = vadd.f32 %v1107, %v1237
    %v1302 = vadd.f32 %v1108, %v1238
    %v1303 = vadd.f32 %v1109, %v1239
    %v1304 = vadd.f32 %v1110, %v1240
    %v1305 = vadd.f32 %v1111, %v1241
    %v1306 = vadd.f32 %v1112, %v1242
    %v1307 = vadd.f32 %v1113, %v1243
    %v1308 = vadd.f32 %v1114, %v1244
    %v1309 = vadd.f32 %v1115, %v1245
    %v1310 = vadd.f32 %v1116, %v1246
    %v1311 = vadd.f32 %v1117, %v1247
    %v1312 = vadd.f32 %v1118, %v1248
    %s1313 = scalar_lea.vmem [#allocation2], 16
    %v1314 = vld [vmem:[%s1313] sm:$0xff]
    %v1315 = vld [vmem:[%s1313 + $0x8] sm:$0xff]
    %v1316 = vld [vmem:[%s1313 + $0x10] sm:$0xff]
    %v1317 = vld [vmem:[%s1313 + $0x18] sm:$0xff]
    %v1318 = vld [vmem:[%s1313 + $0x20] sm:$0xff]
    %v1319 = vld [vmem:[%s1313 + $0x28] sm:$0xff]
    %v1320 = vld [vmem:[%s1313 + $0x30] sm:$0xff]
    %v1321 = vld [vmem:[%s1313 + $0x38] sm:$0xff]
    %v1322 = vld [vmem:[%s1313 + $0x50] sm:$0xff]
    %v1323 = vld [vmem:[%s1313 + $0x58] sm:$0xff]
    %v1324 = vld [vmem:[%s1313 + $0x60] sm:$0xff]
    %v1325 = vld [vmem:[%s1313 + $0x68] sm:$0xff]
    %v1326 = vld [vmem:[%s1313 + $0x70] sm:$0xff]
    %v1327 = vld [vmem:[%s1313 + $0x78] sm:$0xff]
    %v1328 = vld [vmem:[%s1313 + $0x80] sm:$0xff]
    %v1329 = vld [vmem:[%s1313 + $0x88] sm:$0xff]
    %v1330 = vld [vmem:[%s1313 + $0xa0] sm:$0xff]
    %v1331 = vld [vmem:[%s1313 + $0xa8] sm:$0xff]
    %v1332 = vld [vmem:[%s1313 + $0xb0] sm:$0xff]
    %v1333 = vld [vmem:[%s1313 + $0xb8] sm:$0xff]
    %v1334 = vld [vmem:[%s1313 + $0xc0] sm:$0xff]
    %v1335 = vld [vmem:[%s1313 + $0xc8] sm:$0xff]
    %v1336 = vld [vmem:[%s1313 + $0xd0] sm:$0xff]
    %v1337 = vld [vmem:[%s1313 + $0xd8] sm:$0xff]
    %v1338 = vld [vmem:[%s1313 + $0xf0] sm:$0xff]
    %v1339 = vld [vmem:[%s1313 + $0xf8] sm:$0xff]
    %v1340 = vld [vmem:[%s1313 + $0x100] sm:$0xff]
    %v1341 = vld [vmem:[%s1313 + $0x108] sm:$0xff]
    %v1342 = vld [vmem:[%s1313 + $0x110] sm:$0xff]
    %v1343 = vld [vmem:[%s1313 + $0x118] sm:$0xff]
    %v1344 = vld [vmem:[%s1313 + $0x120] sm:$0xff]
    %v1345 = vld [vmem:[%s1313 + $0x128] sm:$0xff]
    %v1346 = vld [vmem:[%s1313 + $0x140] sm:$0xff]
    %v1347 = vld [vmem:[%s1313 + $0x148] sm:$0xff]
    %v1348 = vld [vmem:[%s1313 + $0x150] sm:$0xff]
    %v1349 = vld [vmem:[%s1313 + $0x158] sm:$0xff]
    %v1350 = vld [vmem:[%s1313 + $0x160] sm:$0xff]
    %v1351 = vld [vmem:[%s1313 + $0x168] sm:$0xff]
    %v1352 = vld [vmem:[%s1313 + $0x170] sm:$0xff]
    %v1353 = vld [vmem:[%s1313 + $0x178] sm:$0xff]
    %v1354 = vld [vmem:[%s1313 + $0x190] sm:$0xff]
    %v1355 = vld [vmem:[%s1313 + $0x198] sm:$0xff]
    %v1356 = vld [vmem:[%s1313 + $0x1a0] sm:$0xff]
    %v1357 = vld [vmem:[%s1313 + $0x1a8] sm:$0xff]
    %v1358 = vld [vmem:[%s1313 + $0x1b0] sm:$0xff]
    %v1359 = vld [vmem:[%s1313 + $0x1b8] sm:$0xff]
    %v1360 = vld [vmem:[%s1313 + $0x1c0] sm:$0xff]
    %v1361 = vld [vmem:[%s1313 + $0x1c8] sm:$0xff]
    %v1362 = vld [vmem:[%s1313 + $0x1e0] sm:$0xff]
    %v1363 = vld [vmem:[%s1313 + $0x1e8] sm:$0xff]
    %v1364 = vld [vmem:[%s1313 + $0x1f0] sm:$0xff]
    %v1365 = vld [vmem:[%s1313 + $0x1f8] sm:$0xff]
    %v1366 = vld [vmem:[%s1313 + $0x200] sm:$0xff]
    %v1367 = vld [vmem:[%s1313 + $0x208] sm:$0xff]
    %v1368 = vld [vmem:[%s1313 + $0x210] sm:$0xff]
    %v1369 = vld [vmem:[%s1313 + $0x218] sm:$0xff]
    %v1370 = vld [vmem:[%s1313 + $0x230] sm:$0xff]
    %v1371 = vld [vmem:[%s1313 + $0x238] sm:$0xff]
    %v1372 = vld [vmem:[%s1313 + $0x240] sm:$0xff]
    %v1373 = vld [vmem:[%s1313 + $0x248] sm:$0xff]
    %v1374 = vld [vmem:[%s1313 + $0x250] sm:$0xff]
    %v1375 = vld [vmem:[%s1313 + $0x258] sm:$0xff]
    %v1376 = vld [vmem:[%s1313 + $0x260] sm:$0xff]
    %v1377 = vld [vmem:[%s1313 + $0x268] sm:$0xff]
    %v1378 = vperm.slane %v982, 2
    %v1379 = vmul.f32 %v1314, %v1378
    %v1380 = vmul.f32 %v1315, %v1378
    %v1381 = vmul.f32 %v1316, %v1378
    %v1382 = vmul.f32 %v1317, %v1378
    %v1383 = vmul.f32 %v1318, %v1378
    %v1384 = vmul.f32 %v1319, %v1378
    %v1385 = vmul.f32 %v1320, %v1378
    %v1386 = vmul.f32 %v1321, %v1378
    %v1387 = vmul.f32 %v1322, %v1378
    %v1388 = vmul.f32 %v1323, %v1378
    %v1389 = vmul.f32 %v1324, %v1378
    %v1390 = vmul.f32 %v1325, %v1378
    %v1391 = vmul.f32 %v1326, %v1378
    %v1392 = vmul.f32 %v1327, %v1378
    %v1393 = vmul.f32 %v1328, %v1378
    %v1394 = vmul.f32 %v1329, %v1378
    %v1395 = vmul.f32 %v1330, %v1378
    %v1396 = vmul.f32 %v1331, %v1378
    %v1397 = vmul.f32 %v1332, %v1378
    %v1398 = vmul.f32 %v1333, %v1378
    %v1399 = vmul.f32 %v1334, %v1378
    %v1400 = vmul.f32 %v1335, %v1378
    %v1401 = vmul.f32 %v1336, %v1378
    %v1402 = vmul.f32 %v1337, %v1378
    %v1403 = vmul.f32 %v1338, %v1378
    %v1404 = vmul.f32 %v1339, %v1378
    %v1405 = vmul.f32 %v1340, %v1378
    %v1406 = vmul.f32 %v1341, %v1378
    %v1407 = vmul.f32 %v1342, %v1378
    %v1408 = vmul.f32 %v1343, %v1378
    %v1409 = vmul.f32 %v1344, %v1378
    %v1410 = vmul.f32 %v1345, %v1378
    %v1411 = vmul.f32 %v1346, %v1378
    %v1412 = vmul.f32 %v1347, %v1378
    %v1413 = vmul.f32 %v1348, %v1378
    %v1414 = vmul.f32 %v1349, %v1378
    %v1415 = vmul.f32 %v1350, %v1378
    %v1416 = vmul.f32 %v1351, %v1378
    %v1417 = vmul.f32 %v1352, %v1378
    %v1418 = vmul.f32 %v1353, %v1378
    %v1419 = vmul.f32 %v1354, %v1378
    %v1420 = vmul.f32 %v1355, %v1378
    %v1421 = vmul.f32 %v1356, %v1378
    %v1422 = vmul.f32 %v1357, %v1378
    %v1423 = vmul.f32 %v1358, %v1378
    %v1424 = vmul.f32 %v1359, %v1378
    %v1425 = vmul.f32 %v1360, %v1378
    %v1426 = vmul.f32 %v1361, %v1378
    %v1427 = vmul.f32 %v1362, %v1378
    %v1428 = vmul.f32 %v1363, %v1378
    %v1429 = vmul.f32 %v1364, %v1378
    %v1430 = vmul.f32 %v1365, %v1378
    %v1431 = vmul.f32 %v1366, %v1378
    %v1432 = vmul.f32 %v1367, %v1378
    %v1433 = vmul.f32 %v1368, %v1378
    %v1434 = vmul.f32 %v1369, %v1378
    %v1435 = vmul.f32 %v1370, %v1378
    %v1436 = vmul.f32 %v1371, %v1378
    %v1437 = vmul.f32 %v1372, %v1378
    %v1438 = vmul.f32 %v1373, %v1378
    %v1439 = vmul.f32 %v1374, %v1378
    %v1440 = vmul.f32 %v1375, %v1378
    %v1441 = vmul.f32 %v1376, %v1378
    %v1442 = vmul.f32 %v1377, %v1378
    %v1443 = vadd.f32 %v1249, %v1379
    %v1444 = vadd.f32 %v1250, %v1380
    %v1445 = vadd.f32 %v1251, %v1381
    %v1446 = vadd.f32 %v1252, %v1382
    %v1447 = vadd.f32 %v1253, %v1383
    %v1448 = vadd.f32 %v1254, %v1384
    %v1449 = vadd.f32 %v1255, %v1385
    %v1450 = vadd.f32 %v1256, %v1386
    %v1451 = vadd.f32 %v1257, %v1387
    %v1452 = vadd.f32 %v1258, %v1388
    %v1453 = vadd.f32 %v1259, %v1389
    %v1454 = vadd.f32 %v1260, %v1390
    %v1455 = vadd.f32 %v1261, %v1391
    %v1456 = vadd.f32 %v1262, %v1392
    %v1457 = vadd.f32 %v1263, %v1393
    %v1458 = vadd.f32 %v1264, %v1394
    %v1459 = vadd.f32 %v1265, %v1395
    %v1460 = vadd.f32 %v1266, %v1396
    %v1461 = vadd.f32 %v1267, %v1397
    %v1462 = vadd.f32 %v1268, %v1398
    %v1463 = vadd.f32 %v1269, %v1399
    %v1464 = vadd.f32 %v1270, %v1400
    %v1465 = vadd.f32 %v1271, %v1401
    %v1466 = vadd.f32 %v1272, %v1402
    %v1467 = vadd.f32 %v1273, %v1403
    %v1468 = vadd.f32 %v1274, %v1404
    %v1469 = vadd.f32 %v1275, %v1405
    %v1470 = vadd.f32 %v1276, %v1406
    %v1471 = vadd.f32 %v1277, %v1407
    %v1472 = vadd.f32 %v1278, %v1408
    %v1473 = vadd.f32 %v1279, %v1409
    %v1474 = vadd.f32 %v1280, %v1410
    %v1475 = vadd.f32 %v1281, %v1411
    %v1476 = vadd.f32 %v1282, %v1412
    %v1477 = vadd.f32 %v1283, %v1413
    %v1478 = vadd.f32 %v1284, %v1414
    %v1479 = vadd.f32 %v1285, %v1415
    %v1480 = vadd.f32 %v1286, %v1416
    %v1481 = vadd.f32 %v1287, %v1417
    %v1482 = vadd.f32 %v1288, %v1418
    %v1483 = vadd.f32 %v1289, %v1419
    %v1484 = vadd.f32 %v1290, %v1420
    %v1485 = vadd.f32 %v1291, %v1421
    %v1486 = vadd.f32 %v1292, %v1422
    %v1487 = vadd.f32 %v1293, %v1423
    %v1488 = vadd.f32 %v1294, %v1424
    %v1489 = vadd.f32 %v1295, %v1425
    %v1490 = vadd.f32 %v1296, %v1426
    %v1491 = vadd.f32 %v1297, %v1427
    %v1492 = vadd.f32 %v1298, %v1428
    %v1493 = vadd.f32 %v1299, %v1429
    %v1494 = vadd.f32 %v1300, %v1430
    %v1495 = vadd.f32 %v1301, %v1431
    %v1496 = vadd.f32 %v1302, %v1432
    %v1497 = vadd.f32 %v1303, %v1433
    %v1498 = vadd.f32 %v1304, %v1434
    %v1499 = vadd.f32 %v1305, %v1435
    %v1500 = vadd.f32 %v1306, %v1436
    %v1501 = vadd.f32 %v1307, %v1437
    %v1502 = vadd.f32 %v1308, %v1438
    %v1503 = vadd.f32 %v1309, %v1439
    %v1504 = vadd.f32 %v1310, %v1440
    %v1505 = vadd.f32 %v1311, %v1441
    %v1506 = vadd.f32 %v1312, %v1442
    %s1507 = scalar_lea.vmem [#allocation2], 80
    %v1508 = vld [vmem:[%s1507] sm:$0xff]
    %v1509 = vld [vmem:[%s1507 + $0x8] sm:$0xff]
    %v1510 = vld [vmem:[%s1507 + $0x10] sm:$0xff]
    %v1511 = vld [vmem:[%s1507 + $0x18] sm:$0xff]
    %v1512 = vld [vmem:[%s1507 + $0x20] sm:$0xff]
    %v1513 = vld [vmem:[%s1507 + $0x28] sm:$0xff]
    %v1514 = vld [vmem:[%s1507 + $0x30] sm:$0xff]
    %v1515 = vld [vmem:[%s1507 + $0x38] sm:$0xff]
    %v1516 = vld [vmem:[%s1507 + $0x50] sm:$0xff]
    %v1517 = vld [vmem:[%s1507 + $0x58] sm:$0xff]
    %v1518 = vld [vmem:[%s1507 + $0x60] sm:$0xff]
    %v1519 = vld [vmem:[%s1507 + $0x68] sm:$0xff]
    %v1520 = vld [vmem:[%s1507 + $0x70] sm:$0xff]
    %v1521 = vld [vmem:[%s1507 + $0x78] sm:$0xff]
    %v1522 = vld [vmem:[%s1507 + $0x80] sm:$0xff]
    %v1523 = vld [vmem:[%s1507 + $0x88] sm:$0xff]
    %v1524 = vld [vmem:[%s1507 + $0xa0] sm:$0xff]
    %v1525 = vld [vmem:[%s1507 + $0xa8] sm:$0xff]
    %v1526 = vld [vmem:[%s1507 + $0xb0] sm:$0xff]
    %v1527 = vld [vmem:[%s1507 + $0xb8] sm:$0xff]
    %v1528 = vld [vmem:[%s1507 + $0xc0] sm:$0xff]
    %v1529 = vld [vmem:[%s1507 + $0xc8] sm:$0xff]
    %v1530 = vld [vmem:[%s1507 + $0xd0] sm:$0xff]
    %v1531 = vld [vmem:[%s1507 + $0xd8] sm:$0xff]
    %v1532 = vld [vmem:[%s1507 + $0xf0] sm:$0xff]
    %v1533 = vld [vmem:[%s1507 + $0xf8] sm:$0xff]
    %v1534 = vld [vmem:[%s1507 + $0x100] sm:$0xff]
    %v1535 = vld [vmem:[%s1507 + $0x108] sm:$0xff]
    %v1536 = vld [vmem:[%s1507 + $0x110] sm:$0xff]
    %v1537 = vld [vmem:[%s1507 + $0x118] sm:$0xff]
    %v1538 = vld [vmem:[%s1507 + $0x120] sm:$0xff]
    %v1539 = vld [vmem:[%s1507 + $0x128] sm:$0xff]
    %v1540 = vld [vmem:[%s1507 + $0x140] sm:$0xff]
    %v1541 = vld [vmem:[%s1507 + $0x148] sm:$0xff]
    %v1542 = vld [vmem:[%s1507 + $0x150] sm:$0xff]
    %v1543 = vld [vmem:[%s1507 + $0x158] sm:$0xff]
    %v1544 = vld [vmem:[%s1507 + $0x160] sm:$0xff]
    %v1545 = vld [vmem:[%s1507 + $0x168] sm:$0xff]
    %v1546 = vld [vmem:[%s1507 + $0x170] sm:$0xff]
    %v1547 = vld [vmem:[%s1507 + $0x178] sm:$0xff]
    %v1548 = vld [vmem:[%s1507 + $0x190] sm:$0xff]
    %v1549 = vld [vmem:[%s1507 + $0x198] sm:$0xff]
    %v1550 = vld [vmem:[%s1507 + $0x1a0] sm:$0xff]
    %v1551 = vld [vmem:[%s1507 + $0x1a8] sm:$0xff]
    %v1552 = vld [vmem:[%s1507 + $0x1b0] sm:$0xff]
    %v1553 = vld [vmem:[%s1507 + $0x1b8] sm:$0xff]
    %v1554 = vld [vmem:[%s1507 + $0x1c0] sm:$0xff]
    %v1555 = vld [vmem:[%s1507 + $0x1c8] sm:$0xff]
    %v1556 = vld [vmem:[%s1507 + $0x1e0] sm:$0xff]
    %v1557 = vld [vmem:[%s1507 + $0x1e8] sm:$0xff]
    %v1558 = vld [vmem:[%s1507 + $0x1f0] sm:$0xff]
    %v1559 = vld [vmem:[%s1507 + $0x1f8] sm:$0xff]
    %v1560 = vld [vmem:[%s1507 + $0x200] sm:$0xff]
    %v1561 = vld [vmem:[%s1507 + $0x208] sm:$0xff]
    %v1562 = vld [vmem:[%s1507 + $0x210] sm:$0xff]
    %v1563 = vld [vmem:[%s1507 + $0x218] sm:$0xff]
    %v1564 = vld [vmem:[%s1507 + $0x230] sm:$0xff]
    %v1565 = vld [vmem:[%s1507 + $0x238] sm:$0xff]
    %v1566 = vld [vmem:[%s1507 + $0x240] sm:$0xff]
    %v1567 = vld [vmem:[%s1507 + $0x248] sm:$0xff]
    %v1568 = vld [vmem:[%s1507 + $0x250] sm:$0xff]
    %v1569 = vld [vmem:[%s1507 + $0x258] sm:$0xff]
    %v1570 = vld [vmem:[%s1507 + $0x260] sm:$0xff]
    %v1571 = vld [vmem:[%s1507 + $0x268] sm:$0xff]
    %v1572 = vperm.slane %v983, 0
    %v1573 = vmul.f32 %v1508, %v1572
    %v1574 = vmul.f32 %v1509, %v1572
    %v1575 = vmul.f32 %v1510, %v1572
    %v1576 = vmul.f32 %v1511, %v1572
    %v1577 = vmul.f32 %v1512, %v1572
    %v1578 = vmul.f32 %v1513, %v1572
    %v1579 = vmul.f32 %v1514, %v1572
    %v1580 = vmul.f32 %v1515, %v1572
    %v1581 = vmul.f32 %v1516, %v1572
    %v1582 = vmul.f32 %v1517, %v1572
    %v1583 = vmul.f32 %v1518, %v1572
    %v1584 = vmul.f32 %v1519, %v1572
    %v1585 = vmul.f32 %v1520, %v1572
    %v1586 = vmul.f32 %v1521, %v1572
    %v1587 = vmul.f32 %v1522, %v1572
    %v1588 = vmul.f32 %v1523, %v1572
    %v1589 = vmul.f32 %v1524, %v1572
    %v1590 = vmul.f32 %v1525, %v1572
    %v1591 = vmul.f32 %v1526, %v1572
    %v1592 = vmul.f32 %v1527, %v1572
    %v1593 = vmul.f32 %v1528, %v1572
    %v1594 = vmul.f32 %v1529, %v1572
    %v1595 = vmul.f32 %v1530, %v1572
    %v1596 = vmul.f32 %v1531, %v1572
    %v1597 = vmul.f32 %v1532, %v1572
    %v1598 = vmul.f32 %v1533, %v1572
    %v1599 = vmul.f32 %v1534, %v1572
    %v1600 = vmul.f32 %v1535, %v1572
    %v1601 = vmul.f32 %v1536, %v1572
    %v1602 = vmul.f32 %v1537, %v1572
    %v1603 = vmul.f32 %v1538, %v1572
    %v1604 = vmul.f32 %v1539, %v1572
    %v1605 = vmul.f32 %v1540, %v1572
    %v1606 = vmul.f32 %v1541, %v1572
    %v1607 = vmul.f32 %v1542, %v1572
    %v1608 = vmul.f32 %v1543, %v1572
    %v1609 = vmul.f32 %v1544, %v1572
    %v1610 = vmul.f32 %v1545, %v1572
    %v1611 = vmul.f32 %v1546, %v1572
    %v1612 = vmul.f32 %v1547, %v1572
    %v1613 = vmul.f32 %v1548, %v1572
    %v1614 = vmul.f32 %v1549, %v1572
    %v1615 = vmul.f32 %v1550, %v1572
    %v1616 = vmul.f32 %v1551, %v1572
    %v1617 = vmul.f32 %v1552, %v1572
    %v1618 = vmul.f32 %v1553, %v1572
    %v1619 = vmul.f32 %v1554, %v1572
    %v1620 = vmul.f32 %v1555, %v1572
    %v1621 = vmul.f32 %v1556, %v1572
    %v1622 = vmul.f32 %v1557, %v1572
    %v1623 = vmul.f32 %v1558, %v1572
    %v1624 = vmul.f32 %v1559, %v1572
    %v1625 = vmul.f32 %v1560, %v1572
    %v1626 = vmul.f32 %v1561, %v1572
    %v1627 = vmul.f32 %v1562, %v1572
    %v1628 = vmul.f32 %v1563, %v1572
    %v1629 = vmul.f32 %v1564, %v1572
    %v1630 = vmul.f32 %v1565, %v1572
    %v1631 = vmul.f32 %v1566, %v1572
    %v1632 = vmul.f32 %v1567, %v1572
    %v1633 = vmul.f32 %v1568, %v1572
    %v1634 = vmul.f32 %v1569, %v1572
    %v1635 = vmul.f32 %v1570, %v1572
    %v1636 = vmul.f32 %v1571, %v1572
    %v1637 = vadd.f32 %v1443, %v1573
    %v1638 = vadd.f32 %v1444, %v1574
    %v1639 = vadd.f32 %v1445, %v1575
    %v1640 = vadd.f32 %v1446, %v1576
    %v1641 = vadd.f32 %v1447, %v1577
    %v1642 = vadd.f32 %v1448, %v1578
    %v1643 = vadd.f32 %v1449, %v1579
    %v1644 = vadd.f32 %v1450, %v1580
    %v1645 = vadd.f32 %v1451, %v1581
    %v1646 = vadd.f32 %v1452, %v1582
    %v1647 = vadd.f32 %v1453, %v1583
    %v1648 = vadd.f32 %v1454, %v1584
    %v1649 = vadd.f32 %v1455, %v1585
    %v1650 = vadd.f32 %v1456, %v1586
    %v1651 = vadd.f32 %v1457, %v1587
    %v1652 = vadd.f32 %v1458, %v1588
    %v1653 = vadd.f32 %v1459, %v1589
    %v1654 = vadd.f32 %v1460, %v1590
    %v1655 = vadd.f32 %v1461, %v1591
    %v1656 = vadd.f32 %v1462, %v1592
    %v1657 = vadd.f32 %v1463, %v1593
    %v1658 = vadd.f32 %v1464, %v1594
    %v1659 = vadd.f32 %v1465, %v1595
    %v1660 = vadd.f32 %v1466, %v1596
    %v1661 = vadd.f32 %v1467, %v1597
    %v1662 = vadd.f32 %v1468, %v1598
    %v1663 = vadd.f32 %v1469, %v1599
    %v1664 = vadd.f32 %v1470, %v1600
    %v1665 = vadd.f32 %v1471, %v1601
    %v1666 = vadd.f32 %v1472, %v1602
    %v1667 = vadd.f32 %v1473, %v1603
    %v1668 = vadd.f32 %v1474, %v1604
    %v1669 = vadd.f32 %v1475, %v1605
    %v1670 = vadd.f32 %v1476, %v1606
    %v1671 = vadd.f32 %v1477, %v1607
    %v1672 = vadd.f32 %v1478, %v1608
    %v1673 = vadd.f32 %v1479, %v1609
    %v1674 = vadd.f32 %v1480, %v1610
    %v1675 = vadd.f32 %v1481, %v1611
    %v1676 = vadd.f32 %v1482, %v1612
    %v1677 = vadd.f32 %v1483, %v1613
    %v1678 = vadd.f32 %v1484, %v1614
    %v1679 = vadd.f32 %v1485, %v1615
    %v1680 = vadd.f32 %v1486, %v1616
    %v1681 = vadd.f32 %v1487, %v1617
    %v1682 = vadd.f32 %v1488, %v1618
    %v1683 = vadd.f32 %v1489, %v1619
    %v1684 = vadd.f32 %v1490, %v1620
    %v1685 = vadd.f32 %v1491, %v1621
    %v1686 = vadd.f32 %v1492, %v1622
    %v1687 = vadd.f32 %v1493, %v1623
    %v1688 = vadd.f32 %v1494, %v1624
    %v1689 = vadd.f32 %v1495, %v1625
    %v1690 = vadd.f32 %v1496, %v1626
    %v1691 = vadd.f32 %v1497, %v1627
    %v1692 = vadd.f32 %v1498, %v1628
    %v1693 = vadd.f32 %v1499, %v1629
    %v1694 = vadd.f32 %v1500, %v1630
    %v1695 = vadd.f32 %v1501, %v1631
    %v1696 = vadd.f32 %v1502, %v1632
    %v1697 = vadd.f32 %v1503, %v1633
    %v1698 = vadd.f32 %v1504, %v1634
    %v1699 = vadd.f32 %v1505, %v1635
    %v1700 = vadd.f32 %v1506, %v1636
    %v1701 = vld [vmem:[%s917] sm:$0xff]
    %v1702 = vld [vmem:[%s917 + $0x8] sm:$0xff]
    %v1703 = vld [vmem:[%s917 + $0x10] sm:$0xff]
    %v1704 = vld [vmem:[%s917 + $0x18] sm:$0xff]
    %v1705 = vld [vmem:[%s917 + $0x20] sm:$0xff]
    %v1706 = vld [vmem:[%s917 + $0x28] sm:$0xff]
    %v1707 = vld [vmem:[%s917 + $0x30] sm:$0xff]
    %v1708 = vld [vmem:[%s917 + $0x38] sm:$0xff]
    %v1709 = vld [vmem:[%s917 + $0x50] sm:$0xff]
    %v1710 = vld [vmem:[%s917 + $0x58] sm:$0xff]
    %v1711 = vld [vmem:[%s917 + $0x60] sm:$0xff]
    %v1712 = vld [vmem:[%s917 + $0x68] sm:$0xff]
    %v1713 = vld [vmem:[%s917 + $0x70] sm:$0xff]
    %v1714 = vld [vmem:[%s917 + $0x78] sm:$0xff]
    %v1715 = vld [vmem:[%s917 + $0x80] sm:$0xff]
    %v1716 = vld [vmem:[%s917 + $0x88] sm:$0xff]
    %v1717 = vld [vmem:[%s917 + $0xa0] sm:$0xff]
    %v1718 = vld [vmem:[%s917 + $0xa8] sm:$0xff]
    %v1719 = vld [vmem:[%s917 + $0xb0] sm:$0xff]
    %v1720 = vld [vmem:[%s917 + $0xb8] sm:$0xff]
    %v1721 = vld [vmem:[%s917 + $0xc0] sm:$0xff]
    %v1722 = vld [vmem:[%s917 + $0xc8] sm:$0xff]
    %v1723 = vld [vmem:[%s917 + $0xd0] sm:$0xff]
    %v1724 = vld [vmem:[%s917 + $0xd8] sm:$0xff]
    %v1725 = vld [vmem:[%s917 + $0xf0] sm:$0xff]
    %v1726 = vld [vmem:[%s917 + $0xf8] sm:$0xff]
    %v1727 = vld [vmem:[%s917 + $0x100] sm:$0xff]
    %v1728 = vld [vmem:[%s917 + $0x108] sm:$0xff]
    %v1729 = vld [vmem:[%s917 + $0x110] sm:$0xff]
    %v1730 = vld [vmem:[%s917 + $0x118] sm:$0xff]
    %v1731 = vld [vmem:[%s917 + $0x120] sm:$0xff]
    %v1732 = vld [vmem:[%s917 + $0x128] sm:$0xff]
    %v1733 = vld [vmem:[%s917 + $0x140] sm:$0xff]
    %v1734 = vld [vmem:[%s917 + $0x148] sm:$0xff]
    %v1735 = vld [vmem:[%s917 + $0x150] sm:$0xff]
    %v1736 = vld [vmem:[%s917 + $0x158] sm:$0xff]
    %v1737 = vld [vmem:[%s917 + $0x160] sm:$0xff]
    %v1738 = vld [vmem:[%s917 + $0x168] sm:$0xff]
    %v1739 = vld [vmem:[%s917 + $0x170] sm:$0xff]
    %v1740 = vld [vmem:[%s917 + $0x178] sm:$0xff]
    %v1741 = vld [vmem:[%s917 + $0x190] sm:$0xff]
    %v1742 = vld [vmem:[%s917 + $0x198] sm:$0xff]
    %v1743 = vld [vmem:[%s917 + $0x1a0] sm:$0xff]
    %v1744 = vld [vmem:[%s917 + $0x1a8] sm:$0xff]
    %v1745 = vld [vmem:[%s917 + $0x1b0] sm:$0xff]
    %v1746 = vld [vmem:[%s917 + $0x1b8] sm:$0xff]
    %v1747 = vld [vmem:[%s917 + $0x1c0] sm:$0xff]
    %v1748 = vld [vmem:[%s917 + $0x1c8] sm:$0xff]
    %v1749 = vld [vmem:[%s917 + $0x1e0] sm:$0xff]
    %v1750 = vld [vmem:[%s917 + $0x1e8] sm:$0xff]
    %v1751 = vld [vmem:[%s917 + $0x1f0] sm:$0xff]
    %v1752 = vld [vmem:[%s917 + $0x1f8] sm:$0xff]
    %v1753 = vld [vmem:[%s917 + $0x200] sm:$0xff]
    %v1754 = vld [vmem:[%s917 + $0x208] sm:$0xff]
    %v1755 = vld [vmem:[%s917 + $0x210] sm:$0xff]
    %v1756 = vld [vmem:[%s917 + $0x218] sm:$0xff]
    %v1757 = vld [vmem:[%s917 + $0x230] sm:$0xff]
    %v1758 = vld [vmem:[%s917 + $0x238] sm:$0xff]
    %v1759 = vld [vmem:[%s917 + $0x240] sm:$0xff]
    %v1760 = vld [vmem:[%s917 + $0x248] sm:$0xff]
    %v1761 = vld [vmem:[%s917 + $0x250] sm:$0xff]
    %v1762 = vld [vmem:[%s917 + $0x258] sm:$0xff]
    %v1763 = vld [vmem:[%s917 + $0x260] sm:$0xff]
    %v1764 = vld [vmem:[%s917 + $0x268] sm:$0xff]
    %v1765 = vperm.slane %v983, 1
    %v1766 = vmul.f32 %v1701, %v1765
    %v1767 = vmul.f32 %v1702, %v1765
    %v1768 = vmul.f32 %v1703, %v1765
    %v1769 = vmul.f32 %v1704, %v1765
    %v1770 = vmul.f32 %v1705, %v1765
    %v1771 = vmul.f32 %v1706, %v1765
    %v1772 = vmul.f32 %v1707, %v1765
    %v1773 = vmul.f32 %v1708, %v1765
    %v1774 = vmul.f32 %v1709, %v1765
    %v1775 = vmul.f32 %v1710, %v1765
    %v1776 = vmul.f32 %v1711, %v1765
    %v1777 = vmul.f32 %v1712, %v1765
    %v1778 = vmul.f32 %v1713, %v1765
    %v1779 = vmul.f32 %v1714, %v1765
    %v1780 = vmul.f32 %v1715, %v1765
    %v1781 = vmul.f32 %v1716, %v1765
    %v1782 = vmul.f32 %v1717, %v1765
    %v1783 = vmul.f32 %v1718, %v1765
    %v1784 = vmul.f32 %v1719, %v1765
    %v1785 = vmul.f32 %v1720, %v1765
    %v1786 = vmul.f32 %v1721, %v1765
    %v1787 = vmul.f32 %v1722, %v1765
    %v1788 = vmul.f32 %v1723, %v1765
    %v1789 = vmul.f32 %v1724, %v1765
    %v1790 = vmul.f32 %v1725, %v1765
    %v1791 = vmul.f32 %v1726, %v1765
    %v1792 = vmul.f32 %v1727, %v1765
    %v1793 = vmul.f32 %v1728, %v1765
    %v1794 = vmul.f32 %v1729, %v1765
    %v1795 = vmul.f32 %v1730, %v1765
    %v1796 = vmul.f32 %v1731, %v1765
    %v1797 = vmul.f32 %v1732, %v1765
    %v1798 = vmul.f32 %v1733, %v1765
    %v1799 = vmul.f32 %v1734, %v1765
    %v1800 = vmul.f32 %v1735, %v1765
    %v1801 = vmul.f32 %v1736, %v1765
    %v1802 = vmul.f32 %v1737, %v1765
    %v1803 = vmul.f32 %v1738, %v1765
    %v1804 = vmul.f32 %v1739, %v1765
    %v1805 = vmul.f32 %v1740, %v1765
    %v1806 = vmul.f32 %v1741, %v1765
    %v1807 = vmul.f32 %v1742, %v1765
    %v1808 = vmul.f32 %v1743, %v1765
    %v1809 = vmul.f32 %v1744, %v1765
    %v1810 = vmul.f32 %v1745, %v1765
    %v1811 = vmul.f32 %v1746, %v1765
    %v1812 = vmul.f32 %v1747, %v1765
    %v1813 = vmul.f32 %v1748, %v1765
    %v1814 = vmul.f32 %v1749, %v1765
    %v1815 = vmul.f32 %v1750, %v1765
    %v1816 = vmul.f32 %v1751, %v1765
    %v1817 = vmul.f32 %v1752, %v1765
    %v1818 = vmul.f32 %v1753, %v1765
    %v1819 = vmul.f32 %v1754, %v1765
    %v1820 = vmul.f32 %v1755, %v1765
    %v1821 = vmul.f32 %v1756, %v1765
    %v1822 = vmul.f32 %v1757, %v1765
    %v1823 = vmul.f32 %v1758, %v1765
    %v1824 = vmul.f32 %v1759, %v1765
    %v1825 = vmul.f32 %v1760, %v1765
    %v1826 = vmul.f32 %v1761, %v1765
    %v1827 = vmul.f32 %v1762, %v1765
    %v1828 = vmul.f32 %v1763, %v1765
    %v1829 = vmul.f32 %v1764, %v1765
    %v1830 = vadd.f32 %v1637, %v1766
    %v1831 = vadd.f32 %v1638, %v1767
    %v1832 = vadd.f32 %v1639, %v1768
    %v1833 = vadd.f32 %v1640, %v1769
    %v1834 = vadd.f32 %v1641, %v1770
    %v1835 = vadd.f32 %v1642, %v1771
    %v1836 = vadd.f32 %v1643, %v1772
    %v1837 = vadd.f32 %v1644, %v1773
    %v1838 = vadd.f32 %v1645, %v1774
    %v1839 = vadd.f32 %v1646, %v1775
    %v1840 = vadd.f32 %v1647, %v1776
    %v1841 = vadd.f32 %v1648, %v1777
    %v1842 = vadd.f32 %v1649, %v1778
    %v1843 = vadd.f32 %v1650, %v1779
    %v1844 = vadd.f32 %v1651, %v1780
    %v1845 = vadd.f32 %v1652, %v1781
    %v1846 = vadd.f32 %v1653, %v1782
    %v1847 = vadd.f32 %v1654, %v1783
    %v1848 = vadd.f32 %v1655, %v1784
    %v1849 = vadd.f32 %v1656, %v1785
    %v1850 = vadd.f32 %v1657, %v1786
    %v1851 = vadd.f32 %v1658, %v1787
    %v1852 = vadd.f32 %v1659, %v1788
    %v1853 = vadd.f32 %v1660, %v1789
    %v1854 = vadd.f32 %v1661, %v1790
    %v1855 = vadd.f32 %v1662, %v1791
    %v1856 = vadd.f32 %v1663, %v1792
    %v1857 = vadd.f32 %v1664, %v1793
    %v1858 = vadd.f32 %v1665, %v1794
    %v1859 = vadd.f32 %v1666, %v1795
    %v1860 = vadd.f32 %v1667, %v1796
    %v1861 = vadd.f32 %v1668, %v1797
    %v1862 = vadd.f32 %v1669, %v1798
    %v1863 = vadd.f32 %v1670, %v1799
    %v1864 = vadd.f32 %v1671, %v1800
    %v1865 = vadd.f32 %v1672, %v1801
    %v1866 = vadd.f32 %v1673, %v1802
    %v1867 = vadd.f32 %v1674, %v1803
    %v1868 = vadd.f32 %v1675, %v1804
    %v1869 = vadd.f32 %v1676, %v1805
    %v1870 = vadd.f32 %v1677, %v1806
    %v1871 = vadd.f32 %v1678, %v1807
    %v1872 = vadd.f32 %v1679, %v1808
    %v1873 = vadd.f32 %v1680, %v1809
    %v1874 = vadd.f32 %v1681, %v1810
    %v1875 = vadd.f32 %v1682, %v1811
    %v1876 = vadd.f32 %v1683, %v1812
    %v1877 = vadd.f32 %v1684, %v1813
    %v1878 = vadd.f32 %v1685, %v1814
    %v1879 = vadd.f32 %v1686, %v1815
    %v1880 = vadd.f32 %v1687, %v1816
    %v1881 = vadd.f32 %v1688, %v1817
    %v1882 = vadd.f32 %v1689, %v1818
    %v1883 = vadd.f32 %v1690, %v1819
    %v1884 = vadd.f32 %v1691, %v1820
    %v1885 = vadd.f32 %v1692, %v1821
    %v1886 = vadd.f32 %v1693, %v1822
    %v1887 = vadd.f32 %v1694, %v1823
    %v1888 = vadd.f32 %v1695, %v1824
    %v1889 = vadd.f32 %v1696, %v1825
    %v1890 = vadd.f32 %v1697, %v1826
    %v1891 = vadd.f32 %v1698, %v1827
    %v1892 = vadd.f32 %v1699, %v1828
    %v1893 = vadd.f32 %v1700, %v1829
    %s1894 = scalar_lea.vmem [#allocation2], 96
    %v1895 = vld [vmem:[%s1894] sm:$0xff]
    %v1896 = vld [vmem:[%s1894 + $0x8] sm:$0xff]
    %v1897 = vld [vmem:[%s1894 + $0x10] sm:$0xff]
    %v1898 = vld [vmem:[%s1894 + $0x18] sm:$0xff]
    %v1899 = vld [vmem:[%s1894 + $0x20] sm:$0xff]
    %v1900 = vld [vmem:[%s1894 + $0x28] sm:$0xff]
    %v1901 = vld [vmem:[%s1894 + $0x30] sm:$0xff]
    %v1902 = vld [vmem:[%s1894 + $0x38] sm:$0xff]
    %v1903 = vld [vmem:[%s1894 + $0x50] sm:$0xff]
    %v1904 = vld [vmem:[%s1894 + $0x58] sm:$0xff]
    %v1905 = vld [vmem:[%s1894 + $0x60] sm:$0xff]
    %v1906 = vld [vmem:[%s1894 + $0x68] sm:$0xff]
    %v1907 = vld [vmem:[%s1894 + $0x70] sm:$0xff]
    %v1908 = vld [vmem:[%s1894 + $0x78] sm:$0xff]
    %v1909 = vld [vmem:[%s1894 + $0x80] sm:$0xff]
    %v1910 = vld [vmem:[%s1894 + $0x88] sm:$0xff]
    %v1911 = vld [vmem:[%s1894 + $0xa0] sm:$0xff]
    %v1912 = vld [vmem:[%s1894 + $0xa8] sm:$0xff]
    %v1913 = vld [vmem:[%s1894 + $0xb0] sm:$0xff]
    %v1914 = vld [vmem:[%s1894 + $0xb8] sm:$0xff]
    %v1915 = vld [vmem:[%s1894 + $0xc0] sm:$0xff]
    %v1916 = vld [vmem:[%s1894 + $0xc8] sm:$0xff]
    %v1917 = vld [vmem:[%s1894 + $0xd0] sm:$0xff]
    %v1918 = vld [vmem:[%s1894 + $0xd8] sm:$0xff]
    %v1919 = vld [vmem:[%s1894 + $0xf0] sm:$0xff]
    %v1920 = vld [vmem:[%s1894 + $0xf8] sm:$0xff]
    %v1921 = vld [vmem:[%s1894 + $0x100] sm:$0xff]
    %v1922 = vld [vmem:[%s1894 + $0x108] sm:$0xff]
    %v1923 = vld [vmem:[%s1894 + $0x110] sm:$0xff]
    %v1924 = vld [vmem:[%s1894 + $0x118] sm:$0xff]
    %v1925 = vld [vmem:[%s1894 + $0x120] sm:$0xff]
    %v1926 = vld [vmem:[%s1894 + $0x128] sm:$0xff]
    %v1927 = vld [vmem:[%s1894 + $0x140] sm:$0xff]
    %v1928 = vld [vmem:[%s1894 + $0x148] sm:$0xff]
    %v1929 = vld [vmem:[%s1894 + $0x150] sm:$0xff]
    %v1930 = vld [vmem:[%s1894 + $0x158] sm:$0xff]
    %v1931 = vld [vmem:[%s1894 + $0x160] sm:$0xff]
    %v1932 = vld [vmem:[%s1894 + $0x168] sm:$0xff]
    %v1933 = vld [vmem:[%s1894 + $0x170] sm:$0xff]
    %v1934 = vld [vmem:[%s1894 + $0x178] sm:$0xff]
    %v1935 = vld [vmem:[%s1894 + $0x190] sm:$0xff]
    %v1936 = vld [vmem:[%s1894 + $0x198] sm:$0xff]
    %v1937 = vld [vmem:[%s1894 + $0x1a0] sm:$0xff]
    %v1938 = vld [vmem:[%s1894 + $0x1a8] sm:$0xff]
    %v1939 = vld [vmem:[%s1894 + $0x1b0] sm:$0xff]
    %v1940 = vld [vmem:[%s1894 + $0x1b8] sm:$0xff]
    %v1941 = vld [vmem:[%s1894 + $0x1c0] sm:$0xff]
    %v1942 = vld [vmem:[%s1894 + $0x1c8] sm:$0xff]
    %v1943 = vld [vmem:[%s1894 + $0x1e0] sm:$0xff]
    %v1944 = vld [vmem:[%s1894 + $0x1e8] sm:$0xff]
    %v1945 = vld [vmem:[%s1894 + $0x1f0] sm:$0xff]
    %v1946 = vld [vmem:[%s1894 + $0x1f8] sm:$0xff]
    %v1947 = vld [vmem:[%s1894 + $0x200] sm:$0xff]
    %v1948 = vld [vmem:[%s1894 + $0x208] sm:$0xff]
    %v1949 = vld [vmem:[%s1894 + $0x210] sm:$0xff]
    %v1950 = vld [vmem:[%s1894 + $0x218] sm:$0xff]
    %v1951 = vld [vmem:[%s1894 + $0x230] sm:$0xff]
    %v1952 = vld [vmem:[%s1894 + $0x238] sm:$0xff]
    %v1953 = vld [vmem:[%s1894 + $0x240] sm:$0xff]
    %v1954 = vld [vmem:[%s1894 + $0x248] sm:$0xff]
    %v1955 = vld [vmem:[%s1894 + $0x250] sm:$0xff]
    %v1956 = vld [vmem:[%s1894 + $0x258] sm:$0xff]
    %v1957 = vld [vmem:[%s1894 + $0x260] sm:$0xff]
    %v1958 = vld [vmem:[%s1894 + $0x268] sm:$0xff]
    %v1959 = vperm.slane %v983, 2
    %v1960 = vmul.f32 %v1895, %v1959
    %v1961 = vmul.f32 %v1896, %v1959
    %v1962 = vmul.f32 %v1897, %v1959
    %v1963 = vmul.f32 %v1898, %v1959
    %v1964 = vmul.f32 %v1899, %v1959
    %v1965 = vmul.f32 %v1900, %v1959
    %v1966 = vmul.f32 %v1901, %v1959
    %v1967 = vmul.f32 %v1902, %v1959
    %v1968 = vmul.f32 %v1903, %v1959
    %v1969 = vmul.f32 %v1904, %v1959
    %v1970 = vmul.f32 %v1905, %v1959
    %v1971 = vmul.f32 %v1906, %v1959
    %v1972 = vmul.f32 %v1907, %v1959
    %v1973 = vmul.f32 %v1908, %v1959
    %v1974 = vmul.f32 %v1909, %v1959
    %v1975 = vmul.f32 %v1910, %v1959
    %v1976 = vmul.f32 %v1911, %v1959
    %v1977 = vmul.f32 %v1912, %v1959
    %v1978 = vmul.f32 %v1913, %v1959
    %v1979 = vmul.f32 %v1914, %v1959
    %v1980 = vmul.f32 %v1915, %v1959
    %v1981 = vmul.f32 %v1916, %v1959
    %v1982 = vmul.f32 %v1917, %v1959
    %v1983 = vmul.f32 %v1918, %v1959
    %v1984 = vmul.f32 %v1919, %v1959
    %v1985 = vmul.f32 %v1920, %v1959
    %v1986 = vmul.f32 %v1921, %v1959
    %v1987 = vmul.f32 %v1922, %v1959
    %v1988 = vmul.f32 %v1923, %v1959
    %v1989 = vmul.f32 %v1924, %v1959
    %v1990 = vmul.f32 %v1925, %v1959
    %v1991 = vmul.f32 %v1926, %v1959
    %v1992 = vmul.f32 %v1927, %v1959
    %v1993 = vmul.f32 %v1928, %v1959
    %v1994 = vmul.f32 %v1929, %v1959
    %v1995 = vmul.f32 %v1930, %v1959
    %v1996 = vmul.f32 %v1931, %v1959
    %v1997 = vmul.f32 %v1932, %v1959
    %v1998 = vmul.f32 %v1933, %v1959
    %v1999 = vmul.f32 %v1934, %v1959
    %v2000 = vmul.f32 %v1935, %v1959
    %v2001 = vmul.f32 %v1936, %v1959
    %v2002 = vmul.f32 %v1937, %v1959
    %v2003 = vmul.f32 %v1938, %v1959
    %v2004 = vmul.f32 %v1939, %v1959
    %v2005 = vmul.f32 %v1940, %v1959
    %v2006 = vmul.f32 %v1941, %v1959
    %v2007 = vmul.f32 %v1942, %v1959
    %v2008 = vmul.f32 %v1943, %v1959
    %v2009 = vmul.f32 %v1944, %v1959
    %v2010 = vmul.f32 %v1945, %v1959
    %v2011 = vmul.f32 %v1946, %v1959
    %v2012 = vmul.f32 %v1947, %v1959
    %v2013 = vmul.f32 %v1948, %v1959
    %v2014 = vmul.f32 %v1949, %v1959
    %v2015 = vmul.f32 %v1950, %v1959
    %v2016 = vmul.f32 %v1951, %v1959
    %v2017 = vmul.f32 %v1952, %v1959
    %v2018 = vmul.f32 %v1953, %v1959
    %v2019 = vmul.f32 %v1954, %v1959
    %v2020 = vmul.f32 %v1955, %v1959
    %v2021 = vmul.f32 %v1956, %v1959
    %v2022 = vmul.f32 %v1957, %v1959
    %v2023 = vmul.f32 %v1958, %v1959
    %v2024 = vadd.f32 %v1830, %v1960
    %v2025 = vadd.f32 %v1831, %v1961
    %v2026 = vadd.f32 %v1832, %v1962
    %v2027 = vadd.f32 %v1833, %v1963
    %v2028 = vadd.f32 %v1834, %v1964
    %v2029 = vadd.f32 %v1835, %v1965
    %v2030 = vadd.f32 %v1836, %v1966
    %v2031 = vadd.f32 %v1837, %v1967
    %v2032 = vadd.f32 %v1838, %v1968
    %v2033 = vadd.f32 %v1839, %v1969
    %v2034 = vadd.f32 %v1840, %v1970
    %v2035 = vadd.f32 %v1841, %v1971
    %v2036 = vadd.f32 %v1842, %v1972
    %v2037 = vadd.f32 %v1843, %v1973
    %v2038 = vadd.f32 %v1844, %v1974
    %v2039 = vadd.f32 %v1845, %v1975
    %v2040 = vadd.f32 %v1846, %v1976
    %v2041 = vadd.f32 %v1847, %v1977
    %v2042 = vadd.f32 %v1848, %v1978
    %v2043 = vadd.f32 %v1849, %v1979
    %v2044 = vadd.f32 %v1850, %v1980
    %v2045 = vadd.f32 %v1851, %v1981
    %v2046 = vadd.f32 %v1852, %v1982
    %v2047 = vadd.f32 %v1853, %v1983
    %v2048 = vadd.f32 %v1854, %v1984
    %v2049 = vadd.f32 %v1855, %v1985
    %v2050 = vadd.f32 %v1856, %v1986
    %v2051 = vadd.f32 %v1857, %v1987
    %v2052 = vadd.f32 %v1858, %v1988
    %v2053 = vadd.f32 %v1859, %v1989
    %v2054 = vadd.f32 %v1860, %v1990
    %v2055 = vadd.f32 %v1861, %v1991
    %v2056 = vadd.f32 %v1862, %v1992
    %v2057 = vadd.f32 %v1863, %v1993
    %v2058 = vadd.f32 %v1864, %v1994
    %v2059 = vadd.f32 %v1865, %v1995
    %v2060 = vadd.f32 %v1866, %v1996
    %v2061 = vadd.f32 %v1867, %v1997
    %v2062 = vadd.f32 %v1868, %v1998
    %v2063 = vadd.f32 %v1869, %v1999
    %v2064 = vadd.f32 %v1870, %v2000
    %v2065 = vadd.f32 %v1871, %v2001
    %v2066 = vadd.f32 %v1872, %v2002
    %v2067 = vadd.f32 %v1873, %v2003
    %v2068 = vadd.f32 %v1874, %v2004
    %v2069 = vadd.f32 %v1875, %v2005
    %v2070 = vadd.f32 %v1876, %v2006
    %v2071 = vadd.f32 %v1877, %v2007
    %v2072 = vadd.f32 %v1878, %v2008
    %v2073 = vadd.f32 %v1879, %v2009
    %v2074 = vadd.f32 %v1880, %v2010
    %v2075 = vadd.f32 %v1881, %v2011
    %v2076 = vadd.f32 %v1882, %v2012
    %v2077 = vadd.f32 %v1883, %v2013
    %v2078 = vadd.f32 %v1884, %v2014
    %v2079 = vadd.f32 %v1885, %v2015
    %v2080 = vadd.f32 %v1886, %v2016
    %v2081 = vadd.f32 %v1887, %v2017
    %v2082 = vadd.f32 %v1888, %v2018
    %v2083 = vadd.f32 %v1889, %v2019
    %v2084 = vadd.f32 %v1890, %v2020
    %v2085 = vadd.f32 %v1891, %v2021
    %v2086 = vadd.f32 %v1892, %v2022
    %v2087 = vadd.f32 %v1893, %v2023
    %s2088 = scalar_lea.vmem [#allocation2], 160
    %v2089 = vld [vmem:[%s2088] sm:$0xff]
    %v2090 = vld [vmem:[%s2088 + $0x8] sm:$0xff]
    %v2091 = vld [vmem:[%s2088 + $0x10] sm:$0xff]
    %v2092 = vld [vmem:[%s2088 + $0x18] sm:$0xff]
    %v2093 = vld [vmem:[%s2088 + $0x20] sm:$0xff]
    %v2094 = vld [vmem:[%s2088 + $0x28] sm:$0xff]
    %v2095 = vld [vmem:[%s2088 + $0x30] sm:$0xff]
    %v2096 = vld [vmem:[%s2088 + $0x38] sm:$0xff]
    %v2097 = vld [vmem:[%s2088 + $0x50] sm:$0xff]
    %v2098 = vld [vmem:[%s2088 + $0x58] sm:$0xff]
    %v2099 = vld [vmem:[%s2088 + $0x60] sm:$0xff]
    %v2100 = vld [vmem:[%s2088 + $0x68] sm:$0xff]
    %v2101 = vld [vmem:[%s2088 + $0x70] sm:$0xff]
    %v2102 = vld [vmem:[%s2088 + $0x78] sm:$0xff]
    %v2103 = vld [vmem:[%s2088 + $0x80] sm:$0xff]
    %v2104 = vld [vmem:[%s2088 + $0x88] sm:$0xff]
    %v2105 = vld [vmem:[%s2088 + $0xa0] sm:$0xff]
    %v2106 = vld [vmem:[%s2088 + $0xa8] sm:$0xff]
    %v2107 = vld [vmem:[%s2088 + $0xb0] sm:$0xff]
    %v2108 = vld [vmem:[%s2088 + $0xb8] sm:$0xff]
    %v2109 = vld [vmem:[%s2088 + $0xc0] sm:$0xff]
    %v2110 = vld [vmem:[%s2088 + $0xc8] sm:$0xff]
    %v2111 = vld [vmem:[%s2088 + $0xd0] sm:$0xff]
    %v2112 = vld [vmem:[%s2088 + $0xd8] sm:$0xff]
    %v2113 = vld [vmem:[%s2088 + $0xf0] sm:$0xff]
    %v2114 = vld [vmem:[%s2088 + $0xf8] sm:$0xff]
    %v2115 = vld [vmem:[%s2088 + $0x100] sm:$0xff]
    %v2116 = vld [vmem:[%s2088 + $0x108] sm:$0xff]
    %v2117 = vld [vmem:[%s2088 + $0x110] sm:$0xff]
    %v2118 = vld [vmem:[%s2088 + $0x118] sm:$0xff]
    %v2119 = vld [vmem:[%s2088 + $0x120] sm:$0xff]
    %v2120 = vld [vmem:[%s2088 + $0x128] sm:$0xff]
    %v2121 = vld [vmem:[%s2088 + $0x140] sm:$0xff]
    %v2122 = vld [vmem:[%s2088 + $0x148] sm:$0xff]
    %v2123 = vld [vmem:[%s2088 + $0x150] sm:$0xff]
    %v2124 = vld [vmem:[%s2088 + $0x158] sm:$0xff]
    %v2125 = vld [vmem:[%s2088 + $0x160] sm:$0xff]
    %v2126 = vld [vmem:[%s2088 + $0x168] sm:$0xff]
    %v2127 = vld [vmem:[%s2088 + $0x170] sm:$0xff]
    %v2128 = vld [vmem:[%s2088 + $0x178] sm:$0xff]
    %v2129 = vld [vmem:[%s2088 + $0x190] sm:$0xff]
    %v2130 = vld [vmem:[%s2088 + $0x198] sm:$0xff]
    %v2131 = vld [vmem:[%s2088 + $0x1a0] sm:$0xff]
    %v2132 = vld [vmem:[%s2088 + $0x1a8] sm:$0xff]
    %v2133 = vld [vmem:[%s2088 + $0x1b0] sm:$0xff]
    %v2134 = vld [vmem:[%s2088 + $0x1b8] sm:$0xff]
    %v2135 = vld [vmem:[%s2088 + $0x1c0] sm:$0xff]
    %v2136 = vld [vmem:[%s2088 + $0x1c8] sm:$0xff]
    %v2137 = vld [vmem:[%s2088 + $0x1e0] sm:$0xff]
    %v2138 = vld [vmem:[%s2088 + $0x1e8] sm:$0xff]
    %v2139 = vld [vmem:[%s2088 + $0x1f0] sm:$0xff]
    %v2140 = vld [vmem:[%s2088 + $0x1f8] sm:$0xff]
    %v2141 = vld [vmem:[%s2088 + $0x200] sm:$0xff]
    %v2142 = vld [vmem:[%s2088 + $0x208] sm:$0xff]
    %v2143 = vld [vmem:[%s2088 + $0x210] sm:$0xff]
    %v2144 = vld [vmem:[%s2088 + $0x218] sm:$0xff]
    %v2145 = vld [vmem:[%s2088 + $0x230] sm:$0xff]
    %v2146 = vld [vmem:[%s2088 + $0x238] sm:$0xff]
    %v2147 = vld [vmem:[%s2088 + $0x240] sm:$0xff]
    %v2148 = vld [vmem:[%s2088 + $0x248] sm:$0xff]
    %v2149 = vld [vmem:[%s2088 + $0x250] sm:$0xff]
    %v2150 = vld [vmem:[%s2088 + $0x258] sm:$0xff]
    %v2151 = vld [vmem:[%s2088 + $0x260] sm:$0xff]
    %v2152 = vld [vmem:[%s2088 + $0x268] sm:$0xff]
    %v2153 = vperm.slane %v984, 0
    %v2154 = vmul.f32 %v2089, %v2153
    %v2155 = vmul.f32 %v2090, %v2153
    %v2156 = vmul.f32 %v2091, %v2153
    %v2157 = vmul.f32 %v2092, %v2153
    %v2158 = vmul.f32 %v2093, %v2153
    %v2159 = vmul.f32 %v2094, %v2153
    %v2160 = vmul.f32 %v2095, %v2153
    %v2161 = vmul.f32 %v2096, %v2153
    %v2162 = vmul.f32 %v2097, %v2153
    %v2163 = vmul.f32 %v2098, %v2153
    %v2164 = vmul.f32 %v2099, %v2153
    %v2165 = vmul.f32 %v2100, %v2153
    %v2166 = vmul.f32 %v2101, %v2153
    %v2167 = vmul.f32 %v2102, %v2153
    %v2168 = vmul.f32 %v2103, %v2153
    %v2169 = vmul.f32 %v2104, %v2153
    %v2170 = vmul.f32 %v2105, %v2153
    %v2171 = vmul.f32 %v2106, %v2153
    %v2172 = vmul.f32 %v2107, %v2153
    %v2173 = vmul.f32 %v2108, %v2153
    %v2174 = vmul.f32 %v2109, %v2153
    %v2175 = vmul.f32 %v2110, %v2153
    %v2176 = vmul.f32 %v2111, %v2153
    %v2177 = vmul.f32 %v2112, %v2153
    %v2178 = vmul.f32 %v2113, %v2153
    %v2179 = vmul.f32 %v2114, %v2153
    %v2180 = vmul.f32 %v2115, %v2153
    %v2181 = vmul.f32 %v2116, %v2153
    %v2182 = vmul.f32 %v2117, %v2153
    %v2183 = vmul.f32 %v2118, %v2153
    %v2184 = vmul.f32 %v2119, %v2153
    %v2185 = vmul.f32 %v2120, %v2153
    %v2186 = vmul.f32 %v2121, %v2153
    %v2187 = vmul.f32 %v2122, %v2153
    %v2188 = vmul.f32 %v2123, %v2153
    %v2189 = vmul.f32 %v2124, %v2153
    %v2190 = vmul.f32 %v2125, %v2153
    %v2191 = vmul.f32 %v2126, %v2153
    %v2192 = vmul.f32 %v2127, %v2153
    %v2193 = vmul.f32 %v2128, %v2153
    %v2194 = vmul.f32 %v2129, %v2153
    %v2195 = vmul.f32 %v2130, %v2153
    %v2196 = vmul.f32 %v2131, %v2153
    %v2197 = vmul.f32 %v2132, %v2153
    %v2198 = vmul.f32 %v2133, %v2153
    %v2199 = vmul.f32 %v2134, %v2153
    %v2200 = vmul.f32 %v2135, %v2153
    %v2201 = vmul.f32 %v2136, %v2153
    %v2202 = vmul.f32 %v2137, %v2153
    %v2203 = vmul.f32 %v2138, %v2153
    %v2204 = vmul.f32 %v2139, %v2153
    %v2205 = vmul.f32 %v2140, %v2153
    %v2206 = vmul.f32 %v2141, %v2153
    %v2207 = vmul.f32 %v2142, %v2153
    %v2208 = vmul.f32 %v2143, %v2153
    %v2209 = vmul.f32 %v2144, %v2153
    %v2210 = vmul.f32 %v2145, %v2153
    %v2211 = vmul.f32 %v2146, %v2153
    %v2212 = vmul.f32 %v2147, %v2153
    %v2213 = vmul.f32 %v2148, %v2153
    %v2214 = vmul.f32 %v2149, %v2153
    %v2215 = vmul.f32 %v2150, %v2153
    %v2216 = vmul.f32 %v2151, %v2153
    %v2217 = vmul.f32 %v2152, %v2153
    %v2218 = vadd.f32 %v2024, %v2154
    %v2219 = vadd.f32 %v2025, %v2155
    %v2220 = vadd.f32 %v2026, %v2156
    %v2221 = vadd.f32 %v2027, %v2157
    %v2222 = vadd.f32 %v2028, %v2158
    %v2223 = vadd.f32 %v2029, %v2159
    %v2224 = vadd.f32 %v2030, %v2160
    %v2225 = vadd.f32 %v2031, %v2161
    %v2226 = vadd.f32 %v2032, %v2162
    %v2227 = vadd.f32 %v2033, %v2163
    %v2228 = vadd.f32 %v2034, %v2164
    %v2229 = vadd.f32 %v2035, %v2165
    %v2230 = vadd.f32 %v2036, %v2166
    %v2231 = vadd.f32 %v2037, %v2167
    %v2232 = vadd.f32 %v2038, %v2168
    %v2233 = vadd.f32 %v2039, %v2169
    %v2234 = vadd.f32 %v2040, %v2170
    %v2235 = vadd.f32 %v2041, %v2171
    %v2236 = vadd.f32 %v2042, %v2172
    %v2237 = vadd.f32 %v2043, %v2173
    %v2238 = vadd.f32 %v2044, %v2174
    %v2239 = vadd.f32 %v2045, %v2175
    %v2240 = vadd.f32 %v2046, %v2176
    %v2241 = vadd.f32 %v2047, %v2177
    %v2242 = vadd.f32 %v2048, %v2178
    %v2243 = vadd.f32 %v2049, %v2179
    %v2244 = vadd.f32 %v2050, %v2180
    %v2245 = vadd.f32 %v2051, %v2181
    %v2246 = vadd.f32 %v2052, %v2182
    %v2247 = vadd.f32 %v2053, %v2183
    %v2248 = vadd.f32 %v2054, %v2184
    %v2249 = vadd.f32 %v2055, %v2185
    %v2250 = vadd.f32 %v2056, %v2186
    %v2251 = vadd.f32 %v2057, %v2187
    %v2252 = vadd.f32 %v2058, %v2188
    %v2253 = vadd.f32 %v2059, %v2189
    %v2254 = vadd.f32 %v2060, %v2190
    %v2255 = vadd.f32 %v2061, %v2191
    %v2256 = vadd.f32 %v2062, %v2192
    %v2257 = vadd.f32 %v2063, %v2193
    %v2258 = vadd.f32 %v2064, %v2194
    %v2259 = vadd.f32 %v2065, %v2195
    %v2260 = vadd.f32 %v2066, %v2196
    %v2261 = vadd.f32 %v2067, %v2197
    %v2262 = vadd.f32 %v2068, %v2198
    %v2263 = vadd.f32 %v2069, %v2199
    %v2264 = vadd.f32 %v2070, %v2200
    %v2265 = vadd.f32 %v2071, %v2201
    %v2266 = vadd.f32 %v2072, %v2202
    %v2267 = vadd.f32 %v2073, %v2203
    %v2268 = vadd.f32 %v2074, %v2204
    %v2269 = vadd.f32 %v2075, %v2205
    %v2270 = vadd.f32 %v2076, %v2206
    %v2271 = vadd.f32 %v2077, %v2207
    %v2272 = vadd.f32 %v2078, %v2208
    %v2273 = vadd.f32 %v2079, %v2209
    %v2274 = vadd.f32 %v2080, %v2210
    %v2275 = vadd.f32 %v2081, %v2211
    %v2276 = vadd.f32 %v2082, %v2212
    %v2277 = vadd.f32 %v2083, %v2213
    %v2278 = vadd.f32 %v2084, %v2214
    %v2279 = vadd.f32 %v2085, %v2215
    %v2280 = vadd.f32 %v2086, %v2216
    %v2281 = vadd.f32 %v2087, %v2217
    %s2282 = scalar_lea.vmem [#allocation2], 168
    %v2283 = vld [vmem:[%s2282] sm:$0xff]
    %v2284 = vld [vmem:[%s2282 + $0x8] sm:$0xff]
    %v2285 = vld [vmem:[%s2282 + $0x10] sm:$0xff]
    %v2286 = vld [vmem:[%s2282 + $0x18] sm:$0xff]
    %v2287 = vld [vmem:[%s2282 + $0x20] sm:$0xff]
    %v2288 = vld [vmem:[%s2282 + $0x28] sm:$0xff]
    %v2289 = vld [vmem:[%s2282 + $0x30] sm:$0xff]
    %v2290 = vld [vmem:[%s2282 + $0x38] sm:$0xff]
    %v2291 = vld [vmem:[%s2282 + $0x50] sm:$0xff]
    %v2292 = vld [vmem:[%s2282 + $0x58] sm:$0xff]
    %v2293 = vld [vmem:[%s2282 + $0x60] sm:$0xff]
    %v2294 = vld [vmem:[%s2282 + $0x68] sm:$0xff]
    %v2295 = vld [vmem:[%s2282 + $0x70] sm:$0xff]
    %v2296 = vld [vmem:[%s2282 + $0x78] sm:$0xff]
    %v2297 = vld [vmem:[%s2282 + $0x80] sm:$0xff]
    %v2298 = vld [vmem:[%s2282 + $0x88] sm:$0xff]
    %v2299 = vld [vmem:[%s2282 + $0xa0] sm:$0xff]
    %v2300 = vld [vmem:[%s2282 + $0xa8] sm:$0xff]
    %v2301 = vld [vmem:[%s2282 + $0xb0] sm:$0xff]
    %v2302 = vld [vmem:[%s2282 + $0xb8] sm:$0xff]
    %v2303 = vld [vmem:[%s2282 + $0xc0] sm:$0xff]
    %v2304 = vld [vmem:[%s2282 + $0xc8] sm:$0xff]
    %v2305 = vld [vmem:[%s2282 + $0xd0] sm:$0xff]
    %v2306 = vld [vmem:[%s2282 + $0xd8] sm:$0xff]
    %v2307 = vld [vmem:[%s2282 + $0xf0] sm:$0xff]
    %v2308 = vld [vmem:[%s2282 + $0xf8] sm:$0xff]
    %v2309 = vld [vmem:[%s2282 + $0x100] sm:$0xff]
    %v2310 = vld [vmem:[%s2282 + $0x108] sm:$0xff]
    %v2311 = vld [vmem:[%s2282 + $0x110] sm:$0xff]
    %v2312 = vld [vmem:[%s2282 + $0x118] sm:$0xff]
    %v2313 = vld [vmem:[%s2282 + $0x120] sm:$0xff]
    %v2314 = vld [vmem:[%s2282 + $0x128] sm:$0xff]
    %v2315 = vld [vmem:[%s2282 + $0x140] sm:$0xff]
    %v2316 = vld [vmem:[%s2282 + $0x148] sm:$0xff]
    %v2317 = vld [vmem:[%s2282 + $0x150] sm:$0xff]
    %v2318 = vld [vmem:[%s2282 + $0x158] sm:$0xff]
    %v2319 = vld [vmem:[%s2282 + $0x160] sm:$0xff]
    %v2320 = vld [vmem:[%s2282 + $0x168] sm:$0xff]
    %v2321 = vld [vmem:[%s2282 + $0x170] sm:$0xff]
    %v2322 = vld [vmem:[%s2282 + $0x178] sm:$0xff]
    %v2323 = vld [vmem:[%s2282 + $0x190] sm:$0xff]
    %v2324 = vld [vmem:[%s2282 + $0x198] sm:$0xff]
    %v2325 = vld [vmem:[%s2282 + $0x1a0] sm:$0xff]
    %v2326 = vld [vmem:[%s2282 + $0x1a8] sm:$0xff]
    %v2327 = vld [vmem:[%s2282 + $0x1b0] sm:$0xff]
    %v2328 = vld [vmem:[%s2282 + $0x1b8] sm:$0xff]
    %v2329 = vld [vmem:[%s2282 + $0x1c0] sm:$0xff]
    %v2330 = vld [vmem:[%s2282 + $0x1c8] sm:$0xff]
    %v2331 = vld [vmem:[%s2282 + $0x1e0] sm:$0xff]
    %v2332 = vld [vmem:[%s2282 + $0x1e8] sm:$0xff]
    %v2333 = vld [vmem:[%s2282 + $0x1f0] sm:$0xff]
    %v2334 = vld [vmem:[%s2282 + $0x1f8] sm:$0xff]
    %v2335 = vld [vmem:[%s2282 + $0x200] sm:$0xff]
    %v2336 = vld [vmem:[%s2282 + $0x208] sm:$0xff]
    %v2337 = vld [vmem:[%s2282 + $0x210] sm:$0xff]
    %v2338 = vld [vmem:[%s2282 + $0x218] sm:$0xff]
    %v2339 = vld [vmem:[%s2282 + $0x230] sm:$0xff]
    %v2340 = vld [vmem:[%s2282 + $0x238] sm:$0xff]
    %v2341 = vld [vmem:[%s2282 + $0x240] sm:$0xff]
    %v2342 = vld [vmem:[%s2282 + $0x248] sm:$0xff]
    %v2343 = vld [vmem:[%s2282 + $0x250] sm:$0xff]
    %v2344 = vld [vmem:[%s2282 + $0x258] sm:$0xff]
    %v2345 = vld [vmem:[%s2282 + $0x260] sm:$0xff]
    %v2346 = vld [vmem:[%s2282 + $0x268] sm:$0xff]
    %v2347 = vperm.slane %v984, 1
    %v2348 = vmul.f32 %v2283, %v2347
    %v2349 = vmul.f32 %v2284, %v2347
    %v2350 = vmul.f32 %v2285, %v2347
    %v2351 = vmul.f32 %v2286, %v2347
    %v2352 = vmul.f32 %v2287, %v2347
    %v2353 = vmul.f32 %v2288, %v2347
    %v2354 = vmul.f32 %v2289, %v2347
    %v2355 = vmul.f32 %v2290, %v2347
    %v2356 = vmul.f32 %v2291, %v2347
    %v2357 = vmul.f32 %v2292, %v2347
    %v2358 = vmul.f32 %v2293, %v2347
    %v2359 = vmul.f32 %v2294, %v2347
    %v2360 = vmul.f32 %v2295, %v2347
    %v2361 = vmul.f32 %v2296, %v2347
    %v2362 = vmul.f32 %v2297, %v2347
    %v2363 = vmul.f32 %v2298, %v2347
    %v2364 = vmul.f32 %v2299, %v2347
    %v2365 = vmul.f32 %v2300, %v2347
    %v2366 = vmul.f32 %v2301, %v2347
    %v2367 = vmul.f32 %v2302, %v2347
    %v2368 = vmul.f32 %v2303, %v2347
    %v2369 = vmul.f32 %v2304, %v2347
    %v2370 = vmul.f32 %v2305, %v2347
    %v2371 = vmul.f32 %v2306, %v2347
    %v2372 = vmul.f32 %v2307, %v2347
    %v2373 = vmul.f32 %v2308, %v2347
    %v2374 = vmul.f32 %v2309, %v2347
    %v2375 = vmul.f32 %v2310, %v2347
    %v2376 = vmul.f32 %v2311, %v2347
    %v2377 = vmul.f32 %v2312, %v2347
    %v2378 = vmul.f32 %v2313, %v2347
    %v2379 = vmul.f32 %v2314, %v2347
    %v2380 = vmul.f32 %v2315, %v2347
    %v2381 = vmul.f32 %v2316, %v2347
    %v2382 = vmul.f32 %v2317, %v2347
    %v2383 = vmul.f32 %v2318, %v2347
    %v2384 = vmul.f32 %v2319, %v2347
    %v2385 = vmul.f32 %v2320, %v2347
    %v2386 = vmul.f32 %v2321, %v2347
    %v2387 = vmul.f32 %v2322, %v2347
    %v2388 = vmul.f32 %v2323, %v2347
    %v2389 = vmul.f32 %v2324, %v2347
    %v2390 = vmul.f32 %v2325, %v2347
    %v2391 = vmul.f32 %v2326, %v2347
    %v2392 = vmul.f32 %v2327, %v2347
    %v2393 = vmul.f32 %v2328, %v2347
    %v2394 = vmul.f32 %v2329, %v2347
    %v2395 = vmul.f32 %v2330, %v2347
    %v2396 = vmul.f32 %v2331, %v2347
    %v2397 = vmul.f32 %v2332, %v2347
    %v2398 = vmul.f32 %v2333, %v2347
    %v2399 = vmul.f32 %v2334, %v2347
    %v2400 = vmul.f32 %v2335, %v2347
    %v2401 = vmul.f32 %v2336, %v2347
    %v2402 = vmul.f32 %v2337, %v2347
    %v2403 = vmul.f32 %v2338, %v2347
    %v2404 = vmul.f32 %v2339, %v2347
    %v2405 = vmul.f32 %v2340, %v2347
    %v2406 = vmul.f32 %v2341, %v2347
    %v2407 = vmul.f32 %v2342, %v2347
    %v2408 = vmul.f32 %v2343, %v2347
    %v2409 = vmul.f32 %v2344, %v2347
    %v2410 = vmul.f32 %v2345, %v2347
    %v2411 = vmul.f32 %v2346, %v2347
    %v2412 = vadd.f32 %v2218, %v2348
    %v2413 = vadd.f32 %v2219, %v2349
    %v2414 = vadd.f32 %v2220, %v2350
    %v2415 = vadd.f32 %v2221, %v2351
    %v2416 = vadd.f32 %v2222, %v2352
    %v2417 = vadd.f32 %v2223, %v2353
    %v2418 = vadd.f32 %v2224, %v2354
    %v2419 = vadd.f32 %v2225, %v2355
    %v2420 = vadd.f32 %v2226, %v2356
    %v2421 = vadd.f32 %v2227, %v2357
    %v2422 = vadd.f32 %v2228, %v2358
    %v2423 = vadd.f32 %v2229, %v2359
    %v2424 = vadd.f32 %v2230, %v2360
    %v2425 = vadd.f32 %v2231, %v2361
    %v2426 = vadd.f32 %v2232, %v2362
    %v2427 = vadd.f32 %v2233, %v2363
    %v2428 = vadd.f32 %v2234, %v2364
    %v2429 = vadd.f32 %v2235, %v2365
    %v2430 = vadd.f32 %v2236, %v2366
    %v2431 = vadd.f32 %v2237, %v2367
    %v2432 = vadd.f32 %v2238, %v2368
    %v2433 = vadd.f32 %v2239, %v2369
    %v2434 = vadd.f32 %v2240, %v2370
    %v2435 = vadd.f32 %v2241, %v2371
    %v2436 = vadd.f32 %v2242, %v2372
    %v2437 = vadd.f32 %v2243, %v2373
    %v2438 = vadd.f32 %v2244, %v2374
    %v2439 = vadd.f32 %v2245, %v2375
    %v2440 = vadd.f32 %v2246, %v2376
    %v2441 = vadd.f32 %v2247, %v2377
    %v2442 = vadd.f32 %v2248, %v2378
    %v2443 = vadd.f32 %v2249, %v2379
    %v2444 = vadd.f32 %v2250, %v2380
    %v2445 = vadd.f32 %v2251, %v2381
    %v2446 = vadd.f32 %v2252, %v2382
    %v2447 = vadd.f32 %v2253, %v2383
    %v2448 = vadd.f32 %v2254, %v2384
    %v2449 = vadd.f32 %v2255, %v2385
    %v2450 = vadd.f32 %v2256, %v2386
    %v2451 = vadd.f32 %v2257, %v2387
    %v2452 = vadd.f32 %v2258, %v2388
    %v2453 = vadd.f32 %v2259, %v2389
    %v2454 = vadd.f32 %v2260, %v2390
    %v2455 = vadd.f32 %v2261, %v2391
    %v2456 = vadd.f32 %v2262, %v2392
    %v2457 = vadd.f32 %v2263, %v2393
    %v2458 = vadd.f32 %v2264, %v2394
    %v2459 = vadd.f32 %v2265, %v2395
    %v2460 = vadd.f32 %v2266, %v2396
    %v2461 = vadd.f32 %v2267, %v2397
    %v2462 = vadd.f32 %v2268, %v2398
    %v2463 = vadd.f32 %v2269, %v2399
    %v2464 = vadd.f32 %v2270, %v2400
    %v2465 = vadd.f32 %v2271, %v2401
    %v2466 = vadd.f32 %v2272, %v2402
    %v2467 = vadd.f32 %v2273, %v2403
    %v2468 = vadd.f32 %v2274, %v2404
    %v2469 = vadd.f32 %v2275, %v2405
    %v2470 = vadd.f32 %v2276, %v2406
    %v2471 = vadd.f32 %v2277, %v2407
    %v2472 = vadd.f32 %v2278, %v2408
    %v2473 = vadd.f32 %v2279, %v2409
    %v2474 = vadd.f32 %v2280, %v2410
    %v2475 = vadd.f32 %v2281, %v2411
    %s2476 = scalar_lea.vmem [#allocation2], 176
    %v2477 = vld [vmem:[%s2476] sm:$0xff]
    %v2478 = vld [vmem:[%s2476 + $0x8] sm:$0xff]
    %v2479 = vld [vmem:[%s2476 + $0x10] sm:$0xff]
    %v2480 = vld [vmem:[%s2476 + $0x18] sm:$0xff]
    %v2481 = vld [vmem:[%s2476 + $0x20] sm:$0xff]
    %v2482 = vld [vmem:[%s2476 + $0x28] sm:$0xff]
    %v2483 = vld [vmem:[%s2476 + $0x30] sm:$0xff]
    %v2484 = vld [vmem:[%s2476 + $0x38] sm:$0xff]
    %v2485 = vld [vmem:[%s2476 + $0x50] sm:$0xff]
    %v2486 = vld [vmem:[%s2476 + $0x58] sm:$0xff]
    %v2487 = vld [vmem:[%s2476 + $0x60] sm:$0xff]
    %v2488 = vld [vmem:[%s2476 + $0x68] sm:$0xff]
    %v2489 = vld [vmem:[%s2476 + $0x70] sm:$0xff]
    %v2490 = vld [vmem:[%s2476 + $0x78] sm:$0xff]
    %v2491 = vld [vmem:[%s2476 + $0x80] sm:$0xff]
    %v2492 = vld [vmem:[%s2476 + $0x88] sm:$0xff]
    %v2493 = vld [vmem:[%s2476 + $0xa0] sm:$0xff]
    %v2494 = vld [vmem:[%s2476 + $0xa8] sm:$0xff]
    %v2495 = vld [vmem:[%s2476 + $0xb0] sm:$0xff]
    %v2496 = vld [vmem:[%s2476 + $0xb8] sm:$0xff]
    %v2497 = vld [vmem:[%s2476 + $0xc0] sm:$0xff]
    %v2498 = vld [vmem:[%s2476 + $0xc8] sm:$0xff]
    %v2499 = vld [vmem:[%s2476 + $0xd0] sm:$0xff]
    %v2500 = vld [vmem:[%s2476 + $0xd8] sm:$0xff]
    %v2501 = vld [vmem:[%s2476 + $0xf0] sm:$0xff]
    %v2502 = vld [vmem:[%s2476 + $0xf8] sm:$0xff]
    %v2503 = vld [vmem:[%s2476 + $0x100] sm:$0xff]
    %v2504 = vld [vmem:[%s2476 + $0x108] sm:$0xff]
    %v2505 = vld [vmem:[%s2476 + $0x110] sm:$0xff]
    %v2506 = vld [vmem:[%s2476 + $0x118] sm:$0xff]
    %v2507 = vld [vmem:[%s2476 + $0x120] sm:$0xff]
    %v2508 = vld [vmem:[%s2476 + $0x128] sm:$0xff]
    %v2509 = vld [vmem:[%s2476 + $0x140] sm:$0xff]
    %v2510 = vld [vmem:[%s2476 + $0x148] sm:$0xff]
    %v2511 = vld [vmem:[%s2476 + $0x150] sm:$0xff]
    %v2512 = vld [vmem:[%s2476 + $0x158] sm:$0xff]
    %v2513 = vld [vmem:[%s2476 + $0x160] sm:$0xff]
    %v2514 = vld [vmem:[%s2476 + $0x168] sm:$0xff]
    %v2515 = vld [vmem:[%s2476 + $0x170] sm:$0xff]
    %v2516 = vld [vmem:[%s2476 + $0x178] sm:$0xff]
    %v2517 = vld [vmem:[%s2476 + $0x190] sm:$0xff]
    %v2518 = vld [vmem:[%s2476 + $0x198] sm:$0xff]
    %v2519 = vld [vmem:[%s2476 + $0x1a0] sm:$0xff]
    %v2520 = vld [vmem:[%s2476 + $0x1a8] sm:$0xff]
    %v2521 = vld [vmem:[%s2476 + $0x1b0] sm:$0xff]
    %v2522 = vld [vmem:[%s2476 + $0x1b8] sm:$0xff]
    %v2523 = vld [vmem:[%s2476 + $0x1c0] sm:$0xff]
    %v2524 = vld [vmem:[%s2476 + $0x1c8] sm:$0xff]
    %v2525 = vld [vmem:[%s2476 + $0x1e0] sm:$0xff]
    %v2526 = vld [vmem:[%s2476 + $0x1e8] sm:$0xff]
    %v2527 = vld [vmem:[%s2476 + $0x1f0] sm:$0xff]
    %v2528 = vld [vmem:[%s2476 + $0x1f8] sm:$0xff]
    %v2529 = vld [vmem:[%s2476 + $0x200] sm:$0xff]
    %v2530 = vld [vmem:[%s2476 + $0x208] sm:$0xff]
    %v2531 = vld [vmem:[%s2476 + $0x210] sm:$0xff]
    %v2532 = vld [vmem:[%s2476 + $0x218] sm:$0xff]
    %v2533 = vld [vmem:[%s2476 + $0x230] sm:$0xff]
    %v2534 = vld [vmem:[%s2476 + $0x238] sm:$0xff]
    %v2535 = vld [vmem:[%s2476 + $0x240] sm:$0xff]
    %v2536 = vld [vmem:[%s2476 + $0x248] sm:$0xff]
    %v2537 = vld [vmem:[%s2476 + $0x250] sm:$0xff]
    %v2538 = vld [vmem:[%s2476 + $0x258] sm:$0xff]
    %v2539 = vld [vmem:[%s2476 + $0x260] sm:$0xff]
    %v2540 = vld [vmem:[%s2476 + $0x268] sm:$0xff]
    %v2541 = vperm.slane %v984, 2
    %v2542 = vmul.f32 %v2477, %v2541
    %v2543 = vmul.f32 %v2478, %v2541
    %v2544 = vmul.f32 %v2479, %v2541
    %v2545 = vmul.f32 %v2480, %v2541
    %v2546 = vmul.f32 %v2481, %v2541
    %v2547 = vmul.f32 %v2482, %v2541
    %v2548 = vmul.f32 %v2483, %v2541
    %v2549 = vmul.f32 %v2484, %v2541
    %v2550 = vmul.f32 %v2485, %v2541
    %v2551 = vmul.f32 %v2486, %v2541
    %v2552 = vmul.f32 %v2487, %v2541
    %v2553 = vmul.f32 %v2488, %v2541
    %v2554 = vmul.f32 %v2489, %v2541
    %v2555 = vmul.f32 %v2490, %v2541
    %v2556 = vmul.f32 %v2491, %v2541
    %v2557 = vmul.f32 %v2492, %v2541
    %v2558 = vmul.f32 %v2493, %v2541
    %v2559 = vmul.f32 %v2494, %v2541
    %v2560 = vmul.f32 %v2495, %v2541
    %v2561 = vmul.f32 %v2496, %v2541
    %v2562 = vmul.f32 %v2497, %v2541
    %v2563 = vmul.f32 %v2498, %v2541
    %v2564 = vmul.f32 %v2499, %v2541
    %v2565 = vmul.f32 %v2500, %v2541
    %v2566 = vmul.f32 %v2501, %v2541
    %v2567 = vmul.f32 %v2502, %v2541
    %v2568 = vmul.f32 %v2503, %v2541
    %v2569 = vmul.f32 %v2504, %v2541
    %v2570 = vmul.f32 %v2505, %v2541
    %v2571 = vmul.f32 %v2506, %v2541
    %v2572 = vmul.f32 %v2507, %v2541
    %v2573 = vmul.f32 %v2508, %v2541
    %v2574 = vmul.f32 %v2509, %v2541
    %v2575 = vmul.f32 %v2510, %v2541
    %v2576 = vmul.f32 %v2511, %v2541
    %v2577 = vmul.f32 %v2512, %v2541
    %v2578 = vmul.f32 %v2513, %v2541
    %v2579 = vmul.f32 %v2514, %v2541
    %v2580 = vmul.f32 %v2515, %v2541
    %v2581 = vmul.f32 %v2516, %v2541
    %v2582 = vmul.f32 %v2517, %v2541
    %v2583 = vmul.f32 %v2518, %v2541
    %v2584 = vmul.f32 %v2519, %v2541
    %v2585 = vmul.f32 %v2520, %v2541
    %v2586 = vmul.f32 %v2521, %v2541
    %v2587 = vmul.f32 %v2522, %v2541
    %v2588 = vmul.f32 %v2523, %v2541
    %v2589 = vmul.f32 %v2524, %v2541
    %v2590 = vmul.f32 %v2525, %v2541
    %v2591 = vmul.f32 %v2526, %v2541
    %v2592 = vmul.f32 %v2527, %v2541
    %v2593 = vmul.f32 %v2528, %v2541
    %v2594 = vmul.f32 %v2529, %v2541
    %v2595 = vmul.f32 %v2530, %v2541
    %v2596 = vmul.f32 %v2531, %v2541
    %v2597 = vmul.f32 %v2532, %v2541
    %v2598 = vmul.f32 %v2533, %v2541
    %v2599 = vmul.f32 %v2534, %v2541
    %v2600 = vmul.f32 %v2535, %v2541
    %v2601 = vmul.f32 %v2536, %v2541
    %v2602 = vmul.f32 %v2537, %v2541
    %v2603 = vmul.f32 %v2538, %v2541
    %v2604 = vmul.f32 %v2539, %v2541
    %v2605 = vmul.f32 %v2540, %v2541
    %v2606 = vadd.f32 %v2412, %v2542
    %v2607 = vadd.f32 %v2413, %v2543
    %v2608 = vadd.f32 %v2414, %v2544
    %v2609 = vadd.f32 %v2415, %v2545
    %v2610 = vadd.f32 %v2416, %v2546
    %v2611 = vadd.f32 %v2417, %v2547
    %v2612 = vadd.f32 %v2418, %v2548
    %v2613 = vadd.f32 %v2419, %v2549
    %v2614 = vadd.f32 %v2420, %v2550
    %v2615 = vadd.f32 %v2421, %v2551
    %v2616 = vadd.f32 %v2422, %v2552
    %v2617 = vadd.f32 %v2423, %v2553
    %v2618 = vadd.f32 %v2424, %v2554
    %v2619 = vadd.f32 %v2425, %v2555
    %v2620 = vadd.f32 %v2426, %v2556
    %v2621 = vadd.f32 %v2427, %v2557
    %v2622 = vadd.f32 %v2428, %v2558
    %v2623 = vadd.f32 %v2429, %v2559
    %v2624 = vadd.f32 %v2430, %v2560
    %v2625 = vadd.f32 %v2431, %v2561
    %v2626 = vadd.f32 %v2432, %v2562
    %v2627 = vadd.f32 %v2433, %v2563
    %v2628 = vadd.f32 %v2434, %v2564
    %v2629 = vadd.f32 %v2435, %v2565
    %v2630 = vadd.f32 %v2436, %v2566
    %v2631 = vadd.f32 %v2437, %v2567
    %v2632 = vadd.f32 %v2438, %v2568
    %v2633 = vadd.f32 %v2439, %v2569
    %v2634 = vadd.f32 %v2440, %v2570
    %v2635 = vadd.f32 %v2441, %v2571
    %v2636 = vadd.f32 %v2442, %v2572
    %v2637 = vadd.f32 %v2443, %v2573
    %v2638 = vadd.f32 %v2444, %v2574
    %v2639 = vadd.f32 %v2445, %v2575
    %v2640 = vadd.f32 %v2446, %v2576
    %v2641 = vadd.f32 %v2447, %v2577
    %v2642 = vadd.f32 %v2448, %v2578
    %v2643 = vadd.f32 %v2449, %v2579
    %v2644 = vadd.f32 %v2450, %v2580
    %v2645 = vadd.f32 %v2451, %v2581
    %v2646 = vadd.f32 %v2452, %v2582
    %v2647 = vadd.f32 %v2453, %v2583
    %v2648 = vadd.f32 %v2454, %v2584
    %v2649 = vadd.f32 %v2455, %v2585
    %v2650 = vadd.f32 %v2456, %v2586
    %v2651 = vadd.f32 %v2457, %v2587
    %v2652 = vadd.f32 %v2458, %v2588
    %v2653 = vadd.f32 %v2459, %v2589
    %v2654 = vadd.f32 %v2460, %v2590
    %v2655 = vadd.f32 %v2461, %v2591
    %v2656 = vadd.f32 %v2462, %v2592
    %v2657 = vadd.f32 %v2463, %v2593
    %v2658 = vadd.f32 %v2464, %v2594
    %v2659 = vadd.f32 %v2465, %v2595
    %v2660 = vadd.f32 %v2466, %v2596
    %v2661 = vadd.f32 %v2467, %v2597
    %v2662 = vadd.f32 %v2468, %v2598
    %v2663 = vadd.f32 %v2469, %v2599
    %v2664 = vadd.f32 %v2470, %v2600
    %v2665 = vadd.f32 %v2471, %v2601
    %v2666 = vadd.f32 %v2472, %v2602
    %v2667 = vadd.f32 %v2473, %v2603
    %v2668 = vadd.f32 %v2474, %v2604
    %v2669 = vadd.f32 %v2475, %v2605
    %v2670 = vpack.c.bf16 %v2607, %v2606
    %v2671 = vpack.c.bf16 %v2609, %v2608
    %v2672 = vpack.c.bf16 %v2611, %v2610
    %v2673 = vpack.c.bf16 %v2613, %v2612
    %v2674 = vpack.c.bf16 %v2615, %v2614
    %v2675 = vpack.c.bf16 %v2617, %v2616
    %v2676 = vpack.c.bf16 %v2619, %v2618
    %v2677 = vpack.c.bf16 %v2621, %v2620
    %v2678 = vpack.c.bf16 %v2623, %v2622
    %v2679 = vpack.c.bf16 %v2625, %v2624
    %v2680 = vpack.c.bf16 %v2627, %v2626
    %v2681 = vpack.c.bf16 %v2629, %v2628
    %v2682 = vpack.c.bf16 %v2631, %v2630
    %v2683 = vpack.c.bf16 %v2633, %v2632
    %v2684 = vpack.c.bf16 %v2635, %v2634
    %v2685 = vpack.c.bf16 %v2637, %v2636
    %v2686 = vpack.c.bf16 %v2639, %v2638
    %v2687 = vpack.c.bf16 %v2641, %v2640
    %v2688 = vpack.c.bf16 %v2643, %v2642
    %v2689 = vpack.c.bf16 %v2645, %v2644
    %v2690 = vpack.c.bf16 %v2647, %v2646
    %v2691 = vpack.c.bf16 %v2649, %v2648
    %v2692 = vpack.c.bf16 %v2651, %v2650
    %v2693 = vpack.c.bf16 %v2653, %v2652
    %v2694 = vpack.c.bf16 %v2655, %v2654
    %v2695 = vpack.c.bf16 %v2657, %v2656
    %v2696 = vpack.c.bf16 %v2659, %v2658
    %v2697 = vpack.c.bf16 %v2661, %v2660
    %v2698 = vpack.c.bf16 %v2663, %v2662
    %v2699 = vpack.c.bf16 %v2665, %v2664
    %v2700 = vpack.c.bf16 %v2667, %v2666
    %v2701 = vpack.c.bf16 %v2669, %v2668
    %v2703 = vperm.slane %v989, 0
    %v2709 = vunpack.c.l.b16 %v985
    %v2710 = vunpack.c.l.b16 %v986
    %v2711 = vunpack.c.l.b16 %v987
    %v2712 = vunpack.c.l.b16 %v988
    %v2713 = vpack.c.b16 %v2710, %v2709
    %v2714 = vpack.c.b16 %v2712, %v2711
    %v2718 = vsel %vm265, %v2670, 0
    %v2721 = vsel %vm265, %v2671, 0
    %v2724 = vsel %vm265, %v2672, 0
    %v2727 = vsel %vm265, %v2673, 0
    %v2730 = vsel %vm265, %v2674, 0
    %v2733 = vsel %vm265, %v2675, 0
    %v2736 = vsel %vm265, %v2676, 0
    %v2739 = vsel %vm265, %v2677, 0
    %v2742 = vsel %vm265, %v2678, 0
    %v2745 = vsel %vm265, %v2679, 0
    %v2748 = vsel %vm265, %v2680, 0
    %v2751 = vsel %vm265, %v2681, 0
    %v2754 = vsel %vm265, %v2682, 0
    %v2757 = vsel %vm265, %v2683, 0
    %v2760 = vsel %vm265, %v2684, 0
    %v2763 = vsel %vm265, %v2685, 0
    %v2766 = vsel %vm265, %v2686, 0
    %v2769 = vsel %vm265, %v2687, 0
    %v2772 = vsel %vm265, %v2688, 0
    %v2775 = vsel %vm265, %v2689, 0
    %v2778 = vsel %vm265, %v2690, 0
    %v2781 = vsel %vm265, %v2691, 0
    %v2784 = vsel %vm265, %v2692, 0
    %v2787 = vsel %vm265, %v2693, 0
    %v2790 = vsel %vm265, %v2694, 0
    %v2793 = vsel %vm265, %v2695, 0
    %v2796 = vsel %vm265, %v2696, 0
    %v2799 = vsel %vm265, %v2697, 0
    %v2802 = vsel %vm265, %v2698, 0
    %v2805 = vsel %vm265, %v2699, 0
    %v2808 = vsel %vm265, %v2700, 0
    %v2811 = vsel %vm265, %v2701, 0
    %2813 = vmatpush.bf16.msra.mxu0 0
    %2814 = vmatpush.bf16.msra.mxu0 0
    %2815 = vmatpush.bf16.msra.mxu0 0
    %2816 = vmatpush.bf16.msra.mxu0 0
    %2817 = vmatpush.bf16.msra.mxu0 0
    %2818 = vmatpush.bf16.msra.mxu0 0
    %2819 = vmatpush.bf16.msra.mxu0 %v2714
    %2820 = vmatpush.bf16.msra.mxu0 %v2713
    %2821 = vmatmul.bf16.gmra.mxu0 %v2718
    %v2822 = vpop.f32.mrf.mxu0
    %v2823 = vadd.f32 %v2703, %v2822
    %v2824 = vpop.f32.mrf.mxu0
    %v2825 = vadd.f32 %v2703, %v2824
    %2826 = vmatmul.bf16.gmra.mxu0 %v2721
    %v2827 = vpop.f32.mrf.mxu0
    %v2828 = vadd.f32 %v2703, %v2827
    %v2829 = vpop.f32.mrf.mxu0
    %v2830 = vadd.f32 %v2703, %v2829
    %2831 = vmatmul.bf16.gmra.mxu0 %v2724
    %v2832 = vpop.f32.mrf.mxu0
    %v2833 = vadd.f32 %v2703, %v2832
    %v2834 = vpop.f32.mrf.mxu0
    %v2835 = vadd.f32 %v2703, %v2834
    %2836 = vmatmul.bf16.gmra.mxu0 %v2727
    %v2837 = vpop.f32.mrf.mxu0
    %v2838 = vadd.f32 %v2703, %v2837
    %v2839 = vpop.f32.mrf.mxu0
    %v2840 = vadd.f32 %v2703, %v2839
    %2841 = vmatmul.bf16.gmra.mxu0 %v2730
    %v2842 = vpop.f32.mrf.mxu0
    %v2843 = vadd.f32 %v2703, %v2842
    %v2844 = vpop.f32.mrf.mxu0
    %v2845 = vadd.f32 %v2703, %v2844
    %2846 = vmatmul.bf16.gmra.mxu0 %v2733
    %v2847 = vpop.f32.mrf.mxu0
    %v2848 = vadd.f32 %v2703, %v2847
    %v2849 = vpop.f32.mrf.mxu0
    %v2850 = vadd.f32 %v2703, %v2849
    %2851 = vmatmul.bf16.gmra.mxu0 %v2736
    %v2852 = vpop.f32.mrf.mxu0
    %v2853 = vadd.f32 %v2703, %v2852
    %v2854 = vpop.f32.mrf.mxu0
    %v2855 = vadd.f32 %v2703, %v2854
    %2856 = vmatmul.bf16.gmra.mxu0 %v2739
    %v2857 = vpop.f32.mrf.mxu0
    %v2858 = vadd.f32 %v2703, %v2857
    %v2859 = vpop.f32.mrf.mxu0
    %v2860 = vadd.f32 %v2703, %v2859
    %2861 = vmatmul.bf16.gmra.mxu0 %v2742
    %v2862 = vpop.f32.mrf.mxu0
    %v2863 = vadd.f32 %v2703, %v2862
    %v2864 = vpop.f32.mrf.mxu0
    %v2865 = vadd.f32 %v2703, %v2864
    %2866 = vmatmul.bf16.gmra.mxu0 %v2745
    %v2867 = vpop.f32.mrf.mxu0
    %v2868 = vadd.f32 %v2703, %v2867
    %v2869 = vpop.f32.mrf.mxu0
    %v2870 = vadd.f32 %v2703, %v2869
    %2871 = vmatmul.bf16.gmra.mxu0 %v2748
    %v2872 = vpop.f32.mrf.mxu0
    %v2873 = vadd.f32 %v2703, %v2872
    %v2874 = vpop.f32.mrf.mxu0
    %v2875 = vadd.f32 %v2703, %v2874
    %2876 = vmatmul.bf16.gmra.mxu0 %v2751
    %v2877 = vpop.f32.mrf.mxu0
    %v2878 = vadd.f32 %v2703, %v2877
    %v2879 = vpop.f32.mrf.mxu0
    %v2880 = vadd.f32 %v2703, %v2879
    %2881 = vmatmul.bf16.gmra.mxu0 %v2754
    %v2882 = vpop.f32.mrf.mxu0
    %v2883 = vadd.f32 %v2703, %v2882
    %v2884 = vpop.f32.mrf.mxu0
    %v2885 = vadd.f32 %v2703, %v2884
    %2886 = vmatmul.bf16.gmra.mxu0 %v2757
    %v2887 = vpop.f32.mrf.mxu0
    %v2888 = vadd.f32 %v2703, %v2887
    %v2889 = vpop.f32.mrf.mxu0
    %v2890 = vadd.f32 %v2703, %v2889
    %2891 = vmatmul.bf16.gmra.mxu0 %v2760
    %v2892 = vpop.f32.mrf.mxu0
    %v2893 = vadd.f32 %v2703, %v2892
    %v2894 = vpop.f32.mrf.mxu0
    %v2895 = vadd.f32 %v2703, %v2894
    %2896 = vmatmul.bf16.gmra.mxu0 %v2763
    %v2897 = vpop.f32.mrf.mxu0
    %v2898 = vadd.f32 %v2703, %v2897
    %v2899 = vpop.f32.mrf.mxu0
    %v2900 = vadd.f32 %v2703, %v2899
    %2901 = vmatmul.bf16.gmra.mxu0 %v2766
    %v2902 = vpop.f32.mrf.mxu0
    %v2903 = vadd.f32 %v2703, %v2902
    %v2904 = vpop.f32.mrf.mxu0
    %v2905 = vadd.f32 %v2703, %v2904
    %2906 = vmatmul.bf16.gmra.mxu0 %v2769
    %v2907 = vpop.f32.mrf.mxu0
    %v2908 = vadd.f32 %v2703, %v2907
    %v2909 = vpop.f32.mrf.mxu0
    %v2910 = vadd.f32 %v2703, %v2909
    %2911 = vmatmul.bf16.gmra.mxu0 %v2772
    %v2912 = vpop.f32.mrf.mxu0
    %v2913 = vadd.f32 %v2703, %v2912
    %v2914 = vpop.f32.mrf.mxu0
    %v2915 = vadd.f32 %v2703, %v2914
    %2916 = vmatmul.bf16.gmra.mxu0 %v2775
    %v2917 = vpop.f32.mrf.mxu0
    %v2918 = vadd.f32 %v2703, %v2917
    %v2919 = vpop.f32.mrf.mxu0
    %v2920 = vadd.f32 %v2703, %v2919
    %2921 = vmatmul.bf16.gmra.mxu0 %v2778
    %v2922 = vpop.f32.mrf.mxu0
    %v2923 = vadd.f32 %v2703, %v2922
    %v2924 = vpop.f32.mrf.mxu0
    %v2925 = vadd.f32 %v2703, %v2924
    %2926 = vmatmul.bf16.gmra.mxu0 %v2781
    %v2927 = vpop.f32.mrf.mxu0
    %v2928 = vadd.f32 %v2703, %v2927
    %v2929 = vpop.f32.mrf.mxu0
    %v2930 = vadd.f32 %v2703, %v2929
    %2931 = vmatmul.bf16.gmra.mxu0 %v2784
    %v2932 = vpop.f32.mrf.mxu0
    %v2933 = vadd.f32 %v2703, %v2932
    %v2934 = vpop.f32.mrf.mxu0
    %v2935 = vadd.f32 %v2703, %v2934
    %2936 = vmatmul.bf16.gmra.mxu0 %v2787
    %v2937 = vpop.f32.mrf.mxu0
    %v2938 = vadd.f32 %v2703, %v2937
    %v2939 = vpop.f32.mrf.mxu0
    %v2940 = vadd.f32 %v2703, %v2939
    %2941 = vmatmul.bf16.gmra.mxu0 %v2790
    %v2942 = vpop.f32.mrf.mxu0
    %v2943 = vadd.f32 %v2703, %v2942
    %v2944 = vpop.f32.mrf.mxu0
    %v2945 = vadd.f32 %v2703, %v2944
    %2946 = vmatmul.bf16.gmra.mxu0 %v2793
    %v2947 = vpop.f32.mrf.mxu0
    %v2948 = vadd.f32 %v2703, %v2947
    %v2949 = vpop.f32.mrf.mxu0
    %v2950 = vadd.f32 %v2703, %v2949
    %2951 = vmatmul.bf16.gmra.mxu0 %v2796
    %v2952 = vpop.f32.mrf.mxu0
    %v2953 = vadd.f32 %v2703, %v2952
    %v2954 = vpop.f32.mrf.mxu0
    %v2955 = vadd.f32 %v2703, %v2954
    %2956 = vmatmul.bf16.gmra.mxu0 %v2799
    %v2957 = vpop.f32.mrf.mxu0
    %v2958 = vadd.f32 %v2703, %v2957
    %v2959 = vpop.f32.mrf.mxu0
    %v2960 = vadd.f32 %v2703, %v2959
    %2961 = vmatmul.bf16.gmra.mxu0 %v2802
    %v2962 = vpop.f32.mrf.mxu0
    %v2963 = vadd.f32 %v2703, %v2962
    %v2964 = vpop.f32.mrf.mxu0
    %v2965 = vadd.f32 %v2703, %v2964
    %2966 = vmatmul.bf16.gmra.mxu0 %v2805
    %v2967 = vpop.f32.mrf.mxu0
    %v2968 = vadd.f32 %v2703, %v2967
    %v2969 = vpop.f32.mrf.mxu0
    %v2970 = vadd.f32 %v2703, %v2969
    %2971 = vmatmul.bf16.gmra.mxu0 %v2808
    %v2972 = vpop.f32.mrf.mxu0
    %v2973 = vadd.f32 %v2703, %v2972
    %v2974 = vpop.f32.mrf.mxu0
    %v2975 = vadd.f32 %v2703, %v2974
    %2976 = vmatmul.bf16.gmra.mxu0 %v2811
    %v2977 = vpop.f32.mrf.mxu0
    %v2978 = vadd.f32 %v2703, %v2977
    %v2979 = vpop.f32.mrf.mxu0
    %v2980 = vadd.f32 %v2703, %v2979
    %2981 = vdwg.mxu0
    %v2982 = vmax.f32 %v2823, 0.0
    %v2983 = vmax.f32 %v2825, 0.0
    %v2984 = vmax.f32 %v2828, 0.0
    %v2985 = vmax.f32 %v2830, 0.0
    %v2986 = vmax.f32 %v2833, 0.0
    %v2987 = vmax.f32 %v2835, 0.0
    %v2988 = vmax.f32 %v2838, 0.0
    %v2989 = vmax.f32 %v2840, 0.0
    %v2990 = vmax.f32 %v2843, 0.0
    %v2991 = vmax.f32 %v2845, 0.0
    %v2992 = vmax.f32 %v2848, 0.0
    %v2993 = vmax.f32 %v2850, 0.0
    %v2994 = vmax.f32 %v2853, 0.0
    %v2995 = vmax.f32 %v2855, 0.0
    %v2996 = vmax.f32 %v2858, 0.0
    %v2997 = vmax.f32 %v2860, 0.0
    %v2998 = vmax.f32 %v2863, 0.0
    %v2999 = vmax.f32 %v2865, 0.0
    %v3000 = vmax.f32 %v2868, 0.0
    %v3001 = vmax.f32 %v2870, 0.0
    %v3002 = vmax.f32 %v2873, 0.0
    %v3003 = vmax.f32 %v2875, 0.0
    %v3004 = vmax.f32 %v2878, 0.0
    %v3005 = vmax.f32 %v2880, 0.0
    %v3006 = vmax.f32 %v2883, 0.0
    %v3007 = vmax.f32 %v2885, 0.0
    %v3008 = vmax.f32 %v2888, 0.0
    %v3009 = vmax.f32 %v2890, 0.0
    %v3010 = vmax.f32 %v2893, 0.0
    %v3011 = vmax.f32 %v2895, 0.0
    %v3012 = vmax.f32 %v2898, 0.0
    %v3013 = vmax.f32 %v2900, 0.0
    %v3014 = vmax.f32 %v2903, 0.0
    %v3015 = vmax.f32 %v2905, 0.0
    %v3016 = vmax.f32 %v2908, 0.0
    %v3017 = vmax.f32 %v2910, 0.0
    %v3018 = vmax.f32 %v2913, 0.0
    %v3019 = vmax.f32 %v2915, 0.0
    %v3020 = vmax.f32 %v2918, 0.0
    %v3021 = vmax.f32 %v2920, 0.0
    %v3022 = vmax.f32 %v2923, 0.0
    %v3023 = vmax.f32 %v2925, 0.0
    %v3024 = vmax.f32 %v2928, 0.0
    %v3025 = vmax.f32 %v2930, 0.0
    %v3026 = vmax.f32 %v2933, 0.0
    %v3027 = vmax.f32 %v2935, 0.0
    %v3028 = vmax.f32 %v2938, 0.0
    %v3029 = vmax.f32 %v2940, 0.0
    %v3030 = vmax.f32 %v2943, 0.0
    %v3031 = vmax.f32 %v2945, 0.0
    %v3032 = vmax.f32 %v2948, 0.0
    %v3033 = vmax.f32 %v2950, 0.0
    %v3034 = vmax.f32 %v2953, 0.0
    %v3035 = vmax.f32 %v2955, 0.0
    %v3036 = vmax.f32 %v2958, 0.0
    %v3037 = vmax.f32 %v2960, 0.0
    %v3038 = vmax.f32 %v2963, 0.0
    %v3039 = vmax.f32 %v2965, 0.0
    %v3040 = vmax.f32 %v2968, 0.0
    %v3041 = vmax.f32 %v2970, 0.0
    %v3042 = vmax.f32 %v2973, 0.0
    %v3043 = vmax.f32 %v2975, 0.0
    %v3044 = vmax.f32 %v2978, 0.0
    %v3045 = vmax.f32 %v2980, 0.0
    %s3046 = scalar_lea.vmem [#allocation3], 88
    %3047 = vst.msk [vmem:[%s3046] sm:$0xff] %vm308, %v2982
    %3048 = vst.msk [vmem:[%s3046 + $0x8] sm:$0xff] %vm308, %v2983
    %3049 = vst.msk [vmem:[%s3046 + $0x10] sm:$0xff] %vm308, %v2984
    %3050 = vst.msk [vmem:[%s3046 + $0x18] sm:$0xff] %vm308, %v2985
    %3051 = vst.msk [vmem:[%s3046 + $0x20] sm:$0xff] %vm308, %v2986
    %3052 = vst.msk [vmem:[%s3046 + $0x28] sm:$0xff] %vm308, %v2987
    %3053 = vst.msk [vmem:[%s3046 + $0x30] sm:$0xff] %vm308, %v2988
    %3054 = vst.msk [vmem:[%s3046 + $0x38] sm:$0xff] %vm308, %v2989
    %3055 = vst.msk [vmem:[%s3046 + $0x50] sm:$0xff] %vm308, %v2990
    %3056 = vst.msk [vmem:[%s3046 + $0x58] sm:$0xff] %vm308, %v2991
    %3057 = vst.msk [vmem:[%s3046 + $0x60] sm:$0xff] %vm308, %v2992
    %3058 = vst.msk [vmem:[%s3046 + $0x68] sm:$0xff] %vm308, %v2993
    %3059 = vst.msk [vmem:[%s3046 + $0x70] sm:$0xff] %vm308, %v2994
    %3060 = vst.msk [vmem:[%s3046 + $0x78] sm:$0xff] %vm308, %v2995
    %3061 = vst.msk [vmem:[%s3046 + $0x80] sm:$0xff] %vm308, %v2996
    %3062 = vst.msk [vmem:[%s3046 + $0x88] sm:$0xff] %vm308, %v2997
    %3063 = vst.msk [vmem:[%s3046 + $0xa0] sm:$0xff] %vm308, %v2998
    %3064 = vst.msk [vmem:[%s3046 + $0xa8] sm:$0xff] %vm308, %v2999
    %3065 = vst.msk [vmem:[%s3046 + $0xb0] sm:$0xff] %vm308, %v3000
    %3066 = vst.msk [vmem:[%s3046 + $0xb8] sm:$0xff] %vm308, %v3001
    %3067 = vst.msk [vmem:[%s3046 + $0xc0] sm:$0xff] %vm308, %v3002
    %3068 = vst.msk [vmem:[%s3046 + $0xc8] sm:$0xff] %vm308, %v3003
    %3069 = vst.msk [vmem:[%s3046 + $0xd0] sm:$0xff] %vm308, %v3004
    %3070 = vst.msk [vmem:[%s3046 + $0xd8] sm:$0xff] %vm308, %v3005
    %3071 = vst.msk [vmem:[%s3046 + $0xf0] sm:$0xff] %vm308, %v3006
    %3072 = vst.msk [vmem:[%s3046 + $0xf8] sm:$0xff] %vm308, %v3007
    %3073 = vst.msk [vmem:[%s3046 + $0x100] sm:$0xff] %vm308, %v3008
    %3074 = vst.msk [vmem:[%s3046 + $0x108] sm:$0xff] %vm308, %v3009
    %3075 = vst.msk [vmem:[%s3046 + $0x110] sm:$0xff] %vm308, %v3010
    %3076 = vst.msk [vmem:[%s3046 + $0x118] sm:$0xff] %vm308, %v3011
    %3077 = vst.msk [vmem:[%s3046 + $0x120] sm:$0xff] %vm308, %v3012
    %3078 = vst.msk [vmem:[%s3046 + $0x128] sm:$0xff] %vm308, %v3013
    %3079 = vst.msk [vmem:[%s3046 + $0x140] sm:$0xff] %vm308, %v3014
    %3080 = vst.msk [vmem:[%s3046 + $0x148] sm:$0xff] %vm308, %v3015
    %3081 = vst.msk [vmem:[%s3046 + $0x150] sm:$0xff] %vm308, %v3016
    %3082 = vst.msk [vmem:[%s3046 + $0x158] sm:$0xff] %vm308, %v3017
    %3083 = vst.msk [vmem:[%s3046 + $0x160] sm:$0xff] %vm308, %v3018
    %3084 = vst.msk [vmem:[%s3046 + $0x168] sm:$0xff] %vm308, %v3019
    %3085 = vst.msk [vmem:[%s3046 + $0x170] sm:$0xff] %vm308, %v3020
    %3086 = vst.msk [vmem:[%s3046 + $0x178] sm:$0xff] %vm308, %v3021
    %3087 = vst.msk [vmem:[%s3046 + $0x190] sm:$0xff] %vm308, %v3022
    %3088 = vst.msk [vmem:[%s3046 + $0x198] sm:$0xff] %vm308, %v3023
    %3089 = vst.msk [vmem:[%s3046 + $0x1a0] sm:$0xff] %vm308, %v3024
    %3090 = vst.msk [vmem:[%s3046 + $0x1a8] sm:$0xff] %vm308, %v3025
    %3091 = vst.msk [vmem:[%s3046 + $0x1b0] sm:$0xff] %vm308, %v3026
    %3092 = vst.msk [vmem:[%s3046 + $0x1b8] sm:$0xff] %vm308, %v3027
    %3093 = vst.msk [vmem:[%s3046 + $0x1c0] sm:$0xff] %vm308, %v3028
    %3094 = vst.msk [vmem:[%s3046 + $0x1c8] sm:$0xff] %vm308, %v3029
    %3095 = vst.msk [vmem:[%s3046 + $0x1e0] sm:$0xff] %vm308, %v3030
    %3096 = vst.msk [vmem:[%s3046 + $0x1e8] sm:$0xff] %vm308, %v3031
    %3097 = vst.msk [vmem:[%s3046 + $0x1f0] sm:$0xff] %vm308, %v3032
    %3098 = vst.msk [vmem:[%s3046 + $0x1f8] sm:$0xff] %vm308, %v3033
    %3099 = vst.msk [vmem:[%s3046 + $0x200] sm:$0xff] %vm308, %v3034
    %3100 = vst.msk [vmem:[%s3046 + $0x208] sm:$0xff] %vm308, %v3035
    %3101 = vst.msk [vmem:[%s3046 + $0x210] sm:$0xff] %vm308, %v3036
    %3102 = vst.msk [vmem:[%s3046 + $0x218] sm:$0xff] %vm308, %v3037
    %3103 = vst.msk [vmem:[%s3046 + $0x230] sm:$0xff] %vm308, %v3038
    %3104 = vst.msk [vmem:[%s3046 + $0x238] sm:$0xff] %vm308, %v3039
    %3105 = vst.msk [vmem:[%s3046 + $0x240] sm:$0xff] %vm308, %v3040
    %3106 = vst.msk [vmem:[%s3046 + $0x248] sm:$0xff] %vm308, %v3041
    %3107 = vst.msk [vmem:[%s3046 + $0x250] sm:$0xff] %vm308, %v3042
    %3108 = vst.msk [vmem:[%s3046 + $0x258] sm:$0xff] %vm308, %v3043
    %3109 = vst.msk [vmem:[%s3046 + $0x260] sm:$0xff] %vm308, %v3044
    %3110 = vst.msk [vmem:[%s3046 + $0x268] sm:$0xff] %vm308, %v3045
    %v3111 = vld [vmem:[#allocation15] sm:$0x7]
    %v3112 = vld [vmem:[#allocation15 + $0x4] sm:$0x7]
    %v3113 = vld [vmem:[#allocation15 + $0x8] sm:$0x7]
    %v3114 = vld [vmem:[#allocation16] sm:$0xf]
    %v3115 = vld [vmem:[#allocation16 + $0x4] sm:$0xf]
    %v3116 = vld [vmem:[#allocation16 + $0x8] sm:$0xf]
    %v3117 = vld [vmem:[#allocation16 + $0xc] sm:$0xf]
    %v3118 = vld [vmem:[#allocation16 + $0x10] sm:$0xf]
    %v3119 = vld [vmem:[#allocation16 + $0x14] sm:$0xf]
    %v3120 = vld [vmem:[#allocation16 + $0x18] sm:$0xf]
    %v3121 = vld [vmem:[#allocation16 + $0x1c] sm:$0xf]
    %v3122 = vld [vmem:[#allocation18] sm:$0x1]
    %v3123 = vld [vmem:[#allocation3] sm:$0xff]
    %v3124 = vld [vmem:[#allocation3 + $0x10] sm:$0xff]
    %v3125 = vld [vmem:[#allocation3 + $0x20] sm:$0xff]
    %v3126 = vld [vmem:[#allocation3 + $0x30] sm:$0xff]
    %v3127 = vld [vmem:[#allocation3 + $0xa0] sm:$0xff]
    %v3128 = vld [vmem:[#allocation3 + $0xb0] sm:$0xff]
    %v3129 = vld [vmem:[#allocation3 + $0xc0] sm:$0xff]
    %v3130 = vld [vmem:[#allocation3 + $0xd0] sm:$0xff]
    %v3131 = vld [vmem:[#allocation3 + $0x140] sm:$0xff]
    %v3132 = vld [vmem:[#allocation3 + $0x150] sm:$0xff]
    %v3133 = vld [vmem:[#allocation3 + $0x160] sm:$0xff]
    %v3134 = vld [vmem:[#allocation3 + $0x170] sm:$0xff]
    %v3135 = vld [vmem:[#allocation3 + $0x1e0] sm:$0xff]
    %v3136 = vld [vmem:[#allocation3 + $0x1f0] sm:$0xff]
    %v3137 = vld [vmem:[#allocation3 + $0x200] sm:$0xff]
    %v3138 = vld [vmem:[#allocation3 + $0x210] sm:$0xff]
    %v3139 = vperm.slane %v3111, 0
    %v3140 = vmul.f32 %v3123, %v3139
    %v3141 = vmul.f32 %v3124, %v3139
    %v3142 = vmul.f32 %v3125, %v3139
    %v3143 = vmul.f32 %v3126, %v3139
    %v3144 = vmul.f32 %v3127, %v3139
    %v3145 = vmul.f32 %v3128, %v3139
    %v3146 = vmul.f32 %v3129, %v3139
    %v3147 = vmul.f32 %v3130, %v3139
    %v3148 = vmul.f32 %v3131, %v3139
    %v3149 = vmul.f32 %v3132, %v3139
    %v3150 = vmul.f32 %v3133, %v3139
    %v3151 = vmul.f32 %v3134, %v3139
    %v3152 = vmul.f32 %v3135, %v3139
    %v3153 = vmul.f32 %v3136, %v3139
    %v3154 = vmul.f32 %v3137, %v3139
    %v3155 = vmul.f32 %v3138, %v3139
    %s3156 = scalar_lea.vmem [#allocation3], 8
    %v3157 = vld [vmem:[%s3156] sm:$0xff]
    %v3158 = vld [vmem:[%s3156 + $0x10] sm:$0xff]
    %v3159 = vld [vmem:[%s3156 + $0x20] sm:$0xff]
    %v3160 = vld [vmem:[%s3156 + $0x30] sm:$0xff]
    %v3161 = vld [vmem:[%s3156 + $0xa0] sm:$0xff]
    %v3162 = vld [vmem:[%s3156 + $0xb0] sm:$0xff]
    %v3163 = vld [vmem:[%s3156 + $0xc0] sm:$0xff]
    %v3164 = vld [vmem:[%s3156 + $0xd0] sm:$0xff]
    %v3165 = vld [vmem:[%s3156 + $0x140] sm:$0xff]
    %v3166 = vld [vmem:[%s3156 + $0x150] sm:$0xff]
    %v3167 = vld [vmem:[%s3156 + $0x160] sm:$0xff]
    %v3168 = vld [vmem:[%s3156 + $0x170] sm:$0xff]
    %v3169 = vld [vmem:[%s3156 + $0x1e0] sm:$0xff]
    %v3170 = vld [vmem:[%s3156 + $0x1f0] sm:$0xff]
    %v3171 = vld [vmem:[%s3156 + $0x200] sm:$0xff]
    %v3172 = vld [vmem:[%s3156 + $0x210] sm:$0xff]
    %v3173 = vperm.slane %v3111, 1
    %v3174 = vmul.f32 %v3157, %v3173
    %v3175 = vmul.f32 %v3158, %v3173
    %v3176 = vmul.f32 %v3159, %v3173
    %v3177 = vmul.f32 %v3160, %v3173
    %v3178 = vmul.f32 %v3161, %v3173
    %v3179 = vmul.f32 %v3162, %v3173
    %v3180 = vmul.f32 %v3163, %v3173
    %v3181 = vmul.f32 %v3164, %v3173
    %v3182 = vmul.f32 %v3165, %v3173
    %v3183 = vmul.f32 %v3166, %v3173
    %v3184 = vmul.f32 %v3167, %v3173
    %v3185 = vmul.f32 %v3168, %v3173
    %v3186 = vmul.f32 %v3169, %v3173
    %v3187 = vmul.f32 %v3170, %v3173
    %v3188 = vmul.f32 %v3171, %v3173
    %v3189 = vmul.f32 %v3172, %v3173
    %v3190 = vadd.f32 %v3140, %v3174
    %v3191 = vadd.f32 %v3141, %v3175
    %v3192 = vadd.f32 %v3142, %v3176
    %v3193 = vadd.f32 %v3143, %v3177
    %v3194 = vadd.f32 %v3144, %v3178
    %v3195 = vadd.f32 %v3145, %v3179
    %v3196 = vadd.f32 %v3146, %v3180
    %v3197 = vadd.f32 %v3147, %v3181
    %v3198 = vadd.f32 %v3148, %v3182
    %v3199 = vadd.f32 %v3149, %v3183
    %v3200 = vadd.f32 %v3150, %v3184
    %v3201 = vadd.f32 %v3151, %v3185
    %v3202 = vadd.f32 %v3152, %v3186
    %v3203 = vadd.f32 %v3153, %v3187
    %v3204 = vadd.f32 %v3154, %v3188
    %v3205 = vadd.f32 %v3155, %v3189
    %s3206 = scalar_lea.vmem [#allocation3], 16
    %v3207 = vld [vmem:[%s3206] sm:$0xff]
    %v3208 = vld [vmem:[%s3206 + $0x10] sm:$0xff]
    %v3209 = vld [vmem:[%s3206 + $0x20] sm:$0xff]
    %v3210 = vld [vmem:[%s3206 + $0x30] sm:$0xff]
    %v3211 = vld [vmem:[%s3206 + $0xa0] sm:$0xff]
    %v3212 = vld [vmem:[%s3206 + $0xb0] sm:$0xff]
    %v3213 = vld [vmem:[%s3206 + $0xc0] sm:$0xff]
    %v3214 = vld [vmem:[%s3206 + $0xd0] sm:$0xff]
    %v3215 = vld [vmem:[%s3206 + $0x140] sm:$0xff]
    %v3216 = vld [vmem:[%s3206 + $0x150] sm:$0xff]
    %v3217 = vld [vmem:[%s3206 + $0x160] sm:$0xff]
    %v3218 = vld [vmem:[%s3206 + $0x170] sm:$0xff]
    %v3219 = vld [vmem:[%s3206 + $0x1e0] sm:$0xff]
    %v3220 = vld [vmem:[%s3206 + $0x1f0] sm:$0xff]
    %v3221 = vld [vmem:[%s3206 + $0x200] sm:$0xff]
    %v3222 = vld [vmem:[%s3206 + $0x210] sm:$0xff]
    %v3223 = vperm.slane %v3111, 2
    %v3224 = vmul.f32 %v3207, %v3223
    %v3225 = vmul.f32 %v3208, %v3223
    %v3226 = vmul.f32 %v3209, %v3223
    %v3227 = vmul.f32 %v3210, %v3223
    %v3228 = vmul.f32 %v3211, %v3223
    %v3229 = vmul.f32 %v3212, %v3223
    %v3230 = vmul.f32 %v3213, %v3223
    %v3231 = vmul.f32 %v3214, %v3223
    %v3232 = vmul.f32 %v3215, %v3223
    %v3233 = vmul.f32 %v3216, %v3223
    %v3234 = vmul.f32 %v3217, %v3223
    %v3235 = vmul.f32 %v3218, %v3223
    %v3236 = vmul.f32 %v3219, %v3223
    %v3237 = vmul.f32 %v3220, %v3223
    %v3238 = vmul.f32 %v3221, %v3223
    %v3239 = vmul.f32 %v3222, %v3223
    %v3240 = vadd.f32 %v3190, %v3224
    %v3241 = vadd.f32 %v3191, %v3225
    %v3242 = vadd.f32 %v3192, %v3226
    %v3243 = vadd.f32 %v3193, %v3227
    %v3244 = vadd.f32 %v3194, %v3228
    %v3245 = vadd.f32 %v3195, %v3229
    %v3246 = vadd.f32 %v3196, %v3230
    %v3247 = vadd.f32 %v3197, %v3231
    %v3248 = vadd.f32 %v3198, %v3232
    %v3249 = vadd.f32 %v3199, %v3233
    %v3250 = vadd.f32 %v3200, %v3234
    %v3251 = vadd.f32 %v3201, %v3235
    %v3252 = vadd.f32 %v3202, %v3236
    %v3253 = vadd.f32 %v3203, %v3237
    %v3254 = vadd.f32 %v3204, %v3238
    %v3255 = vadd.f32 %v3205, %v3239
    %s3256 = scalar_lea.vmem [#allocation3], 80
    %v3257 = vld [vmem:[%s3256] sm:$0xff]
    %v3258 = vld [vmem:[%s3256 + $0x10] sm:$0xff]
    %v3259 = vld [vmem:[%s3256 + $0x20] sm:$0xff]
    %v3260 = vld [vmem:[%s3256 + $0x30] sm:$0xff]
    %v3261 = vld [vmem:[%s3256 + $0xa0] sm:$0xff]
    %v3262 = vld [vmem:[%s3256 + $0xb0] sm:$0xff]
    %v3263 = vld [vmem:[%s3256 + $0xc0] sm:$0xff]
    %v3264 = vld [vmem:[%s3256 + $0xd0] sm:$0xff]
    %v3265 = vld [vmem:[%s3256 + $0x140] sm:$0xff]
    %v3266 = vld [vmem:[%s3256 + $0x150] sm:$0xff]
    %v3267 = vld [vmem:[%s3256 + $0x160] sm:$0xff]
    %v3268 = vld [vmem:[%s3256 + $0x170] sm:$0xff]
    %v3269 = vld [vmem:[%s3256 + $0x1e0] sm:$0xff]
    %v3270 = vld [vmem:[%s3256 + $0x1f0] sm:$0xff]
    %v3271 = vld [vmem:[%s3256 + $0x200] sm:$0xff]
    %v3272 = vld [vmem:[%s3256 + $0x210] sm:$0xff]
    %v3273 = vperm.slane %v3112, 0
    %v3274 = vmul.f32 %v3257, %v3273
    %v3275 = vmul.f32 %v3258, %v3273
    %v3276 = vmul.f32 %v3259, %v3273
    %v3277 = vmul.f32 %v3260, %v3273
    %v3278 = vmul.f32 %v3261, %v3273
    %v3279 = vmul.f32 %v3262, %v3273
    %v3280 = vmul.f32 %v3263, %v3273
    %v3281 = vmul.f32 %v3264, %v3273
    %v3282 = vmul.f32 %v3265, %v3273
    %v3283 = vmul.f32 %v3266, %v3273
    %v3284 = vmul.f32 %v3267, %v3273
    %v3285 = vmul.f32 %v3268, %v3273
    %v3286 = vmul.f32 %v3269, %v3273
    %v3287 = vmul.f32 %v3270, %v3273
    %v3288 = vmul.f32 %v3271, %v3273
    %v3289 = vmul.f32 %v3272, %v3273
    %v3290 = vadd.f32 %v3240, %v3274
    %v3291 = vadd.f32 %v3241, %v3275
    %v3292 = vadd.f32 %v3242, %v3276
    %v3293 = vadd.f32 %v3243, %v3277
    %v3294 = vadd.f32 %v3244, %v3278
    %v3295 = vadd.f32 %v3245, %v3279
    %v3296 = vadd.f32 %v3246, %v3280
    %v3297 = vadd.f32 %v3247, %v3281
    %v3298 = vadd.f32 %v3248, %v3282
    %v3299 = vadd.f32 %v3249, %v3283
    %v3300 = vadd.f32 %v3250, %v3284
    %v3301 = vadd.f32 %v3251, %v3285
    %v3302 = vadd.f32 %v3252, %v3286
    %v3303 = vadd.f32 %v3253, %v3287
    %v3304 = vadd.f32 %v3254, %v3288
    %v3305 = vadd.f32 %v3255, %v3289
    %v3306 = vld [vmem:[%s3046] sm:$0xff]
    %v3307 = vld [vmem:[%s3046 + $0x10] sm:$0xff]
    %v3308 = vld [vmem:[%s3046 + $0x20] sm:$0xff]
    %v3309 = vld [vmem:[%s3046 + $0x30] sm:$0xff]
    %v3310 = vld [vmem:[%s3046 + $0xa0] sm:$0xff]
    %v3311 = vld [vmem:[%s3046 + $0xb0] sm:$0xff]
    %v3312 = vld [vmem:[%s3046 + $0xc0] sm:$0xff]
    %v3313 = vld [vmem:[%s3046 + $0xd0] sm:$0xff]
    %v3314 = vld [vmem:[%s3046 + $0x140] sm:$0xff]
    %v3315 = vld [vmem:[%s3046 + $0x150] sm:$0xff]
    %v3316 = vld [vmem:[%s3046 + $0x160] sm:$0xff]
    %v3317 = vld [vmem:[%s3046 + $0x170] sm:$0xff]
    %v3318 = vld [vmem:[%s3046 + $0x1e0] sm:$0xff]
    %v3319 = vld [vmem:[%s3046 + $0x1f0] sm:$0xff]
    %v3320 = vld [vmem:[%s3046 + $0x200] sm:$0xff]
    %v3321 = vld [vmem:[%s3046 + $0x210] sm:$0xff]
    %v3322 = vperm.slane %v3112, 1
    %v3323 = vmul.f32 %v3306, %v3322
    %v3324 = vmul.f32 %v3307, %v3322
    %v3325 = vmul.f32 %v3308, %v3322
    %v3326 = vmul.f32 %v3309, %v3322
    %v3327 = vmul.f32 %v3310, %v3322
    %v3328 = vmul.f32 %v3311, %v3322
    %v3329 = vmul.f32 %v3312, %v3322
    %v3330 = vmul.f32 %v3313, %v3322
    %v3331 = vmul.f32 %v3314, %v3322
    %v3332 = vmul.f32 %v3315, %v3322
    %v3333 = vmul.f32 %v3316, %v3322
    %v3334 = vmul.f32 %v3317, %v3322
    %v3335 = vmul.f32 %v3318, %v3322
    %v3336 = vmul.f32 %v3319, %v3322
    %v3337 = vmul.f32 %v3320, %v3322
    %v3338 = vmul.f32 %v3321, %v3322
    %v3339 = vadd.f32 %v3290, %v3323
    %v3340 = vadd.f32 %v3291, %v3324
    %v3341 = vadd.f32 %v3292, %v3325
    %v3342 = vadd.f32 %v3293, %v3326
    %v3343 = vadd.f32 %v3294, %v3327
    %v3344 = vadd.f32 %v3295, %v3328
    %v3345 = vadd.f32 %v3296, %v3329
    %v3346 = vadd.f32 %v3297, %v3330
    %v3347 = vadd.f32 %v3298, %v3331
    %v3348 = vadd.f32 %v3299, %v3332
    %v3349 = vadd.f32 %v3300, %v3333
    %v3350 = vadd.f32 %v3301, %v3334
    %v3351 = vadd.f32 %v3302, %v3335
    %v3352 = vadd.f32 %v3303, %v3336
    %v3353 = vadd.f32 %v3304, %v3337
    %v3354 = vadd.f32 %v3305, %v3338
    %s3355 = scalar_lea.vmem [#allocation3], 96
    %v3356 = vld [vmem:[%s3355] sm:$0xff]
    %v3357 = vld [vmem:[%s3355 + $0x10] sm:$0xff]
    %v3358 = vld [vmem:[%s3355 + $0x20] sm:$0xff]
    %v3359 = vld [vmem:[%s3355 + $0x30] sm:$0xff]
    %v3360 = vld [vmem:[%s3355 + $0xa0] sm:$0xff]
    %v3361 = vld [vmem:[%s3355 + $0xb0] sm:$0xff]
    %v3362 = vld [vmem:[%s3355 + $0xc0] sm:$0xff]
    %v3363 = vld [vmem:[%s3355 + $0xd0] sm:$0xff]
    %v3364 = vld [vmem:[%s3355 + $0x140] sm:$0xff]
    %v3365 = vld [vmem:[%s3355 + $0x150] sm:$0xff]
    %v3366 = vld [vmem:[%s3355 + $0x160] sm:$0xff]
    %v3367 = vld [vmem:[%s3355 + $0x170] sm:$0xff]
    %v3368 = vld [vmem:[%s3355 + $0x1e0] sm:$0xff]
    %v3369 = vld [vmem:[%s3355 + $0x1f0] sm:$0xff]
    %v3370 = vld [vmem:[%s3355 + $0x200] sm:$0xff]
    %v3371 = vld [vmem:[%s3355 + $0x210] sm:$0xff]
    %v3372 = vperm.slane %v3112, 2
    %v3373 = vmul.f32 %v3356, %v3372
    %v3374 = vmul.f32 %v3357, %v3372
    %v3375 = vmul.f32 %v3358, %v3372
    %v3376 = vmul.f32 %v3359, %v3372
    %v3377 = vmul.f32 %v3360, %v3372
    %v3378 = vmul.f32 %v3361, %v3372
    %v3379 = vmul.f32 %v3362, %v3372
    %v3380 = vmul.f32 %v3363, %v3372
    %v3381 = vmul.f32 %v3364, %v3372
    %v3382 = vmul.f32 %v3365, %v3372
    %v3383 = vmul.f32 %v3366, %v3372
    %v3384 = vmul.f32 %v3367, %v3372
    %v3385 = vmul.f32 %v3368, %v3372
    %v3386 = vmul.f32 %v3369, %v3372
    %v3387 = vmul.f32 %v3370, %v3372
    %v3388 = vmul.f32 %v3371, %v3372
    %v3389 = vadd.f32 %v3339, %v3373
    %v3390 = vadd.f32 %v3340, %v3374
    %v3391 = vadd.f32 %v3341, %v3375
    %v3392 = vadd.f32 %v3342, %v3376
    %v3393 = vadd.f32 %v3343, %v3377
    %v3394 = vadd.f32 %v3344, %v3378
    %v3395 = vadd.f32 %v3345, %v3379
    %v3396 = vadd.f32 %v3346, %v3380
    %v3397 = vadd.f32 %v3347, %v3381
    %v3398 = vadd.f32 %v3348, %v3382
    %v3399 = vadd.f32 %v3349, %v3383
    %v3400 = vadd.f32 %v3350, %v3384
    %v3401 = vadd.f32 %v3351, %v3385
    %v3402 = vadd.f32 %v3352, %v3386
    %v3403 = vadd.f32 %v3353, %v3387
    %v3404 = vadd.f32 %v3354, %v3388
    %s3405 = scalar_lea.vmem [#allocation3], 160
    %v3406 = vld [vmem:[%s3405] sm:$0xff]
    %v3407 = vld [vmem:[%s3405 + $0x10] sm:$0xff]
    %v3408 = vld [vmem:[%s3405 + $0x20] sm:$0xff]
    %v3409 = vld [vmem:[%s3405 + $0x30] sm:$0xff]
    %v3410 = vld [vmem:[%s3405 + $0xa0] sm:$0xff]
    %v3411 = vld [vmem:[%s3405 + $0xb0] sm:$0xff]
    %v3412 = vld [vmem:[%s3405 + $0xc0] sm:$0xff]
    %v3413 = vld [vmem:[%s3405 + $0xd0] sm:$0xff]
    %v3414 = vld [vmem:[%s3405 + $0x140] sm:$0xff]
    %v3415 = vld [vmem:[%s3405 + $0x150] sm:$0xff]
    %v3416 = vld [vmem:[%s3405 + $0x160] sm:$0xff]
    %v3417 = vld [vmem:[%s3405 + $0x170] sm:$0xff]
    %v3418 = vld [vmem:[%s3405 + $0x1e0] sm:$0xff]
    %v3419 = vld [vmem:[%s3405 + $0x1f0] sm:$0xff]
    %v3420 = vld [vmem:[%s3405 + $0x200] sm:$0xff]
    %v3421 = vld [vmem:[%s3405 + $0x210] sm:$0xff]
    %v3422 = vperm.slane %v3113, 0
    %v3423 = vmul.f32 %v3406, %v3422
    %v3424 = vmul.f32 %v3407, %v3422
    %v3425 = vmul.f32 %v3408, %v3422
    %v3426 = vmul.f32 %v3409, %v3422
    %v3427 = vmul.f32 %v3410, %v3422
    %v3428 = vmul.f32 %v3411, %v3422
    %v3429 = vmul.f32 %v3412, %v3422
    %v3430 = vmul.f32 %v3413, %v3422
    %v3431 = vmul.f32 %v3414, %v3422
    %v3432 = vmul.f32 %v3415, %v3422
    %v3433 = vmul.f32 %v3416, %v3422
    %v3434 = vmul.f32 %v3417, %v3422
    %v3435 = vmul.f32 %v3418, %v3422
    %v3436 = vmul.f32 %v3419, %v3422
    %v3437 = vmul.f32 %v3420, %v3422
    %v3438 = vmul.f32 %v3421, %v3422
    %v3439 = vadd.f32 %v3389, %v3423
    %v3440 = vadd.f32 %v3390, %v3424
    %v3441 = vadd.f32 %v3391, %v3425
    %v3442 = vadd.f32 %v3392, %v3426
    %v3443 = vadd.f32 %v3393, %v3427
    %v3444 = vadd.f32 %v3394, %v3428
    %v3445 = vadd.f32 %v3395, %v3429
    %v3446 = vadd.f32 %v3396, %v3430
    %v3447 = vadd.f32 %v3397, %v3431
    %v3448 = vadd.f32 %v3398, %v3432
    %v3449 = vadd.f32 %v3399, %v3433
    %v3450 = vadd.f32 %v3400, %v3434
    %v3451 = vadd.f32 %v3401, %v3435
    %v3452 = vadd.f32 %v3402, %v3436
    %v3453 = vadd.f32 %v3403, %v3437
    %v3454 = vadd.f32 %v3404, %v3438
    %s3455 = scalar_lea.vmem [#allocation3], 168
    %v3456 = vld [vmem:[%s3455] sm:$0xff]
    %v3457 = vld [vmem:[%s3455 + $0x10] sm:$0xff]
    %v3458 = vld [vmem:[%s3455 + $0x20] sm:$0xff]
    %v3459 = vld [vmem:[%s3455 + $0x30] sm:$0xff]
    %v3460 = vld [vmem:[%s3455 + $0xa0] sm:$0xff]
    %v3461 = vld [vmem:[%s3455 + $0xb0] sm:$0xff]
    %v3462 = vld [vmem:[%s3455 + $0xc0] sm:$0xff]
    %v3463 = vld [vmem:[%s3455 + $0xd0] sm:$0xff]
    %v3464 = vld [vmem:[%s3455 + $0x140] sm:$0xff]
    %v3465 = vld [vmem:[%s3455 + $0x150] sm:$0xff]
    %v3466 = vld [vmem:[%s3455 + $0x160] sm:$0xff]
    %v3467 = vld [vmem:[%s3455 + $0x170] sm:$0xff]
    %v3468 = vld [vmem:[%s3455 + $0x1e0] sm:$0xff]
    %v3469 = vld [vmem:[%s3455 + $0x1f0] sm:$0xff]
    %v3470 = vld [vmem:[%s3455 + $0x200] sm:$0xff]
    %v3471 = vld [vmem:[%s3455 + $0x210] sm:$0xff]
    %v3472 = vperm.slane %v3113, 1
    %v3473 = vmul.f32 %v3456, %v3472
    %v3474 = vmul.f32 %v3457, %v3472
    %v3475 = vmul.f32 %v3458, %v3472
    %v3476 = vmul.f32 %v3459, %v3472
    %v3477 = vmul.f32 %v3460, %v3472
    %v3478 = vmul.f32 %v3461, %v3472
    %v3479 = vmul.f32 %v3462, %v3472
    %v3480 = vmul.f32 %v3463, %v3472
    %v3481 = vmul.f32 %v3464, %v3472
    %v3482 = vmul.f32 %v3465, %v3472
    %v3483 = vmul.f32 %v3466, %v3472
    %v3484 = vmul.f32 %v3467, %v3472
    %v3485 = vmul.f32 %v3468, %v3472
    %v3486 = vmul.f32 %v3469, %v3472
    %v3487 = vmul.f32 %v3470, %v3472
    %v3488 = vmul.f32 %v3471, %v3472
    %v3489 = vadd.f32 %v3439, %v3473
    %v3490 = vadd.f32 %v3440, %v3474
    %v3491 = vadd.f32 %v3441, %v3475
    %v3492 = vadd.f32 %v3442, %v3476
    %v3493 = vadd.f32 %v3443, %v3477
    %v3494 = vadd.f32 %v3444, %v3478
    %v3495 = vadd.f32 %v3445, %v3479
    %v3496 = vadd.f32 %v3446, %v3480
    %v3497 = vadd.f32 %v3447, %v3481
    %v3498 = vadd.f32 %v3448, %v3482
    %v3499 = vadd.f32 %v3449, %v3483
    %v3500 = vadd.f32 %v3450, %v3484
    %v3501 = vadd.f32 %v3451, %v3485
    %v3502 = vadd.f32 %v3452, %v3486
    %v3503 = vadd.f32 %v3453, %v3487
    %v3504 = vadd.f32 %v3454, %v3488
    %s3505 = scalar_lea.vmem [#allocation3], 176
    %v3506 = vld [vmem:[%s3505] sm:$0xff]
    %v3507 = vld [vmem:[%s3505 + $0x10] sm:$0xff]
    %v3508 = vld [vmem:[%s3505 + $0x20] sm:$0xff]
    %v3509 = vld [vmem:[%s3505 + $0x30] sm:$0xff]
    %v3510 = vld [vmem:[%s3505 + $0xa0] sm:$0xff]
    %v3511 = vld [vmem:[%s3505 + $0xb0] sm:$0xff]
    %v3512 = vld [vmem:[%s3505 + $0xc0] sm:$0xff]
    %v3513 = vld [vmem:[%s3505 + $0xd0] sm:$0xff]
    %v3514 = vld [vmem:[%s3505 + $0x140] sm:$0xff]
    %v3515 = vld [vmem:[%s3505 + $0x150] sm:$0xff]
    %v3516 = vld [vmem:[%s3505 + $0x160] sm:$0xff]
    %v3517 = vld [vmem:[%s3505 + $0x170] sm:$0xff]
    %v3518 = vld [vmem:[%s3505 + $0x1e0] sm:$0xff]
    %v3519 = vld [vmem:[%s3505 + $0x1f0] sm:$0xff]
    %v3520 = vld [vmem:[%s3505 + $0x200] sm:$0xff]
    %v3521 = vld [vmem:[%s3505 + $0x210] sm:$0xff]
    %v3522 = vperm.slane %v3113, 2
    %v3523 = vmul.f32 %v3506, %v3522
    %v3524 = vmul.f32 %v3507, %v3522
    %v3525 = vmul.f32 %v3508, %v3522
    %v3526 = vmul.f32 %v3509, %v3522
    %v3527 = vmul.f32 %v3510, %v3522
    %v3528 = vmul.f32 %v3511, %v3522
    %v3529 = vmul.f32 %v3512, %v3522
    %v3530 = vmul.f32 %v3513, %v3522
    %v3531 = vmul.f32 %v3514, %v3522
    %v3532 = vmul.f32 %v3515, %v3522
    %v3533 = vmul.f32 %v3516, %v3522
    %v3534 = vmul.f32 %v3517, %v3522
    %v3535 = vmul.f32 %v3518, %v3522
    %v3536 = vmul.f32 %v3519, %v3522
    %v3537 = vmul.f32 %v3520, %v3522
    %v3538 = vmul.f32 %v3521, %v3522
    %v3539 = vadd.f32 %v3489, %v3523
    %v3540 = vadd.f32 %v3490, %v3524
    %v3541 = vadd.f32 %v3491, %v3525
    %v3542 = vadd.f32 %v3492, %v3526
    %v3543 = vadd.f32 %v3493, %v3527
    %v3544 = vadd.f32 %v3494, %v3528
    %v3545 = vadd.f32 %v3495, %v3529
    %v3546 = vadd.f32 %v3496, %v3530
    %v3547 = vadd.f32 %v3497, %v3531
    %v3548 = vadd.f32 %v3498, %v3532
    %v3549 = vadd.f32 %v3499, %v3533
    %v3550 = vadd.f32 %v3500, %v3534
    %v3551 = vadd.f32 %v3501, %v3535
    %v3552 = vadd.f32 %v3502, %v3536
    %v3553 = vadd.f32 %v3503, %v3537
    %v3554 = vadd.f32 %v3504, %v3538
    %v3555 = vpack.c.bf16 %v3540, %v3539
    %v3556 = vpack.c.bf16 %v3542, %v3541
    %v3557 = vpack.c.bf16 %v3544, %v3543
    %v3558 = vpack.c.bf16 %v3546, %v3545
    %v3559 = vpack.c.bf16 %v3548, %v3547
    %v3560 = vpack.c.bf16 %v3550, %v3549
    %v3561 = vpack.c.bf16 %v3552, %v3551
    %v3562 = vpack.c.bf16 %v3554, %v3553
    %v3564 = vperm.slane %v3122, 0
    %v3574 = vunpack.c.l.b16 %v3114
    %v3575 = vunpack.c.l.b16 %v3115
    %v3576 = vunpack.c.l.b16 %v3116
    %v3577 = vunpack.c.l.b16 %v3117
    %v3578 = vunpack.c.l.b16 %v3118
    %v3579 = vunpack.c.l.b16 %v3119
    %v3580 = vunpack.c.l.b16 %v3120
    %v3581 = vunpack.c.l.b16 %v3121
    %v3582 = vpack.c.b16 %v3575, %v3574
    %v3583 = vpack.c.b16 %v3577, %v3576
    %v3584 = vpack.c.b16 %v3579, %v3578
    %v3585 = vpack.c.b16 %v3581, %v3580
    %v3591 = vsel %vm308, %v3555, 0
    %v3594 = vsel %vm308, %v3556, 0
    %v3597 = vsel %vm308, %v3557, 0
    %v3600 = vsel %vm308, %v3558, 0
    %v3603 = vsel %vm308, %v3559, 0
    %v3606 = vsel %vm308, %v3560, 0
    %v3609 = vsel %vm308, %v3561, 0
    %v3612 = vsel %vm308, %v3562, 0
    %3614 = vmatpush.bf16.msra.mxu0 0
    %3615 = vmatpush.bf16.msra.mxu0 0
    %3616 = vmatpush.bf16.msra.mxu0 0
    %3617 = vmatpush.bf16.msra.mxu0 0
    %3618 = vmatpush.bf16.msra.mxu0 %v3585
    %3619 = vmatpush.bf16.msra.mxu0 %v3584
    %3620 = vmatpush.bf16.msra.mxu0 %v3583
    %3621 = vmatpush.bf16.msra.mxu0 %v3582
    %3622 = vmatmul.bf16.gmra.mxu0 %v3591
    %v3623 = vpop.f32.mrf.mxu0
    %v3624 = vadd.f32 %v3564, %v3623
    %v3625 = vpop.f32.mrf.mxu0
    %v3626 = vadd.f32 %v3564, %v3625
    %3627 = vmatmul.bf16.gmra.mxu0 %v3594
    %v3628 = vpop.f32.mrf.mxu0
    %v3629 = vadd.f32 %v3564, %v3628
    %v3630 = vpop.f32.mrf.mxu0
    %v3631 = vadd.f32 %v3564, %v3630
    %3632 = vmatmul.bf16.gmra.mxu0 %v3597
    %v3633 = vpop.f32.mrf.mxu0
    %v3634 = vadd.f32 %v3564, %v3633
    %v3635 = vpop.f32.mrf.mxu0
    %v3636 = vadd.f32 %v3564, %v3635
    %3637 = vmatmul.bf16.gmra.mxu0 %v3600
    %v3638 = vpop.f32.mrf.mxu0
    %v3639 = vadd.f32 %v3564, %v3638
    %v3640 = vpop.f32.mrf.mxu0
    %v3641 = vadd.f32 %v3564, %v3640
    %3642 = vmatmul.bf16.gmra.mxu0 %v3603
    %v3643 = vpop.f32.mrf.mxu0
    %v3644 = vadd.f32 %v3564, %v3643
    %v3645 = vpop.f32.mrf.mxu0
    %v3646 = vadd.f32 %v3564, %v3645
    %3647 = vmatmul.bf16.gmra.mxu0 %v3606
    %v3648 = vpop.f32.mrf.mxu0
    %v3649 = vadd.f32 %v3564, %v3648
    %v3650 = vpop.f32.mrf.mxu0
    %v3651 = vadd.f32 %v3564, %v3650
    %3652 = vmatmul.bf16.gmra.mxu0 %v3609
    %v3653 = vpop.f32.mrf.mxu0
    %v3654 = vadd.f32 %v3564, %v3653
    %v3655 = vpop.f32.mrf.mxu0
    %v3656 = vadd.f32 %v3564, %v3655
    %3657 = vmatmul.bf16.gmra.mxu0 %v3612
    %v3658 = vpop.f32.mrf.mxu0
    %v3659 = vadd.f32 %v3564, %v3658
    %v3660 = vpop.f32.mrf.mxu0
    %v3661 = vadd.f32 %v3564, %v3660
    %3662 = vdwg.mxu0
    %v3663 = vmax.f32 %v3624, 0.0
    %v3664 = vmax.f32 %v3626, 0.0
    %v3665 = vmax.f32 %v3629, 0.0
    %v3666 = vmax.f32 %v3631, 0.0
    %v3667 = vmax.f32 %v3634, 0.0
    %v3668 = vmax.f32 %v3636, 0.0
    %v3669 = vmax.f32 %v3639, 0.0
    %v3670 = vmax.f32 %v3641, 0.0
    %v3671 = vmax.f32 %v3644, 0.0
    %v3672 = vmax.f32 %v3646, 0.0
    %v3673 = vmax.f32 %v3649, 0.0
    %v3674 = vmax.f32 %v3651, 0.0
    %v3675 = vmax.f32 %v3654, 0.0
    %v3676 = vmax.f32 %v3656, 0.0
    %v3677 = vmax.f32 %v3659, 0.0
    %v3678 = vmax.f32 %v3661, 0.0
    %s3679 = scalar_lea.vmem [#allocation4], 56
    %3680 = vst [vmem:[%s3679] sm:$0xff] %v3663
    %3681 = vst [vmem:[%s3679 + $0x8] sm:$0xff] %v3664
    %3682 = vst [vmem:[%s3679 + $0x10] sm:$0xff] %v3665
    %3683 = vst [vmem:[%s3679 + $0x18] sm:$0xff] %v3666
    %3684 = vst [vmem:[%s3679 + $0x30] sm:$0xff] %v3667
    %3685 = vst [vmem:[%s3679 + $0x38] sm:$0xff] %v3668
    %3686 = vst [vmem:[%s3679 + $0x40] sm:$0xff] %v3669
    %3687 = vst [vmem:[%s3679 + $0x48] sm:$0xff] %v3670
    %3688 = vst [vmem:[%s3679 + $0x60] sm:$0xff] %v3671
    %3689 = vst [vmem:[%s3679 + $0x68] sm:$0xff] %v3672
    %3690 = vst [vmem:[%s3679 + $0x70] sm:$0xff] %v3673
    %3691 = vst [vmem:[%s3679 + $0x78] sm:$0xff] %v3674
    %3692 = vst [vmem:[%s3679 + $0x90] sm:$0xff] %v3675
    %3693 = vst [vmem:[%s3679 + $0x98] sm:$0xff] %v3676
    %3694 = vst [vmem:[%s3679 + $0xa0] sm:$0xff] %v3677
    %3695 = vst [vmem:[%s3679 + $0xa8] sm:$0xff] %v3678
    %v3696 = vld [vmem:[#allocation19] sm:$0x7]
    %v3697 = vld [vmem:[#allocation19 + $0x4] sm:$0x7]
    %v3698 = vld [vmem:[#allocation19 + $0x8] sm:$0x7]
    %v3699 = vld [vmem:[%s10] sm:$0xf]
    %v3700 = vld [vmem:[%s10 + $0x4] sm:$0xf]
    %v3701 = vld [vmem:[%s10 + $0x8] sm:$0xf]
    %v3702 = vld [vmem:[%s10 + $0xc] sm:$0xf]
    %v3703 = vld [vmem:[%s10 + $0x10] sm:$0xf]
    %v3704 = vld [vmem:[%s10 + $0x14] sm:$0xf]
    %v3705 = vld [vmem:[%s10 + $0x18] sm:$0xf]
    %v3706 = vld [vmem:[%s10 + $0x1c] sm:$0xf]
    %v3707 = vld [vmem:[%s10 + $0x20] sm:$0xf]
    %v3708 = vld [vmem:[%s10 + $0x24] sm:$0xf]
    %v3709 = vld [vmem:[%s10 + $0x28] sm:$0xf]
    %v3710 = vld [vmem:[%s10 + $0x2c] sm:$0xf]
    %v3711 = vld [vmem:[%s10 + $0x30] sm:$0xf]
    %v3712 = vld [vmem:[%s10 + $0x34] sm:$0xf]
    %v3713 = vld [vmem:[%s10 + $0x38] sm:$0xf]
    %v3714 = vld [vmem:[%s10 + $0x3c] sm:$0xf]
    %v3715 = vld [vmem:[%s11] sm:$0x1]
    %v3716 = vld [vmem:[#allocation4] sm:$0xff]
    %v3717 = vld [vmem:[#allocation4 + $0x8] sm:$0xff]
    %v3718 = vld [vmem:[#allocation4 + $0x10] sm:$0xff]
    %v3719 = vld [vmem:[#allocation4 + $0x18] sm:$0xff]
    %v3720 = vld [vmem:[#allocation4 + $0x30] sm:$0xff]
    %v3721 = vld [vmem:[#allocation4 + $0x38] sm:$0xff]
    %v3722 = vld [vmem:[#allocation4 + $0x40] sm:$0xff]
    %v3723 = vld [vmem:[#allocation4 + $0x48] sm:$0xff]
    %v3724 = vld [vmem:[#allocation4 + $0x60] sm:$0xff]
    %v3725 = vld [vmem:[#allocation4 + $0x68] sm:$0xff]
    %v3726 = vld [vmem:[#allocation4 + $0x70] sm:$0xff]
    %v3727 = vld [vmem:[#allocation4 + $0x78] sm:$0xff]
    %v3728 = vld [vmem:[#allocation4 + $0x90] sm:$0xff]
    %v3729 = vld [vmem:[#allocation4 + $0x98] sm:$0xff]
    %v3730 = vld [vmem:[#allocation4 + $0xa0] sm:$0xff]
    %v3731 = vld [vmem:[#allocation4 + $0xa8] sm:$0xff]
    %v3732 = vperm.slane %v3696, 0
    %v3733 = vmul.f32 %v3716, %v3732
    %v3734 = vmul.f32 %v3717, %v3732
    %v3735 = vmul.f32 %v3718, %v3732
    %v3736 = vmul.f32 %v3719, %v3732
    %v3737 = vmul.f32 %v3720, %v3732
    %v3738 = vmul.f32 %v3721, %v3732
    %v3739 = vmul.f32 %v3722, %v3732
    %v3740 = vmul.f32 %v3723, %v3732
    %v3741 = vmul.f32 %v3724, %v3732
    %v3742 = vmul.f32 %v3725, %v3732
    %v3743 = vmul.f32 %v3726, %v3732
    %v3744 = vmul.f32 %v3727, %v3732
    %v3745 = vmul.f32 %v3728, %v3732
    %v3746 = vmul.f32 %v3729, %v3732
    %v3747 = vmul.f32 %v3730, %v3732
    %v3748 = vmul.f32 %v3731, %v3732
    %s3749 = scalar_lea.vmem [#allocation4], 8
    %v3750 = vld [vmem:[%s3749] sm:$0xff]
    %v3751 = vld [vmem:[%s3749 + $0x8] sm:$0xff]
    %v3752 = vld [vmem:[%s3749 + $0x10] sm:$0xff]
    %v3753 = vld [vmem:[%s3749 + $0x18] sm:$0xff]
    %v3754 = vld [vmem:[%s3749 + $0x30] sm:$0xff]
    %v3755 = vld [vmem:[%s3749 + $0x38] sm:$0xff]
    %v3756 = vld [vmem:[%s3749 + $0x40] sm:$0xff]
    %v3757 = vld [vmem:[%s3749 + $0x48] sm:$0xff]
    %v3758 = vld [vmem:[%s3749 + $0x60] sm:$0xff]
    %v3759 = vld [vmem:[%s3749 + $0x68] sm:$0xff]
    %v3760 = vld [vmem:[%s3749 + $0x70] sm:$0xff]
    %v3761 = vld [vmem:[%s3749 + $0x78] sm:$0xff]
    %v3762 = vld [vmem:[%s3749 + $0x90] sm:$0xff]
    %v3763 = vld [vmem:[%s3749 + $0x98] sm:$0xff]
    %v3764 = vld [vmem:[%s3749 + $0xa0] sm:$0xff]
    %v3765 = vld [vmem:[%s3749 + $0xa8] sm:$0xff]
    %v3766 = vperm.slane %v3696, 1
    %v3767 = vmul.f32 %v3750, %v3766
    %v3768 = vmul.f32 %v3751, %v3766
    %v3769 = vmul.f32 %v3752, %v3766
    %v3770 = vmul.f32 %v3753, %v3766
    %v3771 = vmul.f32 %v3754, %v3766
    %v3772 = vmul.f32 %v3755, %v3766
    %v3773 = vmul.f32 %v3756, %v3766
    %v3774 = vmul.f32 %v3757, %v3766
    %v3775 = vmul.f32 %v3758, %v3766
    %v3776 = vmul.f32 %v3759, %v3766
    %v3777 = vmul.f32 %v3760, %v3766
    %v3778 = vmul.f32 %v3761, %v3766
    %v3779 = vmul.f32 %v3762, %v3766
    %v3780 = vmul.f32 %v3763, %v3766
    %v3781 = vmul.f32 %v3764, %v3766
    %v3782 = vmul.f32 %v3765, %v3766
    %v3783 = vadd.f32 %v3733, %v3767
    %v3784 = vadd.f32 %v3734, %v3768
    %v3785 = vadd.f32 %v3735, %v3769
    %v3786 = vadd.f32 %v3736, %v3770
    %v3787 = vadd.f32 %v3737, %v3771
    %v3788 = vadd.f32 %v3738, %v3772
    %v3789 = vadd.f32 %v3739, %v3773
    %v3790 = vadd.f32 %v3740, %v3774
    %v3791 = vadd.f32 %v3741, %v3775
    %v3792 = vadd.f32 %v3742, %v3776
    %v3793 = vadd.f32 %v3743, %v3777
    %v3794 = vadd.f32 %v3744, %v3778
    %v3795 = vadd.f32 %v3745, %v3779
    %v3796 = vadd.f32 %v3746, %v3780
    %v3797 = vadd.f32 %v3747, %v3781
    %v3798 = vadd.f32 %v3748, %v3782
    %s3799 = scalar_lea.vmem [#allocation4], 16
    %v3800 = vld [vmem:[%s3799] sm:$0xff]
    %v3801 = vld [vmem:[%s3799 + $0x8] sm:$0xff]
    %v3802 = vld [vmem:[%s3799 + $0x10] sm:$0xff]
    %v3803 = vld [vmem:[%s3799 + $0x18] sm:$0xff]
    %v3804 = vld [vmem:[%s3799 + $0x30] sm:$0xff]
    %v3805 = vld [vmem:[%s3799 + $0x38] sm:$0xff]
    %v3806 = vld [vmem:[%s3799 + $0x40] sm:$0xff]
    %v3807 = vld [vmem:[%s3799 + $0x48] sm:$0xff]
    %v3808 = vld [vmem:[%s3799 + $0x60] sm:$0xff]
    %v3809 = vld [vmem:[%s3799 + $0x68] sm:$0xff]
    %v3810 = vld [vmem:[%s3799 + $0x70] sm:$0xff]
    %v3811 = vld [vmem:[%s3799 + $0x78] sm:$0xff]
    %v3812 = vld [vmem:[%s3799 + $0x90] sm:$0xff]
    %v3813 = vld [vmem:[%s3799 + $0x98] sm:$0xff]
    %v3814 = vld [vmem:[%s3799 + $0xa0] sm:$0xff]
    %v3815 = vld [vmem:[%s3799 + $0xa8] sm:$0xff]
    %v3816 = vperm.slane %v3696, 2
    %v3817 = vmul.f32 %v3800, %v3816
    %v3818 = vmul.f32 %v3801, %v3816
    %v3819 = vmul.f32 %v3802, %v3816
    %v3820 = vmul.f32 %v3803, %v3816
    %v3821 = vmul.f32 %v3804, %v3816
    %v3822 = vmul.f32 %v3805, %v3816
    %v3823 = vmul.f32 %v3806, %v3816
    %v3824 = vmul.f32 %v3807, %v3816
    %v3825 = vmul.f32 %v3808, %v3816
    %v3826 = vmul.f32 %v3809, %v3816
    %v3827 = vmul.f32 %v3810, %v3816
    %v3828 = vmul.f32 %v3811, %v3816
    %v3829 = vmul.f32 %v3812, %v3816
    %v3830 = vmul.f32 %v3813, %v3816
    %v3831 = vmul.f32 %v3814, %v3816
    %v3832 = vmul.f32 %v3815, %v3816
    %v3833 = vadd.f32 %v3783, %v3817
    %v3834 = vadd.f32 %v3784, %v3818
    %v3835 = vadd.f32 %v3785, %v3819
    %v3836 = vadd.f32 %v3786, %v3820
    %v3837 = vadd.f32 %v3787, %v3821
    %v3838 = vadd.f32 %v3788, %v3822
    %v3839 = vadd.f32 %v3789, %v3823
    %v3840 = vadd.f32 %v3790, %v3824
    %v3841 = vadd.f32 %v3791, %v3825
    %v3842 = vadd.f32 %v3792, %v3826
    %v3843 = vadd.f32 %v3793, %v3827
    %v3844 = vadd.f32 %v3794, %v3828
    %v3845 = vadd.f32 %v3795, %v3829
    %v3846 = vadd.f32 %v3796, %v3830
    %v3847 = vadd.f32 %v3797, %v3831
    %v3848 = vadd.f32 %v3798, %v3832
    %s3849 = scalar_lea.vmem [#allocation4], 48
    %v3850 = vld [vmem:[%s3849] sm:$0xff]
    %v3851 = vld [vmem:[%s3849 + $0x8] sm:$0xff]
    %v3852 = vld [vmem:[%s3849 + $0x10] sm:$0xff]
    %v3853 = vld [vmem:[%s3849 + $0x18] sm:$0xff]
    %v3854 = vld [vmem:[%s3849 + $0x30] sm:$0xff]
    %v3855 = vld [vmem:[%s3849 + $0x38] sm:$0xff]
    %v3856 = vld [vmem:[%s3849 + $0x40] sm:$0xff]
    %v3857 = vld [vmem:[%s3849 + $0x48] sm:$0xff]
    %v3858 = vld [vmem:[%s3849 + $0x60] sm:$0xff]
    %v3859 = vld [vmem:[%s3849 + $0x68] sm:$0xff]
    %v3860 = vld [vmem:[%s3849 + $0x70] sm:$0xff]
    %v3861 = vld [vmem:[%s3849 + $0x78] sm:$0xff]
    %v3862 = vld [vmem:[%s3849 + $0x90] sm:$0xff]
    %v3863 = vld [vmem:[%s3849 + $0x98] sm:$0xff]
    %v3864 = vld [vmem:[%s3849 + $0xa0] sm:$0xff]
    %v3865 = vld [vmem:[%s3849 + $0xa8] sm:$0xff]
    %v3866 = vperm.slane %v3697, 0
    %v3867 = vmul.f32 %v3850, %v3866
    %v3868 = vmul.f32 %v3851, %v3866
    %v3869 = vmul.f32 %v3852, %v3866
    %v3870 = vmul.f32 %v3853, %v3866
    %v3871 = vmul.f32 %v3854, %v3866
    %v3872 = vmul.f32 %v3855, %v3866
    %v3873 = vmul.f32 %v3856, %v3866
    %v3874 = vmul.f32 %v3857, %v3866
    %v3875 = vmul.f32 %v3858, %v3866
    %v3876 = vmul.f32 %v3859, %v3866
    %v3877 = vmul.f32 %v3860, %v3866
    %v3878 = vmul.f32 %v3861, %v3866
    %v3879 = vmul.f32 %v3862, %v3866
    %v3880 = vmul.f32 %v3863, %v3866
    %v3881 = vmul.f32 %v3864, %v3866
    %v3882 = vmul.f32 %v3865, %v3866
    %v3883 = vadd.f32 %v3833, %v3867
    %v3884 = vadd.f32 %v3834, %v3868
    %v3885 = vadd.f32 %v3835, %v3869
    %v3886 = vadd.f32 %v3836, %v3870
    %v3887 = vadd.f32 %v3837, %v3871
    %v3888 = vadd.f32 %v3838, %v3872
    %v3889 = vadd.f32 %v3839, %v3873
    %v3890 = vadd.f32 %v3840, %v3874
    %v3891 = vadd.f32 %v3841, %v3875
    %v3892 = vadd.f32 %v3842, %v3876
    %v3893 = vadd.f32 %v3843, %v3877
    %v3894 = vadd.f32 %v3844, %v3878
    %v3895 = vadd.f32 %v3845, %v3879
    %v3896 = vadd.f32 %v3846, %v3880
    %v3897 = vadd.f32 %v3847, %v3881
    %v3898 = vadd.f32 %v3848, %v3882
    %v3899 = vld [vmem:[%s3679] sm:$0xff]
    %v3900 = vld [vmem:[%s3679 + $0x8] sm:$0xff]
    %v3901 = vld [vmem:[%s3679 + $0x10] sm:$0xff]
    %v3902 = vld [vmem:[%s3679 + $0x18] sm:$0xff]
    %v3903 = vld [vmem:[%s3679 + $0x30] sm:$0xff]
    %v3904 = vld [vmem:[%s3679 + $0x38] sm:$0xff]
    %v3905 = vld [vmem:[%s3679 + $0x40] sm:$0xff]
    %v3906 = vld [vmem:[%s3679 + $0x48] sm:$0xff]
    %v3907 = vld [vmem:[%s3679 + $0x60] sm:$0xff]
    %v3908 = vld [vmem:[%s3679 + $0x68] sm:$0xff]
    %v3909 = vld [vmem:[%s3679 + $0x70] sm:$0xff]
    %v3910 = vld [vmem:[%s3679 + $0x78] sm:$0xff]
    %v3911 = vld [vmem:[%s3679 + $0x90] sm:$0xff]
    %v3912 = vld [vmem:[%s3679 + $0x98] sm:$0xff]
    %v3913 = vld [vmem:[%s3679 + $0xa0] sm:$0xff]
    %v3914 = vld [vmem:[%s3679 + $0xa8] sm:$0xff]
    %v3915 = vperm.slane %v3697, 1
    %v3916 = vmul.f32 %v3899, %v3915
    %v3917 = vmul.f32 %v3900, %v3915
    %v3918 = vmul.f32 %v3901, %v3915
    %v3919 = vmul.f32 %v3902, %v3915
    %v3920 = vmul.f32 %v3903, %v3915
    %v3921 = vmul.f32 %v3904, %v3915
    %v3922 = vmul.f32 %v3905, %v3915
    %v3923 = vmul.f32 %v3906, %v3915
    %v3924 = vmul.f32 %v3907, %v3915
    %v3925 = vmul.f32 %v3908, %v3915
    %v3926 = vmul.f32 %v3909, %v3915
    %v3927 = vmul.f32 %v3910, %v3915
    %v3928 = vmul.f32 %v3911, %v3915
    %v3929 = vmul.f32 %v3912, %v3915
    %v3930 = vmul.f32 %v3913, %v3915
    %v3931 = vmul.f32 %v3914, %v3915
    %v3932 = vadd.f32 %v3883, %v3916
    %v3933 = vadd.f32 %v3884, %v3917
    %v3934 = vadd.f32 %v3885, %v3918
    %v3935 = vadd.f32 %v3886, %v3919
    %v3936 = vadd.f32 %v3887, %v3920
    %v3937 = vadd.f32 %v3888, %v3921
    %v3938 = vadd.f32 %v3889, %v3922
    %v3939 = vadd.f32 %v3890, %v3923
    %v3940 = vadd.f32 %v3891, %v3924
    %v3941 = vadd.f32 %v3892, %v3925
    %v3942 = vadd.f32 %v3893, %v3926
    %v3943 = vadd.f32 %v3894, %v3927
    %v3944 = vadd.f32 %v3895, %v3928
    %v3945 = vadd.f32 %v3896, %v3929
    %v3946 = vadd.f32 %v3897, %v3930
    %v3947 = vadd.f32 %v3898, %v3931
    %s3948 = scalar_lea.vmem [#allocation4], 64
    %v3949 = vld [vmem:[%s3948] sm:$0xff]
    %v3950 = vld [vmem:[%s3948 + $0x8] sm:$0xff]
    %v3951 = vld [vmem:[%s3948 + $0x10] sm:$0xff]
    %v3952 = vld [vmem:[%s3948 + $0x18] sm:$0xff]
    %v3953 = vld [vmem:[%s3948 + $0x30] sm:$0xff]
    %v3954 = vld [vmem:[%s3948 + $0x38] sm:$0xff]
    %v3955 = vld [vmem:[%s3948 + $0x40] sm:$0xff]
    %v3956 = vld [vmem:[%s3948 + $0x48] sm:$0xff]
    %v3957 = vld [vmem:[%s3948 + $0x60] sm:$0xff]
    %v3958 = vld [vmem:[%s3948 + $0x68] sm:$0xff]
    %v3959 = vld [vmem:[%s3948 + $0x70] sm:$0xff]
    %v3960 = vld [vmem:[%s3948 + $0x78] sm:$0xff]
    %v3961 = vld [vmem:[%s3948 + $0x90] sm:$0xff]
    %v3962 = vld [vmem:[%s3948 + $0x98] sm:$0xff]
    %v3963 = vld [vmem:[%s3948 + $0xa0] sm:$0xff]
    %v3964 = vld [vmem:[%s3948 + $0xa8] sm:$0xff]
    %v3965 = vperm.slane %v3697, 2
    %v3966 = vmul.f32 %v3949, %v3965
    %v3967 = vmul.f32 %v3950, %v3965
    %v3968 = vmul.f32 %v3951, %v3965
    %v3969 = vmul.f32 %v3952, %v3965
    %v3970 = vmul.f32 %v3953, %v3965
    %v3971 = vmul.f32 %v3954, %v3965
    %v3972 = vmul.f32 %v3955, %v3965
    %v3973 = vmul.f32 %v3956, %v3965
    %v3974 = vmul.f32 %v3957, %v3965
    %v3975 = vmul.f32 %v3958, %v3965
    %v3976 = vmul.f32 %v3959, %v3965
    %v3977 = vmul.f32 %v3960, %v3965
    %v3978 = vmul.f32 %v3961, %v3965
    %v3979 = vmul.f32 %v3962, %v3965
    %v3980 = vmul.f32 %v3963, %v3965
    %v3981 = vmul.f32 %v3964, %v3965
    %v3982 = vadd.f32 %v3932, %v3966
    %v3983 = vadd.f32 %v3933, %v3967
    %v3984 = vadd.f32 %v3934, %v3968
    %v3985 = vadd.f32 %v3935, %v3969
    %v3986 = vadd.f32 %v3936, %v3970
    %v3987 = vadd.f32 %v3937, %v3971
    %v3988 = vadd.f32 %v3938, %v3972
    %v3989 = vadd.f32 %v3939, %v3973
    %v3990 = vadd.f32 %v3940, %v3974
    %v3991 = vadd.f32 %v3941, %v3975
    %v3992 = vadd.f32 %v3942, %v3976
    %v3993 = vadd.f32 %v3943, %v3977
    %v3994 = vadd.f32 %v3944, %v3978
    %v3995 = vadd.f32 %v3945, %v3979
    %v3996 = vadd.f32 %v3946, %v3980
    %v3997 = vadd.f32 %v3947, %v3981
    %s3998 = scalar_lea.vmem [#allocation4], 96
    %v3999 = vld [vmem:[%s3998] sm:$0xff]
    %v4000 = vld [vmem:[%s3998 + $0x8] sm:$0xff]
    %v4001 = vld [vmem:[%s3998 + $0x10] sm:$0xff]
    %v4002 = vld [vmem:[%s3998 + $0x18] sm:$0xff]
    %v4003 = vld [vmem:[%s3998 + $0x30] sm:$0xff]
    %v4004 = vld [vmem:[%s3998 + $0x38] sm:$0xff]
    %v4005 = vld [vmem:[%s3998 + $0x40] sm:$0xff]
    %v4006 = vld [vmem:[%s3998 + $0x48] sm:$0xff]
    %v4007 = vld [vmem:[%s3998 + $0x60] sm:$0xff]
    %v4008 = vld [vmem:[%s3998 + $0x68] sm:$0xff]
    %v4009 = vld [vmem:[%s3998 + $0x70] sm:$0xff]
    %v4010 = vld [vmem:[%s3998 + $0x78] sm:$0xff]
    %v4011 = vld [vmem:[%s3998 + $0x90] sm:$0xff]
    %v4012 = vld [vmem:[%s3998 + $0x98] sm:$0xff]
    %v4013 = vld [vmem:[%s3998 + $0xa0] sm:$0xff]
    %v4014 = vld [vmem:[%s3998 + $0xa8] sm:$0xff]
    %v4015 = vperm.slane %v3698, 0
    %v4016 = vmul.f32 %v3999, %v4015
    %v4017 = vmul.f32 %v4000, %v4015
    %v4018 = vmul.f32 %v4001, %v4015
    %v4019 = vmul.f32 %v4002, %v4015
    %v4020 = vmul.f32 %v4003, %v4015
    %v4021 = vmul.f32 %v4004, %v4015
    %v4022 = vmul.f32 %v4005, %v4015
    %v4023 = vmul.f32 %v4006, %v4015
    %v4024 = vmul.f32 %v4007, %v4015
    %v4025 = vmul.f32 %v4008, %v4015
    %v4026 = vmul.f32 %v4009, %v4015
    %v4027 = vmul.f32 %v4010, %v4015
    %v4028 = vmul.f32 %v4011, %v4015
    %v4029 = vmul.f32 %v4012, %v4015
    %v4030 = vmul.f32 %v4013, %v4015
    %v4031 = vmul.f32 %v4014, %v4015
    %v4032 = vadd.f32 %v3982, %v4016
    %v4033 = vadd.f32 %v3983, %v4017
    %v4034 = vadd.f32 %v3984, %v4018
    %v4035 = vadd.f32 %v3985, %v4019
    %v4036 = vadd.f32 %v3986, %v4020
    %v4037 = vadd.f32 %v3987, %v4021
    %v4038 = vadd.f32 %v3988, %v4022
    %v4039 = vadd.f32 %v3989, %v4023
    %v4040 = vadd.f32 %v3990, %v4024
    %v4041 = vadd.f32 %v3991, %v4025
    %v4042 = vadd.f32 %v3992, %v4026
    %v4043 = vadd.f32 %v3993, %v4027
    %v4044 = vadd.f32 %v3994, %v4028
    %v4045 = vadd.f32 %v3995, %v4029
    %v4046 = vadd.f32 %v3996, %v4030
    %v4047 = vadd.f32 %v3997, %v4031
    %s4048 = scalar_lea.vmem [#allocation4], 104
    %v4049 = vld [vmem:[%s4048] sm:$0xff]
    %v4050 = vld [vmem:[%s4048 + $0x8] sm:$0xff]
    %v4051 = vld [vmem:[%s4048 + $0x10] sm:$0xff]
    %v4052 = vld [vmem:[%s4048 + $0x18] sm:$0xff]
    %v4053 = vld [vmem:[%s4048 + $0x30] sm:$0xff]
    %v4054 = vld [vmem:[%s4048 + $0x38] sm:$0xff]
    %v4055 = vld [vmem:[%s4048 + $0x40] sm:$0xff]
    %v4056 = vld [vmem:[%s4048 + $0x48] sm:$0xff]
    %v4057 = vld [vmem:[%s4048 + $0x60] sm:$0xff]
    %v4058 = vld [vmem:[%s4048 + $0x68] sm:$0xff]
    %v4059 = vld [vmem:[%s4048 + $0x70] sm:$0xff]
    %v4060 = vld [vmem:[%s4048 + $0x78] sm:$0xff]
    %v4061 = vld [vmem:[%s4048 + $0x90] sm:$0xff]
    %v4062 = vld [vmem:[%s4048 + $0x98] sm:$0xff]
    %v4063 = vld [vmem:[%s4048 + $0xa0] sm:$0xff]
    %v4064 = vld [vmem:[%s4048 + $0xa8] sm:$0xff]
    %v4065 = vperm.slane %v3698, 1
    %v4066 = vmul.f32 %v4049, %v4065
    %v4067 = vmul.f32 %v4050, %v4065
    %v4068 = vmul.f32 %v4051, %v4065
    %v4069 = vmul.f32 %v4052, %v4065
    %v4070 = vmul.f32 %v4053, %v4065
    %v4071 = vmul.f32 %v4054, %v4065
    %v4072 = vmul.f32 %v4055, %v4065
    %v4073 = vmul.f32 %v4056, %v4065
    %v4074 = vmul.f32 %v4057, %v4065
    %v4075 = vmul.f32 %v4058, %v4065
    %v4076 = vmul.f32 %v4059, %v4065
    %v4077 = vmul.f32 %v4060, %v4065
    %v4078 = vmul.f32 %v4061, %v4065
    %v4079 = vmul.f32 %v4062, %v4065
    %v4080 = vmul.f32 %v4063, %v4065
    %v4081 = vmul.f32 %v4064, %v4065
    %v4082 = vadd.f32 %v4032, %v4066
    %v4083 = vadd.f32 %v4033, %v4067
    %v4084 = vadd.f32 %v4034, %v4068
    %v4085 = vadd.f32 %v4035, %v4069
    %v4086 = vadd.f32 %v4036, %v4070
    %v4087 = vadd.f32 %v4037, %v4071
    %v4088 = vadd.f32 %v4038, %v4072
    %v4089 = vadd.f32 %v4039, %v4073
    %v4090 = vadd.f32 %v4040, %v4074
    %v4091 = vadd.f32 %v4041, %v4075
    %v4092 = vadd.f32 %v4042, %v4076
    %v4093 = vadd.f32 %v4043, %v4077
    %v4094 = vadd.f32 %v4044, %v4078
    %v4095 = vadd.f32 %v4045, %v4079
    %v4096 = vadd.f32 %v4046, %v4080
    %v4097 = vadd.f32 %v4047, %v4081
    %s4098 = scalar_lea.vmem [#allocation4], 112
    %v4099 = vld [vmem:[%s4098] sm:$0xff]
    %v4100 = vld [vmem:[%s4098 + $0x8] sm:$0xff]
    %v4101 = vld [vmem:[%s4098 + $0x10] sm:$0xff]
    %v4102 = vld [vmem:[%s4098 + $0x18] sm:$0xff]
    %v4103 = vld [vmem:[%s4098 + $0x30] sm:$0xff]
    %v4104 = vld [vmem:[%s4098 + $0x38] sm:$0xff]
    %v4105 = vld [vmem:[%s4098 + $0x40] sm:$0xff]
    %v4106 = vld [vmem:[%s4098 + $0x48] sm:$0xff]
    %v4107 = vld [vmem:[%s4098 + $0x60] sm:$0xff]
    %v4108 = vld [vmem:[%s4098 + $0x68] sm:$0xff]
    %v4109 = vld [vmem:[%s4098 + $0x70] sm:$0xff]
    %v4110 = vld [vmem:[%s4098 + $0x78] sm:$0xff]
    %v4111 = vld [vmem:[%s4098 + $0x90] sm:$0xff]
    %v4112 = vld [vmem:[%s4098 + $0x98] sm:$0xff]
    %v4113 = vld [vmem:[%s4098 + $0xa0] sm:$0xff]
    %v4114 = vld [vmem:[%s4098 + $0xa8] sm:$0xff]
    %v4115 = vperm.slane %v3698, 2
    %v4116 = vmul.f32 %v4099, %v4115
    %v4117 = vmul.f32 %v4100, %v4115
    %v4118 = vmul.f32 %v4101, %v4115
    %v4119 = vmul.f32 %v4102, %v4115
    %v4120 = vmul.f32 %v4103, %v4115
    %v4121 = vmul.f32 %v4104, %v4115
    %v4122 = vmul.f32 %v4105, %v4115
    %v4123 = vmul.f32 %v4106, %v4115
    %v4124 = vmul.f32 %v4107, %v4115
    %v4125 = vmul.f32 %v4108, %v4115
    %v4126 = vmul.f32 %v4109, %v4115
    %v4127 = vmul.f32 %v4110, %v4115
    %v4128 = vmul.f32 %v4111, %v4115
    %v4129 = vmul.f32 %v4112, %v4115
    %v4130 = vmul.f32 %v4113, %v4115
    %v4131 = vmul.f32 %v4114, %v4115
    %v4132 = vadd.f32 %v4082, %v4116
    %v4133 = vadd.f32 %v4083, %v4117
    %v4134 = vadd.f32 %v4084, %v4118
    %v4135 = vadd.f32 %v4085, %v4119
    %v4136 = vadd.f32 %v4086, %v4120
    %v4137 = vadd.f32 %v4087, %v4121
    %v4138 = vadd.f32 %v4088, %v4122
    %v4139 = vadd.f32 %v4089, %v4123
    %v4140 = vadd.f32 %v4090, %v4124
    %v4141 = vadd.f32 %v4091, %v4125
    %v4142 = vadd.f32 %v4092, %v4126
    %v4143 = vadd.f32 %v4093, %v4127
    %v4144 = vadd.f32 %v4094, %v4128
    %v4145 = vadd.f32 %v4095, %v4129
    %v4146 = vadd.f32 %v4096, %v4130
    %v4147 = vadd.f32 %v4097, %v4131
    %v4148 = vpack.c.bf16 %v4133, %v4132
    %v4149 = vpack.c.bf16 %v4135, %v4134
    %v4150 = vpack.c.bf16 %v4137, %v4136
    %v4151 = vpack.c.bf16 %v4139, %v4138
    %v4152 = vpack.c.bf16 %v4141, %v4140
    %v4153 = vpack.c.bf16 %v4143, %v4142
    %v4154 = vpack.c.bf16 %v4145, %v4144
    %v4155 = vpack.c.bf16 %v4147, %v4146
    %v4157 = vperm.slane %v3715, 0
    %v4175 = vunpack.c.l.b16 %v3699
    %v4176 = vunpack.c.l.b16 %v3700
    %v4177 = vunpack.c.l.b16 %v3701
    %v4178 = vunpack.c.l.b16 %v3702
    %v4179 = vunpack.c.l.b16 %v3703
    %v4180 = vunpack.c.l.b16 %v3704
    %v4181 = vunpack.c.l.b16 %v3705
    %v4182 = vunpack.c.l.b16 %v3706
    %v4183 = vunpack.c.l.b16 %v3707
    %v4184 = vunpack.c.l.b16 %v3708
    %v4185 = vunpack.c.l.b16 %v3709
    %v4186 = vunpack.c.l.b16 %v3710
    %v4187 = vunpack.c.l.b16 %v3711
    %v4188 = vunpack.c.l.b16 %v3712
    %v4189 = vunpack.c.l.b16 %v3713
    %v4190 = vunpack.c.l.b16 %v3714
    %v4191 = vpack.c.b16 %v4176, %v4175
    %v4192 = vpack.c.b16 %v4178, %v4177
    %v4193 = vpack.c.b16 %v4180, %v4179
    %v4194 = vpack.c.b16 %v4182, %v4181
    %v4195 = vpack.c.b16 %v4184, %v4183
    %v4196 = vpack.c.b16 %v4186, %v4185
    %v4197 = vpack.c.b16 %v4188, %v4187
    %v4198 = vpack.c.b16 %v4190, %v4189
    %4207 = vmatpush.bf16.msra.mxu0 %v4198
    %4208 = vmatpush.bf16.msra.mxu0 %v4197
    %4209 = vmatpush.bf16.msra.mxu0 %v4196
    %4210 = vmatpush.bf16.msra.mxu0 %v4195
    %4211 = vmatpush.bf16.msra.mxu0 %v4194
    %4212 = vmatpush.bf16.msra.mxu0 %v4193
    %4213 = vmatpush.bf16.msra.mxu0 %v4192
    %4214 = vmatpush.bf16.msra.mxu0 %v4191
    %4215 = vmatmul.bf16.gmra.mxu0 %v4148
    %v4216 = vpop.f32.mrf.mxu0
    %v4217 = vadd.f32 %v4157, %v4216
    %v4218 = vpop.f32.mrf.mxu0
    %v4219 = vadd.f32 %v4157, %v4218
    %4220 = vmatmul.bf16.gmra.mxu0 %v4149
    %v4221 = vpop.f32.mrf.mxu0
    %v4222 = vadd.f32 %v4157, %v4221
    %v4223 = vpop.f32.mrf.mxu0
    %v4224 = vadd.f32 %v4157, %v4223
    %4225 = vmatmul.bf16.gmra.mxu0 %v4150
    %v4226 = vpop.f32.mrf.mxu0
    %v4227 = vadd.f32 %v4157, %v4226
    %v4228 = vpop.f32.mrf.mxu0
    %v4229 = vadd.f32 %v4157, %v4228
    %4230 = vmatmul.bf16.gmra.mxu0 %v4151
    %v4231 = vpop.f32.mrf.mxu0
    %v4232 = vadd.f32 %v4157, %v4231
    %v4233 = vpop.f32.mrf.mxu0
    %v4234 = vadd.f32 %v4157, %v4233
    %4235 = vmatmul.bf16.gmra.mxu0 %v4152
    %v4236 = vpop.f32.mrf.mxu0
    %v4237 = vadd.f32 %v4157, %v4236
    %v4238 = vpop.f32.mrf.mxu0
    %v4239 = vadd.f32 %v4157, %v4238
    %4240 = vmatmul.bf16.gmra.mxu0 %v4153
    %v4241 = vpop.f32.mrf.mxu0
    %v4242 = vadd.f32 %v4157, %v4241
    %v4243 = vpop.f32.mrf.mxu0
    %v4244 = vadd.f32 %v4157, %v4243
    %4245 = vmatmul.bf16.gmra.mxu0 %v4154
    %v4246 = vpop.f32.mrf.mxu0
    %v4247 = vadd.f32 %v4157, %v4246
    %v4248 = vpop.f32.mrf.mxu0
    %v4249 = vadd.f32 %v4157, %v4248
    %4250 = vmatmul.bf16.gmra.mxu0 %v4155
    %v4251 = vpop.f32.mrf.mxu0
    %v4252 = vadd.f32 %v4157, %v4251
    %v4253 = vpop.f32.mrf.mxu0
    %v4254 = vadd.f32 %v4157, %v4253
    %4255 = vdwg.mxu0
    %v4256 = vmax.f32 %v4217, 0.0
    %v4257 = vmax.f32 %v4219, 0.0
    %v4258 = vmax.f32 %v4222, 0.0
    %v4259 = vmax.f32 %v4224, 0.0
    %v4260 = vmax.f32 %v4227, 0.0
    %v4261 = vmax.f32 %v4229, 0.0
    %v4262 = vmax.f32 %v4232, 0.0
    %v4263 = vmax.f32 %v4234, 0.0
    %v4264 = vmax.f32 %v4237, 0.0
    %v4265 = vmax.f32 %v4239, 0.0
    %v4266 = vmax.f32 %v4242, 0.0
    %v4267 = vmax.f32 %v4244, 0.0
    %v4268 = vmax.f32 %v4247, 0.0
    %v4269 = vmax.f32 %v4249, 0.0
    %v4270 = vmax.f32 %v4252, 0.0
    %v4271 = vmax.f32 %v4254, 0.0
    %s4272 = scalar_lea.vmem [#allocation5], 56
    %4273 = vst [vmem:[%s4272] sm:$0xff] %v4256
    %4274 = vst [vmem:[%s4272 + $0x8] sm:$0xff] %v4257
    %4275 = vst [vmem:[%s4272 + $0x10] sm:$0xff] %v4258
    %4276 = vst [vmem:[%s4272 + $0x18] sm:$0xff] %v4259
    %4277 = vst [vmem:[%s4272 + $0x30] sm:$0xff] %v4260
    %4278 = vst [vmem:[%s4272 + $0x38] sm:$0xff] %v4261
    %4279 = vst [vmem:[%s4272 + $0x40] sm:$0xff] %v4262
    %4280 = vst [vmem:[%s4272 + $0x48] sm:$0xff] %v4263
    %4281 = vst [vmem:[%s4272 + $0x60] sm:$0xff] %v4264
    %4282 = vst [vmem:[%s4272 + $0x68] sm:$0xff] %v4265
    %4283 = vst [vmem:[%s4272 + $0x70] sm:$0xff] %v4266
    %4284 = vst [vmem:[%s4272 + $0x78] sm:$0xff] %v4267
    %4285 = vst [vmem:[%s4272 + $0x90] sm:$0xff] %v4268
    %4286 = vst [vmem:[%s4272 + $0x98] sm:$0xff] %v4269
    %4287 = vst [vmem:[%s4272 + $0xa0] sm:$0xff] %v4270
    %4288 = vst [vmem:[%s4272 + $0xa8] sm:$0xff] %v4271
    %v4289 = vld [vmem:[#allocation21] sm:$0x7]
    %v4290 = vld [vmem:[#allocation21 + $0x4] sm:$0x7]
    %v4291 = vld [vmem:[#allocation21 + $0x8] sm:$0x7]
    %v4292 = vld [vmem:[#allocation22] sm:$0xff]
    %v4293 = vld [vmem:[#allocation22 + $0x8] sm:$0xff]
    %v4294 = vld [vmem:[#allocation22 + $0x10] sm:$0xff]
    %v4295 = vld [vmem:[#allocation22 + $0x18] sm:$0xff]
    %v4296 = vld [vmem:[#allocation22 + $0x20] sm:$0xff]
    %v4297 = vld [vmem:[#allocation22 + $0x28] sm:$0xff]
    %v4298 = vld [vmem:[#allocation22 + $0x30] sm:$0xff]
    %v4299 = vld [vmem:[#allocation22 + $0x38] sm:$0xff]
    %v4300 = vld [vmem:[#allocation22 + $0x40] sm:$0xff]
    %v4301 = vld [vmem:[#allocation22 + $0x48] sm:$0xff]
    %v4302 = vld [vmem:[#allocation22 + $0x50] sm:$0xff]
    %v4303 = vld [vmem:[#allocation22 + $0x58] sm:$0xff]
    %v4304 = vld [vmem:[#allocation22 + $0x60] sm:$0xff]
    %v4305 = vld [vmem:[#allocation22 + $0x68] sm:$0xff]
    %v4306 = vld [vmem:[#allocation22 + $0x70] sm:$0xff]
    %v4307 = vld [vmem:[#allocation22 + $0x78] sm:$0xff]
    %v4308 = vld [vmem:[%s14] sm:$0x3]
    %v4309 = vld [vmem:[#allocation5] sm:$0xff]
    %v4310 = vld [vmem:[#allocation5 + $0x10] sm:$0xff]
    %v4311 = vld [vmem:[#allocation5 + $0x60] sm:$0xff]
    %v4312 = vld [vmem:[#allocation5 + $0x70] sm:$0xff]
    %v4313 = vperm.slane %v4289, 0
    %v4314 = vmul.f32 %v4309, %v4313
    %v4315 = vmul.f32 %v4310, %v4313
    %v4316 = vmul.f32 %v4311, %v4313
    %v4317 = vmul.f32 %v4312, %v4313
    %s4318 = scalar_lea.vmem [#allocation5], 8
    %v4319 = vld [vmem:[%s4318] sm:$0xff]
    %v4320 = vld [vmem:[%s4318 + $0x10] sm:$0xff]
    %v4321 = vld [vmem:[%s4318 + $0x60] sm:$0xff]
    %v4322 = vld [vmem:[%s4318 + $0x70] sm:$0xff]
    %v4323 = vperm.slane %v4289, 1
    %v4324 = vmul.f32 %v4319, %v4323
    %v4325 = vmul.f32 %v4320, %v4323
    %v4326 = vmul.f32 %v4321, %v4323
    %v4327 = vmul.f32 %v4322, %v4323
    %v4328 = vadd.f32 %v4314, %v4324
    %v4329 = vadd.f32 %v4315, %v4325
    %v4330 = vadd.f32 %v4316, %v4326
    %v4331 = vadd.f32 %v4317, %v4327
    %s4332 = scalar_lea.vmem [#allocation5], 16
    %v4333 = vld [vmem:[%s4332] sm:$0xff]
    %v4334 = vld [vmem:[%s4332 + $0x10] sm:$0xff]
    %v4335 = vld [vmem:[%s4332 + $0x60] sm:$0xff]
    %v4336 = vld [vmem:[%s4332 + $0x70] sm:$0xff]
    %v4337 = vperm.slane %v4289, 2
    %v4338 = vmul.f32 %v4333, %v4337
    %v4339 = vmul.f32 %v4334, %v4337
    %v4340 = vmul.f32 %v4335, %v4337
    %v4341 = vmul.f32 %v4336, %v4337
    %v4342 = vadd.f32 %v4328, %v4338
    %v4343 = vadd.f32 %v4329, %v4339
    %v4344 = vadd.f32 %v4330, %v4340
    %v4345 = vadd.f32 %v4331, %v4341
    %s4346 = scalar_lea.vmem [#allocation5], 48
    %v4347 = vld [vmem:[%s4346] sm:$0xff]
    %v4348 = vld [vmem:[%s4346 + $0x10] sm:$0xff]
    %v4349 = vld [vmem:[%s4346 + $0x60] sm:$0xff]
    %v4350 = vld [vmem:[%s4346 + $0x70] sm:$0xff]
    %v4351 = vperm.slane %v4290, 0
    %v4352 = vmul.f32 %v4347, %v4351
    %v4353 = vmul.f32 %v4348, %v4351
    %v4354 = vmul.f32 %v4349, %v4351
    %v4355 = vmul.f32 %v4350, %v4351
    %v4356 = vadd.f32 %v4342, %v4352
    %v4357 = vadd.f32 %v4343, %v4353
    %v4358 = vadd.f32 %v4344, %v4354
    %v4359 = vadd.f32 %v4345, %v4355
    %v4360 = vld [vmem:[%s4272] sm:$0xff]
    %v4361 = vld [vmem:[%s4272 + $0x10] sm:$0xff]
    %v4362 = vld [vmem:[%s4272 + $0x60] sm:$0xff]
    %v4363 = vld [vmem:[%s4272 + $0x70] sm:$0xff]
    %v4364 = vperm.slane %v4290, 1
    %v4365 = vmul.f32 %v4360, %v4364
    %v4366 = vmul.f32 %v4361, %v4364
    %v4367 = vmul.f32 %v4362, %v4364
    %v4368 = vmul.f32 %v4363, %v4364
    %v4369 = vadd.f32 %v4356, %v4365
    %v4370 = vadd.f32 %v4357, %v4366
    %v4371 = vadd.f32 %v4358, %v4367
    %v4372 = vadd.f32 %v4359, %v4368
    %s4373 = scalar_lea.vmem [#allocation5], 64
    %v4374 = vld [vmem:[%s4373] sm:$0xff]
    %v4375 = vld [vmem:[%s4373 + $0x10] sm:$0xff]
    %v4376 = vld [vmem:[%s4373 + $0x60] sm:$0xff]
    %v4377 = vld [vmem:[%s4373 + $0x70] sm:$0xff]
    %v4378 = vperm.slane %v4290, 2
    %v4379 = vmul.f32 %v4374, %v4378
    %v4380 = vmul.f32 %v4375, %v4378
    %v4381 = vmul.f32 %v4376, %v4378
    %v4382 = vmul.f32 %v4377, %v4378
    %v4383 = vadd.f32 %v4369, %v4379
    %v4384 = vadd.f32 %v4370, %v4380
    %v4385 = vadd.f32 %v4371, %v4381
    %v4386 = vadd.f32 %v4372, %v4382
    %s4387 = scalar_lea.vmem [#allocation5], 96
    %v4388 = vld [vmem:[%s4387] sm:$0xff]
    %v4389 = vld [vmem:[%s4387 + $0x10] sm:$0xff]
    %v4390 = vld [vmem:[%s4387 + $0x60] sm:$0xff]
    %v4391 = vld [vmem:[%s4387 + $0x70] sm:$0xff]
    %v4392 = vperm.slane %v4291, 0
    %v4393 = vmul.f32 %v4388, %v4392
    %v4394 = vmul.f32 %v4389, %v4392
    %v4395 = vmul.f32 %v4390, %v4392
    %v4396 = vmul.f32 %v4391, %v4392
    %v4397 = vadd.f32 %v4383, %v4393
    %v4398 = vadd.f32 %v4384, %v4394
    %v4399 = vadd.f32 %v4385, %v4395
    %v4400 = vadd.f32 %v4386, %v4396
    %s4401 = scalar_lea.vmem [#allocation5], 104
    %v4402 = vld [vmem:[%s4401] sm:$0xff]
    %v4403 = vld [vmem:[%s4401 + $0x10] sm:$0xff]
    %v4404 = vld [vmem:[%s4401 + $0x60] sm:$0xff]
    %v4405 = vld [vmem:[%s4401 + $0x70] sm:$0xff]
    %v4406 = vperm.slane %v4291, 1
    %v4407 = vmul.f32 %v4402, %v4406
    %v4408 = vmul.f32 %v4403, %v4406
    %v4409 = vmul.f32 %v4404, %v4406
    %v4410 = vmul.f32 %v4405, %v4406
    %v4411 = vadd.f32 %v4397, %v4407
    %v4412 = vadd.f32 %v4398, %v4408
    %v4413 = vadd.f32 %v4399, %v4409
    %v4414 = vadd.f32 %v4400, %v4410
    %s4415 = scalar_lea.vmem [#allocation5], 112
    %v4416 = vld [vmem:[%s4415] sm:$0xff]
    %v4417 = vld [vmem:[%s4415 + $0x10] sm:$0xff]
    %v4418 = vld [vmem:[%s4415 + $0x60] sm:$0xff]
    %v4419 = vld [vmem:[%s4415 + $0x70] sm:$0xff]
    %v4420 = vperm.slane %v4291, 2
    %v4421 = vmul.f32 %v4416, %v4420
    %v4422 = vmul.f32 %v4417, %v4420
    %v4423 = vmul.f32 %v4418, %v4420
    %v4424 = vmul.f32 %v4419, %v4420
    %v4425 = vadd.f32 %v4411, %v4421
    %v4426 = vadd.f32 %v4412, %v4422
    %v4427 = vadd.f32 %v4413, %v4423
    %v4428 = vadd.f32 %v4414, %v4424
    %v4429 = vpack.c.bf16 %v4426, %v4425
    %v4430 = vpack.c.bf16 %v4428, %v4427
    %v4432 = vperm.slane %v4308, 0
    %v4433 = vperm.slane %v4308, 1
    %v4452 = vunpack.c.l.b16 %v4292
    %v4453 = vunpack.c.h.b16 %v4292
    %v4454 = vunpack.c.l.b16 %v4293
    %v4455 = vunpack.c.h.b16 %v4293
    %v4456 = vunpack.c.l.b16 %v4294
    %v4457 = vunpack.c.h.b16 %v4294
    %v4458 = vunpack.c.l.b16 %v4295
    %v4459 = vunpack.c.h.b16 %v4295
    %v4460 = vunpack.c.l.b16 %v4296
    %v4461 = vunpack.c.h.b16 %v4296
    %v4462 = vunpack.c.l.b16 %v4297
    %v4463 = vunpack.c.h.b16 %v4297
    %v4464 = vunpack.c.l.b16 %v4298
    %v4465 = vunpack.c.h.b16 %v4298
    %v4466 = vunpack.c.l.b16 %v4299
    %v4467 = vunpack.c.h.b16 %v4299
    %v4468 = vunpack.c.l.b16 %v4300
    %v4469 = vunpack.c.h.b16 %v4300
    %v4470 = vunpack.c.l.b16 %v4301
    %v4471 = vunpack.c.h.b16 %v4301
    %v4472 = vunpack.c.l.b16 %v4302
    %v4473 = vunpack.c.h.b16 %v4302
    %v4474 = vunpack.c.l.b16 %v4303
    %v4475 = vunpack.c.h.b16 %v4303
    %v4476 = vunpack.c.l.b16 %v4304
    %v4477 = vunpack.c.h.b16 %v4304
    %v4478 = vunpack.c.l.b16 %v4305
    %v4479 = vunpack.c.h.b16 %v4305
    %v4480 = vunpack.c.l.b16 %v4306
    %v4481 = vunpack.c.h.b16 %v4306
    %v4482 = vunpack.c.l.b16 %v4307
    %v4483 = vunpack.c.h.b16 %v4307
    %v4484 = vpack.c.b16 %v4454, %v4452
    %v4485 = vpack.c.b16 %v4455, %v4453
    %v4486 = vpack.c.b16 %v4458, %v4456
    %v4487 = vpack.c.b16 %v4459, %v4457
    %v4488 = vpack.c.b16 %v4462, %v4460
    %v4489 = vpack.c.b16 %v4463, %v4461
    %v4490 = vpack.c.b16 %v4466, %v4464
    %v4491 = vpack.c.b16 %v4467, %v4465
    %v4492 = vpack.c.b16 %v4470, %v4468
    %v4493 = vpack.c.b16 %v4471, %v4469
    %v4494 = vpack.c.b16 %v4474, %v4472
    %v4495 = vpack.c.b16 %v4475, %v4473
    %v4496 = vpack.c.b16 %v4478, %v4476
    %v4497 = vpack.c.b16 %v4479, %v4477
    %v4498 = vpack.c.b16 %v4482, %v4480
    %v4499 = vpack.c.b16 %v4483, %v4481
    %4516 = vmatpush.bf16.msra.mxu0 %v4498
    %4517 = vmatpush.bf16.msra.mxu0 %v4496
    %4518 = vmatpush.bf16.msra.mxu0 %v4494
    %4519 = vmatpush.bf16.msra.mxu0 %v4492
    %4520 = vmatpush.bf16.msra.mxu0 %v4490
    %4521 = vmatpush.bf16.msra.mxu0 %v4488
    %4522 = vmatpush.bf16.msra.mxu0 %v4486
    %4523 = vmatpush.bf16.msra.mxu0 %v4484
    %4524 = vmatmul.bf16.gmra.mxu0 %v4429
    %v4525 = vpop.f32.mrf.mxu0
    %v4526 = vadd.f32 %v4432, %v4525
    %v4527 = vpop.f32.mrf.mxu0
    %v4528 = vadd.f32 %v4432, %v4527
    %4529 = vmatmul.bf16.gmra.mxu0 %v4430
    %v4530 = vpop.f32.mrf.mxu0
    %v4531 = vadd.f32 %v4432, %v4530
    %v4532 = vpop.f32.mrf.mxu0
    %v4533 = vadd.f32 %v4432, %v4532
    %4534 = vdwg.mxu0
    %4535 = vmatpush.bf16.msra.mxu0 %v4499
    %4536 = vmatpush.bf16.msra.mxu0 %v4497
    %4537 = vmatpush.bf16.msra.mxu0 %v4495
    %4538 = vmatpush.bf16.msra.mxu0 %v4493
    %4539 = vmatpush.bf16.msra.mxu0 %v4491
    %4540 = vmatpush.bf16.msra.mxu0 %v4489
    %4541 = vmatpush.bf16.msra.mxu0 %v4487
    %4542 = vmatpush.bf16.msra.mxu0 %v4485
    %4543 = vmatmul.bf16.gmra.mxu0 %v4429
    %v4544 = vpop.f32.mrf.mxu0
    %v4545 = vadd.f32 %v4433, %v4544
    %v4546 = vpop.f32.mrf.mxu0
    %v4547 = vadd.f32 %v4433, %v4546
    %4548 = vmatmul.bf16.gmra.mxu0 %v4430
    %v4549 = vpop.f32.mrf.mxu0
    %v4550 = vadd.f32 %v4433, %v4549
    %v4551 = vpop.f32.mrf.mxu0
    %v4552 = vadd.f32 %v4433, %v4551
    %4553 = vdwg.mxu0
    %v4554 = vmax.f32 %v4526, 0.0
    %v4555 = vmax.f32 %v4545, 0.0
    %v4556 = vmax.f32 %v4528, 0.0
    %v4557 = vmax.f32 %v4547, 0.0
    %v4558 = vmax.f32 %v4531, 0.0
    %v4559 = vmax.f32 %v4550, 0.0
    %v4560 = vmax.f32 %v4533, 0.0
    %v4561 = vmax.f32 %v4552, 0.0
    %s4562 = scalar_lea.vmem [#allocation6], 80
    %4563 = vst [vmem:[%s4562] sm:$0xff] %v4554
    %4564 = vst [vmem:[%s4562 + $0x8] sm:$0xff] %v4555
    %4565 = vst [vmem:[%s4562 + $0x10] sm:$0xff] %v4556
    %4566 = vst [vmem:[%s4562 + $0x18] sm:$0xff] %v4557
    %4567 = vst [vmem:[%s4562 + $0x40] sm:$0xff] %v4558
    %4568 = vst [vmem:[%s4562 + $0x48] sm:$0xff] %v4559
    %4569 = vst [vmem:[%s4562 + $0x50] sm:$0xff] %v4560
    %4570 = vst [vmem:[%s4562 + $0x58] sm:$0xff] %v4561
    %v4571 = vld [vmem:[#allocation24] sm:$0x77]
    %v4572 = vld [vmem:[#allocation24 + $0x8] sm:$0x77]
    %v4573 = vld [vmem:[#allocation24 + $0x10] sm:$0x77]
    %v4574 = vld [vmem:[#allocation25] sm:$0xff]
    %v4575 = vld [vmem:[#allocation25 + $0x8] sm:$0xff]
    %v4576 = vld [vmem:[#allocation25 + $0x10] sm:$0xff]
    %v4577 = vld [vmem:[#allocation25 + $0x18] sm:$0xff]
    %v4578 = vld [vmem:[#allocation25 + $0x20] sm:$0xff]
    %v4579 = vld [vmem:[#allocation25 + $0x28] sm:$0xff]
    %v4580 = vld [vmem:[#allocation25 + $0x30] sm:$0xff]
    %v4581 = vld [vmem:[#allocation25 + $0x38] sm:$0xff]
    %v4582 = vld [vmem:[#allocation25 + $0x40] sm:$0xff]
    %v4583 = vld [vmem:[#allocation25 + $0x48] sm:$0xff]
    %v4584 = vld [vmem:[#allocation25 + $0x50] sm:$0xff]
    %v4585 = vld [vmem:[#allocation25 + $0x58] sm:$0xff]
    %v4586 = vld [vmem:[#allocation25 + $0x60] sm:$0xff]
    %v4587 = vld [vmem:[#allocation25 + $0x68] sm:$0xff]
    %v4588 = vld [vmem:[#allocation25 + $0x70] sm:$0xff]
    %v4589 = vld [vmem:[#allocation25 + $0x78] sm:$0xff]
    %v4590 = vld [vmem:[#allocation25 + $0x80] sm:$0xff]
    %v4591 = vld [vmem:[#allocation25 + $0x88] sm:$0xff]
    %v4592 = vld [vmem:[#allocation25 + $0x90] sm:$0xff]
    %v4593 = vld [vmem:[#allocation25 + $0x98] sm:$0xff]
    %v4594 = vld [vmem:[#allocation25 + $0xa0] sm:$0xff]
    %v4595 = vld [vmem:[#allocation25 + $0xa8] sm:$0xff]
    %v4596 = vld [vmem:[#allocation25 + $0xb0] sm:$0xff]
    %v4597 = vld [vmem:[#allocation25 + $0xb8] sm:$0xff]
    %v4598 = vld [vmem:[#allocation25 + $0xc0] sm:$0xff]
    %v4599 = vld [vmem:[#allocation25 + $0xc8] sm:$0xff]
    %v4600 = vld [vmem:[#allocation25 + $0xd0] sm:$0xff]
    %v4601 = vld [vmem:[#allocation25 + $0xd8] sm:$0xff]
    %v4602 = vld [vmem:[#allocation25 + $0xe0] sm:$0xff]
    %v4603 = vld [vmem:[#allocation25 + $0xe8] sm:$0xff]
    %v4604 = vld [vmem:[#allocation25 + $0xf0] sm:$0xff]
    %v4605 = vld [vmem:[#allocation25 + $0xf8] sm:$0xff]
    %v4606 = vld [vmem:[%s17] sm:$0x3]
    %v4607 = vld [vmem:[#allocation6] sm:$0xff]
    %v4608 = vld [vmem:[#allocation6 + $0x8] sm:$0xff]
    %v4609 = vld [vmem:[#allocation6 + $0x10] sm:$0xff]
    %v4610 = vld [vmem:[#allocation6 + $0x18] sm:$0xff]
    %v4611 = vld [vmem:[#allocation6 + $0x40] sm:$0xff]
    %v4612 = vld [vmem:[#allocation6 + $0x48] sm:$0xff]
    %v4613 = vld [vmem:[#allocation6 + $0x50] sm:$0xff]
    %v4614 = vld [vmem:[#allocation6 + $0x58] sm:$0xff]
    %v4616 = vperm.slane %v4571, 0
    %v4617 = vperm.slane %v4571, 4
    %v4620 = vperm.slane %v4616, 0
    %v4621 = vperm.slane %v4617, 0
    %v4622 = vmul.f32 %v4607, %v4620
    %v4623 = vmul.f32 %v4608, %v4621
    %v4624 = vmul.f32 %v4609, %v4620
    %v4625 = vmul.f32 %v4610, %v4621
    %v4626 = vmul.f32 %v4611, %v4620
    %v4627 = vmul.f32 %v4612, %v4621
    %v4628 = vmul.f32 %v4613, %v4620
    %v4629 = vmul.f32 %v4614, %v4621
    %s4630 = scalar_lea.vmem [#allocation6], 16
    %v4631 = vld [vmem:[%s4630] sm:$0xff]
    %v4632 = vld [vmem:[%s4630 + $0x8] sm:$0xff]
    %v4633 = vld [vmem:[%s4630 + $0x10] sm:$0xff]
    %v4634 = vld [vmem:[%s4630 + $0x18] sm:$0xff]
    %v4635 = vld [vmem:[%s4630 + $0x40] sm:$0xff]
    %v4636 = vld [vmem:[%s4630 + $0x48] sm:$0xff]
    %v4637 = vld [vmem:[%s4630 + $0x50] sm:$0xff]
    %v4638 = vld [vmem:[%s4630 + $0x58] sm:$0xff]
    %v4639 = vperm.slane %v4571, 1
    %v4640 = vperm.slane %v4571, 5
    %v4643 = vperm.slane %v4639, 1
    %v4644 = vperm.slane %v4640, 1
    %v4645 = vmul.f32 %v4631, %v4643
    %v4646 = vmul.f32 %v4632, %v4644
    %v4647 = vmul.f32 %v4633, %v4643
    %v4648 = vmul.f32 %v4634, %v4644
    %v4649 = vmul.f32 %v4635, %v4643
    %v4650 = vmul.f32 %v4636, %v4644
    %v4651 = vmul.f32 %v4637, %v4643
    %v4652 = vmul.f32 %v4638, %v4644
    %v4653 = vadd.f32 %v4622, %v4645
    %v4654 = vadd.f32 %v4623, %v4646
    %v4655 = vadd.f32 %v4624, %v4647
    %v4656 = vadd.f32 %v4625, %v4648
    %v4657 = vadd.f32 %v4626, %v4649
    %v4658 = vadd.f32 %v4627, %v4650
    %v4659 = vadd.f32 %v4628, %v4651
    %v4660 = vadd.f32 %v4629, %v4652
    %s4661 = scalar_lea.vmem [#allocation6], 32
    %v4662 = vld [vmem:[%s4661] sm:$0xff]
    %v4663 = vld [vmem:[%s4661 + $0x8] sm:$0xff]
    %v4664 = vld [vmem:[%s4661 + $0x10] sm:$0xff]
    %v4665 = vld [vmem:[%s4661 + $0x18] sm:$0xff]
    %v4666 = vld [vmem:[%s4661 + $0x40] sm:$0xff]
    %v4667 = vld [vmem:[%s4661 + $0x48] sm:$0xff]
    %v4668 = vld [vmem:[%s4661 + $0x50] sm:$0xff]
    %v4669 = vld [vmem:[%s4661 + $0x58] sm:$0xff]
    %v4670 = vperm.slane %v4571, 2
    %v4671 = vperm.slane %v4571, 6
    %v4674 = vperm.slane %v4670, 2
    %v4675 = vperm.slane %v4671, 2
    %v4676 = vmul.f32 %v4662, %v4674
    %v4677 = vmul.f32 %v4663, %v4675
    %v4678 = vmul.f32 %v4664, %v4674
    %v4679 = vmul.f32 %v4665, %v4675
    %v4680 = vmul.f32 %v4666, %v4674
    %v4681 = vmul.f32 %v4667, %v4675
    %v4682 = vmul.f32 %v4668, %v4674
    %v4683 = vmul.f32 %v4669, %v4675
    %v4684 = vadd.f32 %v4653, %v4676
    %v4685 = vadd.f32 %v4654, %v4677
    %v4686 = vadd.f32 %v4655, %v4678
    %v4687 = vadd.f32 %v4656, %v4679
    %v4688 = vadd.f32 %v4657, %v4680
    %v4689 = vadd.f32 %v4658, %v4681
    %v4690 = vadd.f32 %v4659, %v4682
    %v4691 = vadd.f32 %v4660, %v4683
    %s4692 = scalar_lea.vmem [#allocation6], 64
    %v4693 = vld [vmem:[%s4692] sm:$0xff]
    %v4694 = vld [vmem:[%s4692 + $0x8] sm:$0xff]
    %v4695 = vld [vmem:[%s4692 + $0x10] sm:$0xff]
    %v4696 = vld [vmem:[%s4692 + $0x18] sm:$0xff]
    %v4697 = vld [vmem:[%s4692 + $0x40] sm:$0xff]
    %v4698 = vld [vmem:[%s4692 + $0x48] sm:$0xff]
    %v4699 = vld [vmem:[%s4692 + $0x50] sm:$0xff]
    %v4700 = vld [vmem:[%s4692 + $0x58] sm:$0xff]
    %v4702 = vperm.slane %v4572, 0
    %v4703 = vperm.slane %v4572, 4
    %v4706 = vperm.slane %v4702, 0
    %v4707 = vperm.slane %v4703, 0
    %v4708 = vmul.f32 %v4693, %v4706
    %v4709 = vmul.f32 %v4694, %v4707
    %v4710 = vmul.f32 %v4695, %v4706
    %v4711 = vmul.f32 %v4696, %v4707
    %v4712 = vmul.f32 %v4697, %v4706
    %v4713 = vmul.f32 %v4698, %v4707
    %v4714 = vmul.f32 %v4699, %v4706
    %v4715 = vmul.f32 %v4700, %v4707
    %v4716 = vadd.f32 %v4684, %v4708
    %v4717 = vadd.f32 %v4685, %v4709
    %v4718 = vadd.f32 %v4686, %v4710
    %v4719 = vadd.f32 %v4687, %v4711
    %v4720 = vadd.f32 %v4688, %v4712
    %v4721 = vadd.f32 %v4689, %v4713
    %v4722 = vadd.f32 %v4690, %v4714
    %v4723 = vadd.f32 %v4691, %v4715
    %v4724 = vld [vmem:[%s4562] sm:$0xff]
    %v4725 = vld [vmem:[%s4562 + $0x8] sm:$0xff]
    %v4726 = vld [vmem:[%s4562 + $0x10] sm:$0xff]
    %v4727 = vld [vmem:[%s4562 + $0x18] sm:$0xff]
    %v4728 = vld [vmem:[%s4562 + $0x40] sm:$0xff]
    %v4729 = vld [vmem:[%s4562 + $0x48] sm:$0xff]
    %v4730 = vld [vmem:[%s4562 + $0x50] sm:$0xff]
    %v4731 = vld [vmem:[%s4562 + $0x58] sm:$0xff]
    %v4732 = vperm.slane %v4572, 1
    %v4733 = vperm.slane %v4572, 5
    %v4736 = vperm.slane %v4732, 1
    %v4737 = vperm.slane %v4733, 1
    %v4738 = vmul.f32 %v4724, %v4736
    %v4739 = vmul.f32 %v4725, %v4737
    %v4740 = vmul.f32 %v4726, %v4736
    %v4741 = vmul.f32 %v4727, %v4737
    %v4742 = vmul.f32 %v4728, %v4736
    %v4743 = vmul.f32 %v4729, %v4737
    %v4744 = vmul.f32 %v4730, %v4736
    %v4745 = vmul.f32 %v4731, %v4737
    %v4746 = vadd.f32 %v4716, %v4738
    %v4747 = vadd.f32 %v4717, %v4739
    %v4748 = vadd.f32 %v4718, %v4740
    %v4749 = vadd.f32 %v4719, %v4741
    %v4750 = vadd.f32 %v4720, %v4742
    %v4751 = vadd.f32 %v4721, %v4743
    %v4752 = vadd.f32 %v4722, %v4744
    %v4753 = vadd.f32 %v4723, %v4745
    %s4754 = scalar_lea.vmem [#allocation6], 96
    %v4755 = vld [vmem:[%s4754] sm:$0xff]
    %v4756 = vld [vmem:[%s4754 + $0x8] sm:$0xff]
    %v4757 = vld [vmem:[%s4754 + $0x10] sm:$0xff]
    %v4758 = vld [vmem:[%s4754 + $0x18] sm:$0xff]
    %v4759 = vld [vmem:[%s4754 + $0x40] sm:$0xff]
    %v4760 = vld [vmem:[%s4754 + $0x48] sm:$0xff]
    %v4761 = vld [vmem:[%s4754 + $0x50] sm:$0xff]
    %v4762 = vld [vmem:[%s4754 + $0x58] sm:$0xff]
    %v4763 = vperm.slane %v4572, 2
    %v4764 = vperm.slane %v4572, 6
    %v4767 = vperm.slane %v4763, 2
    %v4768 = vperm.slane %v4764, 2
    %v4769 = vmul.f32 %v4755, %v4767
    %v4770 = vmul.f32 %v4756, %v4768
    %v4771 = vmul.f32 %v4757, %v4767
    %v4772 = vmul.f32 %v4758, %v4768
    %v4773 = vmul.f32 %v4759, %v4767
    %v4774 = vmul.f32 %v4760, %v4768
    %v4775 = vmul.f32 %v4761, %v4767
    %v4776 = vmul.f32 %v4762, %v4768
    %v4777 = vadd.f32 %v4746, %v4769
    %v4778 = vadd.f32 %v4747, %v4770
    %v4779 = vadd.f32 %v4748, %v4771
    %v4780 = vadd.f32 %v4749, %v4772
    %v4781 = vadd.f32 %v4750, %v4773
    %v4782 = vadd.f32 %v4751, %v4774
    %v4783 = vadd.f32 %v4752, %v4775
    %v4784 = vadd.f32 %v4753, %v4776
    %s4785 = scalar_lea.vmem [#allocation6], 128
    %v4786 = vld [vmem:[%s4785] sm:$0xff]
    %v4787 = vld [vmem:[%s4785 + $0x8] sm:$0xff]
    %v4788 = vld [vmem:[%s4785 + $0x10] sm:$0xff]
    %v4789 = vld [vmem:[%s4785 + $0x18] sm:$0xff]
    %v4790 = vld [vmem:[%s4785 + $0x40] sm:$0xff]
    %v4791 = vld [vmem:[%s4785 + $0x48] sm:$0xff]
    %v4792 = vld [vmem:[%s4785 + $0x50] sm:$0xff]
    %v4793 = vld [vmem:[%s4785 + $0x58] sm:$0xff]
    %v4795 = vperm.slane %v4573, 0
    %v4796 = vperm.slane %v4573, 4
    %v4799 = vperm.slane %v4795, 0
    %v4800 = vperm.slane %v4796, 0
    %v4801 = vmul.f32 %v4786, %v4799
    %v4802 = vmul.f32 %v4787, %v4800
    %v4803 = vmul.f32 %v4788, %v4799
    %v4804 = vmul.f32 %v4789, %v4800
    %v4805 = vmul.f32 %v4790, %v4799
    %v4806 = vmul.f32 %v4791, %v4800
    %v4807 = vmul.f32 %v4792, %v4799
    %v4808 = vmul.f32 %v4793, %v4800
    %v4809 = vadd.f32 %v4777, %v4801
    %v4810 = vadd.f32 %v4778, %v4802
    %v4811 = vadd.f32 %v4779, %v4803
    %v4812 = vadd.f32 %v4780, %v4804
    %v4813 = vadd.f32 %v4781, %v4805
    %v4814 = vadd.f32 %v4782, %v4806
    %v4815 = vadd.f32 %v4783, %v4807
    %v4816 = vadd.f32 %v4784, %v4808
    %s4817 = scalar_lea.vmem [#allocation6], 144
    %v4818 = vld [vmem:[%s4817] sm:$0xff]
    %v4819 = vld [vmem:[%s4817 + $0x8] sm:$0xff]
    %v4820 = vld [vmem:[%s4817 + $0x10] sm:$0xff]
    %v4821 = vld [vmem:[%s4817 + $0x18] sm:$0xff]
    %v4822 = vld [vmem:[%s4817 + $0x40] sm:$0xff]
    %v4823 = vld [vmem:[%s4817 + $0x48] sm:$0xff]
    %v4824 = vld [vmem:[%s4817 + $0x50] sm:$0xff]
    %v4825 = vld [vmem:[%s4817 + $0x58] sm:$0xff]
    %v4826 = vperm.slane %v4573, 1
    %v4827 = vperm.slane %v4573, 5
    %v4830 = vperm.slane %v4826, 1
    %v4831 = vperm.slane %v4827, 1
    %v4832 = vmul.f32 %v4818, %v4830
    %v4833 = vmul.f32 %v4819, %v4831
    %v4834 = vmul.f32 %v4820, %v4830
    %v4835 = vmul.f32 %v4821, %v4831
    %v4836 = vmul.f32 %v4822, %v4830
    %v4837 = vmul.f32 %v4823, %v4831
    %v4838 = vmul.f32 %v4824, %v4830
    %v4839 = vmul.f32 %v4825, %v4831
    %v4840 = vadd.f32 %v4809, %v4832
    %v4841 = vadd.f32 %v4810, %v4833
    %v4842 = vadd.f32 %v4811, %v4834
    %v4843 = vadd.f32 %v4812, %v4835
    %v4844 = vadd.f32 %v4813, %v4836
    %v4845 = vadd.f32 %v4814, %v4837
    %v4846 = vadd.f32 %v4815, %v4838
    %v4847 = vadd.f32 %v4816, %v4839
    %s4848 = scalar_lea.vmem [#allocation6], 160
    %v4849 = vld [vmem:[%s4848] sm:$0xff]
    %v4850 = vld [vmem:[%s4848 + $0x8] sm:$0xff]
    %v4851 = vld [vmem:[%s4848 + $0x10] sm:$0xff]
    %v4852 = vld [vmem:[%s4848 + $0x18] sm:$0xff]
    %v4853 = vld [vmem:[%s4848 + $0x40] sm:$0xff]
    %v4854 = vld [vmem:[%s4848 + $0x48] sm:$0xff]
    %v4855 = vld [vmem:[%s4848 + $0x50] sm:$0xff]
    %v4856 = vld [vmem:[%s4848 + $0x58] sm:$0xff]
    %v4857 = vperm.slane %v4573, 2
    %v4858 = vperm.slane %v4573, 6
    %v4861 = vperm.slane %v4857, 2
    %v4862 = vperm.slane %v4858, 2
    %v4863 = vmul.f32 %v4849, %v4861
    %v4864 = vmul.f32 %v4850, %v4862
    %v4865 = vmul.f32 %v4851, %v4861
    %v4866 = vmul.f32 %v4852, %v4862
    %v4867 = vmul.f32 %v4853, %v4861
    %v4868 = vmul.f32 %v4854, %v4862
    %v4869 = vmul.f32 %v4855, %v4861
    %v4870 = vmul.f32 %v4856, %v4862
    %v4871 = vadd.f32 %v4840, %v4863
    %v4872 = vadd.f32 %v4841, %v4864
    %v4873 = vadd.f32 %v4842, %v4865
    %v4874 = vadd.f32 %v4843, %v4866
    %v4875 = vadd.f32 %v4844, %v4867
    %v4876 = vadd.f32 %v4845, %v4868
    %v4877 = vadd.f32 %v4846, %v4869
    %v4878 = vadd.f32 %v4847, %v4870
    %v4879 = vpack.c.bf16 %v4873, %v4871
    %v4880 = vpack.c.bf16 %v4874, %v4872
    %v4881 = vpack.c.bf16 %v4877, %v4875
    %v4882 = vpack.c.bf16 %v4878, %v4876
    %v4884 = vperm.slane %v4606, 0
    %v4885 = vperm.slane %v4606, 1
    %v4920 = vunpack.c.l.b16 %v4574
    %v4921 = vunpack.c.h.b16 %v4574
    %v4922 = vunpack.c.l.b16 %v4575
    %v4923 = vunpack.c.h.b16 %v4575
    %v4924 = vunpack.c.l.b16 %v4576
    %v4925 = vunpack.c.h.b16 %v4576
    %v4926 = vunpack.c.l.b16 %v4577
    %v4927 = vunpack.c.h.b16 %v4577
    %v4928 = vunpack.c.l.b16 %v4578
    %v4929 = vunpack.c.h.b16 %v4578
    %v4930 = vunpack.c.l.b16 %v4579
    %v4931 = vunpack.c.h.b16 %v4579
    %v4932 = vunpack.c.l.b16 %v4580
    %v4933 = vunpack.c.h.b16 %v4580
    %v4934 = vunpack.c.l.b16 %v4581
    %v4935 = vunpack.c.h.b16 %v4581
    %v4936 = vunpack.c.l.b16 %v4582
    %v4937 = vunpack.c.h.b16 %v4582
    %v4938 = vunpack.c.l.b16 %v4583
    %v4939 = vunpack.c.h.b16 %v4583
    %v4940 = vunpack.c.l.b16 %v4584
    %v4941 = vunpack.c.h.b16 %v4584
    %v4942 = vunpack.c.l.b16 %v4585
    %v4943 = vunpack.c.h.b16 %v4585
    %v4944 = vunpack.c.l.b16 %v4586
    %v4945 = vunpack.c.h.b16 %v4586
    %v4946 = vunpack.c.l.b16 %v4587
    %v4947 = vunpack.c.h.b16 %v4587
    %v4948 = vunpack.c.l.b16 %v4588
    %v4949 = vunpack.c.h.b16 %v4588
    %v4950 = vunpack.c.l.b16 %v4589
    %v4951 = vunpack.c.h.b16 %v4589
    %v4952 = vunpack.c.l.b16 %v4590
    %v4953 = vunpack.c.h.b16 %v4590
    %v4954 = vunpack.c.l.b16 %v4591
    %v4955 = vunpack.c.h.b16 %v4591
    %v4956 = vunpack.c.l.b16 %v4592
    %v4957 = vunpack.c.h.b16 %v4592
    %v4958 = vunpack.c.l.b16 %v4593
    %v4959 = vunpack.c.h.b16 %v4593
    %v4960 = vunpack.c.l.b16 %v4594
    %v4961 = vunpack.c.h.b16 %v4594
    %v4962 = vunpack.c.l.b16 %v4595
    %v4963 = vunpack.c.h.b16 %v4595
    %v4964 = vunpack.c.l.b16 %v4596
    %v4965 = vunpack.c.h.b16 %v4596
    %v4966 = vunpack.c.l.b16 %v4597
    %v4967 = vunpack.c.h.b16 %v4597
    %v4968 = vunpack.c.l.b16 %v4598
    %v4969 = vunpack.c.h.b16 %v4598
    %v4970 = vunpack.c.l.b16 %v4599
    %v4971 = vunpack.c.h.b16 %v4599
    %v4972 = vunpack.c.l.b16 %v4600
    %v4973 = vunpack.c.h.b16 %v4600
    %v4974 = vunpack.c.l.b16 %v4601
    %v4975 = vunpack.c.h.b16 %v4601
    %v4976 = vunpack.c.l.b16 %v4602
    %v4977 = vunpack.c.h.b16 %v4602
    %v4978 = vunpack.c.l.b16 %v4603
    %v4979 = vunpack.c.h.b16 %v4603
    %v4980 = vunpack.c.l.b16 %v4604
    %v4981 = vunpack.c.h.b16 %v4604
    %v4982 = vunpack.c.l.b16 %v4605
    %v4983 = vunpack.c.h.b16 %v4605
    %v4984 = vpack.c.b16 %v4922, %v4920
    %v4985 = vpack.c.b16 %v4923, %v4921
    %v4986 = vpack.c.b16 %v4926, %v4924
    %v4987 = vpack.c.b16 %v4927, %v4925
    %v4988 = vpack.c.b16 %v4930, %v4928
    %v4989 = vpack.c.b16 %v4931, %v4929
    %v4990 = vpack.c.b16 %v4934, %v4932
    %v4991 = vpack.c.b16 %v4935, %v4933
    %v4992 = vpack.c.b16 %v4938, %v4936
    %v4993 = vpack.c.b16 %v4939, %v4937
    %v4994 = vpack.c.b16 %v4942, %v4940
    %v4995 = vpack.c.b16 %v4943, %v4941
    %v4996 = vpack.c.b16 %v4946, %v4944
    %v4997 = vpack.c.b16 %v4947, %v4945
    %v4998 = vpack.c.b16 %v4950, %v4948
    %v4999 = vpack.c.b16 %v4951, %v4949
    %v5000 = vpack.c.b16 %v4954, %v4952
    %v5001 = vpack.c.b16 %v4955, %v4953
    %v5002 = vpack.c.b16 %v4958, %v4956
    %v5003 = vpack.c.b16 %v4959, %v4957
    %v5004 = vpack.c.b16 %v4962, %v4960
    %v5005 = vpack.c.b16 %v4963, %v4961
    %v5006 = vpack.c.b16 %v4966, %v4964
    %v5007 = vpack.c.b16 %v4967, %v4965
    %v5008 = vpack.c.b16 %v4970, %v4968
    %v5009 = vpack.c.b16 %v4971, %v4969
    %v5010 = vpack.c.b16 %v4974, %v4972
    %v5011 = vpack.c.b16 %v4975, %v4973
    %v5012 = vpack.c.b16 %v4978, %v4976
    %v5013 = vpack.c.b16 %v4979, %v4977
    %v5014 = vpack.c.b16 %v4982, %v4980
    %v5015 = vpack.c.b16 %v4983, %v4981
    %5048 = vmatpush.bf16.msra.mxu0 %v4998
    %5049 = vmatpush.bf16.msra.mxu0 %v4996
    %5050 = vmatpush.bf16.msra.mxu0 %v4994
    %5051 = vmatpush.bf16.msra.mxu0 %v4992
    %5052 = vmatpush.bf16.msra.mxu0 %v4990
    %5053 = vmatpush.bf16.msra.mxu0 %v4988
    %5054 = vmatpush.bf16.msra.mxu0 %v4986
    %5055 = vmatpush.bf16.msra.mxu0 %v4984
    %5056 = vmatmul.bf16.gmra.mxu0 %v4879
    %v5057 = vpop.f32.mrf.mxu0
    %v5058 = vadd.f32 %v4884, %v5057
    %v5059 = vpop.f32.mrf.mxu0
    %v5060 = vadd.f32 %v4884, %v5059
    %5061 = vmatmul.bf16.gmra.mxu0 %v4881
    %v5062 = vpop.f32.mrf.mxu0
    %v5063 = vadd.f32 %v4884, %v5062
    %v5064 = vpop.f32.mrf.mxu0
    %v5065 = vadd.f32 %v4884, %v5064
    %5066 = vdwg.mxu0
    %5067 = vmatpush.bf16.msra.mxu0 %v5014
    %5068 = vmatpush.bf16.msra.mxu0 %v5012
    %5069 = vmatpush.bf16.msra.mxu0 %v5010
    %5070 = vmatpush.bf16.msra.mxu0 %v5008
    %5071 = vmatpush.bf16.msra.mxu0 %v5006
    %5072 = vmatpush.bf16.msra.mxu0 %v5004
    %5073 = vmatpush.bf16.msra.mxu0 %v5002
    %5074 = vmatpush.bf16.msra.mxu0 %v5000
    %5075 = vmatmul.bf16.gmra.mxu0 %v4880
    %v5076 = vpop.f32.mrf.mxu0
    %v5077 = vadd.f32 %v5058, %v5076
    %v5078 = vpop.f32.mrf.mxu0
    %v5079 = vadd.f32 %v5060, %v5078
    %5080 = vmatmul.bf16.gmra.mxu0 %v4882
    %v5081 = vpop.f32.mrf.mxu0
    %v5082 = vadd.f32 %v5063, %v5081
    %v5083 = vpop.f32.mrf.mxu0
    %v5084 = vadd.f32 %v5065, %v5083
    %5085 = vdwg.mxu0
    %5086 = vmatpush.bf16.msra.mxu0 %v4999
    %5087 = vmatpush.bf16.msra.mxu0 %v4997
    %5088 = vmatpush.bf16.msra.mxu0 %v4995
    %5089 = vmatpush.bf16.msra.mxu0 %v4993
    %5090 = vmatpush.bf16.msra.mxu0 %v4991
    %5091 = vmatpush.bf16.msra.mxu0 %v4989
    %5092 = vmatpush.bf16.msra.mxu0 %v4987
    %5093 = vmatpush.bf16.msra.mxu0 %v4985
    %5094 = vmatmul.bf16.gmra.mxu0 %v4879
    %v5095 = vpop.f32.mrf.mxu0
    %v5096 = vadd.f32 %v4885, %v5095
    %v5097 = vpop.f32.mrf.mxu0
    %v5098 = vadd.f32 %v4885, %v5097
    %5099 = vmatmul.bf16.gmra.mxu0 %v4881
    %v5100 = vpop.f32.mrf.mxu0
    %v5101 = vadd.f32 %v4885, %v5100
    %v5102 = vpop.f32.mrf.mxu0
    %v5103 = vadd.f32 %v4885, %v5102
    %5104 = vdwg.mxu0
    %5105 = vmatpush.bf16.msra.mxu0 %v5015
    %5106 = vmatpush.bf16.msra.mxu0 %v5013
    %5107 = vmatpush.bf16.msra.mxu0 %v5011
    %5108 = vmatpush.bf16.msra.mxu0 %v5009
    %5109 = vmatpush.bf16.msra.mxu0 %v5007
    %5110 = vmatpush.bf16.msra.mxu0 %v5005
    %5111 = vmatpush.bf16.msra.mxu0 %v5003
    %5112 = vmatpush.bf16.msra.mxu0 %v5001
    %5113 = vmatmul.bf16.gmra.mxu0 %v4880
    %v5114 = vpop.f32.mrf.mxu0
    %v5115 = vadd.f32 %v5096, %v5114
    %v5116 = vpop.f32.mrf.mxu0
    %v5117 = vadd.f32 %v5098, %v5116
    %5118 = vmatmul.bf16.gmra.mxu0 %v4882
    %v5119 = vpop.f32.mrf.mxu0
    %v5120 = vadd.f32 %v5101, %v5119
    %v5121 = vpop.f32.mrf.mxu0
    %v5122 = vadd.f32 %v5103, %v5121
    %5123 = vdwg.mxu0
    %v5124 = vmax.f32 %v5077, 0.0
    %v5125 = vmax.f32 %v5115, 0.0
    %v5126 = vmax.f32 %v5079, 0.0
    %v5127 = vmax.f32 %v5117, 0.0
    %v5128 = vmax.f32 %v5082, 0.0
    %v5129 = vmax.f32 %v5120, 0.0
    %v5130 = vmax.f32 %v5084, 0.0
    %v5131 = vmax.f32 %v5122, 0.0
    %v5132 = vadd.f32 %v5124, %v5126
    %v5133 = vadd.f32 %v5132, %v5128
    %v5134 = vadd.f32 %v5133, %v5130
    %v5135 = vadd.f32 %v5125, %v5127
    %v5136 = vadd.f32 %v5135, %v5129
    %v5137 = vadd.f32 %v5136, %v5131
    %v5138 = vmul.f32 %v5134, 0.25
    %v5139 = vmul.f32 %v5137, 0.25
    %v5140 = vpack.c.bf16 %v5138, %v5138
    %v5141 = vpack.c.bf16 %v5139, %v5139
    %v5142 = vld [vmem:[#allocation27] sm:$0xf]
    %v5143 = vld [vmem:[#allocation27 + $0x4] sm:$0xf]
    %v5144 = vld [vmem:[#allocation27 + $0x8] sm:$0xf]
    %v5145 = vld [vmem:[#allocation27 + $0xc] sm:$0xf]
    %v5146 = vld [vmem:[#allocation27 + $0x10] sm:$0xf]
    %v5147 = vld [vmem:[#allocation27 + $0x14] sm:$0xf]
    %v5148 = vld [vmem:[#allocation27 + $0x18] sm:$0xf]
    %v5149 = vld [vmem:[#allocation27 + $0x1c] sm:$0xf]
    %v5150 = vld [vmem:[#allocation27 + $0x20] sm:$0xf]
    %v5151 = vld [vmem:[#allocation27 + $0x24] sm:$0xf]
    %v5152 = vld [vmem:[#allocation27 + $0x28] sm:$0xf]
    %v5153 = vld [vmem:[#allocation27 + $0x2c] sm:$0xf]
    %v5154 = vld [vmem:[#allocation27 + $0x30] sm:$0xf]
    %v5155 = vld [vmem:[#allocation27 + $0x34] sm:$0xf]
    %v5156 = vld [vmem:[#allocation27 + $0x38] sm:$0xf]
    %v5157 = vld [vmem:[#allocation27 + $0x3c] sm:$0xf]
    %v5158 = vld [vmem:[#allocation27 + $0x40] sm:$0xf]
    %v5159 = vld [vmem:[#allocation27 + $0x44] sm:$0xf]
    %v5160 = vld [vmem:[#allocation27 + $0x48] sm:$0xf]
    %v5161 = vld [vmem:[#allocation27 + $0x4c] sm:$0xf]
    %v5162 = vld [vmem:[#allocation27 + $0x50] sm:$0xf]
    %v5163 = vld [vmem:[#allocation27 + $0x54] sm:$0xf]
    %v5164 = vld [vmem:[#allocation27 + $0x58] sm:$0xf]
    %v5165 = vld [vmem:[#allocation27 + $0x5c] sm:$0xf]
    %v5166 = vld [vmem:[#allocation27 + $0x60] sm:$0xf]
    %v5167 = vld [vmem:[#allocation27 + $0x64] sm:$0xf]
    %v5168 = vld [vmem:[#allocation27 + $0x68] sm:$0xf]
    %v5169 = vld [vmem:[#allocation27 + $0x6c] sm:$0xf]
    %v5170 = vld [vmem:[#allocation27 + $0x70] sm:$0xf]
    %v5171 = vld [vmem:[#allocation27 + $0x74] sm:$0xf]
    %v5172 = vld [vmem:[#allocation27 + $0x78] sm:$0xf]
    %v5173 = vld [vmem:[#allocation27 + $0x7c] sm:$0xf]
    %v5174 = vld [vmem:[%s19] sm:$0x1]
    %v5176 = vperm.slane %v5174, 0
    %v5210 = vunpack.c.l.b16 %v5142
    %v5211 = vunpack.c.l.b16 %v5143
    %v5212 = vunpack.c.l.b16 %v5144
    %v5213 = vunpack.c.l.b16 %v5145
    %v5214 = vunpack.c.l.b16 %v5146
    %v5215 = vunpack.c.l.b16 %v5147
    %v5216 = vunpack.c.l.b16 %v5148
    %v5217 = vunpack.c.l.b16 %v5149
    %v5218 = vunpack.c.l.b16 %v5150
    %v5219 = vunpack.c.l.b16 %v5151
    %v5220 = vunpack.c.l.b16 %v5152
    %v5221 = vunpack.c.l.b16 %v5153
    %v5222 = vunpack.c.l.b16 %v5154
    %v5223 = vunpack.c.l.b16 %v5155
    %v5224 = vunpack.c.l.b16 %v5156
    %v5225 = vunpack.c.l.b16 %v5157
    %v5226 = vunpack.c.l.b16 %v5158
    %v5227 = vunpack.c.l.b16 %v5159
    %v5228 = vunpack.c.l.b16 %v5160
    %v5229 = vunpack.c.l.b16 %v5161
    %v5230 = vunpack.c.l.b16 %v5162
    %v5231 = vunpack.c.l.b16 %v5163
    %v5232 = vunpack.c.l.b16 %v5164
    %v5233 = vunpack.c.l.b16 %v5165
    %v5234 = vunpack.c.l.b16 %v5166
    %v5235 = vunpack.c.l.b16 %v5167
    %v5236 = vunpack.c.l.b16 %v5168
    %v5237 = vunpack.c.l.b16 %v5169
    %v5238 = vunpack.c.l.b16 %v5170
    %v5239 = vunpack.c.l.b16 %v5171
    %v5240 = vunpack.c.l.b16 %v5172
    %v5241 = vunpack.c.l.b16 %v5173
    %v5242 = vpack.c.b16 %v5211, %v5210
    %v5243 = vpack.c.b16 %v5213, %v5212
    %v5244 = vpack.c.b16 %v5215, %v5214
    %v5245 = vpack.c.b16 %v5217, %v5216
    %v5246 = vpack.c.b16 %v5219, %v5218
    %v5247 = vpack.c.b16 %v5221, %v5220
    %v5248 = vpack.c.b16 %v5223, %v5222
    %v5249 = vpack.c.b16 %v5225, %v5224
    %v5250 = vpack.c.b16 %v5227, %v5226
    %v5251 = vpack.c.b16 %v5229, %v5228
    %v5252 = vpack.c.b16 %v5231, %v5230
    %v5253 = vpack.c.b16 %v5233, %v5232
    %v5254 = vpack.c.b16 %v5235, %v5234
    %v5255 = vpack.c.b16 %v5237, %v5236
    %v5256 = vpack.c.b16 %v5239, %v5238
    %v5257 = vpack.c.b16 %v5241, %v5240
    %5274 = vmatpush.bf16.msra.mxu0 %v5249
    %5275 = vmatpush.bf16.msra.mxu0 %v5248
    %5276 = vmatpush.bf16.msra.mxu0 %v5247
    %5277 = vmatpush.bf16.msra.mxu0 %v5246
    %5278 = vmatpush.bf16.msra.mxu0 %v5245
    %5279 = vmatpush.bf16.msra.mxu0 %v5244
    %5280 = vmatpush.bf16.msra.mxu0 %v5243
    %5281 = vmatpush.bf16.msra.mxu0 %v5242
    %5282 = vmatmul.bf16.gmra.mxu0 %v5140
    %v5283 = vpop.f32.mrf.mxu0
    %v5284 = vadd.f32 %v5176, %v5283
    %v5285 = vpop.f32.mrf.mxu0
    %5286 = vdwg.mxu0
    %5287 = vmatpush.bf16.msra.mxu0 %v5257
    %5288 = vmatpush.bf16.msra.mxu0 %v5256
    %5289 = vmatpush.bf16.msra.mxu0 %v5255
    %5290 = vmatpush.bf16.msra.mxu0 %v5254
    %5291 = vmatpush.bf16.msra.mxu0 %v5253
    %5292 = vmatpush.bf16.msra.mxu0 %v5252
    %5293 = vmatpush.bf16.msra.mxu0 %v5251
    %5294 = vmatpush.bf16.msra.mxu0 %v5250
    %5295 = vmatmul.bf16.gmra.mxu0 %v5141
    %v5296 = vpop.f32.mrf.mxu0
    %v5297 = vadd.f32 %v5284, %v5296
    %v5298 = vpop.f32.mrf.mxu0
    %5299 = vdwg.mxu0
    %5300 = vst [vmem:[#allocation28] sm:$0xff] %v5297
    // Predicated region
    $region134: #{tpu_custom_call.1} parent=1 // pred_check
      _
    $region135: #{tpu_custom_call.1} parent=1 // pred_check_branch
      %5302 = sbr.rel (0) target = $region137
    $region136: #{tpu_custom_call.1} parent=1 // pred_region
      %5304 = vsyncadd [#allocation9], 0
      %s5306 = sshll.u32 [#allocation28], 4
      %s5307 = int_to_ptr.vmem [resolvable:$true] %s5306
      %s5308 = sshll.u32 %s20, 4
      %s5309 = int_to_ptr.hbm [resolvable:$true] %s5308
      %5311 = dma.vmem_to_hbm [thread:$0]  %s5307, 128, %s5309, [#allocation9]
    $region137: #{tpu_custom_call.1} parent=1 // pred_fallthru
      _
    // Predicated region
    $region138: #{tpu_custom_call.1} parent=1 // pred_check
      _
    $region139: #{tpu_custom_call.1} parent=1 // pred_check_branch
      %5313 = sbr.rel (0) target = $region141
    $region140: #{tpu_custom_call.1} parent=1 // pred_region
      %5315 = dma.done [#allocation9], 128
    $region141: #{tpu_custom_call.1} parent=1 // pred_fallthru
      _
    %5316 = vsyncpa [#allocation8], 1
    %5317 = vsyncpa [#allocation11], 1
    %5318 = vsyncpa [#allocation14], 1
    %5319 = vsyncpa [#allocation17], 1
    %5320 = vsyncpa [#allocation20], 1
    %5321 = vsyncpa [#allocation23], 1
    %5322 = vsyncpa [#allocation26], 1
    %5323 = vsyncpa [#allocation9], 1

</llo_original>
